<compile_context>
chip_gen: v6e
topology: v6e:2x2x1
jax: 0.10.0
libtpu: 0.0.40
codegen_flags: <defaults>
</compile_context>

<pallas_src>
import functools

import jax
import jax.numpy as jnp
from jax import lax
from jax.experimental import pallas as pl
from jax.experimental.pallas import tpu as pltpu

INPUT_SIZE = 80
HIDDEN_DIMS = [1024, 512, 256, 128, 64, 32]
NUM_HIDDEN = len(HIDDEN_DIMS)
OUT_DIM = 1
BN_EPS = 1e-5
NUM_CHUNKS = 2          # independent row sub-chunks per batch tile (ILP for MXU/VPU overlap)


def _pad128(d):
    return ((d + 127) // 128) * 128


# Padded (lane-aligned) fan_in / fan_out per hidden layer.  Layer-0 K stays at 80
# (full last dim of x, multiple of 8) -- no feature padding of the input needed.
IN_PADS = [INPUT_SIZE] + [_pad128(d) for d in HIDDEN_DIMS[:-1]]
OUT_PADS = [_pad128(d) for d in HIDDEN_DIMS]


def mlp_kernel(x_ref, *refs):
    """refs = [w1,b1, ..., w6,b6, w_out8,b_out8, o_ref].

    w* are bf16 (BN folded in), b* are f32.  w_out8 is (8, 128) bf16 with row 0
    holding w_out^T (zero-padded), b_out8 is (8, 1) f32 with row 0 = bias.
    o_ref is an (8, block_n) f32 tile: row 0 = predictions for this batch tile.
    """
    o_ref = refs[-1]
    params = refs[:-1]

    block_n = x_ref.shape[0]
    ch = block_n // NUM_CHUNKS

    # Load + cast both sub-chunks (independent dependence chains from here on).
    hs = [x_ref[c * ch:(c + 1) * ch, :].astype(jnp.bfloat16) for c in range(NUM_CHUNKS)]

    # 6 x (Linear with folded BN -> ReLU); Dropout is identity in eval mode.
    # TODO(synk): training-mode dropout / batch-statistics BN not implemented
    # (inference forward only).
    for layer in range(NUM_HIDDEN):
        w = params[2 * layer][...]          # (in_pad, out_pad) bf16
        b = params[2 * layer + 1][...]      # (1, out_pad) f32
        new_hs = []
        for h in hs:                        # independent chunks -> MXU/VPU overlap
            acc = jnp.dot(h, w, preferred_element_type=jnp.float32)
            acc = jnp.maximum(acc + b, 0.0)             # bias + ReLU in f32 (VPU)
            new_hs.append(acc.astype(jnp.bfloat16))     # bf16 into the next MXU pass
        hs = new_hs

    w_out8 = params[-2][...]                # (8, 128) bf16, row 0 = w_out^T
    b_out8 = params[-1][...]                # (8, 1)  f32,  row 0 = bias
    for c, h in enumerate(hs):
        # (8,128) @ (ch,128)^T -> (8, ch): batch ends up on the lane axis, so the
        # store below is lane-dense along the batch (no 1->128 output padding).
        out8 = lax.dot_general(
            w_out8, h,
            dimension_numbers=(((1,), (1,)), ((), ())),
            preferred_element_type=jnp.float32)
        o_ref[:, c * ch:(c + 1) * ch] = out8 + b_out8


@functools.partial(jax.jit, static_argnames=("block_n",))
def mlp_forward(x, folded_params, block_n=512):
    n, f = x.shape
    assert f == INPUT_SIZE
    assert block_n % (NUM_CHUNKS * 128) == 0

    # Only pad rows to a multiple of block_n (no feature pad, no wrapper-side cast).
    row_pad = (-n) % block_n
    x_p = jnp.pad(x.astype(jnp.float32), ((0, row_pad), (0, 0)))
    n_total = n + row_pad
    grid = (n_total // block_n,)

    # x: tile over the batch (last dim 80 == full array dim, so the (8,128) rule
    # is satisfied); params: whole-array blocks with a constant index (resident).
    in_specs = [pl.BlockSpec((block_n, f), lambda i: (i, 0))]
    in_specs += [pl.BlockSpec(p.shape, lambda i: (0, 0)) for p in folded_params]

    # Lane-dense output: (8, n_total) f32, one (8, block_n) column-block per step.
    out_specs = pl.BlockSpec((8, block_n), lambda i: (0, i))

    per_row_macs = sum(int(w.shape[0]) * int(w.shape[1]) for w in folded_params[0::2])
    bytes_accessed = (x_p.size * 4
                      + sum(int(p.size) * p.dtype.itemsize for p in folded_params)
                      + 8 * n_total * 4)

    out = pl.pallas_call(
        mlp_kernel,
        out_shape=jax.ShapeDtypeStruct((8, n_total), jnp.float32),
        grid_spec=pltpu.PrefetchScalarGridSpec(
            num_scalar_prefetch=0,
            grid=grid,
            in_specs=in_specs,
            out_specs=out_specs,
        ),
        compiler_params=pltpu.CompilerParams(
            dimension_semantics=("parallel",),
            vmem_limit_bytes=32 * 1024 * 1024,
        ),
        cost_estimate=pl.CostEstimate(
            flops=2 * int(n_total) * per_row_macs,
            transcendentals=0,
            bytes_accessed=int(bytes_accessed),
        ),
    )(x_p, *folded_params)

    # Row 0 of the lane-dense output holds the predictions; drop pad rows.
    return out[0, :n, None]


def init_raw_params(key):
    """Deterministic synthetic parameters matching the PyTorch module's shapes."""
    dims = [INPUT_SIZE] + HIDDEN_DIMS
    layers = []
    for li in range(NUM_HIDDEN):
        fan_in, fan_out = dims[li], dims[li + 1]
        key, kw, kb, kg, kbe, km, kv = jax.random.split(key, 7)
        bound = 1.0 / jnp.sqrt(fan_in)
        w = jax.random.uniform(kw, (fan_in, fan_out), jnp.float32, -bound, bound)
        b = jax.random.uniform(kb, (1, fan_out), jnp.float32, -bound, bound)
        gamma = 1.0 + 0.1 * jax.random.uniform(kg, (1, fan_out), jnp.float32, -1.0, 1.0)
        beta = 0.1 * jax.random.uniform(kbe, (1, fan_out), jnp.float32, -1.0, 1.0)
        r_mean = 0.1 * jax.random.uniform(km, (1, fan_out), jnp.float32, -1.0, 1.0)
        r_var = jax.random.uniform(kv, (1, fan_out), jnp.float32, 0.5, 1.5)
        layers.append((w, b, gamma, beta, r_mean, r_var))
    key, kw, kb = jax.random.split(key, 3)
    bound = 1.0 / jnp.sqrt(HIDDEN_DIMS[-1])
    w_out = jax.random.uniform(kw, (HIDDEN_DIMS[-1], OUT_DIM), jnp.float32, -bound, bound)
    b_out = jax.random.uniform(kb, (1, OUT_DIM), jnp.float32, -bound, bound)
    return layers, (w_out, b_out)


def fold_params(layers, out_layer):
    """Fold eval-mode BN into the Linear weights, zero-pad the 64/32-wide tail
    layers up to 128 lanes, cast weights to bf16 (biases stay f32), and build the
    transposed/padded (8, 128) output-layer weight row for the lane-dense store."""
    flat = []
    for li, (w, b, gamma, beta, r_mean, r_var) in enumerate(layers):
        scale = gamma / jnp.sqrt(r_var + BN_EPS)        # (1, fan_out)
        w_eff = w * scale                                # broadcast over input rows
        b_eff = (b - r_mean) * scale + beta
        fan_in, fan_out = w.shape
        w_eff = jnp.pad(w_eff, ((0, IN_PADS[li] - fan_in), (0, OUT_PADS[li] - fan_out)))
        b_eff = jnp.pad(b_eff, ((0, 0), (0, OUT_PADS[li] - fan_out)))
        flat += [w_eff.astype(jnp.bfloat16), b_eff.astype(jnp.float32)]

    w_out, b_out = out_layer                             # (32, 1), (1, 1)
    last_pad = _pad128(HIDDEN_DIMS[-1])
    w_out8 = jnp.pad(w_out.T, ((0, 7), (0, last_pad - HIDDEN_DIMS[-1])))   # (8, 128)
    b_out8 = jnp.pad(b_out, ((0, 7), (0, 0)))                              # (8, 1)
    flat += [w_out8.astype(jnp.bfloat16), b_out8.astype(jnp.float32)]
    return flat


def mlp_reference_folded(x, folded_params):
    """Pure-JAX reference mirroring the kernel arithmetic (bf16 inputs, f32 acc)."""
    h = x.astype(jnp.bfloat16)
    for layer in range(NUM_HIDDEN):
        w, b = folded_params[2 * layer], folded_params[2 * layer + 1]
        acc = jnp.dot(h, w, preferred_element_type=jnp.float32) + b
        h = jnp.maximum(acc, 0.0).astype(jnp.bfloat16)
    w_out8, b_out8 = folded_params[-2], folded_params[-1]
    out = jnp.dot(h, w_out8.T, preferred_element_type=jnp.float32) + b_out8.T   # (n, 8)
    return out[:, :OUT_DIM]


def mlp_reference_f32(x, layers, out_layer):
    """Full-precision reference with the original (unfused) BN eval-mode math."""
    h = x.astype(jnp.float32)
    for (w, b, gamma, beta, r_mean, r_var) in layers:
        h = h @ w + b
        h = (h - r_mean) / jnp.sqrt(r_var + BN_EPS) * gamma + beta
        h = jnp.maximum(h, 0.0)
    w_out, b_out = out_layer
    return h @ w_out + b_out


if __name__ == "__main__":
    key = jax.random.PRNGKey(0)
    key, kx = jax.random.split(key)
    n = 1000  # not a multiple of block_n -> exercises row padding + output slicing
    x = jax.random.normal(kx, (n, INPUT_SIZE), jnp.float32)

    layers, out_layer = init_raw_params(key)
    folded = fold_params(layers, out_layer)

    out = mlp_forward(x, folded)
    out = jax.block_until_ready(out)
    assert out.shape == (n, OUT_DIM)

    # Exact-arithmetic mirror (bf16 matmul inputs, f32 accumulation).
    ref_bf16 = mlp_reference_folded(x, folded)
    assert jnp.allclose(out, ref_bf16, atol=2e-3, rtol=2e-3), "mismatch vs bf16-mirror reference"

    # Full f32 PyTorch-semantics reference (loose tolerance: bf16 matmul inputs).
    ref_f32 = mlp_reference_f32(x, layers, out_layer)
    assert jnp.allclose(out, ref_f32, atol=2e-1, rtol=5e-2), "mismatch vs f32 reference"

    print("KERNEL_OK")
</pallas_src>

<mosaic_0001>
module attributes {stable_mosaic.version = 11 : i64} {
  func.func @mlp_kernel(%arg0: i32, %arg1: memref<512x80xf32, #tpu.memory_space<vmem>>, %arg2: memref<80x1024xbf16, #tpu.memory_space<vmem>>, %arg3: memref<1x1024xf32, #tpu.memory_space<vmem>>, %arg4: memref<1024x512xbf16, #tpu.memory_space<vmem>>, %arg5: memref<1x512xf32, #tpu.memory_space<vmem>>, %arg6: memref<512x256xbf16, #tpu.memory_space<vmem>>, %arg7: memref<1x256xf32, #tpu.memory_space<vmem>>, %arg8: memref<256x128xbf16, #tpu.memory_space<vmem>>, %arg9: memref<1x128xf32, #tpu.memory_space<vmem>>, %arg10: memref<128x128xbf16, #tpu.memory_space<vmem>>, %arg11: memref<1x128xf32, #tpu.memory_space<vmem>>, %arg12: memref<128x128xbf16, #tpu.memory_space<vmem>>, %arg13: memref<1x128xf32, #tpu.memory_space<vmem>>, %arg14: memref<8x128xbf16, #tpu.memory_space<vmem>>, %arg15: memref<8x1xf32, #tpu.memory_space<vmem>>, %arg16: memref<8x512xf32, #tpu.memory_space<vmem>>) attributes {dimension_semantics = [#tpu.dimension_semantics<parallel>], iteration_bounds = array<i64: 2>, scalar_prefetch = 0 : i64, scratch_operands = 0 : i64, tpu.core_type = #tpu.core_type<tc>, window_params = [{transform_indices = @transform_0, window_bounds = array<i64: 512, 80>}, {pipeline_mode = #tpu.pipeline_mode<synchronous>, transform_indices = @transform_1, window_bounds = array<i64: 80, 1024>}, {pipeline_mode = #tpu.pipeline_mode<synchronous>, transform_indices = @transform_2, window_bounds = array<i64: 1, 1024>}, {pipeline_mode = #tpu.pipeline_mode<synchronous>, transform_indices = @transform_3, window_bounds = array<i64: 1024, 512>}, {pipeline_mode = #tpu.pipeline_mode<synchronous>, transform_indices = @transform_4, window_bounds = array<i64: 1, 512>}, {pipeline_mode = #tpu.pipeline_mode<synchronous>, transform_indices = @transform_5, window_bounds = array<i64: 512, 256>}, {pipeline_mode = #tpu.pipeline_mode<synchronous>, transform_indices = @transform_6, window_bounds = array<i64: 1, 256>}, {pipeline_mode = #tpu.pipeline_mode<synchronous>, transform_indices = @transform_7, window_bounds = array<i64: 256, 128>}, {pipeline_mode = #tpu.pipeline_mode<synchronous>, transform_indices = @transform_8, window_bounds = array<i64: 1, 128>}, {pipeline_mode = #tpu.pipeline_mode<synchronous>, transform_indices = @transform_9, window_bounds = array<i64: 128, 128>}, {pipeline_mode = #tpu.pipeline_mode<synchronous>, transform_indices = @transform_10, window_bounds = array<i64: 1, 128>}, {pipeline_mode = #tpu.pipeline_mode<synchronous>, transform_indices = @transform_11, window_bounds = array<i64: 128, 128>}, {pipeline_mode = #tpu.pipeline_mode<synchronous>, transform_indices = @transform_12, window_bounds = array<i64: 1, 128>}, {pipeline_mode = #tpu.pipeline_mode<synchronous>, transform_indices = @transform_13, window_bounds = array<i64: 8, 128>}, {pipeline_mode = #tpu.pipeline_mode<synchronous>, transform_indices = @transform_14, window_bounds = array<i64: 8, 1>}, {transform_indices = @transform_15, window_bounds = array<i64: 8, 512>}]} {
    %c0 = arith.constant 0 : index
    %c0_0 = arith.constant 0 : index
    %0 = vector.load %arg1[%c0, %c0_0] : memref<512x80xf32, #tpu.memory_space<vmem>>, vector<256x80xf32>
    %1 = arith.truncf %0 : vector<256x80xf32> to vector<256x80xbf16>
    %c256 = arith.constant 256 : index
    %c0_1 = arith.constant 0 : index
    %2 = vector.load %arg1[%c256, %c0_1] : memref<512x80xf32, #tpu.memory_space<vmem>>, vector<256x80xf32>
    %3 = arith.truncf %2 : vector<256x80xf32> to vector<256x80xbf16>
    %c0_2 = arith.constant 0 : index
    %c0_3 = arith.constant 0 : index
    %4 = vector.load %arg2[%c0_2, %c0_3] : memref<80x1024xbf16, #tpu.memory_space<vmem>>, vector<80x1024xbf16>
    %c0_4 = arith.constant 0 : index
    %c0_5 = arith.constant 0 : index
    %5 = vector.load %arg3[%c0_4, %c0_5] : memref<1x1024xf32, #tpu.memory_space<vmem>>, vector<1x1024xf32>
    %cst = arith.constant dense<0.000000e+00> : vector<256x1024xf32>
    %6 = tpu.matmul %1, %4, %cst {dimension_numbers = #tpu.dot_dimension_numbers<[1], [0], [0], [1], [0, 0, 1, 1], [], []>} : vector<256x80xbf16>, vector<80x1024xbf16>, vector<256x1024xf32> -> vector<256x1024xf32>
    %7 = vector.broadcast %5 : vector<1x1024xf32> to vector<256x1024xf32>
    %8 = arith.addf %6, %7 : vector<256x1024xf32>
    %cst_6 = arith.constant 0.000000e+00 : f32
    %9 = vector.broadcast %cst_6 : f32 to vector<256x1024xf32>
    %10 = arith.maximumf %8, %9 : vector<256x1024xf32>
    %11 = arith.truncf %10 : vector<256x1024xf32> to vector<256x1024xbf16>
    %cst_7 = arith.constant dense<0.000000e+00> : vector<256x1024xf32>
    %12 = tpu.matmul %3, %4, %cst_7 {dimension_numbers = #tpu.dot_dimension_numbers<[1], [0], [0], [1], [0, 0, 1, 1], [], []>} : vector<256x80xbf16>, vector<80x1024xbf16>, vector<256x1024xf32> -> vector<256x1024xf32>
    %13 = vector.broadcast %5 : vector<1x1024xf32> to vector<256x1024xf32>
    %14 = arith.addf %12, %13 : vector<256x1024xf32>
    %cst_8 = arith.constant 0.000000e+00 : f32
    %15 = vector.broadcast %cst_8 : f32 to vector<256x1024xf32>
    %16 = arith.maximumf %14, %15 : vector<256x1024xf32>
    %17 = arith.truncf %16 : vector<256x1024xf32> to vector<256x1024xbf16>
    %c0_9 = arith.constant 0 : index
    %c0_10 = arith.constant 0 : index
    %18 = vector.load %arg4[%c0_9, %c0_10] : memref<1024x512xbf16, #tpu.memory_space<vmem>>, vector<1024x512xbf16>
    %c0_11 = arith.constant 0 : index
    %c0_12 = arith.constant 0 : index
    %19 = vector.load %arg5[%c0_11, %c0_12] : memref<1x512xf32, #tpu.memory_space<vmem>>, vector<1x512xf32>
    %cst_13 = arith.constant dense<0.000000e+00> : vector<256x512xf32>
    %20 = tpu.matmul %11, %18, %cst_13 {dimension_numbers = #tpu.dot_dimension_numbers<[1], [0], [0], [1], [0, 0, 1, 1], [], []>} : vector<256x1024xbf16>, vector<1024x512xbf16>, vector<256x512xf32> -> vector<256x512xf32>
    %21 = vector.broadcast %19 : vector<1x512xf32> to vector<256x512xf32>
    %22 = arith.addf %20, %21 : vector<256x512xf32>
    %cst_14 = arith.constant 0.000000e+00 : f32
    %23 = vector.broadcast %cst_14 : f32 to vector<256x512xf32>
    %24 = arith.maximumf %22, %23 : vector<256x512xf32>
    %25 = arith.truncf %24 : vector<256x512xf32> to vector<256x512xbf16>
    %cst_15 = arith.constant dense<0.000000e+00> : vector<256x512xf32>
    %26 = tpu.matmul %17, %18, %cst_15 {dimension_numbers = #tpu.dot_dimension_numbers<[1], [0], [0], [1], [0, 0, 1, 1], [], []>} : vector<256x1024xbf16>, vector<1024x512xbf16>, vector<256x512xf32> -> vector<256x512xf32>
    %27 = vector.broadcast %19 : vector<1x512xf32> to vector<256x512xf32>
    %28 = arith.addf %26, %27 : vector<256x512xf32>
    %cst_16 = arith.constant 0.000000e+00 : f32
    %29 = vector.broadcast %cst_16 : f32 to vector<256x512xf32>
    %30 = arith.maximumf %28, %29 : vector<256x512xf32>
    %31 = arith.truncf %30 : vector<256x512xf32> to vector<256x512xbf16>
    %c0_17 = arith.constant 0 : index
    %c0_18 = arith.constant 0 : index
    %32 = vector.load %arg6[%c0_17, %c0_18] : memref<512x256xbf16, #tpu.memory_space<vmem>>, vector<512x256xbf16>
    %c0_19 = arith.constant 0 : index
    %c0_20 = arith.constant 0 : index
    %33 = vector.load %arg7[%c0_19, %c0_20] : memref<1x256xf32, #tpu.memory_space<vmem>>, vector<1x256xf32>
    %cst_21 = arith.constant dense<0.000000e+00> : vector<256x256xf32>
    %34 = tpu.matmul %25, %32, %cst_21 {dimension_numbers = #tpu.dot_dimension_numbers<[1], [0], [0], [1], [0, 0, 1, 1], [], []>} : vector<256x512xbf16>, vector<512x256xbf16>, vector<256x256xf32> -> vector<256x256xf32>
    %35 = vector.broadcast %33 : vector<1x256xf32> to vector<256x256xf32>
    %36 = arith.addf %34, %35 : vector<256x256xf32>
    %cst_22 = arith.constant 0.000000e+00 : f32
    %37 = vector.broadcast %cst_22 : f32 to vector<256x256xf32>
    %38 = arith.maximumf %36, %37 : vector<256x256xf32>
    %39 = arith.truncf %38 : vector<256x256xf32> to vector<256x256xbf16>
    %cst_23 = arith.constant dense<0.000000e+00> : vector<256x256xf32>
    %40 = tpu.matmul %31, %32, %cst_23 {dimension_numbers = #tpu.dot_dimension_numbers<[1], [0], [0], [1], [0, 0, 1, 1], [], []>} : vector<256x512xbf16>, vector<512x256xbf16>, vector<256x256xf32> -> vector<256x256xf32>
    %41 = vector.broadcast %33 : vector<1x256xf32> to vector<256x256xf32>
    %42 = arith.addf %40, %41 : vector<256x256xf32>
    %cst_24 = arith.constant 0.000000e+00 : f32
    %43 = vector.broadcast %cst_24 : f32 to vector<256x256xf32>
    %44 = arith.maximumf %42, %43 : vector<256x256xf32>
    %45 = arith.truncf %44 : vector<256x256xf32> to vector<256x256xbf16>
    %c0_25 = arith.constant 0 : index
    %c0_26 = arith.constant 0 : index
    %46 = vector.load %arg8[%c0_25, %c0_26] : memref<256x128xbf16, #tpu.memory_space<vmem>>, vector<256x128xbf16>
    %c0_27 = arith.constant 0 : index
    %c0_28 = arith.constant 0 : index
    %47 = vector.load %arg9[%c0_27, %c0_28] : memref<1x128xf32, #tpu.memory_space<vmem>>, vector<1x128xf32>
    %cst_29 = arith.constant dense<0.000000e+00> : vector<256x128xf32>
    %48 = tpu.matmul %39, %46, %cst_29 {dimension_numbers = #tpu.dot_dimension_numbers<[1], [0], [0], [1], [0, 0, 1, 1], [], []>} : vector<256x256xbf16>, vector<256x128xbf16>, vector<256x128xf32> -> vector<256x128xf32>
    %49 = vector.broadcast %47 : vector<1x128xf32> to vector<256x128xf32>
    %50 = arith.addf %48, %49 : vector<256x128xf32>
    %cst_30 = arith.constant 0.000000e+00 : f32
    %51 = vector.broadcast %cst_30 : f32 to vector<256x128xf32>
    %52 = arith.maximumf %50, %51 : vector<256x128xf32>
    %53 = arith.truncf %52 : vector<256x128xf32> to vector<256x128xbf16>
    %cst_31 = arith.constant dense<0.000000e+00> : vector<256x128xf32>
    %54 = tpu.matmul %45, %46, %cst_31 {dimension_numbers = #tpu.dot_dimension_numbers<[1], [0], [0], [1], [0, 0, 1, 1], [], []>} : vector<256x256xbf16>, vector<256x128xbf16>, vector<256x128xf32> -> vector<256x128xf32>
    %55 = vector.broadcast %47 : vector<1x128xf32> to vector<256x128xf32>
    %56 = arith.addf %54, %55 : vector<256x128xf32>
    %cst_32 = arith.constant 0.000000e+00 : f32
    %57 = vector.broadcast %cst_32 : f32 to vector<256x128xf32>
    %58 = arith.maximumf %56, %57 : vector<256x128xf32>
    %59 = arith.truncf %58 : vector<256x128xf32> to vector<256x128xbf16>
    %c0_33 = arith.constant 0 : index
    %c0_34 = arith.constant 0 : index
    %60 = vector.load %arg10[%c0_33, %c0_34] : memref<128x128xbf16, #tpu.memory_space<vmem>>, vector<128x128xbf16>
    %c0_35 = arith.constant 0 : index
    %c0_36 = arith.constant 0 : index
    %61 = vector.load %arg11[%c0_35, %c0_36] : memref<1x128xf32, #tpu.memory_space<vmem>>, vector<1x128xf32>
    %cst_37 = arith.constant dense<0.000000e+00> : vector<256x128xf32>
    %62 = tpu.matmul %53, %60, %cst_37 {dimension_numbers = #tpu.dot_dimension_numbers<[1], [0], [0], [1], [0, 0, 1, 1], [], []>} : vector<256x128xbf16>, vector<128x128xbf16>, vector<256x128xf32> -> vector<256x128xf32>
    %63 = vector.broadcast %61 : vector<1x128xf32> to vector<256x128xf32>
    %64 = arith.addf %62, %63 : vector<256x128xf32>
    %cst_38 = arith.constant 0.000000e+00 : f32
    %65 = vector.broadcast %cst_38 : f32 to vector<256x128xf32>
    %66 = arith.maximumf %64, %65 : vector<256x128xf32>
    %67 = arith.truncf %66 : vector<256x128xf32> to vector<256x128xbf16>
    %cst_39 = arith.constant dense<0.000000e+00> : vector<256x128xf32>
    %68 = tpu.matmul %59, %60, %cst_39 {dimension_numbers = #tpu.dot_dimension_numbers<[1], [0], [0], [1], [0, 0, 1, 1], [], []>} : vector<256x128xbf16>, vector<128x128xbf16>, vector<256x128xf32> -> vector<256x128xf32>
    %69 = vector.broadcast %61 : vector<1x128xf32> to vector<256x128xf32>
    %70 = arith.addf %68, %69 : vector<256x128xf32>
    %cst_40 = arith.constant 0.000000e+00 : f32
    %71 = vector.broadcast %cst_40 : f32 to vector<256x128xf32>
    %72 = arith.maximumf %70, %71 : vector<256x128xf32>
    %73 = arith.truncf %72 : vector<256x128xf32> to vector<256x128xbf16>
    %c0_41 = arith.constant 0 : index
    %c0_42 = arith.constant 0 : index
    %74 = vector.load %arg12[%c0_41, %c0_42] : memref<128x128xbf16, #tpu.memory_space<vmem>>, vector<128x128xbf16>
    %c0_43 = arith.constant 0 : index
    %c0_44 = arith.constant 0 : index
    %75 = vector.load %arg13[%c0_43, %c0_44] : memref<1x128xf32, #tpu.memory_space<vmem>>, vector<1x128xf32>
    %cst_45 = arith.constant dense<0.000000e+00> : vector<256x128xf32>
    %76 = tpu.matmul %67, %74, %cst_45 {dimension_numbers = #tpu.dot_dimension_numbers<[1], [0], [0], [1], [0, 0, 1, 1], [], []>} : vector<256x128xbf16>, vector<128x128xbf16>, vector<256x128xf32> -> vector<256x128xf32>
    %77 = vector.broadcast %75 : vector<1x128xf32> to vector<256x128xf32>
    %78 = arith.addf %76, %77 : vector<256x128xf32>
    %cst_46 = arith.constant 0.000000e+00 : f32
    %79 = vector.broadcast %cst_46 : f32 to vector<256x128xf32>
    %80 = arith.maximumf %78, %79 : vector<256x128xf32>
    %81 = arith.truncf %80 : vector<256x128xf32> to vector<256x128xbf16>
    %cst_47 = arith.constant dense<0.000000e+00> : vector<256x128xf32>
    %82 = tpu.matmul %73, %74, %cst_47 {dimension_numbers = #tpu.dot_dimension_numbers<[1], [0], [0], [1], [0, 0, 1, 1], [], []>} : vector<256x128xbf16>, vector<128x128xbf16>, vector<256x128xf32> -> vector<256x128xf32>
    %83 = vector.broadcast %75 : vector<1x128xf32> to vector<256x128xf32>
    %84 = arith.addf %82, %83 : vector<256x128xf32>
    %cst_48 = arith.constant 0.000000e+00 : f32
    %85 = vector.broadcast %cst_48 : f32 to vector<256x128xf32>
    %86 = arith.maximumf %84, %85 : vector<256x128xf32>
    %87 = arith.truncf %86 : vector<256x128xf32> to vector<256x128xbf16>
    %c0_49 = arith.constant 0 : index
    %c0_50 = arith.constant 0 : index
    %88 = vector.load %arg14[%c0_49, %c0_50] : memref<8x128xbf16, #tpu.memory_space<vmem>>, vector<8x128xbf16>
    %c0_51 = arith.constant 0 : index
    %c0_52 = arith.constant 0 : index
    %89 = vector.load %arg15[%c0_51, %c0_52] : memref<8x1xf32, #tpu.memory_space<vmem>>, vector<8x1xf32>
    %cst_53 = arith.constant dense<0.000000e+00> : vector<8x256xf32>
    %90 = tpu.matmul %88, %81, %cst_53 {dimension_numbers = #tpu.dot_dimension_numbers<[1], [1], [0], [0], [0, 0, 1, 0], [], []>} : vector<8x128xbf16>, vector<256x128xbf16>, vector<8x256xf32> -> vector<8x256xf32>
    %91 = vector.broadcast %89 : vector<8x1xf32> to vector<8x256xf32>
    %92 = arith.addf %90, %91 : vector<8x256xf32>
    %c0_54 = arith.constant 0 : index
    %c0_55 = arith.constant 0 : index
    %93 = vector.load %arg16[%c0_54, %c0_55] : memref<8x512xf32, #tpu.memory_space<vmem>>, vector<8x256xf32>
    tpu.vector_store %arg16[%c0_54, %c0_55], %92 {strides = array<i32>} : memref<8x512xf32, #tpu.memory_space<vmem>>, vector<8x256xf32>,
    %cst_56 = arith.constant dense<0.000000e+00> : vector<8x256xf32>
    %94 = tpu.matmul %88, %87, %cst_56 {dimension_numbers = #tpu.dot_dimension_numbers<[1], [1], [0], [0], [0, 0, 1, 0], [], []>} : vector<8x128xbf16>, vector<256x128xbf16>, vector<8x256xf32> -> vector<8x256xf32>
    %95 = vector.broadcast %89 : vector<8x1xf32> to vector<8x256xf32>
    %96 = arith.addf %94, %95 : vector<8x256xf32>
    %c0_57 = arith.constant 0 : index
    %c256_58 = arith.constant 256 : index
    %97 = vector.load %arg16[%c0_57, %c256_58] : memref<8x512xf32, #tpu.memory_space<vmem>>, vector<8x256xf32>
    tpu.vector_store %arg16[%c0_57, %c256_58], %96 {strides = array<i32>} : memref<8x512xf32, #tpu.memory_space<vmem>>, vector<8x256xf32>,
    return
  }
  func.func @transform_0(%arg0: i32) -> (i32, i32) {
    %c0_i32 = arith.constant 0 : i32
    %c0_i32_0 = arith.constant 0 : i32
    return %arg0, %c0_i32 : i32, i32
  }
  func.func @transform_1(%arg0: i32) -> (i32, i32) {
    %c0_i32 = arith.constant 0 : i32
    %c0_i32_0 = arith.constant 0 : i32
    %c0_i32_1 = arith.constant 0 : i32
    return %c0_i32, %c0_i32_0 : i32, i32
  }
  func.func @transform_2(%arg0: i32) -> (i32, i32) {
    %c0_i32 = arith.constant 0 : i32
    %c0_i32_0 = arith.constant 0 : i32
    %c0_i32_1 = arith.constant 0 : i32
    return %c0_i32, %c0_i32_0 : i32, i32
  }
  func.func @transform_3(%arg0: i32) -> (i32, i32) {
    %c0_i32 = arith.constant 0 : i32
    %c0_i32_0 = arith.constant 0 : i32
    %c0_i32_1 = arith.constant 0 : i32
    return %c0_i32, %c0_i32_0 : i32, i32
  }
  func.func @transform_4(%arg0: i32) -> (i32, i32) {
    %c0_i32 = arith.constant 0 : i32
    %c0_i32_0 = arith.constant 0 : i32
    %c0_i32_1 = arith.constant 0 : i32
    return %c0_i32, %c0_i32_0 : i32, i32
  }
  func.func @transform_5(%arg0: i32) -> (i32, i32) {
    %c0_i32 = arith.constant 0 : i32
    %c0_i32_0 = arith.constant 0 : i32
    %c0_i32_1 = arith.constant 0 : i32
    return %c0_i32, %c0_i32_0 : i32, i32
  }
  func.func @transform_6(%arg0: i32) -> (i32, i32) {
    %c0_i32 = arith.constant 0 : i32
    %c0_i32_0 = arith.constant 0 : i32
    %c0_i32_1 = arith.constant 0 : i32
    return %c0_i32, %c0_i32_0 : i32, i32
  }
  func.func @transform_7(%arg0: i32) -> (i32, i32) {
    %c0_i32 = arith.constant 0 : i32
    %c0_i32_0 = arith.constant 0 : i32
    %c0_i32_1 = arith.constant 0 : i32
    return %c0_i32, %c0_i32_0 : i32, i32
  }
  func.func @transform_8(%arg0: i32) -> (i32, i32) {
    %c0_i32 = arith.constant 0 : i32
    %c0_i32_0 = arith.constant 0 : i32
    %c0_i32_1 = arith.constant 0 : i32
    return %c0_i32, %c0_i32_0 : i32, i32
  }
  func.func @transform_9(%arg0: i32) -> (i32, i32) {
    %c0_i32 = arith.constant 0 : i32
    %c0_i32_0 = arith.constant 0 : i32
    %c0_i32_1 = arith.constant 0 : i32
    return %c0_i32, %c0_i32_0 : i32, i32
  }
  func.func @transform_10(%arg0: i32) -> (i32, i32) {
    %c0_i32 = arith.constant 0 : i32
    %c0_i32_0 = arith.constant 0 : i32
    %c0_i32_1 = arith.constant 0 : i32
    return %c0_i32, %c0_i32_0 : i32, i32
  }
  func.func @transform_11(%arg0: i32) -> (i32, i32) {
    %c0_i32 = arith.constant 0 : i32
    %c0_i32_0 = arith.constant 0 : i32
    %c0_i32_1 = arith.constant 0 : i32
    return %c0_i32, %c0_i32_0 : i32, i32
  }
  func.func @transform_12(%arg0: i32) -> (i32, i32) {
    %c0_i32 = arith.constant 0 : i32
    %c0_i32_0 = arith.constant 0 : i32
    %c0_i32_1 = arith.constant 0 : i32
    return %c0_i32, %c0_i32_0 : i32, i32
  }
  func.func @transform_13(%arg0: i32) -> (i32, i32) {
    %c0_i32 = arith.constant 0 : i32
    %c0_i32_0 = arith.constant 0 : i32
    %c0_i32_1 = arith.constant 0 : i32
    return %c0_i32, %c0_i32_0 : i32, i32
  }
  func.func @transform_14(%arg0: i32) -> (i32, i32) {
    %c0_i32 = arith.constant 0 : i32
    %c0_i32_0 = arith.constant 0 : i32
    %c0_i32_1 = arith.constant 0 : i32
    return %c0_i32, %c0_i32_0 : i32, i32
  }
  func.func @transform_15(%arg0: i32) -> (i32, i32) {
    %c0_i32 = arith.constant 0 : i32
    %c0_i32_0 = arith.constant 0 : i32
    return %c0_i32, %arg0 : i32, i32
  }
}

</mosaic_0001>

<llo_original>
// kernel: mlp_forward.1
$region0: #{mlp_forward.1}
  #allocation0 [shape = 'u32[]', space=smem, size = 0x4, offset = 0x4, fixed_abs, tag = 'smem constant byte address 0x4 - core index']
  #allocation1 [shape = 'u32[144,128]{1,0:T(1,128)}', space=vmem, size = 0x12000, scoped, tag = 'internal scratch']
  %s0 = inlined_call_operand.vmem [shape: f32[1024,80], index: 0, kind: input, shape index: {}]
  %s1 = inlined_call_operand.vmem [shape: bf16[80,1024], index: 1, kind: input, shape index: {}]
  %s2 = inlined_call_operand.vmem [shape: f32[1,1024], index: 2, kind: input, shape index: {}]
  %s3 = inlined_call_operand.vmem [shape: bf16[1024,512], index: 3, kind: input, shape index: {}]
  %s4 = inlined_call_operand.vmem [shape: f32[1,512], index: 4, kind: input, shape index: {}]
  %s5 = inlined_call_operand.vmem [shape: bf16[512,256], index: 5, kind: input, shape index: {}]
  %s6 = inlined_call_operand.vmem [shape: f32[1,256], index: 6, kind: input, shape index: {}]
  %s7 = inlined_call_operand.vmem [shape: bf16[256,128], index: 7, kind: input, shape index: {}]
  %s8 = inlined_call_operand.vmem [shape: f32[1,128], index: 8, kind: input, shape index: {}]
  %s9 = inlined_call_operand.vmem [shape: bf16[128,128], index: 9, kind: input, shape index: {}]
  %s10 = inlined_call_operand.vmem [shape: f32[1,128], index: 10, kind: input, shape index: {}]
  %s11 = inlined_call_operand.vmem [shape: bf16[128,128], index: 11, kind: input, shape index: {}]
  %s12 = inlined_call_operand.vmem [shape: f32[1,128], index: 12, kind: input, shape index: {}]
  %s13 = inlined_call_operand.vmem [shape: bf16[8,128], index: 13, kind: input, shape index: {}]
  %s14 = inlined_call_operand.vmem [shape: f32[8,1], index: 14, kind: input, shape index: {}]
  %s15 = inlined_call_operand.vmem [shape: f32[8,1024], index: 15, kind: output, shape index: {}]
  %s16 = sld [smem:[#allocation0]]
  $region93: #{mlp_forward.1} parent=0
    _
  %s18 = ssub.s32 1, %s16
  %s19 = scalar_select 0, %s18, %s16
  loop: start=0, step=1, limit=4
  $region2: #{mlp_forward.1} parent=0 // loop_pre_header
    _
  $region3: #{mlp_forward.1} parent=0 // loop_header
    %s21 = sphi 0, %s25
    %p22 = scmp.ge.s32.totalorder %s21, 4
    %s31 = sphi 0, %s33
    %s34 = sphi 0, %s31
    %s35 = sphi 0, %s34
    %s51 = sphi 0, %s35
    %s55 = sphi 0, %s55
    %s57 = sphi 0, %s55
    %s58 = sphi 0, %s57
    %s72 = sphi 0, %s58
    %s76 = sphi 0, %s76
    %s78 = sphi 0, %s76
    %s79 = sphi 0, %s78
    %s93 = sphi 0, %s79
    %s97 = sphi 0, %s97
    %s99 = sphi 0, %s97
    %s100 = sphi 0, %s99
    %s114 = sphi 0, %s100
    %s118 = sphi 0, %s118
    %s120 = sphi 0, %s118
    %s121 = sphi 0, %s120
    %s135 = sphi 0, %s121
    %s139 = sphi 0, %s139
    %s141 = sphi 0, %s139
    %s142 = sphi 0, %s141
    %s156 = sphi 0, %s142
    %s160 = sphi 0, %s160
    %s162 = sphi 0, %s160
    %s163 = sphi 0, %s162
    %s177 = sphi 0, %s163
    %s181 = sphi 0, %s181
    %s183 = sphi 0, %s181
    %s184 = sphi 0, %s183
    %s198 = sphi 0, %s184
    %s202 = sphi 0, %s202
    %s204 = sphi 0, %s202
    %s205 = sphi 0, %s204
    %s219 = sphi 0, %s205
    %s223 = sphi 0, %s223
    %s225 = sphi 0, %s223
    %s226 = sphi 0, %s225
    %s240 = sphi 0, %s226
    %s244 = sphi 0, %s244
    %s246 = sphi 0, %s244
    %s247 = sphi 0, %s246
    %s261 = sphi 0, %s247
    %s265 = sphi 0, %s265
    %s267 = sphi 0, %s265
    %s268 = sphi 0, %s267
    %s282 = sphi 0, %s268
    %s286 = sphi 0, %s286
    %s288 = sphi 0, %s286
    %s289 = sphi 0, %s288
    %s303 = sphi 0, %s289
    %s307 = sphi 0, %s307
    %s309 = sphi 0, %s307
    %s310 = sphi 0, %s309
    %s324 = sphi 0, %s310
    %s328 = sphi 0, %s328
    %s330 = sphi 0, %s328
    %s331 = sphi 0, %s330
    %s345 = sphi 0, %s331
    %s351 = sphi 0, %s353
    %s354 = sphi 0, %s351
    %s355 = sphi 0, %s354
    %s371 = sphi 0, %s355
  $region4: #{mlp_forward.1} parent=0 // loop_header_branch
    %24 = sbr.rel (%p22) target = $region8
  $region5: #{mlp_forward.1} parent=0 // loop_body
    %s26 = ssub.s32 %s21, 1
    %s27 = ssub.s32 %s21, 2
    %s28 = sadd.s32 %s21, 1
    %s29 = ssub.s32 %s21, %s28
    %p30 = scmp.eq.s32.totalorder %s29, 0
    %s32 = sadd.s32 %s31, 1
    %s33 = scalar_select %p30, %s31, %s32
    %p36 = pneg %p30
    %p37 = scmp.eq.s32.totalorder %s21, 1
    %p38 = por %p36, %p37
    %p39 = scmp.ne.s32.totalorder %s31, %s34
    %p40 = scmp.eq.s32.totalorder %s21, 0
    %p41 = por %p39, %p40
    %p42 = scmp.ne.s32.totalorder %s31, %s34
    %p43 = scmp.eq.s32.totalorder %s26, 1
    %p44 = por %p42, %p43
    %p45 = scmp.ne.s32.totalorder %s34, %s35
    %p46 = scmp.eq.s32.totalorder %s26, 0
    %p47 = por %p45, %p46
    %p48 = scmp.ne.s32.totalorder %s34, %s35
    %p49 = scmp.eq.s32.totalorder %s27, 1
    %p50 = por %p48, %p49
    %p52 = scmp.ne.s32.totalorder %s35, %s51
    %p53 = scmp.eq.s32.totalorder %s27, 0
    %p54 = por %p52, %p53
    %s56 = sadd.s32 %s55, 1
    %p59 = scmp.eq.s32.totalorder %s21, 1
    %p60 = scmp.ne.s32.totalorder %s55, %s57
    %p61 = scmp.eq.s32.totalorder %s21, 0
    %p62 = por %p60, %p61
    %p63 = scmp.ne.s32.totalorder %s55, %s57
    %p64 = scmp.eq.s32.totalorder %s26, 1
    %p65 = por %p63, %p64
    %p66 = scmp.ne.s32.totalorder %s57, %s58
    %p67 = scmp.eq.s32.totalorder %s26, 0
    %p68 = por %p66, %p67
    %p69 = scmp.ne.s32.totalorder %s57, %s58
    %p70 = scmp.eq.s32.totalorder %s27, 1
    %p71 = por %p69, %p70
    %p73 = scmp.ne.s32.totalorder %s58, %s72
    %p74 = scmp.eq.s32.totalorder %s27, 0
    %p75 = por %p73, %p74
    %s77 = sadd.s32 %s76, 1
    %p80 = scmp.eq.s32.totalorder %s21, 1
    %p81 = scmp.ne.s32.totalorder %s76, %s78
    %p82 = scmp.eq.s32.totalorder %s21, 0
    %p83 = por %p81, %p82
    %p84 = scmp.ne.s32.totalorder %s76, %s78
    %p85 = scmp.eq.s32.totalorder %s26, 1
    %p86 = por %p84, %p85
    %p87 = scmp.ne.s32.totalorder %s78, %s79
    %p88 = scmp.eq.s32.totalorder %s26, 0
    %p89 = por %p87, %p88
    %p90 = scmp.ne.s32.totalorder %s78, %s79
    %p91 = scmp.eq.s32.totalorder %s27, 1
    %p92 = por %p90, %p91
    %p94 = scmp.ne.s32.totalorder %s79, %s93
    %p95 = scmp.eq.s32.totalorder %s27, 0
    %p96 = por %p94, %p95
    %s98 = sadd.s32 %s97, 1
    %p101 = scmp.eq.s32.totalorder %s21, 1
    %p102 = scmp.ne.s32.totalorder %s97, %s99
    %p103 = scmp.eq.s32.totalorder %s21, 0
    %p104 = por %p102, %p103
    %p105 = scmp.ne.s32.totalorder %s97, %s99
    %p106 = scmp.eq.s32.totalorder %s26, 1
    %p107 = por %p105, %p106
    %p108 = scmp.ne.s32.totalorder %s99, %s100
    %p109 = scmp.eq.s32.totalorder %s26, 0
    %p110 = por %p108, %p109
    %p111 = scmp.ne.s32.totalorder %s99, %s100
    %p112 = scmp.eq.s32.totalorder %s27, 1
    %p113 = por %p111, %p112
    %p115 = scmp.ne.s32.totalorder %s100, %s114
    %p116 = scmp.eq.s32.totalorder %s27, 0
    %p117 = por %p115, %p116
    %s119 = sadd.s32 %s118, 1
    %p122 = scmp.eq.s32.totalorder %s21, 1
    %p123 = scmp.ne.s32.totalorder %s118, %s120
    %p124 = scmp.eq.s32.totalorder %s21, 0
    %p125 = por %p123, %p124
    %p126 = scmp.ne.s32.totalorder %s118, %s120
    %p127 = scmp.eq.s32.totalorder %s26, 1
    %p128 = por %p126, %p127
    %p129 = scmp.ne.s32.totalorder %s120, %s121
    %p130 = scmp.eq.s32.totalorder %s26, 0
    %p131 = por %p129, %p130
    %p132 = scmp.ne.s32.totalorder %s120, %s121
    %p133 = scmp.eq.s32.totalorder %s27, 1
    %p134 = por %p132, %p133
    %p136 = scmp.ne.s32.totalorder %s121, %s135
    %p137 = scmp.eq.s32.totalorder %s27, 0
    %p138 = por %p136, %p137
    %s140 = sadd.s32 %s139, 1
    %p143 = scmp.eq.s32.totalorder %s21, 1
    %p144 = scmp.ne.s32.totalorder %s139, %s141
    %p145 = scmp.eq.s32.totalorder %s21, 0
    %p146 = por %p144, %p145
    %p147 = scmp.ne.s32.totalorder %s139, %s141
    %p148 = scmp.eq.s32.totalorder %s26, 1
    %p149 = por %p147, %p148
    %p150 = scmp.ne.s32.totalorder %s141, %s142
    %p151 = scmp.eq.s32.totalorder %s26, 0
    %p152 = por %p150, %p151
    %p153 = scmp.ne.s32.totalorder %s141, %s142
    %p154 = scmp.eq.s32.totalorder %s27, 1
    %p155 = por %p153, %p154
    %p157 = scmp.ne.s32.totalorder %s142, %s156
    %p158 = scmp.eq.s32.totalorder %s27, 0
    %p159 = por %p157, %p158
    %s161 = sadd.s32 %s160, 1
    %p164 = scmp.eq.s32.totalorder %s21, 1
    %p165 = scmp.ne.s32.totalorder %s160, %s162
    %p166 = scmp.eq.s32.totalorder %s21, 0
    %p167 = por %p165, %p166
    %p168 = scmp.ne.s32.totalorder %s160, %s162
    %p169 = scmp.eq.s32.totalorder %s26, 1
    %p170 = por %p168, %p169
    %p171 = scmp.ne.s32.totalorder %s162, %s163
    %p172 = scmp.eq.s32.totalorder %s26, 0
    %p173 = por %p171, %p172
    %p174 = scmp.ne.s32.totalorder %s162, %s163
    %p175 = scmp.eq.s32.totalorder %s27, 1
    %p176 = por %p174, %p175
    %p178 = scmp.ne.s32.totalorder %s163, %s177
    %p179 = scmp.eq.s32.totalorder %s27, 0
    %p180 = por %p178, %p179
    %s182 = sadd.s32 %s181, 1
    %p185 = scmp.eq.s32.totalorder %s21, 1
    %p186 = scmp.ne.s32.totalorder %s181, %s183
    %p187 = scmp.eq.s32.totalorder %s21, 0
    %p188 = por %p186, %p187
    %p189 = scmp.ne.s32.totalorder %s181, %s183
    %p190 = scmp.eq.s32.totalorder %s26, 1
    %p191 = por %p189, %p190
    %p192 = scmp.ne.s32.totalorder %s183, %s184
    %p193 = scmp.eq.s32.totalorder %s26, 0
    %p194 = por %p192, %p193
    %p195 = scmp.ne.s32.totalorder %s183, %s184
    %p196 = scmp.eq.s32.totalorder %s27, 1
    %p197 = por %p195, %p196
    %p199 = scmp.ne.s32.totalorder %s184, %s198
    %p200 = scmp.eq.s32.totalorder %s27, 0
    %p201 = por %p199, %p200
    %s203 = sadd.s32 %s202, 1
    %p206 = scmp.eq.s32.totalorder %s21, 1
    %p207 = scmp.ne.s32.totalorder %s202, %s204
    %p208 = scmp.eq.s32.totalorder %s21, 0
    %p209 = por %p207, %p208
    %p210 = scmp.ne.s32.totalorder %s202, %s204
    %p211 = scmp.eq.s32.totalorder %s26, 1
    %p212 = por %p210, %p211
    %p213 = scmp.ne.s32.totalorder %s204, %s205
    %p214 = scmp.eq.s32.totalorder %s26, 0
    %p215 = por %p213, %p214
    %p216 = scmp.ne.s32.totalorder %s204, %s205
    %p217 = scmp.eq.s32.totalorder %s27, 1
    %p218 = por %p216, %p217
    %p220 = scmp.ne.s32.totalorder %s205, %s219
    %p221 = scmp.eq.s32.totalorder %s27, 0
    %p222 = por %p220, %p221
    %s224 = sadd.s32 %s223, 1
    %p227 = scmp.eq.s32.totalorder %s21, 1
    %p228 = scmp.ne.s32.totalorder %s223, %s225
    %p229 = scmp.eq.s32.totalorder %s21, 0
    %p230 = por %p228, %p229
    %p231 = scmp.ne.s32.totalorder %s223, %s225
    %p232 = scmp.eq.s32.totalorder %s26, 1
    %p233 = por %p231, %p232
    %p234 = scmp.ne.s32.totalorder %s225, %s226
    %p235 = scmp.eq.s32.totalorder %s26, 0
    %p236 = por %p234, %p235
    %p237 = scmp.ne.s32.totalorder %s225, %s226
    %p238 = scmp.eq.s32.totalorder %s27, 1
    %p239 = por %p237, %p238
    %p241 = scmp.ne.s32.totalorder %s226, %s240
    %p242 = scmp.eq.s32.totalorder %s27, 0
    %p243 = por %p241, %p242
    %s245 = sadd.s32 %s244, 1
    %p248 = scmp.eq.s32.totalorder %s21, 1
    %p249 = scmp.ne.s32.totalorder %s244, %s246
    %p250 = scmp.eq.s32.totalorder %s21, 0
    %p251 = por %p249, %p250
    %p252 = scmp.ne.s32.totalorder %s244, %s246
    %p253 = scmp.eq.s32.totalorder %s26, 1
    %p254 = por %p252, %p253
    %p255 = scmp.ne.s32.totalorder %s246, %s247
    %p256 = scmp.eq.s32.totalorder %s26, 0
    %p257 = por %p255, %p256
    %p258 = scmp.ne.s32.totalorder %s246, %s247
    %p259 = scmp.eq.s32.totalorder %s27, 1
    %p260 = por %p258, %p259
    %p262 = scmp.ne.s32.totalorder %s247, %s261
    %p263 = scmp.eq.s32.totalorder %s27, 0
    %p264 = por %p262, %p263
    %s266 = sadd.s32 %s265, 1
    %p269 = scmp.eq.s32.totalorder %s21, 1
    %p270 = scmp.ne.s32.totalorder %s265, %s267
    %p271 = scmp.eq.s32.totalorder %s21, 0
    %p272 = por %p270, %p271
    %p273 = scmp.ne.s32.totalorder %s265, %s267
    %p274 = scmp.eq.s32.totalorder %s26, 1
    %p275 = por %p273, %p274
    %p276 = scmp.ne.s32.totalorder %s267, %s268
    %p277 = scmp.eq.s32.totalorder %s26, 0
    %p278 = por %p276, %p277
    %p279 = scmp.ne.s32.totalorder %s267, %s268
    %p280 = scmp.eq.s32.totalorder %s27, 1
    %p281 = por %p279, %p280
    %p283 = scmp.ne.s32.totalorder %s268, %s282
    %p284 = scmp.eq.s32.totalorder %s27, 0
    %p285 = por %p283, %p284
    %s287 = sadd.s32 %s286, 1
    %p290 = scmp.eq.s32.totalorder %s21, 1
    %p291 = scmp.ne.s32.totalorder %s286, %s288
    %p292 = scmp.eq.s32.totalorder %s21, 0
    %p293 = por %p291, %p292
    %p294 = scmp.ne.s32.totalorder %s286, %s288
    %p295 = scmp.eq.s32.totalorder %s26, 1
    %p296 = por %p294, %p295
    %p297 = scmp.ne.s32.totalorder %s288, %s289
    %p298 = scmp.eq.s32.totalorder %s26, 0
    %p299 = por %p297, %p298
    %p300 = scmp.ne.s32.totalorder %s288, %s289
    %p301 = scmp.eq.s32.totalorder %s27, 1
    %p302 = por %p300, %p301
    %p304 = scmp.ne.s32.totalorder %s289, %s303
    %p305 = scmp.eq.s32.totalorder %s27, 0
    %p306 = por %p304, %p305
    %s308 = sadd.s32 %s307, 1
    %p311 = scmp.eq.s32.totalorder %s21, 1
    %p312 = scmp.ne.s32.totalorder %s307, %s309
    %p313 = scmp.eq.s32.totalorder %s21, 0
    %p314 = por %p312, %p313
    %p315 = scmp.ne.s32.totalorder %s307, %s309
    %p316 = scmp.eq.s32.totalorder %s26, 1
    %p317 = por %p315, %p316
    %p318 = scmp.ne.s32.totalorder %s309, %s310
    %p319 = scmp.eq.s32.totalorder %s26, 0
    %p320 = por %p318, %p319
    %p321 = scmp.ne.s32.totalorder %s309, %s310
    %p322 = scmp.eq.s32.totalorder %s27, 1
    %p323 = por %p321, %p322
    %p325 = scmp.ne.s32.totalorder %s310, %s324
    %p326 = scmp.eq.s32.totalorder %s27, 0
    %p327 = por %p325, %p326
    %s329 = sadd.s32 %s328, 1
    %p332 = scmp.eq.s32.totalorder %s21, 1
    %p333 = scmp.ne.s32.totalorder %s328, %s330
    %p334 = scmp.eq.s32.totalorder %s21, 0
    %p335 = por %p333, %p334
    %p336 = scmp.ne.s32.totalorder %s328, %s330
    %p337 = scmp.eq.s32.totalorder %s26, 1
    %p338 = por %p336, %p337
    %p339 = scmp.ne.s32.totalorder %s330, %s331
    %p340 = scmp.eq.s32.totalorder %s26, 0
    %p341 = por %p339, %p340
    %p342 = scmp.ne.s32.totalorder %s330, %s331
    %p343 = scmp.eq.s32.totalorder %s27, 1
    %p344 = por %p342, %p343
    %p346 = scmp.ne.s32.totalorder %s331, %s345
    %p347 = scmp.eq.s32.totalorder %s27, 0
    %p348 = por %p346, %p347
    %s349 = ssub.s32 %s21, %s28
    %p350 = scmp.eq.s32.totalorder %s349, 0
    %s352 = sadd.s32 %s351, 1
    %s353 = scalar_select %p350, %s351, %s352
    %p356 = pneg %p350
    %p357 = scmp.eq.s32.totalorder %s21, 1
    %p358 = por %p356, %p357
    %p359 = scmp.ne.s32.totalorder %s351, %s354
    %p360 = scmp.eq.s32.totalorder %s21, 0
    %p361 = por %p359, %p360
    %p362 = scmp.ne.s32.totalorder %s351, %s354
    %p363 = scmp.eq.s32.totalorder %s26, 1
    %p364 = por %p362, %p363
    %p365 = scmp.ne.s32.totalorder %s354, %s355
    %p366 = scmp.eq.s32.totalorder %s26, 0
    %p367 = por %p365, %p366
    %p368 = scmp.ne.s32.totalorder %s354, %s355
    %p369 = scmp.eq.s32.totalorder %s27, 1
    %p370 = por %p368, %p369
    %p372 = scmp.ne.s32.totalorder %s355, %s371
    %p373 = scmp.eq.s32.totalorder %s27, 0
    %p374 = por %p372, %p373
    %p375 = scmp.le.s32.totalorder 1, %s21
    %p376 = scmp.lt.s32.totalorder %s21, 3
    %p377 = pnand %p375, %p376
    %p378 = pneg %p377
    // Predicated region
    $region9: #{mlp_forward.1} parent=5 // pred_check
      _
    $region10: #{mlp_forward.1} parent=5 // pred_check_branch
      %380 = sbr.rel (%p377) target = $region12
    $region11: #{mlp_forward.1} parent=5 // pred_region
      %s381 = ssub.s32 %s21, 1
      // Predicated region
      $region13: #{mlp_forward.1} parent=11 // pred_check
        %p382 = pneg %p68
      $region14: #{mlp_forward.1} parent=11 // pred_check_branch
        %384 = sbr.rel (%p382) target = $region16
      $region15: #{mlp_forward.1} parent=11 // pred_region
        _
      $region16: #{mlp_forward.1} parent=11 // pred_fallthru
        _
      // Predicated region
      $region17: #{mlp_forward.1} parent=11 // pred_check
        %p385 = pneg %p89
      $region18: #{mlp_forward.1} parent=11 // pred_check_branch
        %387 = sbr.rel (%p385) target = $region20
      $region19: #{mlp_forward.1} parent=11 // pred_region
        _
      $region20: #{mlp_forward.1} parent=11 // pred_fallthru
        _
      // Predicated region
      $region21: #{mlp_forward.1} parent=11 // pred_check
        %p388 = pneg %p110
      $region22: #{mlp_forward.1} parent=11 // pred_check_branch
        %390 = sbr.rel (%p388) target = $region24
      $region23: #{mlp_forward.1} parent=11 // pred_region
        _
      $region24: #{mlp_forward.1} parent=11 // pred_fallthru
        _
      // Predicated region
      $region25: #{mlp_forward.1} parent=11 // pred_check
        %p391 = pneg %p131
      $region26: #{mlp_forward.1} parent=11 // pred_check_branch
        %393 = sbr.rel (%p391) target = $region28
      $region27: #{mlp_forward.1} parent=11 // pred_region
        _
      $region28: #{mlp_forward.1} parent=11 // pred_fallthru
        _
      // Predicated region
      $region29: #{mlp_forward.1} parent=11 // pred_check
        %p394 = pneg %p152
      $region30: #{mlp_forward.1} parent=11 // pred_check_branch
        %396 = sbr.rel (%p394) target = $region32
      $region31: #{mlp_forward.1} parent=11 // pred_region
        _
      $region32: #{mlp_forward.1} parent=11 // pred_fallthru
        _
      // Predicated region
      $region33: #{mlp_forward.1} parent=11 // pred_check
        %p397 = pneg %p173
      $region34: #{mlp_forward.1} parent=11 // pred_check_branch
        %399 = sbr.rel (%p397) target = $region36
      $region35: #{mlp_forward.1} parent=11 // pred_region
        _
      $region36: #{mlp_forward.1} parent=11 // pred_fallthru
        _
      // Predicated region
      $region37: #{mlp_forward.1} parent=11 // pred_check
        %p400 = pneg %p194
      $region38: #{mlp_forward.1} parent=11 // pred_check_branch
        %402 = sbr.rel (%p400) target = $region40
      $region39: #{mlp_forward.1} parent=11 // pred_region
        _
      $region40: #{mlp_forward.1} parent=11 // pred_fallthru
        _
      // Predicated region
      $region41: #{mlp_forward.1} parent=11 // pred_check
        %p403 = pneg %p215
      $region42: #{mlp_forward.1} parent=11 // pred_check_branch
        %405 = sbr.rel (%p403) target = $region44
      $region43: #{mlp_forward.1} parent=11 // pred_region
        _
      $region44: #{mlp_forward.1} parent=11 // pred_fallthru
        _
      // Predicated region
      $region45: #{mlp_forward.1} parent=11 // pred_check
        %p406 = pneg %p236
      $region46: #{mlp_forward.1} parent=11 // pred_check_branch
        %408 = sbr.rel (%p406) target = $region48
      $region47: #{mlp_forward.1} parent=11 // pred_region
        _
      $region48: #{mlp_forward.1} parent=11 // pred_fallthru
        _
      // Predicated region
      $region49: #{mlp_forward.1} parent=11 // pred_check
        %p409 = pneg %p257
      $region50: #{mlp_forward.1} parent=11 // pred_check_branch
        %411 = sbr.rel (%p409) target = $region52
      $region51: #{mlp_forward.1} parent=11 // pred_region
        _
      $region52: #{mlp_forward.1} parent=11 // pred_fallthru
        _
      // Predicated region
      $region53: #{mlp_forward.1} parent=11 // pred_check
        %p412 = pneg %p278
      $region54: #{mlp_forward.1} parent=11 // pred_check_branch
        %414 = sbr.rel (%p412) target = $region56
      $region55: #{mlp_forward.1} parent=11 // pred_region
        _
      $region56: #{mlp_forward.1} parent=11 // pred_fallthru
        _
      // Predicated region
      $region57: #{mlp_forward.1} parent=11 // pred_check
        %p415 = pneg %p299
      $region58: #{mlp_forward.1} parent=11 // pred_check_branch
        %417 = sbr.rel (%p415) target = $region60
      $region59: #{mlp_forward.1} parent=11 // pred_region
        _
      $region60: #{mlp_forward.1} parent=11 // pred_fallthru
        _
      // Predicated region
      $region61: #{mlp_forward.1} parent=11 // pred_check
        %p418 = pneg %p320
      $region62: #{mlp_forward.1} parent=11 // pred_check_branch
        %420 = sbr.rel (%p418) target = $region64
      $region63: #{mlp_forward.1} parent=11 // pred_region
        _
      $region64: #{mlp_forward.1} parent=11 // pred_fallthru
        _
      // Predicated region
      $region65: #{mlp_forward.1} parent=11 // pred_check
        %p421 = pneg %p341
      $region66: #{mlp_forward.1} parent=11 // pred_check_branch
        %423 = sbr.rel (%p421) target = $region68
      $region67: #{mlp_forward.1} parent=11 // pred_region
        _
      $region68: #{mlp_forward.1} parent=11 // pred_fallthru
        _
    $region12: #{mlp_forward.1} parent=5 // pred_fallthru
      _
    %p424 = scmp.lt.s32.totalorder %s21, 2
    // Predicated region
    $region69: #{mlp_forward.1} parent=5 // pred_check
      %p425 = pneg %p424
    $region70: #{mlp_forward.1} parent=5 // pred_check_branch
      %427 = sbr.rel (%p425) target = $region72
    $region71: #{mlp_forward.1} parent=5 // pred_region
      // Predicated region
      $region73: #{mlp_forward.1} parent=71 // pred_check
        %p428 = pneg %p41
      $region74: #{mlp_forward.1} parent=71 // pred_check_branch
        %430 = sbr.rel (%p428) target = $region76
      $region75: #{mlp_forward.1} parent=71 // pred_region
        %s431 = smul.u32 64, %s21
        %p432 = scmp.lt.s32.totalorder %s431, 127
        %s433 = scalar_select %p432, %s431, 127
        %s434 = smul.addr %s433, 8
        %s435 = scalar_lea.vmem %s0, %s434
        %s436 = smul.u32 64, %s21
      $region76: #{mlp_forward.1} parent=71 // pred_fallthru
        _
    $region72: #{mlp_forward.1} parent=5 // pred_fallthru
      _
    %p437 = scmp.le.s32.totalorder 1, %s21
    %p438 = scmp.lt.s32.totalorder %s21, 3
    %p439 = pnand %p437, %p438
    %p440 = pneg %p439
    // Predicated region
    $region77: #{mlp_forward.1} parent=5 // pred_check
      _
    $region78: #{mlp_forward.1} parent=5 // pred_check_branch
      %442 = sbr.rel (%p439) target = $region80
    $region79: #{mlp_forward.1} parent=5 // pred_region
      %s443 = ssub.s32 %s21, 1
      %s444 = smul.u32 64, %s26
      %p445 = scmp.lt.s32.totalorder %s444, 127
      %s446 = scalar_select %p445, %s444, 127
      %s447 = smul.addr %s446, 8
      %s448 = scalar_lea.vmem %s0, %s447
      %p449 = pneg %p47
      %p450 = pneg %p44
      %p451 = pneg %p68
      %p452 = pneg %p65
      %p453 = pneg %p89
      %p454 = pneg %p86
      %p455 = pneg %p110
      %p456 = pneg %p107
      %p457 = pneg %p131
      %p458 = pneg %p128
      %p459 = pneg %p152
      %p460 = pneg %p149
      %p461 = pneg %p173
      %p462 = pneg %p170
      %p463 = pneg %p194
      %p464 = pneg %p191
      %p465 = pneg %p215
      %p466 = pneg %p212
      %p467 = pneg %p236
      %p468 = pneg %p233
      %p469 = pneg %p257
      %p470 = pneg %p254
      %p471 = pneg %p278
      %p472 = pneg %p275
      %p473 = pneg %p299
      %p474 = pneg %p296
      %p475 = pneg %p320
      %p476 = pneg %p317
      %p477 = pneg %p341
      %p478 = pneg %p338
      %p479 = pneg %p367
      %p480 = pneg %p364
      %s481 = smul.u32 4, %s26
      %p482 = scmp.lt.s32.totalorder %s481, 7
      %s483 = scalar_select %p482, %s481, 7
      %s484 = smul.addr %s483, 8
      %s485 = scalar_lea.vmem %s15, %s484
      %s486 = smul.u32 64, %s26
      %p487 = scmp.lt.s32.totalorder %s486, 127
      %s488 = scalar_select %p487, %s486, 127
      %s489 = smul.addr %s488, 8
      %s490 = scalar_lea.vmem %s0, %s489
      %s491 = smul.u32 64, %s26
      %s492 = smul.u32 4, %s26
      %p493 = scmp.lt.s32.totalorder %s492, 7
      %s494 = scalar_select %p493, %s492, 7
      %s495 = smul.addr %s494, 8
      %s496 = scalar_lea.vmem %s15, %s495
      %s497 = smul.u32 4, %s26
      %v499 = vld [vmem:[%s490] sm:$0xff]
      %v500 = vld [vmem:[%s490 + $0x8] sm:$0xff]
      %v501 = vld [vmem:[%s490 + $0x10] sm:$0xff]
      %v502 = vld [vmem:[%s490 + $0x18] sm:$0xff]
      %v503 = vld [vmem:[%s490 + $0x20] sm:$0xff]
      %v504 = vld [vmem:[%s490 + $0x28] sm:$0xff]
      %v505 = vld [vmem:[%s490 + $0x30] sm:$0xff]
      %v506 = vld [vmem:[%s490 + $0x38] sm:$0xff]
      %v507 = vld [vmem:[%s490 + $0x40] sm:$0xff]
      %v508 = vld [vmem:[%s490 + $0x48] sm:$0xff]
      %v509 = vld [vmem:[%s490 + $0x50] sm:$0xff]
      %v510 = vld [vmem:[%s490 + $0x58] sm:$0xff]
      %v511 = vld [vmem:[%s490 + $0x60] sm:$0xff]
      %v512 = vld [vmem:[%s490 + $0x68] sm:$0xff]
      %v513 = vld [vmem:[%s490 + $0x70] sm:$0xff]
      %v514 = vld [vmem:[%s490 + $0x78] sm:$0xff]
      %v515 = vld [vmem:[%s490 + $0x80] sm:$0xff]
      %v516 = vld [vmem:[%s490 + $0x88] sm:$0xff]
      %v517 = vld [vmem:[%s490 + $0x90] sm:$0xff]
      %v518 = vld [vmem:[%s490 + $0x98] sm:$0xff]
      %v519 = vld [vmem:[%s490 + $0xa0] sm:$0xff]
      %v520 = vld [vmem:[%s490 + $0xa8] sm:$0xff]
      %v521 = vld [vmem:[%s490 + $0xb0] sm:$0xff]
      %v522 = vld [vmem:[%s490 + $0xb8] sm:$0xff]
      %v523 = vld [vmem:[%s490 + $0xc0] sm:$0xff]
      %v524 = vld [vmem:[%s490 + $0xc8] sm:$0xff]
      %v525 = vld [vmem:[%s490 + $0xd0] sm:$0xff]
      %v526 = vld [vmem:[%s490 + $0xd8] sm:$0xff]
      %v527 = vld [vmem:[%s490 + $0xe0] sm:$0xff]
      %v528 = vld [vmem:[%s490 + $0xe8] sm:$0xff]
      %v529 = vld [vmem:[%s490 + $0xf0] sm:$0xff]
      %v530 = vld [vmem:[%s490 + $0xf8] sm:$0xff]
      %v531 = vpack.c.bf16 %v500, %v499
      %v532 = vpack.c.bf16 %v502, %v501
      %v533 = vpack.c.bf16 %v504, %v503
      %v534 = vpack.c.bf16 %v506, %v505
      %v535 = vpack.c.bf16 %v508, %v507
      %v536 = vpack.c.bf16 %v510, %v509
      %v537 = vpack.c.bf16 %v512, %v511
      %v538 = vpack.c.bf16 %v514, %v513
      %v539 = vpack.c.bf16 %v516, %v515
      %v540 = vpack.c.bf16 %v518, %v517
      %v541 = vpack.c.bf16 %v520, %v519
      %v542 = vpack.c.bf16 %v522, %v521
      %v543 = vpack.c.bf16 %v524, %v523
      %v544 = vpack.c.bf16 %v526, %v525
      %v545 = vpack.c.bf16 %v528, %v527
      %v546 = vpack.c.bf16 %v530, %v529
      %v547 = vld [vmem:[%s490 + $0x100] sm:$0xff]
      %v548 = vld [vmem:[%s490 + $0x108] sm:$0xff]
      %v549 = vld [vmem:[%s490 + $0x110] sm:$0xff]
      %v550 = vld [vmem:[%s490 + $0x118] sm:$0xff]
      %v551 = vld [vmem:[%s490 + $0x120] sm:$0xff]
      %v552 = vld [vmem:[%s490 + $0x128] sm:$0xff]
      %v553 = vld [vmem:[%s490 + $0x130] sm:$0xff]
      %v554 = vld [vmem:[%s490 + $0x138] sm:$0xff]
      %v555 = vld [vmem:[%s490 + $0x140] sm:$0xff]
      %v556 = vld [vmem:[%s490 + $0x148] sm:$0xff]
      %v557 = vld [vmem:[%s490 + $0x150] sm:$0xff]
      %v558 = vld [vmem:[%s490 + $0x158] sm:$0xff]
      %v559 = vld [vmem:[%s490 + $0x160] sm:$0xff]
      %v560 = vld [vmem:[%s490 + $0x168] sm:$0xff]
      %v561 = vld [vmem:[%s490 + $0x170] sm:$0xff]
      %v562 = vld [vmem:[%s490 + $0x178] sm:$0xff]
      %v563 = vld [vmem:[%s490 + $0x180] sm:$0xff]
      %v564 = vld [vmem:[%s490 + $0x188] sm:$0xff]
      %v565 = vld [vmem:[%s490 + $0x190] sm:$0xff]
      %v566 = vld [vmem:[%s490 + $0x198] sm:$0xff]
      %v567 = vld [vmem:[%s490 + $0x1a0] sm:$0xff]
      %v568 = vld [vmem:[%s490 + $0x1a8] sm:$0xff]
      %v569 = vld [vmem:[%s490 + $0x1b0] sm:$0xff]
      %v570 = vld [vmem:[%s490 + $0x1b8] sm:$0xff]
      %v571 = vld [vmem:[%s490 + $0x1c0] sm:$0xff]
      %v572 = vld [vmem:[%s490 + $0x1c8] sm:$0xff]
      %v573 = vld [vmem:[%s490 + $0x1d0] sm:$0xff]
      %v574 = vld [vmem:[%s490 + $0x1d8] sm:$0xff]
      %v575 = vld [vmem:[%s490 + $0x1e0] sm:$0xff]
      %v576 = vld [vmem:[%s490 + $0x1e8] sm:$0xff]
      %v577 = vld [vmem:[%s490 + $0x1f0] sm:$0xff]
      %v578 = vld [vmem:[%s490 + $0x1f8] sm:$0xff]
      %v579 = vpack.c.bf16 %v548, %v547
      %v580 = vpack.c.bf16 %v550, %v549
      %v581 = vpack.c.bf16 %v552, %v551
      %v582 = vpack.c.bf16 %v554, %v553
      %v583 = vpack.c.bf16 %v556, %v555
      %v584 = vpack.c.bf16 %v558, %v557
      %v585 = vpack.c.bf16 %v560, %v559
      %v586 = vpack.c.bf16 %v562, %v561
      %v587 = vpack.c.bf16 %v564, %v563
      %v588 = vpack.c.bf16 %v566, %v565
      %v589 = vpack.c.bf16 %v568, %v567
      %v590 = vpack.c.bf16 %v570, %v569
      %v591 = vpack.c.bf16 %v572, %v571
      %v592 = vpack.c.bf16 %v574, %v573
      %v593 = vpack.c.bf16 %v576, %v575
      %v594 = vpack.c.bf16 %v578, %v577
      %v595 = vld [vmem:[%s1] sm:$0xff]
      %v596 = vld [vmem:[%s1 + $0x8] sm:$0xff]
      %v597 = vld [vmem:[%s1 + $0x10] sm:$0xff]
      %v598 = vld [vmem:[%s1 + $0x18] sm:$0xff]
      %v599 = vld [vmem:[%s1 + $0x20] sm:$0xff]
      %v600 = vld [vmem:[%s1 + $0x28] sm:$0xff]
      %v601 = vld [vmem:[%s1 + $0x30] sm:$0xff]
      %v602 = vld [vmem:[%s1 + $0x38] sm:$0xff]
      %v603 = vld [vmem:[%s1 + $0x40] sm:$0xff]
      %v604 = vld [vmem:[%s1 + $0x48] sm:$0xff]
      %v605 = vld [vmem:[%s1 + $0x50] sm:$0xff]
      %v606 = vld [vmem:[%s1 + $0x58] sm:$0xff]
      %v607 = vld [vmem:[%s1 + $0x60] sm:$0xff]
      %v608 = vld [vmem:[%s1 + $0x68] sm:$0xff]
      %v609 = vld [vmem:[%s1 + $0x70] sm:$0xff]
      %v610 = vld [vmem:[%s1 + $0x78] sm:$0xff]
      %v611 = vld [vmem:[%s1 + $0x80] sm:$0xff]
      %v612 = vld [vmem:[%s1 + $0x88] sm:$0xff]
      %v613 = vld [vmem:[%s1 + $0x90] sm:$0xff]
      %v614 = vld [vmem:[%s1 + $0x98] sm:$0xff]
      %v615 = vld [vmem:[%s1 + $0xa0] sm:$0xff]
      %v616 = vld [vmem:[%s1 + $0xa8] sm:$0xff]
      %v617 = vld [vmem:[%s1 + $0xb0] sm:$0xff]
      %v618 = vld [vmem:[%s1 + $0xb8] sm:$0xff]
      %v619 = vld [vmem:[%s1 + $0xc0] sm:$0xff]
      %v620 = vld [vmem:[%s1 + $0xc8] sm:$0xff]
      %v621 = vld [vmem:[%s1 + $0xd0] sm:$0xff]
      %v622 = vld [vmem:[%s1 + $0xd8] sm:$0xff]
      %v623 = vld [vmem:[%s1 + $0xe0] sm:$0xff]
      %v624 = vld [vmem:[%s1 + $0xe8] sm:$0xff]
      %v625 = vld [vmem:[%s1 + $0xf0] sm:$0xff]
      %v626 = vld [vmem:[%s1 + $0xf8] sm:$0xff]
      %v627 = vld [vmem:[%s1 + $0x100] sm:$0xff]
      %v628 = vld [vmem:[%s1 + $0x108] sm:$0xff]
      %v629 = vld [vmem:[%s1 + $0x110] sm:$0xff]
      %v630 = vld [vmem:[%s1 + $0x118] sm:$0xff]
      %v631 = vld [vmem:[%s1 + $0x120] sm:$0xff]
      %v632 = vld [vmem:[%s1 + $0x128] sm:$0xff]
      %v633 = vld [vmem:[%s1 + $0x130] sm:$0xff]
      %v634 = vld [vmem:[%s1 + $0x138] sm:$0xff]
      %v635 = vld [vmem:[%s2] sm:$0xff]
      %v637 = vlaneseq
      %v638 = vshrl.u32 %v637, 7
      %v639 = vsub.s32 0, %v638
      %v640 = vrot.slane %v635, %v639
      %v641 = vlaneseq
      %v642 = vshrl.u32 %v641, 7
      %v643 = vsub.s32 1, %v642
      %v644 = vrot.slane %v635, %v643
      %v645 = vlaneseq
      %v646 = vshrl.u32 %v645, 7
      %v647 = vsub.s32 2, %v646
      %v648 = vrot.slane %v635, %v647
      %v649 = vlaneseq
      %v650 = vshrl.u32 %v649, 7
      %v651 = vsub.s32 3, %v650
      %v652 = vrot.slane %v635, %v651
      %v653 = vlaneseq
      %v654 = vshrl.u32 %v653, 7
      %v655 = vsub.s32 4, %v654
      %v656 = vrot.slane %v635, %v655
      %v657 = vlaneseq
      %v658 = vshrl.u32 %v657, 7
      %v659 = vsub.s32 5, %v658
      %v660 = vrot.slane %v635, %v659
      %v661 = vlaneseq
      %v662 = vshrl.u32 %v661, 7
      %v663 = vsub.s32 6, %v662
      %v664 = vrot.slane %v635, %v663
      %v665 = vlaneseq
      %v666 = vshrl.u32 %v665, 7
      %v667 = vsub.s32 7, %v666
      %v668 = vrot.slane %v635, %v667
      %v717 = vunpack.c.l.b16 %v595
      %v718 = vunpack.c.h.b16 %v595
      %v719 = vunpack.c.l.b16 %v596
      %v720 = vunpack.c.h.b16 %v596
      %v721 = vunpack.c.l.b16 %v597
      %v722 = vunpack.c.h.b16 %v597
      %v723 = vunpack.c.l.b16 %v598
      %v724 = vunpack.c.h.b16 %v598
      %v725 = vunpack.c.l.b16 %v599
      %v726 = vunpack.c.h.b16 %v599
      %v727 = vunpack.c.l.b16 %v600
      %v728 = vunpack.c.h.b16 %v600
      %v729 = vunpack.c.l.b16 %v601
      %v730 = vunpack.c.h.b16 %v601
      %v731 = vunpack.c.l.b16 %v602
      %v732 = vunpack.c.h.b16 %v602
      %v733 = vunpack.c.l.b16 %v603
      %v734 = vunpack.c.h.b16 %v603
      %v735 = vunpack.c.l.b16 %v604
      %v736 = vunpack.c.h.b16 %v604
      %v737 = vunpack.c.l.b16 %v605
      %v738 = vunpack.c.h.b16 %v605
      %v739 = vunpack.c.l.b16 %v606
      %v740 = vunpack.c.h.b16 %v606
      %v741 = vunpack.c.l.b16 %v607
      %v742 = vunpack.c.h.b16 %v607
      %v743 = vunpack.c.l.b16 %v608
      %v744 = vunpack.c.h.b16 %v608
      %v745 = vunpack.c.l.b16 %v609
      %v746 = vunpack.c.h.b16 %v609
      %v747 = vunpack.c.l.b16 %v610
      %v748 = vunpack.c.h.b16 %v610
      %v749 = vunpack.c.l.b16 %v611
      %v750 = vunpack.c.h.b16 %v611
      %v751 = vunpack.c.l.b16 %v612
      %v752 = vunpack.c.h.b16 %v612
      %v753 = vunpack.c.l.b16 %v613
      %v754 = vunpack.c.h.b16 %v613
      %v755 = vunpack.c.l.b16 %v614
      %v756 = vunpack.c.h.b16 %v614
      %v757 = vunpack.c.l.b16 %v615
      %v758 = vunpack.c.h.b16 %v615
      %v759 = vunpack.c.l.b16 %v616
      %v760 = vunpack.c.h.b16 %v616
      %v761 = vunpack.c.l.b16 %v617
      %v762 = vunpack.c.h.b16 %v617
      %v763 = vunpack.c.l.b16 %v618
      %v764 = vunpack.c.h.b16 %v618
      %v765 = vunpack.c.l.b16 %v619
      %v766 = vunpack.c.h.b16 %v619
      %v767 = vunpack.c.l.b16 %v620
      %v768 = vunpack.c.h.b16 %v620
      %v769 = vunpack.c.l.b16 %v621
      %v770 = vunpack.c.h.b16 %v621
      %v771 = vunpack.c.l.b16 %v622
      %v772 = vunpack.c.h.b16 %v622
      %v773 = vunpack.c.l.b16 %v623
      %v774 = vunpack.c.h.b16 %v623
      %v775 = vunpack.c.l.b16 %v624
      %v776 = vunpack.c.h.b16 %v624
      %v777 = vunpack.c.l.b16 %v625
      %v778 = vunpack.c.h.b16 %v625
      %v779 = vunpack.c.l.b16 %v626
      %v780 = vunpack.c.h.b16 %v626
      %v781 = vunpack.c.l.b16 %v627
      %v782 = vunpack.c.h.b16 %v627
      %v783 = vunpack.c.l.b16 %v628
      %v784 = vunpack.c.h.b16 %v628
      %v785 = vunpack.c.l.b16 %v629
      %v786 = vunpack.c.h.b16 %v629
      %v787 = vunpack.c.l.b16 %v630
      %v788 = vunpack.c.h.b16 %v630
      %v789 = vunpack.c.l.b16 %v631
      %v790 = vunpack.c.h.b16 %v631
      %v791 = vunpack.c.l.b16 %v632
      %v792 = vunpack.c.h.b16 %v632
      %v793 = vunpack.c.l.b16 %v633
      %v794 = vunpack.c.h.b16 %v633
      %v795 = vunpack.c.l.b16 %v634
      %v796 = vunpack.c.h.b16 %v634
      %v797 = vpack.c.b16 %v725, %v717
      %v798 = vpack.c.b16 %v726, %v718
      %v799 = vpack.c.b16 %v727, %v719
      %v800 = vpack.c.b16 %v728, %v720
      %v801 = vpack.c.b16 %v729, %v721
      %v802 = vpack.c.b16 %v730, %v722
      %v803 = vpack.c.b16 %v731, %v723
      %v804 = vpack.c.b16 %v732, %v724
      %v805 = vpack.c.b16 %v741, %v733
      %v806 = vpack.c.b16 %v742, %v734
      %v807 = vpack.c.b16 %v743, %v735
      %v808 = vpack.c.b16 %v744, %v736
      %v809 = vpack.c.b16 %v745, %v737
      %v810 = vpack.c.b16 %v746, %v738
      %v811 = vpack.c.b16 %v747, %v739
      %v812 = vpack.c.b16 %v748, %v740
      %v813 = vpack.c.b16 %v757, %v749
      %v814 = vpack.c.b16 %v758, %v750
      %v815 = vpack.c.b16 %v759, %v751
      %v816 = vpack.c.b16 %v760, %v752
      %v817 = vpack.c.b16 %v761, %v753
      %v818 = vpack.c.b16 %v762, %v754
      %v819 = vpack.c.b16 %v763, %v755
      %v820 = vpack.c.b16 %v764, %v756
      %v821 = vpack.c.b16 %v773, %v765
      %v822 = vpack.c.b16 %v774, %v766
      %v823 = vpack.c.b16 %v775, %v767
      %v824 = vpack.c.b16 %v776, %v768
      %v825 = vpack.c.b16 %v777, %v769
      %v826 = vpack.c.b16 %v778, %v770
      %v827 = vpack.c.b16 %v779, %v771
      %v828 = vpack.c.b16 %v780, %v772
      %v829 = vpack.c.b16 %v789, %v781
      %v830 = vpack.c.b16 %v790, %v782
      %v831 = vpack.c.b16 %v791, %v783
      %v832 = vpack.c.b16 %v792, %v784
      %v833 = vpack.c.b16 %v793, %v785
      %v834 = vpack.c.b16 %v794, %v786
      %v835 = vpack.c.b16 %v795, %v787
      %v836 = vpack.c.b16 %v796, %v788
      %vm877 = vcmask 654336
      %v879 = vsel %vm877, %v531, 0
      %v882 = vsel %vm877, %v532, 0
      %v885 = vsel %vm877, %v533, 0
      %v888 = vsel %vm877, %v534, 0
      %v891 = vsel %vm877, %v535, 0
      %v894 = vsel %vm877, %v536, 0
      %v897 = vsel %vm877, %v537, 0
      %v900 = vsel %vm877, %v538, 0
      %v903 = vsel %vm877, %v539, 0
      %v906 = vsel %vm877, %v540, 0
      %v909 = vsel %vm877, %v541, 0
      %v912 = vsel %vm877, %v542, 0
      %v915 = vsel %vm877, %v543, 0
      %v918 = vsel %vm877, %v544, 0
      %v921 = vsel %vm877, %v545, 0
      %v924 = vsel %vm877, %v546, 0
      %926 = vmatprep.subr.bf16.mxu0 0
      %927 = vmatpush1.bf16.msra.mxu0 0
      %928 = vmatprep.subr.bf16.mxu0 0
      %929 = vmatpush1.bf16.msra.mxu0 0
      %930 = vmatprep.subr.bf16.mxu0 0
      %931 = vmatpush1.bf16.msra.mxu0 0
      %932 = vmatprep.subr.bf16.mxu0 %v830
      %933 = vmatpush1.bf16.msra.mxu0 %v829
      %934 = vmatprep.subr.bf16.mxu0 %v822
      %935 = vmatpush1.bf16.msra.mxu0 %v821
      %936 = vmatprep.subr.bf16.mxu0 %v814
      %937 = vmatpush1.bf16.msra.mxu0 %v813
      %938 = vmatprep.subr.bf16.mxu0 %v806
      %939 = vmatpush1.bf16.msra.mxu0 %v805
      %940 = vmatprep.subr.bf16.mxu0 %v798
      %941 = vmatpush1.bf16.msra.mxu0 %v797
      %942 = vmatprep.subr.bf16.mxu0 0
      %943 = vmatpush2.bf16.msra.mxu0 0
      %944 = vmatprep.subr.bf16.mxu0 0
      %945 = vmatpush2.bf16.msra.mxu0 0
      %946 = vmatprep.subr.bf16.mxu0 0
      %947 = vmatpush2.bf16.msra.mxu0 0
      %948 = vmatprep.subr.bf16.mxu0 0
      %949 = vmatpush2.bf16.msra.mxu0 0
      %950 = vmatprep.subr.bf16.mxu0 0
      %951 = vmatpush2.bf16.msra.mxu0 0
      %952 = vmatprep.subr.bf16.mxu0 0
      %953 = vmatpush2.bf16.msra.mxu0 0
      %954 = vmatprep.subr.bf16.mxu0 0
      %955 = vmatpush2.bf16.msra.mxu0 0
      %956 = vmatprep.subr.bf16.mxu0 0
      %957 = vmatpush2.bf16.msra.mxu0 0
      %958 = vmatprep.mubr.bf16.mxu0 0
      %959 = vmatmul.mubr.bf16.gmra.mxu0 %v879
      %v960 = vpop.f32.mrf.mxu0
      %v961 = vadd.f32 %v640, %v960
      %v962 = vpop.f32.mrf.mxu0
      %v963 = vadd.f32 %v644, %v962
      %v964 = vpop.f32.mrf.mxu0
      %v965 = vadd.f32 %v640, %v964
      %v966 = vpop.f32.mrf.mxu0
      %v967 = vadd.f32 %v644, %v966
      %968 = vmatprep.mubr.bf16.mxu0 0
      %969 = vmatmul.mubr.bf16.gmra.mxu0 %v882
      %v970 = vpop.f32.mrf.mxu0
      %v971 = vadd.f32 %v640, %v970
      %v972 = vpop.f32.mrf.mxu0
      %v973 = vadd.f32 %v644, %v972
      %v974 = vpop.f32.mrf.mxu0
      %v975 = vadd.f32 %v640, %v974
      %v976 = vpop.f32.mrf.mxu0
      %v977 = vadd.f32 %v644, %v976
      %978 = vmatprep.mubr.bf16.mxu0 0
      %979 = vmatmul.mubr.bf16.gmra.mxu0 %v885
      %v980 = vpop.f32.mrf.mxu0
      %v981 = vadd.f32 %v640, %v980
      %v982 = vpop.f32.mrf.mxu0
      %v983 = vadd.f32 %v644, %v982
      %v984 = vpop.f32.mrf.mxu0
      %v985 = vadd.f32 %v640, %v984
      %v986 = vpop.f32.mrf.mxu0
      %v987 = vadd.f32 %v644, %v986
      %988 = vmatprep.mubr.bf16.mxu0 0
      %989 = vmatmul.mubr.bf16.gmra.mxu0 %v888
      %v990 = vpop.f32.mrf.mxu0
      %v991 = vadd.f32 %v640, %v990
      %v992 = vpop.f32.mrf.mxu0
      %v993 = vadd.f32 %v644, %v992
      %v994 = vpop.f32.mrf.mxu0
      %v995 = vadd.f32 %v640, %v994
      %v996 = vpop.f32.mrf.mxu0
      %v997 = vadd.f32 %v644, %v996
      %998 = vmatprep.mubr.bf16.mxu0 0
      %999 = vmatmul.mubr.bf16.gmra.mxu0 %v891
      %v1000 = vpop.f32.mrf.mxu0
      %v1001 = vadd.f32 %v640, %v1000
      %v1002 = vpop.f32.mrf.mxu0
      %v1003 = vadd.f32 %v644, %v1002
      %v1004 = vpop.f32.mrf.mxu0
      %v1005 = vadd.f32 %v640, %v1004
      %v1006 = vpop.f32.mrf.mxu0
      %v1007 = vadd.f32 %v644, %v1006
      %1008 = vmatprep.mubr.bf16.mxu0 0
      %1009 = vmatmul.mubr.bf16.gmra.mxu0 %v894
      %v1010 = vpop.f32.mrf.mxu0
      %v1011 = vadd.f32 %v640, %v1010
      %v1012 = vpop.f32.mrf.mxu0
      %v1013 = vadd.f32 %v644, %v1012
      %v1014 = vpop.f32.mrf.mxu0
      %v1015 = vadd.f32 %v640, %v1014
      %v1016 = vpop.f32.mrf.mxu0
      %v1017 = vadd.f32 %v644, %v1016
      %1018 = vmatprep.mubr.bf16.mxu0 0
      %1019 = vmatmul.mubr.bf16.gmra.mxu0 %v897
      %v1020 = vpop.f32.mrf.mxu0
      %v1021 = vadd.f32 %v640, %v1020
      %v1022 = vpop.f32.mrf.mxu0
      %v1023 = vadd.f32 %v644, %v1022
      %v1024 = vpop.f32.mrf.mxu0
      %v1025 = vadd.f32 %v640, %v1024
      %v1026 = vpop.f32.mrf.mxu0
      %v1027 = vadd.f32 %v644, %v1026
      %1028 = vmatprep.mubr.bf16.mxu0 0
      %1029 = vmatmul.mubr.bf16.gmra.mxu0 %v900
      %v1030 = vpop.f32.mrf.mxu0
      %v1031 = vadd.f32 %v640, %v1030
      %v1032 = vpop.f32.mrf.mxu0
      %v1033 = vadd.f32 %v644, %v1032
      %v1034 = vpop.f32.mrf.mxu0
      %v1035 = vadd.f32 %v640, %v1034
      %v1036 = vpop.f32.mrf.mxu0
      %v1037 = vadd.f32 %v644, %v1036
      %1038 = vmatprep.mubr.bf16.mxu0 0
      %1039 = vmatmul.mubr.bf16.gmra.mxu0 %v903
      %v1040 = vpop.f32.mrf.mxu0
      %v1041 = vadd.f32 %v640, %v1040
      %v1042 = vpop.f32.mrf.mxu0
      %v1043 = vadd.f32 %v644, %v1042
      %v1044 = vpop.f32.mrf.mxu0
      %v1045 = vadd.f32 %v640, %v1044
      %v1046 = vpop.f32.mrf.mxu0
      %v1047 = vadd.f32 %v644, %v1046
      %1048 = vmatprep.mubr.bf16.mxu0 0
      %1049 = vmatmul.mubr.bf16.gmra.mxu0 %v906
      %v1050 = vpop.f32.mrf.mxu0
      %v1051 = vadd.f32 %v640, %v1050
      %v1052 = vpop.f32.mrf.mxu0
      %v1053 = vadd.f32 %v644, %v1052
      %v1054 = vpop.f32.mrf.mxu0
      %v1055 = vadd.f32 %v640, %v1054
      %v1056 = vpop.f32.mrf.mxu0
      %v1057 = vadd.f32 %v644, %v1056
      %1058 = vmatprep.mubr.bf16.mxu0 0
      %1059 = vmatmul.mubr.bf16.gmra.mxu0 %v909
      %v1060 = vpop.f32.mrf.mxu0
      %v1061 = vadd.f32 %v640, %v1060
      %v1062 = vpop.f32.mrf.mxu0
      %v1063 = vadd.f32 %v644, %v1062
      %v1064 = vpop.f32.mrf.mxu0
      %v1065 = vadd.f32 %v640, %v1064
      %v1066 = vpop.f32.mrf.mxu0
      %v1067 = vadd.f32 %v644, %v1066
      %1068 = vmatprep.mubr.bf16.mxu0 0
      %1069 = vmatmul.mubr.bf16.gmra.mxu0 %v912
      %v1070 = vpop.f32.mrf.mxu0
      %v1071 = vadd.f32 %v640, %v1070
      %v1072 = vpop.f32.mrf.mxu0
      %v1073 = vadd.f32 %v644, %v1072
      %v1074 = vpop.f32.mrf.mxu0
      %v1075 = vadd.f32 %v640, %v1074
      %v1076 = vpop.f32.mrf.mxu0
      %v1077 = vadd.f32 %v644, %v1076
      %1078 = vmatprep.mubr.bf16.mxu0 0
      %1079 = vmatmul.mubr.bf16.gmra.mxu0 %v915
      %v1080 = vpop.f32.mrf.mxu0
      %v1081 = vadd.f32 %v640, %v1080
      %v1082 = vpop.f32.mrf.mxu0
      %v1083 = vadd.f32 %v644, %v1082
      %v1084 = vpop.f32.mrf.mxu0
      %v1085 = vadd.f32 %v640, %v1084
      %v1086 = vpop.f32.mrf.mxu0
      %v1087 = vadd.f32 %v644, %v1086
      %1088 = vmatprep.mubr.bf16.mxu0 0
      %1089 = vmatmul.mubr.bf16.gmra.mxu0 %v918
      %v1090 = vpop.f32.mrf.mxu0
      %v1091 = vadd.f32 %v640, %v1090
      %v1092 = vpop.f32.mrf.mxu0
      %v1093 = vadd.f32 %v644, %v1092
      %v1094 = vpop.f32.mrf.mxu0
      %v1095 = vadd.f32 %v640, %v1094
      %v1096 = vpop.f32.mrf.mxu0
      %v1097 = vadd.f32 %v644, %v1096
      %1098 = vmatprep.mubr.bf16.mxu0 0
      %1099 = vmatmul.mubr.bf16.gmra.mxu0 %v921
      %v1100 = vpop.f32.mrf.mxu0
      %v1101 = vadd.f32 %v640, %v1100
      %v1102 = vpop.f32.mrf.mxu0
      %v1103 = vadd.f32 %v644, %v1102
      %v1104 = vpop.f32.mrf.mxu0
      %v1105 = vadd.f32 %v640, %v1104
      %v1106 = vpop.f32.mrf.mxu0
      %v1107 = vadd.f32 %v644, %v1106
      %1108 = vmatprep.mubr.bf16.mxu0 0
      %1109 = vmatmul.mubr.bf16.gmra.mxu0 %v924
      %v1110 = vpop.f32.mrf.mxu0
      %v1111 = vadd.f32 %v640, %v1110
      %v1112 = vpop.f32.mrf.mxu0
      %v1113 = vadd.f32 %v644, %v1112
      %v1114 = vpop.f32.mrf.mxu0
      %v1115 = vadd.f32 %v640, %v1114
      %v1116 = vpop.f32.mrf.mxu0
      %v1117 = vadd.f32 %v644, %v1116
      %1118 = vdwg.mxu0
      %1119 = vmatprep.subr.bf16.mxu0 0
      %1120 = vmatpush1.bf16.msra.mxu0 0
      %1121 = vmatprep.subr.bf16.mxu0 0
      %1122 = vmatpush1.bf16.msra.mxu0 0
      %1123 = vmatprep.subr.bf16.mxu0 0
      %1124 = vmatpush1.bf16.msra.mxu0 0
      %1125 = vmatprep.subr.bf16.mxu0 %v832
      %1126 = vmatpush1.bf16.msra.mxu0 %v831
      %1127 = vmatprep.subr.bf16.mxu0 %v824
      %1128 = vmatpush1.bf16.msra.mxu0 %v823
      %1129 = vmatprep.subr.bf16.mxu0 %v816
      %1130 = vmatpush1.bf16.msra.mxu0 %v815
      %1131 = vmatprep.subr.bf16.mxu0 %v808
      %1132 = vmatpush1.bf16.msra.mxu0 %v807
      %1133 = vmatprep.subr.bf16.mxu0 %v800
      %1134 = vmatpush1.bf16.msra.mxu0 %v799
      %1135 = vmatprep.subr.bf16.mxu0 0
      %1136 = vmatpush2.bf16.msra.mxu0 0
      %1137 = vmatprep.subr.bf16.mxu0 0
      %1138 = vmatpush2.bf16.msra.mxu0 0
      %1139 = vmatprep.subr.bf16.mxu0 0
      %1140 = vmatpush2.bf16.msra.mxu0 0
      %1141 = vmatprep.subr.bf16.mxu0 0
      %1142 = vmatpush2.bf16.msra.mxu0 0
      %1143 = vmatprep.subr.bf16.mxu0 0
      %1144 = vmatpush2.bf16.msra.mxu0 0
      %1145 = vmatprep.subr.bf16.mxu0 0
      %1146 = vmatpush2.bf16.msra.mxu0 0
      %1147 = vmatprep.subr.bf16.mxu0 0
      %1148 = vmatpush2.bf16.msra.mxu0 0
      %1149 = vmatprep.subr.bf16.mxu0 0
      %1150 = vmatpush2.bf16.msra.mxu0 0
      %1151 = vmatprep.mubr.bf16.mxu0 0
      %1152 = vmatmul.mubr.bf16.gmra.mxu0 %v879
      %v1153 = vpop.f32.mrf.mxu0
      %v1154 = vadd.f32 %v648, %v1153
      %v1155 = vpop.f32.mrf.mxu0
      %v1156 = vadd.f32 %v652, %v1155
      %v1157 = vpop.f32.mrf.mxu0
      %v1158 = vadd.f32 %v648, %v1157
      %v1159 = vpop.f32.mrf.mxu0
      %v1160 = vadd.f32 %v652, %v1159
      %1161 = vmatprep.mubr.bf16.mxu0 0
      %1162 = vmatmul.mubr.bf16.gmra.mxu0 %v882
      %v1163 = vpop.f32.mrf.mxu0
      %v1164 = vadd.f32 %v648, %v1163
      %v1165 = vpop.f32.mrf.mxu0
      %v1166 = vadd.f32 %v652, %v1165
      %v1167 = vpop.f32.mrf.mxu0
      %v1168 = vadd.f32 %v648, %v1167
      %v1169 = vpop.f32.mrf.mxu0
      %v1170 = vadd.f32 %v652, %v1169
      %1171 = vmatprep.mubr.bf16.mxu0 0
      %1172 = vmatmul.mubr.bf16.gmra.mxu0 %v885
      %v1173 = vpop.f32.mrf.mxu0
      %v1174 = vadd.f32 %v648, %v1173
      %v1175 = vpop.f32.mrf.mxu0
      %v1176 = vadd.f32 %v652, %v1175
      %v1177 = vpop.f32.mrf.mxu0
      %v1178 = vadd.f32 %v648, %v1177
      %v1179 = vpop.f32.mrf.mxu0
      %v1180 = vadd.f32 %v652, %v1179
      %1181 = vmatprep.mubr.bf16.mxu0 0
      %1182 = vmatmul.mubr.bf16.gmra.mxu0 %v888
      %v1183 = vpop.f32.mrf.mxu0
      %v1184 = vadd.f32 %v648, %v1183
      %v1185 = vpop.f32.mrf.mxu0
      %v1186 = vadd.f32 %v652, %v1185
      %v1187 = vpop.f32.mrf.mxu0
      %v1188 = vadd.f32 %v648, %v1187
      %v1189 = vpop.f32.mrf.mxu0
      %v1190 = vadd.f32 %v652, %v1189
      %1191 = vmatprep.mubr.bf16.mxu0 0
      %1192 = vmatmul.mubr.bf16.gmra.mxu0 %v891
      %v1193 = vpop.f32.mrf.mxu0
      %v1194 = vadd.f32 %v648, %v1193
      %v1195 = vpop.f32.mrf.mxu0
      %v1196 = vadd.f32 %v652, %v1195
      %v1197 = vpop.f32.mrf.mxu0
      %v1198 = vadd.f32 %v648, %v1197
      %v1199 = vpop.f32.mrf.mxu0
      %v1200 = vadd.f32 %v652, %v1199
      %1201 = vmatprep.mubr.bf16.mxu0 0
      %1202 = vmatmul.mubr.bf16.gmra.mxu0 %v894
      %v1203 = vpop.f32.mrf.mxu0
      %v1204 = vadd.f32 %v648, %v1203
      %v1205 = vpop.f32.mrf.mxu0
      %v1206 = vadd.f32 %v652, %v1205
      %v1207 = vpop.f32.mrf.mxu0
      %v1208 = vadd.f32 %v648, %v1207
      %v1209 = vpop.f32.mrf.mxu0
      %v1210 = vadd.f32 %v652, %v1209
      %1211 = vmatprep.mubr.bf16.mxu0 0
      %1212 = vmatmul.mubr.bf16.gmra.mxu0 %v897
      %v1213 = vpop.f32.mrf.mxu0
      %v1214 = vadd.f32 %v648, %v1213
      %v1215 = vpop.f32.mrf.mxu0
      %v1216 = vadd.f32 %v652, %v1215
      %v1217 = vpop.f32.mrf.mxu0
      %v1218 = vadd.f32 %v648, %v1217
      %v1219 = vpop.f32.mrf.mxu0
      %v1220 = vadd.f32 %v652, %v1219
      %1221 = vmatprep.mubr.bf16.mxu0 0
      %1222 = vmatmul.mubr.bf16.gmra.mxu0 %v900
      %v1223 = vpop.f32.mrf.mxu0
      %v1224 = vadd.f32 %v648, %v1223
      %v1225 = vpop.f32.mrf.mxu0
      %v1226 = vadd.f32 %v652, %v1225
      %v1227 = vpop.f32.mrf.mxu0
      %v1228 = vadd.f32 %v648, %v1227
      %v1229 = vpop.f32.mrf.mxu0
      %v1230 = vadd.f32 %v652, %v1229
      %1231 = vmatprep.mubr.bf16.mxu0 0
      %1232 = vmatmul.mubr.bf16.gmra.mxu0 %v903
      %v1233 = vpop.f32.mrf.mxu0
      %v1234 = vadd.f32 %v648, %v1233
      %v1235 = vpop.f32.mrf.mxu0
      %v1236 = vadd.f32 %v652, %v1235
      %v1237 = vpop.f32.mrf.mxu0
      %v1238 = vadd.f32 %v648, %v1237
      %v1239 = vpop.f32.mrf.mxu0
      %v1240 = vadd.f32 %v652, %v1239
      %1241 = vmatprep.mubr.bf16.mxu0 0
      %1242 = vmatmul.mubr.bf16.gmra.mxu0 %v906
      %v1243 = vpop.f32.mrf.mxu0
      %v1244 = vadd.f32 %v648, %v1243
      %v1245 = vpop.f32.mrf.mxu0
      %v1246 = vadd.f32 %v652, %v1245
      %v1247 = vpop.f32.mrf.mxu0
      %v1248 = vadd.f32 %v648, %v1247
      %v1249 = vpop.f32.mrf.mxu0
      %v1250 = vadd.f32 %v652, %v1249
      %1251 = vmatprep.mubr.bf16.mxu0 0
      %1252 = vmatmul.mubr.bf16.gmra.mxu0 %v909
      %v1253 = vpop.f32.mrf.mxu0
      %v1254 = vadd.f32 %v648, %v1253
      %v1255 = vpop.f32.mrf.mxu0
      %v1256 = vadd.f32 %v652, %v1255
      %v1257 = vpop.f32.mrf.mxu0
      %v1258 = vadd.f32 %v648, %v1257
      %v1259 = vpop.f32.mrf.mxu0
      %v1260 = vadd.f32 %v652, %v1259
      %1261 = vmatprep.mubr.bf16.mxu0 0
      %1262 = vmatmul.mubr.bf16.gmra.mxu0 %v912
      %v1263 = vpop.f32.mrf.mxu0
      %v1264 = vadd.f32 %v648, %v1263
      %v1265 = vpop.f32.mrf.mxu0
      %v1266 = vadd.f32 %v652, %v1265
      %v1267 = vpop.f32.mrf.mxu0
      %v1268 = vadd.f32 %v648, %v1267
      %v1269 = vpop.f32.mrf.mxu0
      %v1270 = vadd.f32 %v652, %v1269
      %1271 = vmatprep.mubr.bf16.mxu0 0
      %1272 = vmatmul.mubr.bf16.gmra.mxu0 %v915
      %v1273 = vpop.f32.mrf.mxu0
      %v1274 = vadd.f32 %v648, %v1273
      %v1275 = vpop.f32.mrf.mxu0
      %v1276 = vadd.f32 %v652, %v1275
      %v1277 = vpop.f32.mrf.mxu0
      %v1278 = vadd.f32 %v648, %v1277
      %v1279 = vpop.f32.mrf.mxu0
      %v1280 = vadd.f32 %v652, %v1279
      %1281 = vmatprep.mubr.bf16.mxu0 0
      %1282 = vmatmul.mubr.bf16.gmra.mxu0 %v918
      %v1283 = vpop.f32.mrf.mxu0
      %v1284 = vadd.f32 %v648, %v1283
      %v1285 = vpop.f32.mrf.mxu0
      %v1286 = vadd.f32 %v652, %v1285
      %v1287 = vpop.f32.mrf.mxu0
      %v1288 = vadd.f32 %v648, %v1287
      %v1289 = vpop.f32.mrf.mxu0
      %v1290 = vadd.f32 %v652, %v1289
      %1291 = vmatprep.mubr.bf16.mxu0 0
      %1292 = vmatmul.mubr.bf16.gmra.mxu0 %v921
      %v1293 = vpop.f32.mrf.mxu0
      %v1294 = vadd.f32 %v648, %v1293
      %v1295 = vpop.f32.mrf.mxu0
      %v1296 = vadd.f32 %v652, %v1295
      %v1297 = vpop.f32.mrf.mxu0
      %v1298 = vadd.f32 %v648, %v1297
      %v1299 = vpop.f32.mrf.mxu0
      %v1300 = vadd.f32 %v652, %v1299
      %1301 = vmatprep.mubr.bf16.mxu0 0
      %1302 = vmatmul.mubr.bf16.gmra.mxu0 %v924
      %v1303 = vpop.f32.mrf.mxu0
      %v1304 = vadd.f32 %v648, %v1303
      %v1305 = vpop.f32.mrf.mxu0
      %v1306 = vadd.f32 %v652, %v1305
      %v1307 = vpop.f32.mrf.mxu0
      %v1308 = vadd.f32 %v648, %v1307
      %v1309 = vpop.f32.mrf.mxu0
      %v1310 = vadd.f32 %v652, %v1309
      %1311 = vdwg.mxu0
      %1312 = vmatprep.subr.bf16.mxu0 0
      %1313 = vmatpush1.bf16.msra.mxu0 0
      %1314 = vmatprep.subr.bf16.mxu0 0
      %1315 = vmatpush1.bf16.msra.mxu0 0
      %1316 = vmatprep.subr.bf16.mxu0 0
      %1317 = vmatpush1.bf16.msra.mxu0 0
      %1318 = vmatprep.subr.bf16.mxu0 %v834
      %1319 = vmatpush1.bf16.msra.mxu0 %v833
      %1320 = vmatprep.subr.bf16.mxu0 %v826
      %1321 = vmatpush1.bf16.msra.mxu0 %v825
      %1322 = vmatprep.subr.bf16.mxu0 %v818
      %1323 = vmatpush1.bf16.msra.mxu0 %v817
      %1324 = vmatprep.subr.bf16.mxu0 %v810
      %1325 = vmatpush1.bf16.msra.mxu0 %v809
      %1326 = vmatprep.subr.bf16.mxu0 %v802
      %1327 = vmatpush1.bf16.msra.mxu0 %v801
      %1328 = vmatprep.subr.bf16.mxu0 0
      %1329 = vmatpush2.bf16.msra.mxu0 0
      %1330 = vmatprep.subr.bf16.mxu0 0
      %1331 = vmatpush2.bf16.msra.mxu0 0
      %1332 = vmatprep.subr.bf16.mxu0 0
      %1333 = vmatpush2.bf16.msra.mxu0 0
      %1334 = vmatprep.subr.bf16.mxu0 0
      %1335 = vmatpush2.bf16.msra.mxu0 0
      %1336 = vmatprep.subr.bf16.mxu0 0
      %1337 = vmatpush2.bf16.msra.mxu0 0
      %1338 = vmatprep.subr.bf16.mxu0 0
      %1339 = vmatpush2.bf16.msra.mxu0 0
      %1340 = vmatprep.subr.bf16.mxu0 0
      %1341 = vmatpush2.bf16.msra.mxu0 0
      %1342 = vmatprep.subr.bf16.mxu0 0
      %1343 = vmatpush2.bf16.msra.mxu0 0
      %1344 = vmatprep.mubr.bf16.mxu0 0
      %1345 = vmatmul.mubr.bf16.gmra.mxu0 %v879
      %v1346 = vpop.f32.mrf.mxu0
      %v1347 = vadd.f32 %v656, %v1346
      %v1348 = vpop.f32.mrf.mxu0
      %v1349 = vadd.f32 %v660, %v1348
      %v1350 = vpop.f32.mrf.mxu0
      %v1351 = vadd.f32 %v656, %v1350
      %v1352 = vpop.f32.mrf.mxu0
      %v1353 = vadd.f32 %v660, %v1352
      %1354 = vmatprep.mubr.bf16.mxu0 0
      %1355 = vmatmul.mubr.bf16.gmra.mxu0 %v882
      %v1356 = vpop.f32.mrf.mxu0
      %v1357 = vadd.f32 %v656, %v1356
      %v1358 = vpop.f32.mrf.mxu0
      %v1359 = vadd.f32 %v660, %v1358
      %v1360 = vpop.f32.mrf.mxu0
      %v1361 = vadd.f32 %v656, %v1360
      %v1362 = vpop.f32.mrf.mxu0
      %v1363 = vadd.f32 %v660, %v1362
      %1364 = vmatprep.mubr.bf16.mxu0 0
      %1365 = vmatmul.mubr.bf16.gmra.mxu0 %v885
      %v1366 = vpop.f32.mrf.mxu0
      %v1367 = vadd.f32 %v656, %v1366
      %v1368 = vpop.f32.mrf.mxu0
      %v1369 = vadd.f32 %v660, %v1368
      %v1370 = vpop.f32.mrf.mxu0
      %v1371 = vadd.f32 %v656, %v1370
      %v1372 = vpop.f32.mrf.mxu0
      %v1373 = vadd.f32 %v660, %v1372
      %1374 = vmatprep.mubr.bf16.mxu0 0
      %1375 = vmatmul.mubr.bf16.gmra.mxu0 %v888
      %v1376 = vpop.f32.mrf.mxu0
      %v1377 = vadd.f32 %v656, %v1376
      %v1378 = vpop.f32.mrf.mxu0
      %v1379 = vadd.f32 %v660, %v1378
      %v1380 = vpop.f32.mrf.mxu0
      %v1381 = vadd.f32 %v656, %v1380
      %v1382 = vpop.f32.mrf.mxu0
      %v1383 = vadd.f32 %v660, %v1382
      %1384 = vmatprep.mubr.bf16.mxu0 0
      %1385 = vmatmul.mubr.bf16.gmra.mxu0 %v891
      %v1386 = vpop.f32.mrf.mxu0
      %v1387 = vadd.f32 %v656, %v1386
      %v1388 = vpop.f32.mrf.mxu0
      %v1389 = vadd.f32 %v660, %v1388
      %v1390 = vpop.f32.mrf.mxu0
      %v1391 = vadd.f32 %v656, %v1390
      %v1392 = vpop.f32.mrf.mxu0
      %v1393 = vadd.f32 %v660, %v1392
      %1394 = vmatprep.mubr.bf16.mxu0 0
      %1395 = vmatmul.mubr.bf16.gmra.mxu0 %v894
      %v1396 = vpop.f32.mrf.mxu0
      %v1397 = vadd.f32 %v656, %v1396
      %v1398 = vpop.f32.mrf.mxu0
      %v1399 = vadd.f32 %v660, %v1398
      %v1400 = vpop.f32.mrf.mxu0
      %v1401 = vadd.f32 %v656, %v1400
      %v1402 = vpop.f32.mrf.mxu0
      %v1403 = vadd.f32 %v660, %v1402
      %1404 = vmatprep.mubr.bf16.mxu0 0
      %1405 = vmatmul.mubr.bf16.gmra.mxu0 %v897
      %v1406 = vpop.f32.mrf.mxu0
      %v1407 = vadd.f32 %v656, %v1406
      %v1408 = vpop.f32.mrf.mxu0
      %v1409 = vadd.f32 %v660, %v1408
      %v1410 = vpop.f32.mrf.mxu0
      %v1411 = vadd.f32 %v656, %v1410
      %v1412 = vpop.f32.mrf.mxu0
      %v1413 = vadd.f32 %v660, %v1412
      %1414 = vmatprep.mubr.bf16.mxu0 0
      %1415 = vmatmul.mubr.bf16.gmra.mxu0 %v900
      %v1416 = vpop.f32.mrf.mxu0
      %v1417 = vadd.f32 %v656, %v1416
      %v1418 = vpop.f32.mrf.mxu0
      %v1419 = vadd.f32 %v660, %v1418
      %v1420 = vpop.f32.mrf.mxu0
      %v1421 = vadd.f32 %v656, %v1420
      %v1422 = vpop.f32.mrf.mxu0
      %v1423 = vadd.f32 %v660, %v1422
      %1424 = vmatprep.mubr.bf16.mxu0 0
      %1425 = vmatmul.mubr.bf16.gmra.mxu0 %v903
      %v1426 = vpop.f32.mrf.mxu0
      %v1427 = vadd.f32 %v656, %v1426
      %v1428 = vpop.f32.mrf.mxu0
      %v1429 = vadd.f32 %v660, %v1428
      %v1430 = vpop.f32.mrf.mxu0
      %v1431 = vadd.f32 %v656, %v1430
      %v1432 = vpop.f32.mrf.mxu0
      %v1433 = vadd.f32 %v660, %v1432
      %1434 = vmatprep.mubr.bf16.mxu0 0
      %1435 = vmatmul.mubr.bf16.gmra.mxu0 %v906
      %v1436 = vpop.f32.mrf.mxu0
      %v1437 = vadd.f32 %v656, %v1436
      %v1438 = vpop.f32.mrf.mxu0
      %v1439 = vadd.f32 %v660, %v1438
      %v1440 = vpop.f32.mrf.mxu0
      %v1441 = vadd.f32 %v656, %v1440
      %v1442 = vpop.f32.mrf.mxu0
      %v1443 = vadd.f32 %v660, %v1442
      %1444 = vmatprep.mubr.bf16.mxu0 0
      %1445 = vmatmul.mubr.bf16.gmra.mxu0 %v909
      %v1446 = vpop.f32.mrf.mxu0
      %v1447 = vadd.f32 %v656, %v1446
      %v1448 = vpop.f32.mrf.mxu0
      %v1449 = vadd.f32 %v660, %v1448
      %v1450 = vpop.f32.mrf.mxu0
      %v1451 = vadd.f32 %v656, %v1450
      %v1452 = vpop.f32.mrf.mxu0
      %v1453 = vadd.f32 %v660, %v1452
      %1454 = vmatprep.mubr.bf16.mxu0 0
      %1455 = vmatmul.mubr.bf16.gmra.mxu0 %v912
      %v1456 = vpop.f32.mrf.mxu0
      %v1457 = vadd.f32 %v656, %v1456
      %v1458 = vpop.f32.mrf.mxu0
      %v1459 = vadd.f32 %v660, %v1458
      %v1460 = vpop.f32.mrf.mxu0
      %v1461 = vadd.f32 %v656, %v1460
      %v1462 = vpop.f32.mrf.mxu0
      %v1463 = vadd.f32 %v660, %v1462
      %1464 = vmatprep.mubr.bf16.mxu0 0
      %1465 = vmatmul.mubr.bf16.gmra.mxu0 %v915
      %v1466 = vpop.f32.mrf.mxu0
      %v1467 = vadd.f32 %v656, %v1466
      %v1468 = vpop.f32.mrf.mxu0
      %v1469 = vadd.f32 %v660, %v1468
      %v1470 = vpop.f32.mrf.mxu0
      %v1471 = vadd.f32 %v656, %v1470
      %v1472 = vpop.f32.mrf.mxu0
      %v1473 = vadd.f32 %v660, %v1472
      %1474 = vmatprep.mubr.bf16.mxu0 0
      %1475 = vmatmul.mubr.bf16.gmra.mxu0 %v918
      %v1476 = vpop.f32.mrf.mxu0
      %v1477 = vadd.f32 %v656, %v1476
      %v1478 = vpop.f32.mrf.mxu0
      %v1479 = vadd.f32 %v660, %v1478
      %v1480 = vpop.f32.mrf.mxu0
      %v1481 = vadd.f32 %v656, %v1480
      %v1482 = vpop.f32.mrf.mxu0
      %v1483 = vadd.f32 %v660, %v1482
      %1484 = vmatprep.mubr.bf16.mxu0 0
      %1485 = vmatmul.mubr.bf16.gmra.mxu0 %v921
      %v1486 = vpop.f32.mrf.mxu0
      %v1487 = vadd.f32 %v656, %v1486
      %v1488 = vpop.f32.mrf.mxu0
      %v1489 = vadd.f32 %v660, %v1488
      %v1490 = vpop.f32.mrf.mxu0
      %v1491 = vadd.f32 %v656, %v1490
      %v1492 = vpop.f32.mrf.mxu0
      %v1493 = vadd.f32 %v660, %v1492
      %1494 = vmatprep.mubr.bf16.mxu0 0
      %1495 = vmatmul.mubr.bf16.gmra.mxu0 %v924
      %v1496 = vpop.f32.mrf.mxu0
      %v1497 = vadd.f32 %v656, %v1496
      %v1498 = vpop.f32.mrf.mxu0
      %v1499 = vadd.f32 %v660, %v1498
      %v1500 = vpop.f32.mrf.mxu0
      %v1501 = vadd.f32 %v656, %v1500
      %v1502 = vpop.f32.mrf.mxu0
      %v1503 = vadd.f32 %v660, %v1502
      %1504 = vdwg.mxu0
      %1505 = vmatprep.subr.bf16.mxu0 0
      %1506 = vmatpush1.bf16.msra.mxu0 0
      %1507 = vmatprep.subr.bf16.mxu0 0
      %1508 = vmatpush1.bf16.msra.mxu0 0
      %1509 = vmatprep.subr.bf16.mxu0 0
      %1510 = vmatpush1.bf16.msra.mxu0 0
      %1511 = vmatprep.subr.bf16.mxu0 %v836
      %1512 = vmatpush1.bf16.msra.mxu0 %v835
      %1513 = vmatprep.subr.bf16.mxu0 %v828
      %1514 = vmatpush1.bf16.msra.mxu0 %v827
      %1515 = vmatprep.subr.bf16.mxu0 %v820
      %1516 = vmatpush1.bf16.msra.mxu0 %v819
      %1517 = vmatprep.subr.bf16.mxu0 %v812
      %1518 = vmatpush1.bf16.msra.mxu0 %v811
      %1519 = vmatprep.subr.bf16.mxu0 %v804
      %1520 = vmatpush1.bf16.msra.mxu0 %v803
      %1521 = vmatprep.subr.bf16.mxu0 0
      %1522 = vmatpush2.bf16.msra.mxu0 0
      %1523 = vmatprep.subr.bf16.mxu0 0
      %1524 = vmatpush2.bf16.msra.mxu0 0
      %1525 = vmatprep.subr.bf16.mxu0 0
      %1526 = vmatpush2.bf16.msra.mxu0 0
      %1527 = vmatprep.subr.bf16.mxu0 0
      %1528 = vmatpush2.bf16.msra.mxu0 0
      %1529 = vmatprep.subr.bf16.mxu0 0
      %1530 = vmatpush2.bf16.msra.mxu0 0
      %1531 = vmatprep.subr.bf16.mxu0 0
      %1532 = vmatpush2.bf16.msra.mxu0 0
      %1533 = vmatprep.subr.bf16.mxu0 0
      %1534 = vmatpush2.bf16.msra.mxu0 0
      %1535 = vmatprep.subr.bf16.mxu0 0
      %1536 = vmatpush2.bf16.msra.mxu0 0
      %1537 = vmatprep.mubr.bf16.mxu0 0
      %1538 = vmatmul.mubr.bf16.gmra.mxu0 %v879
      %v1539 = vpop.f32.mrf.mxu0
      %v1540 = vadd.f32 %v664, %v1539
      %v1541 = vpop.f32.mrf.mxu0
      %v1542 = vadd.f32 %v668, %v1541
      %v1543 = vpop.f32.mrf.mxu0
      %v1544 = vadd.f32 %v664, %v1543
      %v1545 = vpop.f32.mrf.mxu0
      %v1546 = vadd.f32 %v668, %v1545
      %1547 = vmatprep.mubr.bf16.mxu0 0
      %1548 = vmatmul.mubr.bf16.gmra.mxu0 %v882
      %v1549 = vpop.f32.mrf.mxu0
      %v1550 = vadd.f32 %v664, %v1549
      %v1551 = vpop.f32.mrf.mxu0
      %v1552 = vadd.f32 %v668, %v1551
      %v1553 = vpop.f32.mrf.mxu0
      %v1554 = vadd.f32 %v664, %v1553
      %v1555 = vpop.f32.mrf.mxu0
      %v1556 = vadd.f32 %v668, %v1555
      %1557 = vmatprep.mubr.bf16.mxu0 0
      %1558 = vmatmul.mubr.bf16.gmra.mxu0 %v885
      %v1559 = vpop.f32.mrf.mxu0
      %v1560 = vadd.f32 %v664, %v1559
      %v1561 = vpop.f32.mrf.mxu0
      %v1562 = vadd.f32 %v668, %v1561
      %v1563 = vpop.f32.mrf.mxu0
      %v1564 = vadd.f32 %v664, %v1563
      %v1565 = vpop.f32.mrf.mxu0
      %v1566 = vadd.f32 %v668, %v1565
      %1567 = vmatprep.mubr.bf16.mxu0 0
      %1568 = vmatmul.mubr.bf16.gmra.mxu0 %v888
      %v1569 = vpop.f32.mrf.mxu0
      %v1570 = vadd.f32 %v664, %v1569
      %v1571 = vpop.f32.mrf.mxu0
      %v1572 = vadd.f32 %v668, %v1571
      %v1573 = vpop.f32.mrf.mxu0
      %v1574 = vadd.f32 %v664, %v1573
      %v1575 = vpop.f32.mrf.mxu0
      %v1576 = vadd.f32 %v668, %v1575
      %1577 = vmatprep.mubr.bf16.mxu0 0
      %1578 = vmatmul.mubr.bf16.gmra.mxu0 %v891
      %v1579 = vpop.f32.mrf.mxu0
      %v1580 = vadd.f32 %v664, %v1579
      %v1581 = vpop.f32.mrf.mxu0
      %v1582 = vadd.f32 %v668, %v1581
      %v1583 = vpop.f32.mrf.mxu0
      %v1584 = vadd.f32 %v664, %v1583
      %v1585 = vpop.f32.mrf.mxu0
      %v1586 = vadd.f32 %v668, %v1585
      %1587 = vmatprep.mubr.bf16.mxu0 0
      %1588 = vmatmul.mubr.bf16.gmra.mxu0 %v894
      %v1589 = vpop.f32.mrf.mxu0
      %v1590 = vadd.f32 %v664, %v1589
      %v1591 = vpop.f32.mrf.mxu0
      %v1592 = vadd.f32 %v668, %v1591
      %v1593 = vpop.f32.mrf.mxu0
      %v1594 = vadd.f32 %v664, %v1593
      %v1595 = vpop.f32.mrf.mxu0
      %v1596 = vadd.f32 %v668, %v1595
      %1597 = vmatprep.mubr.bf16.mxu0 0
      %1598 = vmatmul.mubr.bf16.gmra.mxu0 %v897
      %v1599 = vpop.f32.mrf.mxu0
      %v1600 = vadd.f32 %v664, %v1599
      %v1601 = vpop.f32.mrf.mxu0
      %v1602 = vadd.f32 %v668, %v1601
      %v1603 = vpop.f32.mrf.mxu0
      %v1604 = vadd.f32 %v664, %v1603
      %v1605 = vpop.f32.mrf.mxu0
      %v1606 = vadd.f32 %v668, %v1605
      %1607 = vmatprep.mubr.bf16.mxu0 0
      %1608 = vmatmul.mubr.bf16.gmra.mxu0 %v900
      %v1609 = vpop.f32.mrf.mxu0
      %v1610 = vadd.f32 %v664, %v1609
      %v1611 = vpop.f32.mrf.mxu0
      %v1612 = vadd.f32 %v668, %v1611
      %v1613 = vpop.f32.mrf.mxu0
      %v1614 = vadd.f32 %v664, %v1613
      %v1615 = vpop.f32.mrf.mxu0
      %v1616 = vadd.f32 %v668, %v1615
      %1617 = vmatprep.mubr.bf16.mxu0 0
      %1618 = vmatmul.mubr.bf16.gmra.mxu0 %v903
      %v1619 = vpop.f32.mrf.mxu0
      %v1620 = vadd.f32 %v664, %v1619
      %v1621 = vpop.f32.mrf.mxu0
      %v1622 = vadd.f32 %v668, %v1621
      %v1623 = vpop.f32.mrf.mxu0
      %v1624 = vadd.f32 %v664, %v1623
      %v1625 = vpop.f32.mrf.mxu0
      %v1626 = vadd.f32 %v668, %v1625
      %1627 = vmatprep.mubr.bf16.mxu0 0
      %1628 = vmatmul.mubr.bf16.gmra.mxu0 %v906
      %v1629 = vpop.f32.mrf.mxu0
      %v1630 = vadd.f32 %v664, %v1629
      %v1631 = vpop.f32.mrf.mxu0
      %v1632 = vadd.f32 %v668, %v1631
      %v1633 = vpop.f32.mrf.mxu0
      %v1634 = vadd.f32 %v664, %v1633
      %v1635 = vpop.f32.mrf.mxu0
      %v1636 = vadd.f32 %v668, %v1635
      %1637 = vmatprep.mubr.bf16.mxu0 0
      %1638 = vmatmul.mubr.bf16.gmra.mxu0 %v909
      %v1639 = vpop.f32.mrf.mxu0
      %v1640 = vadd.f32 %v664, %v1639
      %v1641 = vpop.f32.mrf.mxu0
      %v1642 = vadd.f32 %v668, %v1641
      %v1643 = vpop.f32.mrf.mxu0
      %v1644 = vadd.f32 %v664, %v1643
      %v1645 = vpop.f32.mrf.mxu0
      %v1646 = vadd.f32 %v668, %v1645
      %1647 = vmatprep.mubr.bf16.mxu0 0
      %1648 = vmatmul.mubr.bf16.gmra.mxu0 %v912
      %v1649 = vpop.f32.mrf.mxu0
      %v1650 = vadd.f32 %v664, %v1649
      %v1651 = vpop.f32.mrf.mxu0
      %v1652 = vadd.f32 %v668, %v1651
      %v1653 = vpop.f32.mrf.mxu0
      %v1654 = vadd.f32 %v664, %v1653
      %v1655 = vpop.f32.mrf.mxu0
      %v1656 = vadd.f32 %v668, %v1655
      %1657 = vmatprep.mubr.bf16.mxu0 0
      %1658 = vmatmul.mubr.bf16.gmra.mxu0 %v915
      %v1659 = vpop.f32.mrf.mxu0
      %v1660 = vadd.f32 %v664, %v1659
      %v1661 = vpop.f32.mrf.mxu0
      %v1662 = vadd.f32 %v668, %v1661
      %v1663 = vpop.f32.mrf.mxu0
      %v1664 = vadd.f32 %v664, %v1663
      %v1665 = vpop.f32.mrf.mxu0
      %v1666 = vadd.f32 %v668, %v1665
      %1667 = vmatprep.mubr.bf16.mxu0 0
      %1668 = vmatmul.mubr.bf16.gmra.mxu0 %v918
      %v1669 = vpop.f32.mrf.mxu0
      %v1670 = vadd.f32 %v664, %v1669
      %v1671 = vpop.f32.mrf.mxu0
      %v1672 = vadd.f32 %v668, %v1671
      %v1673 = vpop.f32.mrf.mxu0
      %v1674 = vadd.f32 %v664, %v1673
      %v1675 = vpop.f32.mrf.mxu0
      %v1676 = vadd.f32 %v668, %v1675
      %1677 = vmatprep.mubr.bf16.mxu0 0
      %1678 = vmatmul.mubr.bf16.gmra.mxu0 %v921
      %v1679 = vpop.f32.mrf.mxu0
      %v1680 = vadd.f32 %v664, %v1679
      %v1681 = vpop.f32.mrf.mxu0
      %v1682 = vadd.f32 %v668, %v1681
      %v1683 = vpop.f32.mrf.mxu0
      %v1684 = vadd.f32 %v664, %v1683
      %v1685 = vpop.f32.mrf.mxu0
      %v1686 = vadd.f32 %v668, %v1685
      %1687 = vmatprep.mubr.bf16.mxu0 0
      %1688 = vmatmul.mubr.bf16.gmra.mxu0 %v924
      %v1689 = vpop.f32.mrf.mxu0
      %v1690 = vadd.f32 %v664, %v1689
      %v1691 = vpop.f32.mrf.mxu0
      %v1692 = vadd.f32 %v668, %v1691
      %v1693 = vpop.f32.mrf.mxu0
      %v1694 = vadd.f32 %v664, %v1693
      %v1695 = vpop.f32.mrf.mxu0
      %v1696 = vadd.f32 %v668, %v1695
      %1697 = vdwg.mxu0
      %v1698 = vmax.f32 %v961, 0.0
      %v1699 = vmax.f32 %v963, 0.0
      %v1700 = vmax.f32 %v1154, 0.0
      %v1701 = vmax.f32 %v1156, 0.0
      %v1702 = vmax.f32 %v1347, 0.0
      %v1703 = vmax.f32 %v1349, 0.0
      %v1704 = vmax.f32 %v1540, 0.0
      %v1705 = vmax.f32 %v1542, 0.0
      %v1706 = vmax.f32 %v965, 0.0
      %v1707 = vmax.f32 %v967, 0.0
      %v1708 = vmax.f32 %v1158, 0.0
      %v1709 = vmax.f32 %v1160, 0.0
      %v1710 = vmax.f32 %v1351, 0.0
      %v1711 = vmax.f32 %v1353, 0.0
      %v1712 = vmax.f32 %v1544, 0.0
      %v1713 = vmax.f32 %v1546, 0.0
      %v1714 = vmax.f32 %v971, 0.0
      %v1715 = vmax.f32 %v973, 0.0
      %v1716 = vmax.f32 %v1164, 0.0
      %v1717 = vmax.f32 %v1166, 0.0
      %v1718 = vmax.f32 %v1357, 0.0
      %v1719 = vmax.f32 %v1359, 0.0
      %v1720 = vmax.f32 %v1550, 0.0
      %v1721 = vmax.f32 %v1552, 0.0
      %v1722 = vmax.f32 %v975, 0.0
      %v1723 = vmax.f32 %v977, 0.0
      %v1724 = vmax.f32 %v1168, 0.0
      %v1725 = vmax.f32 %v1170, 0.0
      %v1726 = vmax.f32 %v1361, 0.0
      %v1727 = vmax.f32 %v1363, 0.0
      %v1728 = vmax.f32 %v1554, 0.0
      %v1729 = vmax.f32 %v1556, 0.0
      %v1730 = vmax.f32 %v981, 0.0
      %v1731 = vmax.f32 %v983, 0.0
      %v1732 = vmax.f32 %v1174, 0.0
      %v1733 = vmax.f32 %v1176, 0.0
      %v1734 = vmax.f32 %v1367, 0.0
      %v1735 = vmax.f32 %v1369, 0.0
      %v1736 = vmax.f32 %v1560, 0.0
      %v1737 = vmax.f32 %v1562, 0.0
      %v1738 = vmax.f32 %v985, 0.0
      %v1739 = vmax.f32 %v987, 0.0
      %v1740 = vmax.f32 %v1178, 0.0
      %v1741 = vmax.f32 %v1180, 0.0
      %v1742 = vmax.f32 %v1371, 0.0
      %v1743 = vmax.f32 %v1373, 0.0
      %v1744 = vmax.f32 %v1564, 0.0
      %v1745 = vmax.f32 %v1566, 0.0
      %v1746 = vmax.f32 %v991, 0.0
      %v1747 = vmax.f32 %v993, 0.0
      %v1748 = vmax.f32 %v1184, 0.0
      %v1749 = vmax.f32 %v1186, 0.0
      %v1750 = vmax.f32 %v1377, 0.0
      %v1751 = vmax.f32 %v1379, 0.0
      %v1752 = vmax.f32 %v1570, 0.0
      %v1753 = vmax.f32 %v1572, 0.0
      %v1754 = vmax.f32 %v995, 0.0
      %v1755 = vmax.f32 %v997, 0.0
      %v1756 = vmax.f32 %v1188, 0.0
      %v1757 = vmax.f32 %v1190, 0.0
      %v1758 = vmax.f32 %v1381, 0.0
      %v1759 = vmax.f32 %v1383, 0.0
      %v1760 = vmax.f32 %v1574, 0.0
      %v1761 = vmax.f32 %v1576, 0.0
      %v1762 = vmax.f32 %v1001, 0.0
      %v1763 = vmax.f32 %v1003, 0.0
      %v1764 = vmax.f32 %v1194, 0.0
      %v1765 = vmax.f32 %v1196, 0.0
      %v1766 = vmax.f32 %v1387, 0.0
      %v1767 = vmax.f32 %v1389, 0.0
      %v1768 = vmax.f32 %v1580, 0.0
      %v1769 = vmax.f32 %v1582, 0.0
      %v1770 = vmax.f32 %v1005, 0.0
      %v1771 = vmax.f32 %v1007, 0.0
      %v1772 = vmax.f32 %v1198, 0.0
      %v1773 = vmax.f32 %v1200, 0.0
      %v1774 = vmax.f32 %v1391, 0.0
      %v1775 = vmax.f32 %v1393, 0.0
      %v1776 = vmax.f32 %v1584, 0.0
      %v1777 = vmax.f32 %v1586, 0.0
      %v1778 = vmax.f32 %v1011, 0.0
      %v1779 = vmax.f32 %v1013, 0.0
      %v1780 = vmax.f32 %v1204, 0.0
      %v1781 = vmax.f32 %v1206, 0.0
      %v1782 = vmax.f32 %v1397, 0.0
      %v1783 = vmax.f32 %v1399, 0.0
      %v1784 = vmax.f32 %v1590, 0.0
      %v1785 = vmax.f32 %v1592, 0.0
      %v1786 = vmax.f32 %v1015, 0.0
      %v1787 = vmax.f32 %v1017, 0.0
      %v1788 = vmax.f32 %v1208, 0.0
      %v1789 = vmax.f32 %v1210, 0.0
      %v1790 = vmax.f32 %v1401, 0.0
      %v1791 = vmax.f32 %v1403, 0.0
      %v1792 = vmax.f32 %v1594, 0.0
      %v1793 = vmax.f32 %v1596, 0.0
      %v1794 = vmax.f32 %v1021, 0.0
      %v1795 = vmax.f32 %v1023, 0.0
      %v1796 = vmax.f32 %v1214, 0.0
      %v1797 = vmax.f32 %v1216, 0.0
      %v1798 = vmax.f32 %v1407, 0.0
      %v1799 = vmax.f32 %v1409, 0.0
      %v1800 = vmax.f32 %v1600, 0.0
      %v1801 = vmax.f32 %v1602, 0.0
      %v1802 = vmax.f32 %v1025, 0.0
      %v1803 = vmax.f32 %v1027, 0.0
      %v1804 = vmax.f32 %v1218, 0.0
      %v1805 = vmax.f32 %v1220, 0.0
      %v1806 = vmax.f32 %v1411, 0.0
      %v1807 = vmax.f32 %v1413, 0.0
      %v1808 = vmax.f32 %v1604, 0.0
      %v1809 = vmax.f32 %v1606, 0.0
      %v1810 = vmax.f32 %v1031, 0.0
      %v1811 = vmax.f32 %v1033, 0.0
      %v1812 = vmax.f32 %v1224, 0.0
      %v1813 = vmax.f32 %v1226, 0.0
      %v1814 = vmax.f32 %v1417, 0.0
      %v1815 = vmax.f32 %v1419, 0.0
      %v1816 = vmax.f32 %v1610, 0.0
      %v1817 = vmax.f32 %v1612, 0.0
      %v1818 = vmax.f32 %v1035, 0.0
      %v1819 = vmax.f32 %v1037, 0.0
      %v1820 = vmax.f32 %v1228, 0.0
      %v1821 = vmax.f32 %v1230, 0.0
      %v1822 = vmax.f32 %v1421, 0.0
      %v1823 = vmax.f32 %v1423, 0.0
      %v1824 = vmax.f32 %v1614, 0.0
      %v1825 = vmax.f32 %v1616, 0.0
      %v1826 = vmax.f32 %v1041, 0.0
      %v1827 = vmax.f32 %v1043, 0.0
      %v1828 = vmax.f32 %v1234, 0.0
      %v1829 = vmax.f32 %v1236, 0.0
      %v1830 = vmax.f32 %v1427, 0.0
      %v1831 = vmax.f32 %v1429, 0.0
      %v1832 = vmax.f32 %v1620, 0.0
      %v1833 = vmax.f32 %v1622, 0.0
      %v1834 = vmax.f32 %v1045, 0.0
      %v1835 = vmax.f32 %v1047, 0.0
      %v1836 = vmax.f32 %v1238, 0.0
      %v1837 = vmax.f32 %v1240, 0.0
      %v1838 = vmax.f32 %v1431, 0.0
      %v1839 = vmax.f32 %v1433, 0.0
      %v1840 = vmax.f32 %v1624, 0.0
      %v1841 = vmax.f32 %v1626, 0.0
      %v1842 = vmax.f32 %v1051, 0.0
      %v1843 = vmax.f32 %v1053, 0.0
      %v1844 = vmax.f32 %v1244, 0.0
      %v1845 = vmax.f32 %v1246, 0.0
      %v1846 = vmax.f32 %v1437, 0.0
      %v1847 = vmax.f32 %v1439, 0.0
      %v1848 = vmax.f32 %v1630, 0.0
      %v1849 = vmax.f32 %v1632, 0.0
      %v1850 = vmax.f32 %v1055, 0.0
      %v1851 = vmax.f32 %v1057, 0.0
      %v1852 = vmax.f32 %v1248, 0.0
      %v1853 = vmax.f32 %v1250, 0.0
      %v1854 = vmax.f32 %v1441, 0.0
      %v1855 = vmax.f32 %v1443, 0.0
      %v1856 = vmax.f32 %v1634, 0.0
      %v1857 = vmax.f32 %v1636, 0.0
      %v1858 = vmax.f32 %v1061, 0.0
      %v1859 = vmax.f32 %v1063, 0.0
      %v1860 = vmax.f32 %v1254, 0.0
      %v1861 = vmax.f32 %v1256, 0.0
      %v1862 = vmax.f32 %v1447, 0.0
      %v1863 = vmax.f32 %v1449, 0.0
      %v1864 = vmax.f32 %v1640, 0.0
      %v1865 = vmax.f32 %v1642, 0.0
      %v1866 = vmax.f32 %v1065, 0.0
      %v1867 = vmax.f32 %v1067, 0.0
      %v1868 = vmax.f32 %v1258, 0.0
      %v1869 = vmax.f32 %v1260, 0.0
      %v1870 = vmax.f32 %v1451, 0.0
      %v1871 = vmax.f32 %v1453, 0.0
      %v1872 = vmax.f32 %v1644, 0.0
      %v1873 = vmax.f32 %v1646, 0.0
      %v1874 = vmax.f32 %v1071, 0.0
      %v1875 = vmax.f32 %v1073, 0.0
      %v1876 = vmax.f32 %v1264, 0.0
      %v1877 = vmax.f32 %v1266, 0.0
      %v1878 = vmax.f32 %v1457, 0.0
      %v1879 = vmax.f32 %v1459, 0.0
      %v1880 = vmax.f32 %v1650, 0.0
      %v1881 = vmax.f32 %v1652, 0.0
      %v1882 = vmax.f32 %v1075, 0.0
      %v1883 = vmax.f32 %v1077, 0.0
      %v1884 = vmax.f32 %v1268, 0.0
      %v1885 = vmax.f32 %v1270, 0.0
      %v1886 = vmax.f32 %v1461, 0.0
      %v1887 = vmax.f32 %v1463, 0.0
      %v1888 = vmax.f32 %v1654, 0.0
      %v1889 = vmax.f32 %v1656, 0.0
      %v1890 = vmax.f32 %v1081, 0.0
      %v1891 = vmax.f32 %v1083, 0.0
      %v1892 = vmax.f32 %v1274, 0.0
      %v1893 = vmax.f32 %v1276, 0.0
      %v1894 = vmax.f32 %v1467, 0.0
      %v1895 = vmax.f32 %v1469, 0.0
      %v1896 = vmax.f32 %v1660, 0.0
      %v1897 = vmax.f32 %v1662, 0.0
      %v1898 = vmax.f32 %v1085, 0.0
      %v1899 = vmax.f32 %v1087, 0.0
      %v1900 = vmax.f32 %v1278, 0.0
      %v1901 = vmax.f32 %v1280, 0.0
      %v1902 = vmax.f32 %v1471, 0.0
      %v1903 = vmax.f32 %v1473, 0.0
      %v1904 = vmax.f32 %v1664, 0.0
      %v1905 = vmax.f32 %v1666, 0.0
      %v1906 = vmax.f32 %v1091, 0.0
      %v1907 = vmax.f32 %v1093, 0.0
      %v1908 = vmax.f32 %v1284, 0.0
      %v1909 = vmax.f32 %v1286, 0.0
      %v1910 = vmax.f32 %v1477, 0.0
      %v1911 = vmax.f32 %v1479, 0.0
      %v1912 = vmax.f32 %v1670, 0.0
      %v1913 = vmax.f32 %v1672, 0.0
      %v1914 = vmax.f32 %v1095, 0.0
      %v1915 = vmax.f32 %v1097, 0.0
      %v1916 = vmax.f32 %v1288, 0.0
      %v1917 = vmax.f32 %v1290, 0.0
      %v1918 = vmax.f32 %v1481, 0.0
      %v1919 = vmax.f32 %v1483, 0.0
      %v1920 = vmax.f32 %v1674, 0.0
      %v1921 = vmax.f32 %v1676, 0.0
      %v1922 = vmax.f32 %v1101, 0.0
      %v1923 = vmax.f32 %v1103, 0.0
      %v1924 = vmax.f32 %v1294, 0.0
      %v1925 = vmax.f32 %v1296, 0.0
      %v1926 = vmax.f32 %v1487, 0.0
      %v1927 = vmax.f32 %v1489, 0.0
      %v1928 = vmax.f32 %v1680, 0.0
      %v1929 = vmax.f32 %v1682, 0.0
      %v1930 = vmax.f32 %v1105, 0.0
      %v1931 = vmax.f32 %v1107, 0.0
      %v1932 = vmax.f32 %v1298, 0.0
      %v1933 = vmax.f32 %v1300, 0.0
      %v1934 = vmax.f32 %v1491, 0.0
      %v1935 = vmax.f32 %v1493, 0.0
      %v1936 = vmax.f32 %v1684, 0.0
      %v1937 = vmax.f32 %v1686, 0.0
      %v1938 = vmax.f32 %v1111, 0.0
      %v1939 = vmax.f32 %v1113, 0.0
      %v1940 = vmax.f32 %v1304, 0.0
      %v1941 = vmax.f32 %v1306, 0.0
      %v1942 = vmax.f32 %v1497, 0.0
      %v1943 = vmax.f32 %v1499, 0.0
      %v1944 = vmax.f32 %v1690, 0.0
      %v1945 = vmax.f32 %v1692, 0.0
      %v1946 = vmax.f32 %v1115, 0.0
      %v1947 = vmax.f32 %v1117, 0.0
      %v1948 = vmax.f32 %v1308, 0.0
      %v1949 = vmax.f32 %v1310, 0.0
      %v1950 = vmax.f32 %v1501, 0.0
      %v1951 = vmax.f32 %v1503, 0.0
      %v1952 = vmax.f32 %v1694, 0.0
      %v1953 = vmax.f32 %v1696, 0.0
      %v1954 = vpack.c.bf16 %v1706, %v1698
      %v1955 = vpack.c.bf16 %v1707, %v1699
      %v1956 = vpack.c.bf16 %v1708, %v1700
      %v1957 = vpack.c.bf16 %v1709, %v1701
      %v1958 = vpack.c.bf16 %v1710, %v1702
      %v1959 = vpack.c.bf16 %v1711, %v1703
      %v1960 = vpack.c.bf16 %v1712, %v1704
      %v1961 = vpack.c.bf16 %v1713, %v1705
      %v1962 = vpack.c.bf16 %v1722, %v1714
      %v1963 = vpack.c.bf16 %v1723, %v1715
      %v1964 = vpack.c.bf16 %v1724, %v1716
      %v1965 = vpack.c.bf16 %v1725, %v1717
      %v1966 = vpack.c.bf16 %v1726, %v1718
      %v1967 = vpack.c.bf16 %v1727, %v1719
      %v1968 = vpack.c.bf16 %v1728, %v1720
      %v1969 = vpack.c.bf16 %v1729, %v1721
      %v1970 = vpack.c.bf16 %v1738, %v1730
      %v1971 = vpack.c.bf16 %v1739, %v1731
      %v1972 = vpack.c.bf16 %v1740, %v1732
      %v1973 = vpack.c.bf16 %v1741, %v1733
      %v1974 = vpack.c.bf16 %v1742, %v1734
      %v1975 = vpack.c.bf16 %v1743, %v1735
      %v1976 = vpack.c.bf16 %v1744, %v1736
      %v1977 = vpack.c.bf16 %v1745, %v1737
      %v1978 = vpack.c.bf16 %v1754, %v1746
      %v1979 = vpack.c.bf16 %v1755, %v1747
      %v1980 = vpack.c.bf16 %v1756, %v1748
      %v1981 = vpack.c.bf16 %v1757, %v1749
      %v1982 = vpack.c.bf16 %v1758, %v1750
      %v1983 = vpack.c.bf16 %v1759, %v1751
      %v1984 = vpack.c.bf16 %v1760, %v1752
      %v1985 = vpack.c.bf16 %v1761, %v1753
      %v1986 = vpack.c.bf16 %v1770, %v1762
      %v1987 = vpack.c.bf16 %v1771, %v1763
      %v1988 = vpack.c.bf16 %v1772, %v1764
      %v1989 = vpack.c.bf16 %v1773, %v1765
      %v1990 = vpack.c.bf16 %v1774, %v1766
      %v1991 = vpack.c.bf16 %v1775, %v1767
      %v1992 = vpack.c.bf16 %v1776, %v1768
      %v1993 = vpack.c.bf16 %v1777, %v1769
      %v1994 = vpack.c.bf16 %v1786, %v1778
      %v1995 = vpack.c.bf16 %v1787, %v1779
      %v1996 = vpack.c.bf16 %v1788, %v1780
      %v1997 = vpack.c.bf16 %v1789, %v1781
      %v1998 = vpack.c.bf16 %v1790, %v1782
      %v1999 = vpack.c.bf16 %v1791, %v1783
      %v2000 = vpack.c.bf16 %v1792, %v1784
      %v2001 = vpack.c.bf16 %v1793, %v1785
      %v2002 = vpack.c.bf16 %v1802, %v1794
      %v2003 = vpack.c.bf16 %v1803, %v1795
      %v2004 = vpack.c.bf16 %v1804, %v1796
      %v2005 = vpack.c.bf16 %v1805, %v1797
      %v2006 = vpack.c.bf16 %v1806, %v1798
      %v2007 = vpack.c.bf16 %v1807, %v1799
      %v2008 = vpack.c.bf16 %v1808, %v1800
      %v2009 = vpack.c.bf16 %v1809, %v1801
      %v2010 = vpack.c.bf16 %v1818, %v1810
      %v2011 = vpack.c.bf16 %v1819, %v1811
      %v2012 = vpack.c.bf16 %v1820, %v1812
      %v2013 = vpack.c.bf16 %v1821, %v1813
      %v2014 = vpack.c.bf16 %v1822, %v1814
      %v2015 = vpack.c.bf16 %v1823, %v1815
      %v2016 = vpack.c.bf16 %v1824, %v1816
      %v2017 = vpack.c.bf16 %v1825, %v1817
      %v2018 = vpack.c.bf16 %v1834, %v1826
      %v2019 = vpack.c.bf16 %v1835, %v1827
      %v2020 = vpack.c.bf16 %v1836, %v1828
      %v2021 = vpack.c.bf16 %v1837, %v1829
      %v2022 = vpack.c.bf16 %v1838, %v1830
      %v2023 = vpack.c.bf16 %v1839, %v1831
      %v2024 = vpack.c.bf16 %v1840, %v1832
      %v2025 = vpack.c.bf16 %v1841, %v1833
      %v2026 = vpack.c.bf16 %v1850, %v1842
      %v2027 = vpack.c.bf16 %v1851, %v1843
      %v2028 = vpack.c.bf16 %v1852, %v1844
      %v2029 = vpack.c.bf16 %v1853, %v1845
      %v2030 = vpack.c.bf16 %v1854, %v1846
      %v2031 = vpack.c.bf16 %v1855, %v1847
      %v2032 = vpack.c.bf16 %v1856, %v1848
      %v2033 = vpack.c.bf16 %v1857, %v1849
      %v2034 = vpack.c.bf16 %v1866, %v1858
      %v2035 = vpack.c.bf16 %v1867, %v1859
      %v2036 = vpack.c.bf16 %v1868, %v1860
      %v2037 = vpack.c.bf16 %v1869, %v1861
      %v2038 = vpack.c.bf16 %v1870, %v1862
      %v2039 = vpack.c.bf16 %v1871, %v1863
      %v2040 = vpack.c.bf16 %v1872, %v1864
      %v2041 = vpack.c.bf16 %v1873, %v1865
      %v2042 = vpack.c.bf16 %v1882, %v1874
      %v2043 = vpack.c.bf16 %v1883, %v1875
      %v2044 = vpack.c.bf16 %v1884, %v1876
      %v2045 = vpack.c.bf16 %v1885, %v1877
      %v2046 = vpack.c.bf16 %v1886, %v1878
      %v2047 = vpack.c.bf16 %v1887, %v1879
      %v2048 = vpack.c.bf16 %v1888, %v1880
      %v2049 = vpack.c.bf16 %v1889, %v1881
      %v2050 = vpack.c.bf16 %v1898, %v1890
      %v2051 = vpack.c.bf16 %v1899, %v1891
      %v2052 = vpack.c.bf16 %v1900, %v1892
      %v2053 = vpack.c.bf16 %v1901, %v1893
      %v2054 = vpack.c.bf16 %v1902, %v1894
      %v2055 = vpack.c.bf16 %v1903, %v1895
      %v2056 = vpack.c.bf16 %v1904, %v1896
      %v2057 = vpack.c.bf16 %v1905, %v1897
      %v2058 = vpack.c.bf16 %v1914, %v1906
      %v2059 = vpack.c.bf16 %v1915, %v1907
      %v2060 = vpack.c.bf16 %v1916, %v1908
      %v2061 = vpack.c.bf16 %v1917, %v1909
      %v2062 = vpack.c.bf16 %v1918, %v1910
      %v2063 = vpack.c.bf16 %v1919, %v1911
      %v2064 = vpack.c.bf16 %v1920, %v1912
      %v2065 = vpack.c.bf16 %v1921, %v1913
      %v2066 = vpack.c.bf16 %v1930, %v1922
      %v2067 = vpack.c.bf16 %v1931, %v1923
      %v2068 = vpack.c.bf16 %v1932, %v1924
      %v2069 = vpack.c.bf16 %v1933, %v1925
      %v2070 = vpack.c.bf16 %v1934, %v1926
      %v2071 = vpack.c.bf16 %v1935, %v1927
      %v2072 = vpack.c.bf16 %v1936, %v1928
      %v2073 = vpack.c.bf16 %v1937, %v1929
      %v2074 = vpack.c.bf16 %v1946, %v1938
      %v2075 = vpack.c.bf16 %v1947, %v1939
      %v2076 = vpack.c.bf16 %v1948, %v1940
      %v2077 = vpack.c.bf16 %v1949, %v1941
      %v2078 = vpack.c.bf16 %v1950, %v1942
      %v2079 = vpack.c.bf16 %v1951, %v1943
      %v2080 = vpack.c.bf16 %v1952, %v1944
      %v2081 = vpack.c.bf16 %v1953, %v1945
      %v2083 = vsel %vm877, %v579, 0
      %v2086 = vsel %vm877, %v580, 0
      %v2089 = vsel %vm877, %v581, 0
      %v2092 = vsel %vm877, %v582, 0
      %v2095 = vsel %vm877, %v583, 0
      %v2098 = vsel %vm877, %v584, 0
      %v2101 = vsel %vm877, %v585, 0
      %v2104 = vsel %vm877, %v586, 0
      %v2107 = vsel %vm877, %v587, 0
      %v2110 = vsel %vm877, %v588, 0
      %v2113 = vsel %vm877, %v589, 0
      %v2116 = vsel %vm877, %v590, 0
      %v2119 = vsel %vm877, %v591, 0
      %v2122 = vsel %vm877, %v592, 0
      %v2125 = vsel %vm877, %v593, 0
      %v2128 = vsel %vm877, %v594, 0
      %2130 = vmatprep.subr.bf16.mxu0 0
      %2131 = vmatpush1.bf16.msra.mxu0 0
      %2132 = vmatprep.subr.bf16.mxu0 0
      %2133 = vmatpush1.bf16.msra.mxu0 0
      %2134 = vmatprep.subr.bf16.mxu0 0
      %2135 = vmatpush1.bf16.msra.mxu0 0
      %2136 = vmatprep.subr.bf16.mxu0 %v830
      %2137 = vmatpush1.bf16.msra.mxu0 %v829
      %2138 = vmatprep.subr.bf16.mxu0 %v822
      %2139 = vmatpush1.bf16.msra.mxu0 %v821
      %2140 = vmatprep.subr.bf16.mxu0 %v814
      %2141 = vmatpush1.bf16.msra.mxu0 %v813
      %2142 = vmatprep.subr.bf16.mxu0 %v806
      %2143 = vmatpush1.bf16.msra.mxu0 %v805
      %2144 = vmatprep.subr.bf16.mxu0 %v798
      %2145 = vmatpush1.bf16.msra.mxu0 %v797
      %2146 = vmatprep.subr.bf16.mxu0 0
      %2147 = vmatpush2.bf16.msra.mxu0 0
      %2148 = vmatprep.subr.bf16.mxu0 0
      %2149 = vmatpush2.bf16.msra.mxu0 0
      %2150 = vmatprep.subr.bf16.mxu0 0
      %2151 = vmatpush2.bf16.msra.mxu0 0
      %2152 = vmatprep.subr.bf16.mxu0 0
      %2153 = vmatpush2.bf16.msra.mxu0 0
      %2154 = vmatprep.subr.bf16.mxu0 0
      %2155 = vmatpush2.bf16.msra.mxu0 0
      %2156 = vmatprep.subr.bf16.mxu0 0
      %2157 = vmatpush2.bf16.msra.mxu0 0
      %2158 = vmatprep.subr.bf16.mxu0 0
      %2159 = vmatpush2.bf16.msra.mxu0 0
      %2160 = vmatprep.subr.bf16.mxu0 0
      %2161 = vmatpush2.bf16.msra.mxu0 0
      %2162 = vmatprep.mubr.bf16.mxu0 0
      %2163 = vmatmul.mubr.bf16.gmra.mxu0 %v2083
      %v2164 = vpop.f32.mrf.mxu0
      %v2165 = vadd.f32 %v640, %v2164
      %v2166 = vpop.f32.mrf.mxu0
      %v2167 = vadd.f32 %v644, %v2166
      %v2168 = vpop.f32.mrf.mxu0
      %v2169 = vadd.f32 %v640, %v2168
      %v2170 = vpop.f32.mrf.mxu0
      %v2171 = vadd.f32 %v644, %v2170
      %2172 = vmatprep.mubr.bf16.mxu0 0
      %2173 = vmatmul.mubr.bf16.gmra.mxu0 %v2086
      %v2174 = vpop.f32.mrf.mxu0
      %v2175 = vadd.f32 %v640, %v2174
      %v2176 = vpop.f32.mrf.mxu0
      %v2177 = vadd.f32 %v644, %v2176
      %v2178 = vpop.f32.mrf.mxu0
      %v2179 = vadd.f32 %v640, %v2178
      %v2180 = vpop.f32.mrf.mxu0
      %v2181 = vadd.f32 %v644, %v2180
      %2182 = vmatprep.mubr.bf16.mxu0 0
      %2183 = vmatmul.mubr.bf16.gmra.mxu0 %v2089
      %v2184 = vpop.f32.mrf.mxu0
      %v2185 = vadd.f32 %v640, %v2184
      %v2186 = vpop.f32.mrf.mxu0
      %v2187 = vadd.f32 %v644, %v2186
      %v2188 = vpop.f32.mrf.mxu0
      %v2189 = vadd.f32 %v640, %v2188
      %v2190 = vpop.f32.mrf.mxu0
      %v2191 = vadd.f32 %v644, %v2190
      %2192 = vmatprep.mubr.bf16.mxu0 0
      %2193 = vmatmul.mubr.bf16.gmra.mxu0 %v2092
      %v2194 = vpop.f32.mrf.mxu0
      %v2195 = vadd.f32 %v640, %v2194
      %v2196 = vpop.f32.mrf.mxu0
      %v2197 = vadd.f32 %v644, %v2196
      %v2198 = vpop.f32.mrf.mxu0
      %v2199 = vadd.f32 %v640, %v2198
      %v2200 = vpop.f32.mrf.mxu0
      %v2201 = vadd.f32 %v644, %v2200
      %2202 = vmatprep.mubr.bf16.mxu0 0
      %2203 = vmatmul.mubr.bf16.gmra.mxu0 %v2095
      %v2204 = vpop.f32.mrf.mxu0
      %v2205 = vadd.f32 %v640, %v2204
      %v2206 = vpop.f32.mrf.mxu0
      %v2207 = vadd.f32 %v644, %v2206
      %v2208 = vpop.f32.mrf.mxu0
      %v2209 = vadd.f32 %v640, %v2208
      %v2210 = vpop.f32.mrf.mxu0
      %v2211 = vadd.f32 %v644, %v2210
      %2212 = vmatprep.mubr.bf16.mxu0 0
      %2213 = vmatmul.mubr.bf16.gmra.mxu0 %v2098
      %v2214 = vpop.f32.mrf.mxu0
      %v2215 = vadd.f32 %v640, %v2214
      %v2216 = vpop.f32.mrf.mxu0
      %v2217 = vadd.f32 %v644, %v2216
      %v2218 = vpop.f32.mrf.mxu0
      %v2219 = vadd.f32 %v640, %v2218
      %v2220 = vpop.f32.mrf.mxu0
      %v2221 = vadd.f32 %v644, %v2220
      %2222 = vmatprep.mubr.bf16.mxu0 0
      %2223 = vmatmul.mubr.bf16.gmra.mxu0 %v2101
      %v2224 = vpop.f32.mrf.mxu0
      %v2225 = vadd.f32 %v640, %v2224
      %v2226 = vpop.f32.mrf.mxu0
      %v2227 = vadd.f32 %v644, %v2226
      %v2228 = vpop.f32.mrf.mxu0
      %v2229 = vadd.f32 %v640, %v2228
      %v2230 = vpop.f32.mrf.mxu0
      %v2231 = vadd.f32 %v644, %v2230
      %2232 = vmatprep.mubr.bf16.mxu0 0
      %2233 = vmatmul.mubr.bf16.gmra.mxu0 %v2104
      %v2234 = vpop.f32.mrf.mxu0
      %v2235 = vadd.f32 %v640, %v2234
      %v2236 = vpop.f32.mrf.mxu0
      %v2237 = vadd.f32 %v644, %v2236
      %v2238 = vpop.f32.mrf.mxu0
      %v2239 = vadd.f32 %v640, %v2238
      %v2240 = vpop.f32.mrf.mxu0
      %v2241 = vadd.f32 %v644, %v2240
      %2242 = vmatprep.mubr.bf16.mxu0 0
      %2243 = vmatmul.mubr.bf16.gmra.mxu0 %v2107
      %v2244 = vpop.f32.mrf.mxu0
      %v2245 = vadd.f32 %v640, %v2244
      %v2246 = vpop.f32.mrf.mxu0
      %v2247 = vadd.f32 %v644, %v2246
      %v2248 = vpop.f32.mrf.mxu0
      %v2249 = vadd.f32 %v640, %v2248
      %v2250 = vpop.f32.mrf.mxu0
      %v2251 = vadd.f32 %v644, %v2250
      %2252 = vmatprep.mubr.bf16.mxu0 0
      %2253 = vmatmul.mubr.bf16.gmra.mxu0 %v2110
      %v2254 = vpop.f32.mrf.mxu0
      %v2255 = vadd.f32 %v640, %v2254
      %v2256 = vpop.f32.mrf.mxu0
      %v2257 = vadd.f32 %v644, %v2256
      %v2258 = vpop.f32.mrf.mxu0
      %v2259 = vadd.f32 %v640, %v2258
      %v2260 = vpop.f32.mrf.mxu0
      %v2261 = vadd.f32 %v644, %v2260
      %2262 = vmatprep.mubr.bf16.mxu0 0
      %2263 = vmatmul.mubr.bf16.gmra.mxu0 %v2113
      %v2264 = vpop.f32.mrf.mxu0
      %v2265 = vadd.f32 %v640, %v2264
      %v2266 = vpop.f32.mrf.mxu0
      %v2267 = vadd.f32 %v644, %v2266
      %v2268 = vpop.f32.mrf.mxu0
      %v2269 = vadd.f32 %v640, %v2268
      %v2270 = vpop.f32.mrf.mxu0
      %v2271 = vadd.f32 %v644, %v2270
      %2272 = vmatprep.mubr.bf16.mxu0 0
      %2273 = vmatmul.mubr.bf16.gmra.mxu0 %v2116
      %v2274 = vpop.f32.mrf.mxu0
      %v2275 = vadd.f32 %v640, %v2274
      %v2276 = vpop.f32.mrf.mxu0
      %v2277 = vadd.f32 %v644, %v2276
      %v2278 = vpop.f32.mrf.mxu0
      %v2279 = vadd.f32 %v640, %v2278
      %v2280 = vpop.f32.mrf.mxu0
      %v2281 = vadd.f32 %v644, %v2280
      %2282 = vmatprep.mubr.bf16.mxu0 0
      %2283 = vmatmul.mubr.bf16.gmra.mxu0 %v2119
      %v2284 = vpop.f32.mrf.mxu0
      %v2285 = vadd.f32 %v640, %v2284
      %v2286 = vpop.f32.mrf.mxu0
      %v2287 = vadd.f32 %v644, %v2286
      %v2288 = vpop.f32.mrf.mxu0
      %v2289 = vadd.f32 %v640, %v2288
      %v2290 = vpop.f32.mrf.mxu0
      %v2291 = vadd.f32 %v644, %v2290
      %2292 = vmatprep.mubr.bf16.mxu0 0
      %2293 = vmatmul.mubr.bf16.gmra.mxu0 %v2122
      %v2294 = vpop.f32.mrf.mxu0
      %v2295 = vadd.f32 %v640, %v2294
      %v2296 = vpop.f32.mrf.mxu0
      %v2297 = vadd.f32 %v644, %v2296
      %v2298 = vpop.f32.mrf.mxu0
      %v2299 = vadd.f32 %v640, %v2298
      %v2300 = vpop.f32.mrf.mxu0
      %v2301 = vadd.f32 %v644, %v2300
      %2302 = vmatprep.mubr.bf16.mxu0 0
      %2303 = vmatmul.mubr.bf16.gmra.mxu0 %v2125
      %v2304 = vpop.f32.mrf.mxu0
      %v2305 = vadd.f32 %v640, %v2304
      %v2306 = vpop.f32.mrf.mxu0
      %v2307 = vadd.f32 %v644, %v2306
      %v2308 = vpop.f32.mrf.mxu0
      %v2309 = vadd.f32 %v640, %v2308
      %v2310 = vpop.f32.mrf.mxu0
      %v2311 = vadd.f32 %v644, %v2310
      %2312 = vmatprep.mubr.bf16.mxu0 0
      %2313 = vmatmul.mubr.bf16.gmra.mxu0 %v2128
      %v2314 = vpop.f32.mrf.mxu0
      %v2315 = vadd.f32 %v640, %v2314
      %v2316 = vpop.f32.mrf.mxu0
      %v2317 = vadd.f32 %v644, %v2316
      %v2318 = vpop.f32.mrf.mxu0
      %v2319 = vadd.f32 %v640, %v2318
      %v2320 = vpop.f32.mrf.mxu0
      %v2321 = vadd.f32 %v644, %v2320
      %2322 = vdwg.mxu0
      %2323 = vmatprep.subr.bf16.mxu0 0
      %2324 = vmatpush1.bf16.msra.mxu0 0
      %2325 = vmatprep.subr.bf16.mxu0 0
      %2326 = vmatpush1.bf16.msra.mxu0 0
      %2327 = vmatprep.subr.bf16.mxu0 0
      %2328 = vmatpush1.bf16.msra.mxu0 0
      %2329 = vmatprep.subr.bf16.mxu0 %v832
      %2330 = vmatpush1.bf16.msra.mxu0 %v831
      %2331 = vmatprep.subr.bf16.mxu0 %v824
      %2332 = vmatpush1.bf16.msra.mxu0 %v823
      %2333 = vmatprep.subr.bf16.mxu0 %v816
      %2334 = vmatpush1.bf16.msra.mxu0 %v815
      %2335 = vmatprep.subr.bf16.mxu0 %v808
      %2336 = vmatpush1.bf16.msra.mxu0 %v807
      %2337 = vmatprep.subr.bf16.mxu0 %v800
      %2338 = vmatpush1.bf16.msra.mxu0 %v799
      %2339 = vmatprep.subr.bf16.mxu0 0
      %2340 = vmatpush2.bf16.msra.mxu0 0
      %2341 = vmatprep.subr.bf16.mxu0 0
      %2342 = vmatpush2.bf16.msra.mxu0 0
      %2343 = vmatprep.subr.bf16.mxu0 0
      %2344 = vmatpush2.bf16.msra.mxu0 0
      %2345 = vmatprep.subr.bf16.mxu0 0
      %2346 = vmatpush2.bf16.msra.mxu0 0
      %2347 = vmatprep.subr.bf16.mxu0 0
      %2348 = vmatpush2.bf16.msra.mxu0 0
      %2349 = vmatprep.subr.bf16.mxu0 0
      %2350 = vmatpush2.bf16.msra.mxu0 0
      %2351 = vmatprep.subr.bf16.mxu0 0
      %2352 = vmatpush2.bf16.msra.mxu0 0
      %2353 = vmatprep.subr.bf16.mxu0 0
      %2354 = vmatpush2.bf16.msra.mxu0 0
      %2355 = vmatprep.mubr.bf16.mxu0 0
      %2356 = vmatmul.mubr.bf16.gmra.mxu0 %v2083
      %v2357 = vpop.f32.mrf.mxu0
      %v2358 = vadd.f32 %v648, %v2357
      %v2359 = vpop.f32.mrf.mxu0
      %v2360 = vadd.f32 %v652, %v2359
      %v2361 = vpop.f32.mrf.mxu0
      %v2362 = vadd.f32 %v648, %v2361
      %v2363 = vpop.f32.mrf.mxu0
      %v2364 = vadd.f32 %v652, %v2363
      %2365 = vmatprep.mubr.bf16.mxu0 0
      %2366 = vmatmul.mubr.bf16.gmra.mxu0 %v2086
      %v2367 = vpop.f32.mrf.mxu0
      %v2368 = vadd.f32 %v648, %v2367
      %v2369 = vpop.f32.mrf.mxu0
      %v2370 = vadd.f32 %v652, %v2369
      %v2371 = vpop.f32.mrf.mxu0
      %v2372 = vadd.f32 %v648, %v2371
      %v2373 = vpop.f32.mrf.mxu0
      %v2374 = vadd.f32 %v652, %v2373
      %2375 = vmatprep.mubr.bf16.mxu0 0
      %2376 = vmatmul.mubr.bf16.gmra.mxu0 %v2089
      %v2377 = vpop.f32.mrf.mxu0
      %v2378 = vadd.f32 %v648, %v2377
      %v2379 = vpop.f32.mrf.mxu0
      %v2380 = vadd.f32 %v652, %v2379
      %v2381 = vpop.f32.mrf.mxu0
      %v2382 = vadd.f32 %v648, %v2381
      %v2383 = vpop.f32.mrf.mxu0
      %v2384 = vadd.f32 %v652, %v2383
      %2385 = vmatprep.mubr.bf16.mxu0 0
      %2386 = vmatmul.mubr.bf16.gmra.mxu0 %v2092
      %v2387 = vpop.f32.mrf.mxu0
      %v2388 = vadd.f32 %v648, %v2387
      %v2389 = vpop.f32.mrf.mxu0
      %v2390 = vadd.f32 %v652, %v2389
      %v2391 = vpop.f32.mrf.mxu0
      %v2392 = vadd.f32 %v648, %v2391
      %v2393 = vpop.f32.mrf.mxu0
      %v2394 = vadd.f32 %v652, %v2393
      %2395 = vmatprep.mubr.bf16.mxu0 0
      %2396 = vmatmul.mubr.bf16.gmra.mxu0 %v2095
      %v2397 = vpop.f32.mrf.mxu0
      %v2398 = vadd.f32 %v648, %v2397
      %v2399 = vpop.f32.mrf.mxu0
      %v2400 = vadd.f32 %v652, %v2399
      %v2401 = vpop.f32.mrf.mxu0
      %v2402 = vadd.f32 %v648, %v2401
      %v2403 = vpop.f32.mrf.mxu0
      %v2404 = vadd.f32 %v652, %v2403
      %2405 = vmatprep.mubr.bf16.mxu0 0
      %2406 = vmatmul.mubr.bf16.gmra.mxu0 %v2098
      %v2407 = vpop.f32.mrf.mxu0
      %v2408 = vadd.f32 %v648, %v2407
      %v2409 = vpop.f32.mrf.mxu0
      %v2410 = vadd.f32 %v652, %v2409
      %v2411 = vpop.f32.mrf.mxu0
      %v2412 = vadd.f32 %v648, %v2411
      %v2413 = vpop.f32.mrf.mxu0
      %v2414 = vadd.f32 %v652, %v2413
      %2415 = vmatprep.mubr.bf16.mxu0 0
      %2416 = vmatmul.mubr.bf16.gmra.mxu0 %v2101
      %v2417 = vpop.f32.mrf.mxu0
      %v2418 = vadd.f32 %v648, %v2417
      %v2419 = vpop.f32.mrf.mxu0
      %v2420 = vadd.f32 %v652, %v2419
      %v2421 = vpop.f32.mrf.mxu0
      %v2422 = vadd.f32 %v648, %v2421
      %v2423 = vpop.f32.mrf.mxu0
      %v2424 = vadd.f32 %v652, %v2423
      %2425 = vmatprep.mubr.bf16.mxu0 0
      %2426 = vmatmul.mubr.bf16.gmra.mxu0 %v2104
      %v2427 = vpop.f32.mrf.mxu0
      %v2428 = vadd.f32 %v648, %v2427
      %v2429 = vpop.f32.mrf.mxu0
      %v2430 = vadd.f32 %v652, %v2429
      %v2431 = vpop.f32.mrf.mxu0
      %v2432 = vadd.f32 %v648, %v2431
      %v2433 = vpop.f32.mrf.mxu0
      %v2434 = vadd.f32 %v652, %v2433
      %2435 = vmatprep.mubr.bf16.mxu0 0
      %2436 = vmatmul.mubr.bf16.gmra.mxu0 %v2107
      %v2437 = vpop.f32.mrf.mxu0
      %v2438 = vadd.f32 %v648, %v2437
      %v2439 = vpop.f32.mrf.mxu0
      %v2440 = vadd.f32 %v652, %v2439
      %v2441 = vpop.f32.mrf.mxu0
      %v2442 = vadd.f32 %v648, %v2441
      %v2443 = vpop.f32.mrf.mxu0
      %v2444 = vadd.f32 %v652, %v2443
      %2445 = vmatprep.mubr.bf16.mxu0 0
      %2446 = vmatmul.mubr.bf16.gmra.mxu0 %v2110
      %v2447 = vpop.f32.mrf.mxu0
      %v2448 = vadd.f32 %v648, %v2447
      %v2449 = vpop.f32.mrf.mxu0
      %v2450 = vadd.f32 %v652, %v2449
      %v2451 = vpop.f32.mrf.mxu0
      %v2452 = vadd.f32 %v648, %v2451
      %v2453 = vpop.f32.mrf.mxu0
      %v2454 = vadd.f32 %v652, %v2453
      %2455 = vmatprep.mubr.bf16.mxu0 0
      %2456 = vmatmul.mubr.bf16.gmra.mxu0 %v2113
      %v2457 = vpop.f32.mrf.mxu0
      %v2458 = vadd.f32 %v648, %v2457
      %v2459 = vpop.f32.mrf.mxu0
      %v2460 = vadd.f32 %v652, %v2459
      %v2461 = vpop.f32.mrf.mxu0
      %v2462 = vadd.f32 %v648, %v2461
      %v2463 = vpop.f32.mrf.mxu0
      %v2464 = vadd.f32 %v652, %v2463
      %2465 = vmatprep.mubr.bf16.mxu0 0
      %2466 = vmatmul.mubr.bf16.gmra.mxu0 %v2116
      %v2467 = vpop.f32.mrf.mxu0
      %v2468 = vadd.f32 %v648, %v2467
      %v2469 = vpop.f32.mrf.mxu0
      %v2470 = vadd.f32 %v652, %v2469
      %v2471 = vpop.f32.mrf.mxu0
      %v2472 = vadd.f32 %v648, %v2471
      %v2473 = vpop.f32.mrf.mxu0
      %v2474 = vadd.f32 %v652, %v2473
      %2475 = vmatprep.mubr.bf16.mxu0 0
      %2476 = vmatmul.mubr.bf16.gmra.mxu0 %v2119
      %v2477 = vpop.f32.mrf.mxu0
      %v2478 = vadd.f32 %v648, %v2477
      %v2479 = vpop.f32.mrf.mxu0
      %v2480 = vadd.f32 %v652, %v2479
      %v2481 = vpop.f32.mrf.mxu0
      %v2482 = vadd.f32 %v648, %v2481
      %v2483 = vpop.f32.mrf.mxu0
      %v2484 = vadd.f32 %v652, %v2483
      %2485 = vmatprep.mubr.bf16.mxu0 0
      %2486 = vmatmul.mubr.bf16.gmra.mxu0 %v2122
      %v2487 = vpop.f32.mrf.mxu0
      %v2488 = vadd.f32 %v648, %v2487
      %v2489 = vpop.f32.mrf.mxu0
      %v2490 = vadd.f32 %v652, %v2489
      %v2491 = vpop.f32.mrf.mxu0
      %v2492 = vadd.f32 %v648, %v2491
      %v2493 = vpop.f32.mrf.mxu0
      %v2494 = vadd.f32 %v652, %v2493
      %2495 = vmatprep.mubr.bf16.mxu0 0
      %2496 = vmatmul.mubr.bf16.gmra.mxu0 %v2125
      %v2497 = vpop.f32.mrf.mxu0
      %v2498 = vadd.f32 %v648, %v2497
      %v2499 = vpop.f32.mrf.mxu0
      %v2500 = vadd.f32 %v652, %v2499
      %v2501 = vpop.f32.mrf.mxu0
      %v2502 = vadd.f32 %v648, %v2501
      %v2503 = vpop.f32.mrf.mxu0
      %v2504 = vadd.f32 %v652, %v2503
      %2505 = vmatprep.mubr.bf16.mxu0 0
      %2506 = vmatmul.mubr.bf16.gmra.mxu0 %v2128
      %v2507 = vpop.f32.mrf.mxu0
      %v2508 = vadd.f32 %v648, %v2507
      %v2509 = vpop.f32.mrf.mxu0
      %v2510 = vadd.f32 %v652, %v2509
      %v2511 = vpop.f32.mrf.mxu0
      %v2512 = vadd.f32 %v648, %v2511
      %v2513 = vpop.f32.mrf.mxu0
      %v2514 = vadd.f32 %v652, %v2513
      %2515 = vdwg.mxu0
      %2516 = vmatprep.subr.bf16.mxu0 0
      %2517 = vmatpush1.bf16.msra.mxu0 0
      %2518 = vmatprep.subr.bf16.mxu0 0
      %2519 = vmatpush1.bf16.msra.mxu0 0
      %2520 = vmatprep.subr.bf16.mxu0 0
      %2521 = vmatpush1.bf16.msra.mxu0 0
      %2522 = vmatprep.subr.bf16.mxu0 %v834
      %2523 = vmatpush1.bf16.msra.mxu0 %v833
      %2524 = vmatprep.subr.bf16.mxu0 %v826
      %2525 = vmatpush1.bf16.msra.mxu0 %v825
      %2526 = vmatprep.subr.bf16.mxu0 %v818
      %2527 = vmatpush1.bf16.msra.mxu0 %v817
      %2528 = vmatprep.subr.bf16.mxu0 %v810
      %2529 = vmatpush1.bf16.msra.mxu0 %v809
      %2530 = vmatprep.subr.bf16.mxu0 %v802
      %2531 = vmatpush1.bf16.msra.mxu0 %v801
      %2532 = vmatprep.subr.bf16.mxu0 0
      %2533 = vmatpush2.bf16.msra.mxu0 0
      %2534 = vmatprep.subr.bf16.mxu0 0
      %2535 = vmatpush2.bf16.msra.mxu0 0
      %2536 = vmatprep.subr.bf16.mxu0 0
      %2537 = vmatpush2.bf16.msra.mxu0 0
      %2538 = vmatprep.subr.bf16.mxu0 0
      %2539 = vmatpush2.bf16.msra.mxu0 0
      %2540 = vmatprep.subr.bf16.mxu0 0
      %2541 = vmatpush2.bf16.msra.mxu0 0
      %2542 = vmatprep.subr.bf16.mxu0 0
      %2543 = vmatpush2.bf16.msra.mxu0 0
      %2544 = vmatprep.subr.bf16.mxu0 0
      %2545 = vmatpush2.bf16.msra.mxu0 0
      %2546 = vmatprep.subr.bf16.mxu0 0
      %2547 = vmatpush2.bf16.msra.mxu0 0
      %2548 = vmatprep.mubr.bf16.mxu0 0
      %2549 = vmatmul.mubr.bf16.gmra.mxu0 %v2083
      %v2550 = vpop.f32.mrf.mxu0
      %v2551 = vadd.f32 %v656, %v2550
      %v2552 = vpop.f32.mrf.mxu0
      %v2553 = vadd.f32 %v660, %v2552
      %v2554 = vpop.f32.mrf.mxu0
      %v2555 = vadd.f32 %v656, %v2554
      %v2556 = vpop.f32.mrf.mxu0
      %v2557 = vadd.f32 %v660, %v2556
      %2558 = vmatprep.mubr.bf16.mxu0 0
      %2559 = vmatmul.mubr.bf16.gmra.mxu0 %v2086
      %v2560 = vpop.f32.mrf.mxu0
      %v2561 = vadd.f32 %v656, %v2560
      %v2562 = vpop.f32.mrf.mxu0
      %v2563 = vadd.f32 %v660, %v2562
      %v2564 = vpop.f32.mrf.mxu0
      %v2565 = vadd.f32 %v656, %v2564
      %v2566 = vpop.f32.mrf.mxu0
      %v2567 = vadd.f32 %v660, %v2566
      %2568 = vmatprep.mubr.bf16.mxu0 0
      %2569 = vmatmul.mubr.bf16.gmra.mxu0 %v2089
      %v2570 = vpop.f32.mrf.mxu0
      %v2571 = vadd.f32 %v656, %v2570
      %v2572 = vpop.f32.mrf.mxu0
      %v2573 = vadd.f32 %v660, %v2572
      %v2574 = vpop.f32.mrf.mxu0
      %v2575 = vadd.f32 %v656, %v2574
      %v2576 = vpop.f32.mrf.mxu0
      %v2577 = vadd.f32 %v660, %v2576
      %2578 = vmatprep.mubr.bf16.mxu0 0
      %2579 = vmatmul.mubr.bf16.gmra.mxu0 %v2092
      %v2580 = vpop.f32.mrf.mxu0
      %v2581 = vadd.f32 %v656, %v2580
      %v2582 = vpop.f32.mrf.mxu0
      %v2583 = vadd.f32 %v660, %v2582
      %v2584 = vpop.f32.mrf.mxu0
      %v2585 = vadd.f32 %v656, %v2584
      %v2586 = vpop.f32.mrf.mxu0
      %v2587 = vadd.f32 %v660, %v2586
      %2588 = vmatprep.mubr.bf16.mxu0 0
      %2589 = vmatmul.mubr.bf16.gmra.mxu0 %v2095
      %v2590 = vpop.f32.mrf.mxu0
      %v2591 = vadd.f32 %v656, %v2590
      %v2592 = vpop.f32.mrf.mxu0
      %v2593 = vadd.f32 %v660, %v2592
      %v2594 = vpop.f32.mrf.mxu0
      %v2595 = vadd.f32 %v656, %v2594
      %v2596 = vpop.f32.mrf.mxu0
      %v2597 = vadd.f32 %v660, %v2596
      %2598 = vmatprep.mubr.bf16.mxu0 0
      %2599 = vmatmul.mubr.bf16.gmra.mxu0 %v2098
      %v2600 = vpop.f32.mrf.mxu0
      %v2601 = vadd.f32 %v656, %v2600
      %v2602 = vpop.f32.mrf.mxu0
      %v2603 = vadd.f32 %v660, %v2602
      %v2604 = vpop.f32.mrf.mxu0
      %v2605 = vadd.f32 %v656, %v2604
      %v2606 = vpop.f32.mrf.mxu0
      %v2607 = vadd.f32 %v660, %v2606
      %2608 = vmatprep.mubr.bf16.mxu0 0
      %2609 = vmatmul.mubr.bf16.gmra.mxu0 %v2101
      %v2610 = vpop.f32.mrf.mxu0
      %v2611 = vadd.f32 %v656, %v2610
      %v2612 = vpop.f32.mrf.mxu0
      %v2613 = vadd.f32 %v660, %v2612
      %v2614 = vpop.f32.mrf.mxu0
      %v2615 = vadd.f32 %v656, %v2614
      %v2616 = vpop.f32.mrf.mxu0
      %v2617 = vadd.f32 %v660, %v2616
      %2618 = vmatprep.mubr.bf16.mxu0 0
      %2619 = vmatmul.mubr.bf16.gmra.mxu0 %v2104
      %v2620 = vpop.f32.mrf.mxu0
      %v2621 = vadd.f32 %v656, %v2620
      %v2622 = vpop.f32.mrf.mxu0
      %v2623 = vadd.f32 %v660, %v2622
      %v2624 = vpop.f32.mrf.mxu0
      %v2625 = vadd.f32 %v656, %v2624
      %v2626 = vpop.f32.mrf.mxu0
      %v2627 = vadd.f32 %v660, %v2626
      %2628 = vmatprep.mubr.bf16.mxu0 0
      %2629 = vmatmul.mubr.bf16.gmra.mxu0 %v2107
      %v2630 = vpop.f32.mrf.mxu0
      %v2631 = vadd.f32 %v656, %v2630
      %v2632 = vpop.f32.mrf.mxu0
      %v2633 = vadd.f32 %v660, %v2632
      %v2634 = vpop.f32.mrf.mxu0
      %v2635 = vadd.f32 %v656, %v2634
      %v2636 = vpop.f32.mrf.mxu0
      %v2637 = vadd.f32 %v660, %v2636
      %2638 = vmatprep.mubr.bf16.mxu0 0
      %2639 = vmatmul.mubr.bf16.gmra.mxu0 %v2110
      %v2640 = vpop.f32.mrf.mxu0
      %v2641 = vadd.f32 %v656, %v2640
      %v2642 = vpop.f32.mrf.mxu0
      %v2643 = vadd.f32 %v660, %v2642
      %v2644 = vpop.f32.mrf.mxu0
      %v2645 = vadd.f32 %v656, %v2644
      %v2646 = vpop.f32.mrf.mxu0
      %v2647 = vadd.f32 %v660, %v2646
      %2648 = vmatprep.mubr.bf16.mxu0 0
      %2649 = vmatmul.mubr.bf16.gmra.mxu0 %v2113
      %v2650 = vpop.f32.mrf.mxu0
      %v2651 = vadd.f32 %v656, %v2650
      %v2652 = vpop.f32.mrf.mxu0
      %v2653 = vadd.f32 %v660, %v2652
      %v2654 = vpop.f32.mrf.mxu0
      %v2655 = vadd.f32 %v656, %v2654
      %v2656 = vpop.f32.mrf.mxu0
      %v2657 = vadd.f32 %v660, %v2656
      %2658 = vmatprep.mubr.bf16.mxu0 0
      %2659 = vmatmul.mubr.bf16.gmra.mxu0 %v2116
      %v2660 = vpop.f32.mrf.mxu0
      %v2661 = vadd.f32 %v656, %v2660
      %v2662 = vpop.f32.mrf.mxu0
      %v2663 = vadd.f32 %v660, %v2662
      %v2664 = vpop.f32.mrf.mxu0
      %v2665 = vadd.f32 %v656, %v2664
      %v2666 = vpop.f32.mrf.mxu0
      %v2667 = vadd.f32 %v660, %v2666
      %2668 = vmatprep.mubr.bf16.mxu0 0
      %2669 = vmatmul.mubr.bf16.gmra.mxu0 %v2119
      %v2670 = vpop.f32.mrf.mxu0
      %v2671 = vadd.f32 %v656, %v2670
      %v2672 = vpop.f32.mrf.mxu0
      %v2673 = vadd.f32 %v660, %v2672
      %v2674 = vpop.f32.mrf.mxu0
      %v2675 = vadd.f32 %v656, %v2674
      %v2676 = vpop.f32.mrf.mxu0
      %v2677 = vadd.f32 %v660, %v2676
      %2678 = vmatprep.mubr.bf16.mxu0 0
      %2679 = vmatmul.mubr.bf16.gmra.mxu0 %v2122
      %v2680 = vpop.f32.mrf.mxu0
      %v2681 = vadd.f32 %v656, %v2680
      %v2682 = vpop.f32.mrf.mxu0
      %v2683 = vadd.f32 %v660, %v2682
      %v2684 = vpop.f32.mrf.mxu0
      %v2685 = vadd.f32 %v656, %v2684
      %v2686 = vpop.f32.mrf.mxu0
      %v2687 = vadd.f32 %v660, %v2686
      %2688 = vmatprep.mubr.bf16.mxu0 0
      %2689 = vmatmul.mubr.bf16.gmra.mxu0 %v2125
      %v2690 = vpop.f32.mrf.mxu0
      %v2691 = vadd.f32 %v656, %v2690
      %v2692 = vpop.f32.mrf.mxu0
      %v2693 = vadd.f32 %v660, %v2692
      %v2694 = vpop.f32.mrf.mxu0
      %v2695 = vadd.f32 %v656, %v2694
      %v2696 = vpop.f32.mrf.mxu0
      %v2697 = vadd.f32 %v660, %v2696
      %2698 = vmatprep.mubr.bf16.mxu0 0
      %2699 = vmatmul.mubr.bf16.gmra.mxu0 %v2128
      %v2700 = vpop.f32.mrf.mxu0
      %v2701 = vadd.f32 %v656, %v2700
      %v2702 = vpop.f32.mrf.mxu0
      %v2703 = vadd.f32 %v660, %v2702
      %v2704 = vpop.f32.mrf.mxu0
      %v2705 = vadd.f32 %v656, %v2704
      %v2706 = vpop.f32.mrf.mxu0
      %v2707 = vadd.f32 %v660, %v2706
      %2708 = vdwg.mxu0
      %2709 = vmatprep.subr.bf16.mxu0 0
      %2710 = vmatpush1.bf16.msra.mxu0 0
      %2711 = vmatprep.subr.bf16.mxu0 0
      %2712 = vmatpush1.bf16.msra.mxu0 0
      %2713 = vmatprep.subr.bf16.mxu0 0
      %2714 = vmatpush1.bf16.msra.mxu0 0
      %2715 = vmatprep.subr.bf16.mxu0 %v836
      %2716 = vmatpush1.bf16.msra.mxu0 %v835
      %2717 = vmatprep.subr.bf16.mxu0 %v828
      %2718 = vmatpush1.bf16.msra.mxu0 %v827
      %2719 = vmatprep.subr.bf16.mxu0 %v820
      %2720 = vmatpush1.bf16.msra.mxu0 %v819
      %2721 = vmatprep.subr.bf16.mxu0 %v812
      %2722 = vmatpush1.bf16.msra.mxu0 %v811
      %2723 = vmatprep.subr.bf16.mxu0 %v804
      %2724 = vmatpush1.bf16.msra.mxu0 %v803
      %2725 = vmatprep.subr.bf16.mxu0 0
      %2726 = vmatpush2.bf16.msra.mxu0 0
      %2727 = vmatprep.subr.bf16.mxu0 0
      %2728 = vmatpush2.bf16.msra.mxu0 0
      %2729 = vmatprep.subr.bf16.mxu0 0
      %2730 = vmatpush2.bf16.msra.mxu0 0
      %2731 = vmatprep.subr.bf16.mxu0 0
      %2732 = vmatpush2.bf16.msra.mxu0 0
      %2733 = vmatprep.subr.bf16.mxu0 0
      %2734 = vmatpush2.bf16.msra.mxu0 0
      %2735 = vmatprep.subr.bf16.mxu0 0
      %2736 = vmatpush2.bf16.msra.mxu0 0
      %2737 = vmatprep.subr.bf16.mxu0 0
      %2738 = vmatpush2.bf16.msra.mxu0 0
      %2739 = vmatprep.subr.bf16.mxu0 0
      %2740 = vmatpush2.bf16.msra.mxu0 0
      %2741 = vmatprep.mubr.bf16.mxu0 0
      %2742 = vmatmul.mubr.bf16.gmra.mxu0 %v2083
      %v2743 = vpop.f32.mrf.mxu0
      %v2744 = vadd.f32 %v664, %v2743
      %v2745 = vpop.f32.mrf.mxu0
      %v2746 = vadd.f32 %v668, %v2745
      %v2747 = vpop.f32.mrf.mxu0
      %v2748 = vadd.f32 %v664, %v2747
      %v2749 = vpop.f32.mrf.mxu0
      %v2750 = vadd.f32 %v668, %v2749
      %2751 = vmatprep.mubr.bf16.mxu0 0
      %2752 = vmatmul.mubr.bf16.gmra.mxu0 %v2086
      %v2753 = vpop.f32.mrf.mxu0
      %v2754 = vadd.f32 %v664, %v2753
      %v2755 = vpop.f32.mrf.mxu0
      %v2756 = vadd.f32 %v668, %v2755
      %v2757 = vpop.f32.mrf.mxu0
      %v2758 = vadd.f32 %v664, %v2757
      %v2759 = vpop.f32.mrf.mxu0
      %v2760 = vadd.f32 %v668, %v2759
      %2761 = vmatprep.mubr.bf16.mxu0 0
      %2762 = vmatmul.mubr.bf16.gmra.mxu0 %v2089
      %v2763 = vpop.f32.mrf.mxu0
      %v2764 = vadd.f32 %v664, %v2763
      %v2765 = vpop.f32.mrf.mxu0
      %v2766 = vadd.f32 %v668, %v2765
      %v2767 = vpop.f32.mrf.mxu0
      %v2768 = vadd.f32 %v664, %v2767
      %v2769 = vpop.f32.mrf.mxu0
      %v2770 = vadd.f32 %v668, %v2769
      %2771 = vmatprep.mubr.bf16.mxu0 0
      %2772 = vmatmul.mubr.bf16.gmra.mxu0 %v2092
      %v2773 = vpop.f32.mrf.mxu0
      %v2774 = vadd.f32 %v664, %v2773
      %v2775 = vpop.f32.mrf.mxu0
      %v2776 = vadd.f32 %v668, %v2775
      %v2777 = vpop.f32.mrf.mxu0
      %v2778 = vadd.f32 %v664, %v2777
      %v2779 = vpop.f32.mrf.mxu0
      %v2780 = vadd.f32 %v668, %v2779
      %2781 = vmatprep.mubr.bf16.mxu0 0
      %2782 = vmatmul.mubr.bf16.gmra.mxu0 %v2095
      %v2783 = vpop.f32.mrf.mxu0
      %v2784 = vadd.f32 %v664, %v2783
      %v2785 = vpop.f32.mrf.mxu0
      %v2786 = vadd.f32 %v668, %v2785
      %v2787 = vpop.f32.mrf.mxu0
      %v2788 = vadd.f32 %v664, %v2787
      %v2789 = vpop.f32.mrf.mxu0
      %v2790 = vadd.f32 %v668, %v2789
      %2791 = vmatprep.mubr.bf16.mxu0 0
      %2792 = vmatmul.mubr.bf16.gmra.mxu0 %v2098
      %v2793 = vpop.f32.mrf.mxu0
      %v2794 = vadd.f32 %v664, %v2793
      %v2795 = vpop.f32.mrf.mxu0
      %v2796 = vadd.f32 %v668, %v2795
      %v2797 = vpop.f32.mrf.mxu0
      %v2798 = vadd.f32 %v664, %v2797
      %v2799 = vpop.f32.mrf.mxu0
      %v2800 = vadd.f32 %v668, %v2799
      %2801 = vmatprep.mubr.bf16.mxu0 0
      %2802 = vmatmul.mubr.bf16.gmra.mxu0 %v2101
      %v2803 = vpop.f32.mrf.mxu0
      %v2804 = vadd.f32 %v664, %v2803
      %v2805 = vpop.f32.mrf.mxu0
      %v2806 = vadd.f32 %v668, %v2805
      %v2807 = vpop.f32.mrf.mxu0
      %v2808 = vadd.f32 %v664, %v2807
      %v2809 = vpop.f32.mrf.mxu0
      %v2810 = vadd.f32 %v668, %v2809
      %2811 = vmatprep.mubr.bf16.mxu0 0
      %2812 = vmatmul.mubr.bf16.gmra.mxu0 %v2104
      %v2813 = vpop.f32.mrf.mxu0
      %v2814 = vadd.f32 %v664, %v2813
      %v2815 = vpop.f32.mrf.mxu0
      %v2816 = vadd.f32 %v668, %v2815
      %v2817 = vpop.f32.mrf.mxu0
      %v2818 = vadd.f32 %v664, %v2817
      %v2819 = vpop.f32.mrf.mxu0
      %v2820 = vadd.f32 %v668, %v2819
      %2821 = vmatprep.mubr.bf16.mxu0 0
      %2822 = vmatmul.mubr.bf16.gmra.mxu0 %v2107
      %v2823 = vpop.f32.mrf.mxu0
      %v2824 = vadd.f32 %v664, %v2823
      %v2825 = vpop.f32.mrf.mxu0
      %v2826 = vadd.f32 %v668, %v2825
      %v2827 = vpop.f32.mrf.mxu0
      %v2828 = vadd.f32 %v664, %v2827
      %v2829 = vpop.f32.mrf.mxu0
      %v2830 = vadd.f32 %v668, %v2829
      %2831 = vmatprep.mubr.bf16.mxu0 0
      %2832 = vmatmul.mubr.bf16.gmra.mxu0 %v2110
      %v2833 = vpop.f32.mrf.mxu0
      %v2834 = vadd.f32 %v664, %v2833
      %v2835 = vpop.f32.mrf.mxu0
      %v2836 = vadd.f32 %v668, %v2835
      %v2837 = vpop.f32.mrf.mxu0
      %v2838 = vadd.f32 %v664, %v2837
      %v2839 = vpop.f32.mrf.mxu0
      %v2840 = vadd.f32 %v668, %v2839
      %2841 = vmatprep.mubr.bf16.mxu0 0
      %2842 = vmatmul.mubr.bf16.gmra.mxu0 %v2113
      %v2843 = vpop.f32.mrf.mxu0
      %v2844 = vadd.f32 %v664, %v2843
      %v2845 = vpop.f32.mrf.mxu0
      %v2846 = vadd.f32 %v668, %v2845
      %v2847 = vpop.f32.mrf.mxu0
      %v2848 = vadd.f32 %v664, %v2847
      %v2849 = vpop.f32.mrf.mxu0
      %v2850 = vadd.f32 %v668, %v2849
      %2851 = vmatprep.mubr.bf16.mxu0 0
      %2852 = vmatmul.mubr.bf16.gmra.mxu0 %v2116
      %v2853 = vpop.f32.mrf.mxu0
      %v2854 = vadd.f32 %v664, %v2853
      %v2855 = vpop.f32.mrf.mxu0
      %v2856 = vadd.f32 %v668, %v2855
      %v2857 = vpop.f32.mrf.mxu0
      %v2858 = vadd.f32 %v664, %v2857
      %v2859 = vpop.f32.mrf.mxu0
      %v2860 = vadd.f32 %v668, %v2859
      %2861 = vmatprep.mubr.bf16.mxu0 0
      %2862 = vmatmul.mubr.bf16.gmra.mxu0 %v2119
      %v2863 = vpop.f32.mrf.mxu0
      %v2864 = vadd.f32 %v664, %v2863
      %v2865 = vpop.f32.mrf.mxu0
      %v2866 = vadd.f32 %v668, %v2865
      %v2867 = vpop.f32.mrf.mxu0
      %v2868 = vadd.f32 %v664, %v2867
      %v2869 = vpop.f32.mrf.mxu0
      %v2870 = vadd.f32 %v668, %v2869
      %2871 = vmatprep.mubr.bf16.mxu0 0
      %2872 = vmatmul.mubr.bf16.gmra.mxu0 %v2122
      %v2873 = vpop.f32.mrf.mxu0
      %v2874 = vadd.f32 %v664, %v2873
      %v2875 = vpop.f32.mrf.mxu0
      %v2876 = vadd.f32 %v668, %v2875
      %v2877 = vpop.f32.mrf.mxu0
      %v2878 = vadd.f32 %v664, %v2877
      %v2879 = vpop.f32.mrf.mxu0
      %v2880 = vadd.f32 %v668, %v2879
      %2881 = vmatprep.mubr.bf16.mxu0 0
      %2882 = vmatmul.mubr.bf16.gmra.mxu0 %v2125
      %v2883 = vpop.f32.mrf.mxu0
      %v2884 = vadd.f32 %v664, %v2883
      %v2885 = vpop.f32.mrf.mxu0
      %v2886 = vadd.f32 %v668, %v2885
      %v2887 = vpop.f32.mrf.mxu0
      %v2888 = vadd.f32 %v664, %v2887
      %v2889 = vpop.f32.mrf.mxu0
      %v2890 = vadd.f32 %v668, %v2889
      %2891 = vmatprep.mubr.bf16.mxu0 0
      %2892 = vmatmul.mubr.bf16.gmra.mxu0 %v2128
      %v2893 = vpop.f32.mrf.mxu0
      %v2894 = vadd.f32 %v664, %v2893
      %v2895 = vpop.f32.mrf.mxu0
      %v2896 = vadd.f32 %v668, %v2895
      %v2897 = vpop.f32.mrf.mxu0
      %v2898 = vadd.f32 %v664, %v2897
      %v2899 = vpop.f32.mrf.mxu0
      %v2900 = vadd.f32 %v668, %v2899
      %2901 = vdwg.mxu0
      %v2902 = vmax.f32 %v2165, 0.0
      %v2903 = vmax.f32 %v2167, 0.0
      %v2904 = vmax.f32 %v2358, 0.0
      %v2905 = vmax.f32 %v2360, 0.0
      %v2906 = vmax.f32 %v2551, 0.0
      %v2907 = vmax.f32 %v2553, 0.0
      %v2908 = vmax.f32 %v2744, 0.0
      %v2909 = vmax.f32 %v2746, 0.0
      %v2910 = vmax.f32 %v2169, 0.0
      %v2911 = vmax.f32 %v2171, 0.0
      %v2912 = vmax.f32 %v2362, 0.0
      %v2913 = vmax.f32 %v2364, 0.0
      %v2914 = vmax.f32 %v2555, 0.0
      %v2915 = vmax.f32 %v2557, 0.0
      %v2916 = vmax.f32 %v2748, 0.0
      %v2917 = vmax.f32 %v2750, 0.0
      %v2918 = vmax.f32 %v2175, 0.0
      %v2919 = vmax.f32 %v2177, 0.0
      %v2920 = vmax.f32 %v2368, 0.0
      %v2921 = vmax.f32 %v2370, 0.0
      %v2922 = vmax.f32 %v2561, 0.0
      %v2923 = vmax.f32 %v2563, 0.0
      %v2924 = vmax.f32 %v2754, 0.0
      %v2925 = vmax.f32 %v2756, 0.0
      %v2926 = vmax.f32 %v2179, 0.0
      %v2927 = vmax.f32 %v2181, 0.0
      %v2928 = vmax.f32 %v2372, 0.0
      %v2929 = vmax.f32 %v2374, 0.0
      %v2930 = vmax.f32 %v2565, 0.0
      %v2931 = vmax.f32 %v2567, 0.0
      %v2932 = vmax.f32 %v2758, 0.0
      %v2933 = vmax.f32 %v2760, 0.0
      %v2934 = vmax.f32 %v2185, 0.0
      %v2935 = vmax.f32 %v2187, 0.0
      %v2936 = vmax.f32 %v2378, 0.0
      %v2937 = vmax.f32 %v2380, 0.0
      %v2938 = vmax.f32 %v2571, 0.0
      %v2939 = vmax.f32 %v2573, 0.0
      %v2940 = vmax.f32 %v2764, 0.0
      %v2941 = vmax.f32 %v2766, 0.0
      %v2942 = vmax.f32 %v2189, 0.0
      %v2943 = vmax.f32 %v2191, 0.0
      %v2944 = vmax.f32 %v2382, 0.0
      %v2945 = vmax.f32 %v2384, 0.0
      %v2946 = vmax.f32 %v2575, 0.0
      %v2947 = vmax.f32 %v2577, 0.0
      %v2948 = vmax.f32 %v2768, 0.0
      %v2949 = vmax.f32 %v2770, 0.0
      %v2950 = vmax.f32 %v2195, 0.0
      %v2951 = vmax.f32 %v2197, 0.0
      %v2952 = vmax.f32 %v2388, 0.0
      %v2953 = vmax.f32 %v2390, 0.0
      %v2954 = vmax.f32 %v2581, 0.0
      %v2955 = vmax.f32 %v2583, 0.0
      %v2956 = vmax.f32 %v2774, 0.0
      %v2957 = vmax.f32 %v2776, 0.0
      %v2958 = vmax.f32 %v2199, 0.0
      %v2959 = vmax.f32 %v2201, 0.0
      %v2960 = vmax.f32 %v2392, 0.0
      %v2961 = vmax.f32 %v2394, 0.0
      %v2962 = vmax.f32 %v2585, 0.0
      %v2963 = vmax.f32 %v2587, 0.0
      %v2964 = vmax.f32 %v2778, 0.0
      %v2965 = vmax.f32 %v2780, 0.0
      %v2966 = vmax.f32 %v2205, 0.0
      %v2967 = vmax.f32 %v2207, 0.0
      %v2968 = vmax.f32 %v2398, 0.0
      %v2969 = vmax.f32 %v2400, 0.0
      %v2970 = vmax.f32 %v2591, 0.0
      %v2971 = vmax.f32 %v2593, 0.0
      %v2972 = vmax.f32 %v2784, 0.0
      %v2973 = vmax.f32 %v2786, 0.0
      %v2974 = vmax.f32 %v2209, 0.0
      %v2975 = vmax.f32 %v2211, 0.0
      %v2976 = vmax.f32 %v2402, 0.0
      %v2977 = vmax.f32 %v2404, 0.0
      %v2978 = vmax.f32 %v2595, 0.0
      %v2979 = vmax.f32 %v2597, 0.0
      %v2980 = vmax.f32 %v2788, 0.0
      %v2981 = vmax.f32 %v2790, 0.0
      %v2982 = vmax.f32 %v2215, 0.0
      %v2983 = vmax.f32 %v2217, 0.0
      %v2984 = vmax.f32 %v2408, 0.0
      %v2985 = vmax.f32 %v2410, 0.0
      %v2986 = vmax.f32 %v2601, 0.0
      %v2987 = vmax.f32 %v2603, 0.0
      %v2988 = vmax.f32 %v2794, 0.0
      %v2989 = vmax.f32 %v2796, 0.0
      %v2990 = vmax.f32 %v2219, 0.0
      %v2991 = vmax.f32 %v2221, 0.0
      %v2992 = vmax.f32 %v2412, 0.0
      %v2993 = vmax.f32 %v2414, 0.0
      %v2994 = vmax.f32 %v2605, 0.0
      %v2995 = vmax.f32 %v2607, 0.0
      %v2996 = vmax.f32 %v2798, 0.0
      %v2997 = vmax.f32 %v2800, 0.0
      %v2998 = vmax.f32 %v2225, 0.0
      %v2999 = vmax.f32 %v2227, 0.0
      %v3000 = vmax.f32 %v2418, 0.0
      %v3001 = vmax.f32 %v2420, 0.0
      %v3002 = vmax.f32 %v2611, 0.0
      %v3003 = vmax.f32 %v2613, 0.0
      %v3004 = vmax.f32 %v2804, 0.0
      %v3005 = vmax.f32 %v2806, 0.0
      %v3006 = vmax.f32 %v2229, 0.0
      %v3007 = vmax.f32 %v2231, 0.0
      %v3008 = vmax.f32 %v2422, 0.0
      %v3009 = vmax.f32 %v2424, 0.0
      %v3010 = vmax.f32 %v2615, 0.0
      %v3011 = vmax.f32 %v2617, 0.0
      %v3012 = vmax.f32 %v2808, 0.0
      %v3013 = vmax.f32 %v2810, 0.0
      %v3014 = vmax.f32 %v2235, 0.0
      %v3015 = vmax.f32 %v2237, 0.0
      %v3016 = vmax.f32 %v2428, 0.0
      %v3017 = vmax.f32 %v2430, 0.0
      %v3018 = vmax.f32 %v2621, 0.0
      %v3019 = vmax.f32 %v2623, 0.0
      %v3020 = vmax.f32 %v2814, 0.0
      %v3021 = vmax.f32 %v2816, 0.0
      %v3022 = vmax.f32 %v2239, 0.0
      %v3023 = vmax.f32 %v2241, 0.0
      %v3024 = vmax.f32 %v2432, 0.0
      %v3025 = vmax.f32 %v2434, 0.0
      %v3026 = vmax.f32 %v2625, 0.0
      %v3027 = vmax.f32 %v2627, 0.0
      %v3028 = vmax.f32 %v2818, 0.0
      %v3029 = vmax.f32 %v2820, 0.0
      %v3030 = vmax.f32 %v2245, 0.0
      %v3031 = vmax.f32 %v2247, 0.0
      %v3032 = vmax.f32 %v2438, 0.0
      %v3033 = vmax.f32 %v2440, 0.0
      %v3034 = vmax.f32 %v2631, 0.0
      %v3035 = vmax.f32 %v2633, 0.0
      %v3036 = vmax.f32 %v2824, 0.0
      %v3037 = vmax.f32 %v2826, 0.0
      %v3038 = vmax.f32 %v2249, 0.0
      %v3039 = vmax.f32 %v2251, 0.0
      %v3040 = vmax.f32 %v2442, 0.0
      %v3041 = vmax.f32 %v2444, 0.0
      %v3042 = vmax.f32 %v2635, 0.0
      %v3043 = vmax.f32 %v2637, 0.0
      %v3044 = vmax.f32 %v2828, 0.0
      %v3045 = vmax.f32 %v2830, 0.0
      %v3046 = vmax.f32 %v2255, 0.0
      %v3047 = vmax.f32 %v2257, 0.0
      %v3048 = vmax.f32 %v2448, 0.0
      %v3049 = vmax.f32 %v2450, 0.0
      %v3050 = vmax.f32 %v2641, 0.0
      %v3051 = vmax.f32 %v2643, 0.0
      %v3052 = vmax.f32 %v2834, 0.0
      %v3053 = vmax.f32 %v2836, 0.0
      %v3054 = vmax.f32 %v2259, 0.0
      %v3055 = vmax.f32 %v2261, 0.0
      %v3056 = vmax.f32 %v2452, 0.0
      %v3057 = vmax.f32 %v2454, 0.0
      %v3058 = vmax.f32 %v2645, 0.0
      %v3059 = vmax.f32 %v2647, 0.0
      %v3060 = vmax.f32 %v2838, 0.0
      %v3061 = vmax.f32 %v2840, 0.0
      %v3062 = vmax.f32 %v2265, 0.0
      %v3063 = vmax.f32 %v2267, 0.0
      %v3064 = vmax.f32 %v2458, 0.0
      %v3065 = vmax.f32 %v2460, 0.0
      %v3066 = vmax.f32 %v2651, 0.0
      %v3067 = vmax.f32 %v2653, 0.0
      %v3068 = vmax.f32 %v2844, 0.0
      %v3069 = vmax.f32 %v2846, 0.0
      %v3070 = vmax.f32 %v2269, 0.0
      %v3071 = vmax.f32 %v2271, 0.0
      %v3072 = vmax.f32 %v2462, 0.0
      %v3073 = vmax.f32 %v2464, 0.0
      %v3074 = vmax.f32 %v2655, 0.0
      %v3075 = vmax.f32 %v2657, 0.0
      %v3076 = vmax.f32 %v2848, 0.0
      %v3077 = vmax.f32 %v2850, 0.0
      %v3078 = vmax.f32 %v2275, 0.0
      %v3079 = vmax.f32 %v2277, 0.0
      %v3080 = vmax.f32 %v2468, 0.0
      %v3081 = vmax.f32 %v2470, 0.0
      %v3082 = vmax.f32 %v2661, 0.0
      %v3083 = vmax.f32 %v2663, 0.0
      %v3084 = vmax.f32 %v2854, 0.0
      %v3085 = vmax.f32 %v2856, 0.0
      %v3086 = vmax.f32 %v2279, 0.0
      %v3087 = vmax.f32 %v2281, 0.0
      %v3088 = vmax.f32 %v2472, 0.0
      %v3089 = vmax.f32 %v2474, 0.0
      %v3090 = vmax.f32 %v2665, 0.0
      %v3091 = vmax.f32 %v2667, 0.0
      %v3092 = vmax.f32 %v2858, 0.0
      %v3093 = vmax.f32 %v2860, 0.0
      %v3094 = vmax.f32 %v2285, 0.0
      %v3095 = vmax.f32 %v2287, 0.0
      %v3096 = vmax.f32 %v2478, 0.0
      %v3097 = vmax.f32 %v2480, 0.0
      %v3098 = vmax.f32 %v2671, 0.0
      %v3099 = vmax.f32 %v2673, 0.0
      %v3100 = vmax.f32 %v2864, 0.0
      %v3101 = vmax.f32 %v2866, 0.0
      %v3102 = vmax.f32 %v2289, 0.0
      %v3103 = vmax.f32 %v2291, 0.0
      %v3104 = vmax.f32 %v2482, 0.0
      %v3105 = vmax.f32 %v2484, 0.0
      %v3106 = vmax.f32 %v2675, 0.0
      %v3107 = vmax.f32 %v2677, 0.0
      %v3108 = vmax.f32 %v2868, 0.0
      %v3109 = vmax.f32 %v2870, 0.0
      %v3110 = vmax.f32 %v2295, 0.0
      %v3111 = vmax.f32 %v2297, 0.0
      %v3112 = vmax.f32 %v2488, 0.0
      %v3113 = vmax.f32 %v2490, 0.0
      %v3114 = vmax.f32 %v2681, 0.0
      %v3115 = vmax.f32 %v2683, 0.0
      %v3116 = vmax.f32 %v2874, 0.0
      %v3117 = vmax.f32 %v2876, 0.0
      %v3118 = vmax.f32 %v2299, 0.0
      %v3119 = vmax.f32 %v2301, 0.0
      %v3120 = vmax.f32 %v2492, 0.0
      %v3121 = vmax.f32 %v2494, 0.0
      %v3122 = vmax.f32 %v2685, 0.0
      %v3123 = vmax.f32 %v2687, 0.0
      %v3124 = vmax.f32 %v2878, 0.0
      %v3125 = vmax.f32 %v2880, 0.0
      %v3126 = vmax.f32 %v2305, 0.0
      %v3127 = vmax.f32 %v2307, 0.0
      %v3128 = vmax.f32 %v2498, 0.0
      %v3129 = vmax.f32 %v2500, 0.0
      %v3130 = vmax.f32 %v2691, 0.0
      %v3131 = vmax.f32 %v2693, 0.0
      %v3132 = vmax.f32 %v2884, 0.0
      %v3133 = vmax.f32 %v2886, 0.0
      %v3134 = vmax.f32 %v2309, 0.0
      %v3135 = vmax.f32 %v2311, 0.0
      %v3136 = vmax.f32 %v2502, 0.0
      %v3137 = vmax.f32 %v2504, 0.0
      %v3138 = vmax.f32 %v2695, 0.0
      %v3139 = vmax.f32 %v2697, 0.0
      %v3140 = vmax.f32 %v2888, 0.0
      %v3141 = vmax.f32 %v2890, 0.0
      %v3142 = vmax.f32 %v2315, 0.0
      %v3143 = vmax.f32 %v2317, 0.0
      %v3144 = vmax.f32 %v2508, 0.0
      %v3145 = vmax.f32 %v2510, 0.0
      %v3146 = vmax.f32 %v2701, 0.0
      %v3147 = vmax.f32 %v2703, 0.0
      %v3148 = vmax.f32 %v2894, 0.0
      %v3149 = vmax.f32 %v2896, 0.0
      %v3150 = vmax.f32 %v2319, 0.0
      %v3151 = vmax.f32 %v2321, 0.0
      %v3152 = vmax.f32 %v2512, 0.0
      %v3153 = vmax.f32 %v2514, 0.0
      %v3154 = vmax.f32 %v2705, 0.0
      %v3155 = vmax.f32 %v2707, 0.0
      %v3156 = vmax.f32 %v2898, 0.0
      %v3157 = vmax.f32 %v2900, 0.0
      %v3158 = vpack.c.bf16 %v2910, %v2902
      %v3159 = vpack.c.bf16 %v2911, %v2903
      %v3160 = vpack.c.bf16 %v2912, %v2904
      %v3161 = vpack.c.bf16 %v2913, %v2905
      %v3162 = vpack.c.bf16 %v2914, %v2906
      %v3163 = vpack.c.bf16 %v2915, %v2907
      %v3164 = vpack.c.bf16 %v2916, %v2908
      %v3165 = vpack.c.bf16 %v2917, %v2909
      %v3166 = vpack.c.bf16 %v2926, %v2918
      %v3167 = vpack.c.bf16 %v2927, %v2919
      %v3168 = vpack.c.bf16 %v2928, %v2920
      %v3169 = vpack.c.bf16 %v2929, %v2921
      %v3170 = vpack.c.bf16 %v2930, %v2922
      %v3171 = vpack.c.bf16 %v2931, %v2923
      %v3172 = vpack.c.bf16 %v2932, %v2924
      %v3173 = vpack.c.bf16 %v2933, %v2925
      %v3174 = vpack.c.bf16 %v2942, %v2934
      %v3175 = vpack.c.bf16 %v2943, %v2935
      %v3176 = vpack.c.bf16 %v2944, %v2936
      %v3177 = vpack.c.bf16 %v2945, %v2937
      %v3178 = vpack.c.bf16 %v2946, %v2938
      %v3179 = vpack.c.bf16 %v2947, %v2939
      %v3180 = vpack.c.bf16 %v2948, %v2940
      %v3181 = vpack.c.bf16 %v2949, %v2941
      %v3182 = vpack.c.bf16 %v2958, %v2950
      %v3183 = vpack.c.bf16 %v2959, %v2951
      %v3184 = vpack.c.bf16 %v2960, %v2952
      %v3185 = vpack.c.bf16 %v2961, %v2953
      %v3186 = vpack.c.bf16 %v2962, %v2954
      %v3187 = vpack.c.bf16 %v2963, %v2955
      %v3188 = vpack.c.bf16 %v2964, %v2956
      %v3189 = vpack.c.bf16 %v2965, %v2957
      %v3190 = vpack.c.bf16 %v2974, %v2966
      %v3191 = vpack.c.bf16 %v2975, %v2967
      %v3192 = vpack.c.bf16 %v2976, %v2968
      %v3193 = vpack.c.bf16 %v2977, %v2969
      %v3194 = vpack.c.bf16 %v2978, %v2970
      %v3195 = vpack.c.bf16 %v2979, %v2971
      %v3196 = vpack.c.bf16 %v2980, %v2972
      %v3197 = vpack.c.bf16 %v2981, %v2973
      %v3198 = vpack.c.bf16 %v2990, %v2982
      %v3199 = vpack.c.bf16 %v2991, %v2983
      %v3200 = vpack.c.bf16 %v2992, %v2984
      %v3201 = vpack.c.bf16 %v2993, %v2985
      %v3202 = vpack.c.bf16 %v2994, %v2986
      %v3203 = vpack.c.bf16 %v2995, %v2987
      %v3204 = vpack.c.bf16 %v2996, %v2988
      %v3205 = vpack.c.bf16 %v2997, %v2989
      %v3206 = vpack.c.bf16 %v3006, %v2998
      %v3207 = vpack.c.bf16 %v3007, %v2999
      %v3208 = vpack.c.bf16 %v3008, %v3000
      %v3209 = vpack.c.bf16 %v3009, %v3001
      %v3210 = vpack.c.bf16 %v3010, %v3002
      %v3211 = vpack.c.bf16 %v3011, %v3003
      %v3212 = vpack.c.bf16 %v3012, %v3004
      %v3213 = vpack.c.bf16 %v3013, %v3005
      %v3214 = vpack.c.bf16 %v3022, %v3014
      %v3215 = vpack.c.bf16 %v3023, %v3015
      %v3216 = vpack.c.bf16 %v3024, %v3016
      %v3217 = vpack.c.bf16 %v3025, %v3017
      %v3218 = vpack.c.bf16 %v3026, %v3018
      %v3219 = vpack.c.bf16 %v3027, %v3019
      %v3220 = vpack.c.bf16 %v3028, %v3020
      %v3221 = vpack.c.bf16 %v3029, %v3021
      %v3222 = vpack.c.bf16 %v3038, %v3030
      %v3223 = vpack.c.bf16 %v3039, %v3031
      %v3224 = vpack.c.bf16 %v3040, %v3032
      %v3225 = vpack.c.bf16 %v3041, %v3033
      %v3226 = vpack.c.bf16 %v3042, %v3034
      %v3227 = vpack.c.bf16 %v3043, %v3035
      %v3228 = vpack.c.bf16 %v3044, %v3036
      %v3229 = vpack.c.bf16 %v3045, %v3037
      %v3230 = vpack.c.bf16 %v3054, %v3046
      %v3231 = vpack.c.bf16 %v3055, %v3047
      %v3232 = vpack.c.bf16 %v3056, %v3048
      %v3233 = vpack.c.bf16 %v3057, %v3049
      %v3234 = vpack.c.bf16 %v3058, %v3050
      %v3235 = vpack.c.bf16 %v3059, %v3051
      %v3236 = vpack.c.bf16 %v3060, %v3052
      %v3237 = vpack.c.bf16 %v3061, %v3053
      %v3238 = vpack.c.bf16 %v3070, %v3062
      %v3239 = vpack.c.bf16 %v3071, %v3063
      %v3240 = vpack.c.bf16 %v3072, %v3064
      %v3241 = vpack.c.bf16 %v3073, %v3065
      %v3242 = vpack.c.bf16 %v3074, %v3066
      %v3243 = vpack.c.bf16 %v3075, %v3067
      %v3244 = vpack.c.bf16 %v3076, %v3068
      %v3245 = vpack.c.bf16 %v3077, %v3069
      %v3246 = vpack.c.bf16 %v3086, %v3078
      %v3247 = vpack.c.bf16 %v3087, %v3079
      %v3248 = vpack.c.bf16 %v3088, %v3080
      %v3249 = vpack.c.bf16 %v3089, %v3081
      %v3250 = vpack.c.bf16 %v3090, %v3082
      %v3251 = vpack.c.bf16 %v3091, %v3083
      %v3252 = vpack.c.bf16 %v3092, %v3084
      %v3253 = vpack.c.bf16 %v3093, %v3085
      %v3254 = vpack.c.bf16 %v3102, %v3094
      %v3255 = vpack.c.bf16 %v3103, %v3095
      %v3256 = vpack.c.bf16 %v3104, %v3096
      %v3257 = vpack.c.bf16 %v3105, %v3097
      %v3258 = vpack.c.bf16 %v3106, %v3098
      %v3259 = vpack.c.bf16 %v3107, %v3099
      %v3260 = vpack.c.bf16 %v3108, %v3100
      %v3261 = vpack.c.bf16 %v3109, %v3101
      %v3262 = vpack.c.bf16 %v3118, %v3110
      %v3263 = vpack.c.bf16 %v3119, %v3111
      %v3264 = vpack.c.bf16 %v3120, %v3112
      %v3265 = vpack.c.bf16 %v3121, %v3113
      %v3266 = vpack.c.bf16 %v3122, %v3114
      %v3267 = vpack.c.bf16 %v3123, %v3115
      %v3268 = vpack.c.bf16 %v3124, %v3116
      %v3269 = vpack.c.bf16 %v3125, %v3117
      %v3270 = vpack.c.bf16 %v3134, %v3126
      %v3271 = vpack.c.bf16 %v3135, %v3127
      %v3272 = vpack.c.bf16 %v3136, %v3128
      %v3273 = vpack.c.bf16 %v3137, %v3129
      %v3274 = vpack.c.bf16 %v3138, %v3130
      %v3275 = vpack.c.bf16 %v3139, %v3131
      %v3276 = vpack.c.bf16 %v3140, %v3132
      %v3277 = vpack.c.bf16 %v3141, %v3133
      %v3278 = vpack.c.bf16 %v3150, %v3142
      %v3279 = vpack.c.bf16 %v3151, %v3143
      %v3280 = vpack.c.bf16 %v3152, %v3144
      %v3281 = vpack.c.bf16 %v3153, %v3145
      %v3282 = vpack.c.bf16 %v3154, %v3146
      %v3283 = vpack.c.bf16 %v3155, %v3147
      %v3284 = vpack.c.bf16 %v3156, %v3148
      %v3285 = vpack.c.bf16 %v3157, %v3149
      %v3286 = vld [vmem:[%s3] sm:$0xff]
      %v3287 = vld [vmem:[%s3 + $0x8] sm:$0xff]
      %v3288 = vld [vmem:[%s3 + $0x10] sm:$0xff]
      %v3289 = vld [vmem:[%s3 + $0x18] sm:$0xff]
      %v3290 = vld [vmem:[%s3 + $0x20] sm:$0xff]
      %v3291 = vld [vmem:[%s3 + $0x28] sm:$0xff]
      %v3292 = vld [vmem:[%s3 + $0x30] sm:$0xff]
      %v3293 = vld [vmem:[%s3 + $0x38] sm:$0xff]
      %v3294 = vld [vmem:[%s3 + $0x40] sm:$0xff]
      %v3295 = vld [vmem:[%s3 + $0x48] sm:$0xff]
      %v3296 = vld [vmem:[%s3 + $0x50] sm:$0xff]
      %v3297 = vld [vmem:[%s3 + $0x58] sm:$0xff]
      %v3298 = vld [vmem:[%s3 + $0x60] sm:$0xff]
      %v3299 = vld [vmem:[%s3 + $0x68] sm:$0xff]
      %v3300 = vld [vmem:[%s3 + $0x70] sm:$0xff]
      %v3301 = vld [vmem:[%s3 + $0x78] sm:$0xff]
      %v3302 = vld [vmem:[%s3 + $0x80] sm:$0xff]
      %v3303 = vld [vmem:[%s3 + $0x88] sm:$0xff]
      %v3304 = vld [vmem:[%s3 + $0x90] sm:$0xff]
      %v3305 = vld [vmem:[%s3 + $0x98] sm:$0xff]
      %v3306 = vld [vmem:[%s3 + $0xa0] sm:$0xff]
      %v3307 = vld [vmem:[%s3 + $0xa8] sm:$0xff]
      %v3308 = vld [vmem:[%s3 + $0xb0] sm:$0xff]
      %v3309 = vld [vmem:[%s3 + $0xb8] sm:$0xff]
      %v3310 = vld [vmem:[%s3 + $0xc0] sm:$0xff]
      %v3311 = vld [vmem:[%s3 + $0xc8] sm:$0xff]
      %v3312 = vld [vmem:[%s3 + $0xd0] sm:$0xff]
      %v3313 = vld [vmem:[%s3 + $0xd8] sm:$0xff]
      %v3314 = vld [vmem:[%s3 + $0xe0] sm:$0xff]
      %v3315 = vld [vmem:[%s3 + $0xe8] sm:$0xff]
      %v3316 = vld [vmem:[%s3 + $0xf0] sm:$0xff]
      %v3317 = vld [vmem:[%s3 + $0xf8] sm:$0xff]
      %v3318 = vld [vmem:[%s3 + $0x100] sm:$0xff]
      %v3319 = vld [vmem:[%s3 + $0x108] sm:$0xff]
      %v3320 = vld [vmem:[%s3 + $0x110] sm:$0xff]
      %v3321 = vld [vmem:[%s3 + $0x118] sm:$0xff]
      %v3322 = vld [vmem:[%s3 + $0x120] sm:$0xff]
      %v3323 = vld [vmem:[%s3 + $0x128] sm:$0xff]
      %v3324 = vld [vmem:[%s3 + $0x130] sm:$0xff]
      %v3325 = vld [vmem:[%s3 + $0x138] sm:$0xff]
      %v3326 = vld [vmem:[%s3 + $0x140] sm:$0xff]
      %v3327 = vld [vmem:[%s3 + $0x148] sm:$0xff]
      %v3328 = vld [vmem:[%s3 + $0x150] sm:$0xff]
      %v3329 = vld [vmem:[%s3 + $0x158] sm:$0xff]
      %v3330 = vld [vmem:[%s3 + $0x160] sm:$0xff]
      %v3331 = vld [vmem:[%s3 + $0x168] sm:$0xff]
      %v3332 = vld [vmem:[%s3 + $0x170] sm:$0xff]
      %v3333 = vld [vmem:[%s3 + $0x178] sm:$0xff]
      %v3334 = vld [vmem:[%s3 + $0x180] sm:$0xff]
      %v3335 = vld [vmem:[%s3 + $0x188] sm:$0xff]
      %v3336 = vld [vmem:[%s3 + $0x190] sm:$0xff]
      %v3337 = vld [vmem:[%s3 + $0x198] sm:$0xff]
      %v3338 = vld [vmem:[%s3 + $0x1a0] sm:$0xff]
      %v3339 = vld [vmem:[%s3 + $0x1a8] sm:$0xff]
      %v3340 = vld [vmem:[%s3 + $0x1b0] sm:$0xff]
      %v3341 = vld [vmem:[%s3 + $0x1b8] sm:$0xff]
      %v3342 = vld [vmem:[%s3 + $0x1c0] sm:$0xff]
      %v3343 = vld [vmem:[%s3 + $0x1c8] sm:$0xff]
      %v3344 = vld [vmem:[%s3 + $0x1d0] sm:$0xff]
      %v3345 = vld [vmem:[%s3 + $0x1d8] sm:$0xff]
      %v3346 = vld [vmem:[%s3 + $0x1e0] sm:$0xff]
      %v3347 = vld [vmem:[%s3 + $0x1e8] sm:$0xff]
      %v3348 = vld [vmem:[%s3 + $0x1f0] sm:$0xff]
      %v3349 = vld [vmem:[%s3 + $0x1f8] sm:$0xff]
      %v3350 = vld [vmem:[%s3 + $0x200] sm:$0xff]
      %v3351 = vld [vmem:[%s3 + $0x208] sm:$0xff]
      %v3352 = vld [vmem:[%s3 + $0x210] sm:$0xff]
      %v3353 = vld [vmem:[%s3 + $0x218] sm:$0xff]
      %v3354 = vld [vmem:[%s3 + $0x220] sm:$0xff]
      %v3355 = vld [vmem:[%s3 + $0x228] sm:$0xff]
      %v3356 = vld [vmem:[%s3 + $0x230] sm:$0xff]
      %v3357 = vld [vmem:[%s3 + $0x238] sm:$0xff]
      %v3358 = vld [vmem:[%s3 + $0x240] sm:$0xff]
      %v3359 = vld [vmem:[%s3 + $0x248] sm:$0xff]
      %v3360 = vld [vmem:[%s3 + $0x250] sm:$0xff]
      %v3361 = vld [vmem:[%s3 + $0x258] sm:$0xff]
      %v3362 = vld [vmem:[%s3 + $0x260] sm:$0xff]
      %v3363 = vld [vmem:[%s3 + $0x268] sm:$0xff]
      %v3364 = vld [vmem:[%s3 + $0x270] sm:$0xff]
      %v3365 = vld [vmem:[%s3 + $0x278] sm:$0xff]
      %v3366 = vld [vmem:[%s3 + $0x280] sm:$0xff]
      %v3367 = vld [vmem:[%s3 + $0x288] sm:$0xff]
      %v3368 = vld [vmem:[%s3 + $0x290] sm:$0xff]
      %v3369 = vld [vmem:[%s3 + $0x298] sm:$0xff]
      %v3370 = vld [vmem:[%s3 + $0x2a0] sm:$0xff]
      %v3371 = vld [vmem:[%s3 + $0x2a8] sm:$0xff]
      %v3372 = vld [vmem:[%s3 + $0x2b0] sm:$0xff]
      %v3373 = vld [vmem:[%s3 + $0x2b8] sm:$0xff]
      %v3374 = vld [vmem:[%s3 + $0x2c0] sm:$0xff]
      %v3375 = vld [vmem:[%s3 + $0x2c8] sm:$0xff]
      %v3376 = vld [vmem:[%s3 + $0x2d0] sm:$0xff]
      %v3377 = vld [vmem:[%s3 + $0x2d8] sm:$0xff]
      %v3378 = vld [vmem:[%s3 + $0x2e0] sm:$0xff]
      %v3379 = vld [vmem:[%s3 + $0x2e8] sm:$0xff]
      %v3380 = vld [vmem:[%s3 + $0x2f0] sm:$0xff]
      %v3381 = vld [vmem:[%s3 + $0x2f8] sm:$0xff]
      %v3382 = vld [vmem:[%s3 + $0x300] sm:$0xff]
      %v3383 = vld [vmem:[%s3 + $0x308] sm:$0xff]
      %v3384 = vld [vmem:[%s3 + $0x310] sm:$0xff]
      %v3385 = vld [vmem:[%s3 + $0x318] sm:$0xff]
      %v3386 = vld [vmem:[%s3 + $0x320] sm:$0xff]
      %v3387 = vld [vmem:[%s3 + $0x328] sm:$0xff]
      %v3388 = vld [vmem:[%s3 + $0x330] sm:$0xff]
      %v3389 = vld [vmem:[%s3 + $0x338] sm:$0xff]
      %v3390 = vld [vmem:[%s3 + $0x340] sm:$0xff]
      %v3391 = vld [vmem:[%s3 + $0x348] sm:$0xff]
      %v3392 = vld [vmem:[%s3 + $0x350] sm:$0xff]
      %v3393 = vld [vmem:[%s3 + $0x358] sm:$0xff]
      %v3394 = vld [vmem:[%s3 + $0x360] sm:$0xff]
      %v3395 = vld [vmem:[%s3 + $0x368] sm:$0xff]
      %v3396 = vld [vmem:[%s3 + $0x370] sm:$0xff]
      %v3397 = vld [vmem:[%s3 + $0x378] sm:$0xff]
      %v3398 = vld [vmem:[%s3 + $0x380] sm:$0xff]
      %v3399 = vld [vmem:[%s3 + $0x388] sm:$0xff]
      %v3400 = vld [vmem:[%s3 + $0x390] sm:$0xff]
      %v3401 = vld [vmem:[%s3 + $0x398] sm:$0xff]
      %v3402 = vld [vmem:[%s3 + $0x3a0] sm:$0xff]
      %v3403 = vld [vmem:[%s3 + $0x3a8] sm:$0xff]
      %v3404 = vld [vmem:[%s3 + $0x3b0] sm:$0xff]
      %v3405 = vld [vmem:[%s3 + $0x3b8] sm:$0xff]
      %v3406 = vld [vmem:[%s3 + $0x3c0] sm:$0xff]
      %v3407 = vld [vmem:[%s3 + $0x3c8] sm:$0xff]
      %v3408 = vld [vmem:[%s3 + $0x3d0] sm:$0xff]
      %v3409 = vld [vmem:[%s3 + $0x3d8] sm:$0xff]
      %v3410 = vld [vmem:[%s3 + $0x3e0] sm:$0xff]
      %v3411 = vld [vmem:[%s3 + $0x3e8] sm:$0xff]
      %v3412 = vld [vmem:[%s3 + $0x3f0] sm:$0xff]
      %v3413 = vld [vmem:[%s3 + $0x3f8] sm:$0xff]
      %v3414 = vld [vmem:[%s3 + $0x400] sm:$0xff]
      %v3415 = vld [vmem:[%s3 + $0x408] sm:$0xff]
      %v3416 = vld [vmem:[%s3 + $0x410] sm:$0xff]
      %v3417 = vld [vmem:[%s3 + $0x418] sm:$0xff]
      %v3418 = vld [vmem:[%s3 + $0x420] sm:$0xff]
      %v3419 = vld [vmem:[%s3 + $0x428] sm:$0xff]
      %v3420 = vld [vmem:[%s3 + $0x430] sm:$0xff]
      %v3421 = vld [vmem:[%s3 + $0x438] sm:$0xff]
      %v3422 = vld [vmem:[%s3 + $0x440] sm:$0xff]
      %v3423 = vld [vmem:[%s3 + $0x448] sm:$0xff]
      %v3424 = vld [vmem:[%s3 + $0x450] sm:$0xff]
      %v3425 = vld [vmem:[%s3 + $0x458] sm:$0xff]
      %v3426 = vld [vmem:[%s3 + $0x460] sm:$0xff]
      %v3427 = vld [vmem:[%s3 + $0x468] sm:$0xff]
      %v3428 = vld [vmem:[%s3 + $0x470] sm:$0xff]
      %v3429 = vld [vmem:[%s3 + $0x478] sm:$0xff]
      %v3430 = vld [vmem:[%s3 + $0x480] sm:$0xff]
      %v3431 = vld [vmem:[%s3 + $0x488] sm:$0xff]
      %v3432 = vld [vmem:[%s3 + $0x490] sm:$0xff]
      %v3433 = vld [vmem:[%s3 + $0x498] sm:$0xff]
      %v3434 = vld [vmem:[%s3 + $0x4a0] sm:$0xff]
      %v3435 = vld [vmem:[%s3 + $0x4a8] sm:$0xff]
      %v3436 = vld [vmem:[%s3 + $0x4b0] sm:$0xff]
      %v3437 = vld [vmem:[%s3 + $0x4b8] sm:$0xff]
      %v3438 = vld [vmem:[%s3 + $0x4c0] sm:$0xff]
      %v3439 = vld [vmem:[%s3 + $0x4c8] sm:$0xff]
      %v3440 = vld [vmem:[%s3 + $0x4d0] sm:$0xff]
      %v3441 = vld [vmem:[%s3 + $0x4d8] sm:$0xff]
      %v3442 = vld [vmem:[%s3 + $0x4e0] sm:$0xff]
      %v3443 = vld [vmem:[%s3 + $0x4e8] sm:$0xff]
      %v3444 = vld [vmem:[%s3 + $0x4f0] sm:$0xff]
      %v3445 = vld [vmem:[%s3 + $0x4f8] sm:$0xff]
      %v3446 = vld [vmem:[%s3 + $0x500] sm:$0xff]
      %v3447 = vld [vmem:[%s3 + $0x508] sm:$0xff]
      %v3448 = vld [vmem:[%s3 + $0x510] sm:$0xff]
      %v3449 = vld [vmem:[%s3 + $0x518] sm:$0xff]
      %v3450 = vld [vmem:[%s3 + $0x520] sm:$0xff]
      %v3451 = vld [vmem:[%s3 + $0x528] sm:$0xff]
      %v3452 = vld [vmem:[%s3 + $0x530] sm:$0xff]
      %v3453 = vld [vmem:[%s3 + $0x538] sm:$0xff]
      %v3454 = vld [vmem:[%s3 + $0x540] sm:$0xff]
      %v3455 = vld [vmem:[%s3 + $0x548] sm:$0xff]
      %v3456 = vld [vmem:[%s3 + $0x550] sm:$0xff]
      %v3457 = vld [vmem:[%s3 + $0x558] sm:$0xff]
      %v3458 = vld [vmem:[%s3 + $0x560] sm:$0xff]
      %v3459 = vld [vmem:[%s3 + $0x568] sm:$0xff]
      %v3460 = vld [vmem:[%s3 + $0x570] sm:$0xff]
      %v3461 = vld [vmem:[%s3 + $0x578] sm:$0xff]
      %v3462 = vld [vmem:[%s3 + $0x580] sm:$0xff]
      %v3463 = vld [vmem:[%s3 + $0x588] sm:$0xff]
      %v3464 = vld [vmem:[%s3 + $0x590] sm:$0xff]
      %v3465 = vld [vmem:[%s3 + $0x598] sm:$0xff]
      %v3466 = vld [vmem:[%s3 + $0x5a0] sm:$0xff]
      %v3467 = vld [vmem:[%s3 + $0x5a8] sm:$0xff]
      %v3468 = vld [vmem:[%s3 + $0x5b0] sm:$0xff]
      %v3469 = vld [vmem:[%s3 + $0x5b8] sm:$0xff]
      %v3470 = vld [vmem:[%s3 + $0x5c0] sm:$0xff]
      %v3471 = vld [vmem:[%s3 + $0x5c8] sm:$0xff]
      %v3472 = vld [vmem:[%s3 + $0x5d0] sm:$0xff]
      %v3473 = vld [vmem:[%s3 + $0x5d8] sm:$0xff]
      %v3474 = vld [vmem:[%s3 + $0x5e0] sm:$0xff]
      %v3475 = vld [vmem:[%s3 + $0x5e8] sm:$0xff]
      %v3476 = vld [vmem:[%s3 + $0x5f0] sm:$0xff]
      %v3477 = vld [vmem:[%s3 + $0x5f8] sm:$0xff]
      %v3478 = vld [vmem:[%s3 + $0x600] sm:$0xff]
      %v3479 = vld [vmem:[%s3 + $0x608] sm:$0xff]
      %v3480 = vld [vmem:[%s3 + $0x610] sm:$0xff]
      %v3481 = vld [vmem:[%s3 + $0x618] sm:$0xff]
      %v3482 = vld [vmem:[%s3 + $0x620] sm:$0xff]
      %v3483 = vld [vmem:[%s3 + $0x628] sm:$0xff]
      %v3484 = vld [vmem:[%s3 + $0x630] sm:$0xff]
      %v3485 = vld [vmem:[%s3 + $0x638] sm:$0xff]
      %v3486 = vld [vmem:[%s3 + $0x640] sm:$0xff]
      %v3487 = vld [vmem:[%s3 + $0x648] sm:$0xff]
      %v3488 = vld [vmem:[%s3 + $0x650] sm:$0xff]
      %v3489 = vld [vmem:[%s3 + $0x658] sm:$0xff]
      %v3490 = vld [vmem:[%s3 + $0x660] sm:$0xff]
      %v3491 = vld [vmem:[%s3 + $0x668] sm:$0xff]
      %v3492 = vld [vmem:[%s3 + $0x670] sm:$0xff]
      %v3493 = vld [vmem:[%s3 + $0x678] sm:$0xff]
      %v3494 = vld [vmem:[%s3 + $0x680] sm:$0xff]
      %v3495 = vld [vmem:[%s3 + $0x688] sm:$0xff]
      %v3496 = vld [vmem:[%s3 + $0x690] sm:$0xff]
      %v3497 = vld [vmem:[%s3 + $0x698] sm:$0xff]
      %v3498 = vld [vmem:[%s3 + $0x6a0] sm:$0xff]
      %v3499 = vld [vmem:[%s3 + $0x6a8] sm:$0xff]
      %v3500 = vld [vmem:[%s3 + $0x6b0] sm:$0xff]
      %v3501 = vld [vmem:[%s3 + $0x6b8] sm:$0xff]
      %v3502 = vld [vmem:[%s3 + $0x6c0] sm:$0xff]
      %v3503 = vld [vmem:[%s3 + $0x6c8] sm:$0xff]
      %v3504 = vld [vmem:[%s3 + $0x6d0] sm:$0xff]
      %v3505 = vld [vmem:[%s3 + $0x6d8] sm:$0xff]
      %v3506 = vld [vmem:[%s3 + $0x6e0] sm:$0xff]
      %v3507 = vld [vmem:[%s3 + $0x6e8] sm:$0xff]
      %v3508 = vld [vmem:[%s3 + $0x6f0] sm:$0xff]
      %v3509 = vld [vmem:[%s3 + $0x6f8] sm:$0xff]
      %v3510 = vld [vmem:[%s3 + $0x700] sm:$0xff]
      %v3511 = vld [vmem:[%s3 + $0x708] sm:$0xff]
      %v3512 = vld [vmem:[%s3 + $0x710] sm:$0xff]
      %v3513 = vld [vmem:[%s3 + $0x718] sm:$0xff]
      %v3514 = vld [vmem:[%s3 + $0x720] sm:$0xff]
      %v3515 = vld [vmem:[%s3 + $0x728] sm:$0xff]
      %v3516 = vld [vmem:[%s3 + $0x730] sm:$0xff]
      %v3517 = vld [vmem:[%s3 + $0x738] sm:$0xff]
      %v3518 = vld [vmem:[%s3 + $0x740] sm:$0xff]
      %v3519 = vld [vmem:[%s3 + $0x748] sm:$0xff]
      %v3520 = vld [vmem:[%s3 + $0x750] sm:$0xff]
      %v3521 = vld [vmem:[%s3 + $0x758] sm:$0xff]
      %v3522 = vld [vmem:[%s3 + $0x760] sm:$0xff]
      %v3523 = vld [vmem:[%s3 + $0x768] sm:$0xff]
      %v3524 = vld [vmem:[%s3 + $0x770] sm:$0xff]
      %v3525 = vld [vmem:[%s3 + $0x778] sm:$0xff]
      %v3526 = vld [vmem:[%s3 + $0x780] sm:$0xff]
      %v3527 = vld [vmem:[%s3 + $0x788] sm:$0xff]
      %v3528 = vld [vmem:[%s3 + $0x790] sm:$0xff]
      %v3529 = vld [vmem:[%s3 + $0x798] sm:$0xff]
      %v3530 = vld [vmem:[%s3 + $0x7a0] sm:$0xff]
      %v3531 = vld [vmem:[%s3 + $0x7a8] sm:$0xff]
      %v3532 = vld [vmem:[%s3 + $0x7b0] sm:$0xff]
      %v3533 = vld [vmem:[%s3 + $0x7b8] sm:$0xff]
      %v3534 = vld [vmem:[%s3 + $0x7c0] sm:$0xff]
      %v3535 = vld [vmem:[%s3 + $0x7c8] sm:$0xff]
      %v3536 = vld [vmem:[%s3 + $0x7d0] sm:$0xff]
      %v3537 = vld [vmem:[%s3 + $0x7d8] sm:$0xff]
      %v3538 = vld [vmem:[%s3 + $0x7e0] sm:$0xff]
      %v3539 = vld [vmem:[%s3 + $0x7e8] sm:$0xff]
      %v3540 = vld [vmem:[%s3 + $0x7f0] sm:$0xff]
      %v3541 = vld [vmem:[%s3 + $0x7f8] sm:$0xff]
      %v3542 = vld [vmem:[%s4] sm:$0xf]
      %v3544 = vlaneseq
      %v3545 = vshrl.u32 %v3544, 7
      %v3546 = vsub.s32 0, %v3545
      %v3547 = vrot.slane %v3542, %v3546
      %v3548 = vlaneseq
      %v3549 = vshrl.u32 %v3548, 7
      %v3550 = vsub.s32 1, %v3549
      %v3551 = vrot.slane %v3542, %v3550
      %v3552 = vlaneseq
      %v3553 = vshrl.u32 %v3552, 7
      %v3554 = vsub.s32 2, %v3553
      %v3555 = vrot.slane %v3542, %v3554
      %v3556 = vlaneseq
      %v3557 = vshrl.u32 %v3556, 7
      %v3558 = vsub.s32 3, %v3557
      %v3559 = vrot.slane %v3542, %v3558
      %v3820 = vunpack.c.l.b16 %v3286
      %v3821 = vunpack.c.h.b16 %v3286
      %v3822 = vunpack.c.l.b16 %v3287
      %v3823 = vunpack.c.h.b16 %v3287
      %v3824 = vunpack.c.l.b16 %v3288
      %v3825 = vunpack.c.h.b16 %v3288
      %v3826 = vunpack.c.l.b16 %v3289
      %v3827 = vunpack.c.h.b16 %v3289
      %v3828 = vunpack.c.l.b16 %v3290
      %v3829 = vunpack.c.h.b16 %v3290
      %v3830 = vunpack.c.l.b16 %v3291
      %v3831 = vunpack.c.h.b16 %v3291
      %v3832 = vunpack.c.l.b16 %v3292
      %v3833 = vunpack.c.h.b16 %v3292
      %v3834 = vunpack.c.l.b16 %v3293
      %v3835 = vunpack.c.h.b16 %v3293
      %v3836 = vunpack.c.l.b16 %v3294
      %v3837 = vunpack.c.h.b16 %v3294
      %v3838 = vunpack.c.l.b16 %v3295
      %v3839 = vunpack.c.h.b16 %v3295
      %v3840 = vunpack.c.l.b16 %v3296
      %v3841 = vunpack.c.h.b16 %v3296
      %v3842 = vunpack.c.l.b16 %v3297
      %v3843 = vunpack.c.h.b16 %v3297
      %v3844 = vunpack.c.l.b16 %v3298
      %v3845 = vunpack.c.h.b16 %v3298
      %v3846 = vunpack.c.l.b16 %v3299
      %v3847 = vunpack.c.h.b16 %v3299
      %v3848 = vunpack.c.l.b16 %v3300
      %v3849 = vunpack.c.h.b16 %v3300
      %v3850 = vunpack.c.l.b16 %v3301
      %v3851 = vunpack.c.h.b16 %v3301
      %v3852 = vunpack.c.l.b16 %v3302
      %v3853 = vunpack.c.h.b16 %v3302
      %v3854 = vunpack.c.l.b16 %v3303
      %v3855 = vunpack.c.h.b16 %v3303
      %v3856 = vunpack.c.l.b16 %v3304
      %v3857 = vunpack.c.h.b16 %v3304
      %v3858 = vunpack.c.l.b16 %v3305
      %v3859 = vunpack.c.h.b16 %v3305
      %v3860 = vunpack.c.l.b16 %v3306
      %v3861 = vunpack.c.h.b16 %v3306
      %v3862 = vunpack.c.l.b16 %v3307
      %v3863 = vunpack.c.h.b16 %v3307
      %v3864 = vunpack.c.l.b16 %v3308
      %v3865 = vunpack.c.h.b16 %v3308
      %v3866 = vunpack.c.l.b16 %v3309
      %v3867 = vunpack.c.h.b16 %v3309
      %v3868 = vunpack.c.l.b16 %v3310
      %v3869 = vunpack.c.h.b16 %v3310
      %v3870 = vunpack.c.l.b16 %v3311
      %v3871 = vunpack.c.h.b16 %v3311
      %v3872 = vunpack.c.l.b16 %v3312
      %v3873 = vunpack.c.h.b16 %v3312
      %v3874 = vunpack.c.l.b16 %v3313
      %v3875 = vunpack.c.h.b16 %v3313
      %v3876 = vunpack.c.l.b16 %v3314
      %v3877 = vunpack.c.h.b16 %v3314
      %v3878 = vunpack.c.l.b16 %v3315
      %v3879 = vunpack.c.h.b16 %v3315
      %v3880 = vunpack.c.l.b16 %v3316
      %v3881 = vunpack.c.h.b16 %v3316
      %v3882 = vunpack.c.l.b16 %v3317
      %v3883 = vunpack.c.h.b16 %v3317
      %v3884 = vunpack.c.l.b16 %v3318
      %v3885 = vunpack.c.h.b16 %v3318
      %v3886 = vunpack.c.l.b16 %v3319
      %v3887 = vunpack.c.h.b16 %v3319
      %v3888 = vunpack.c.l.b16 %v3320
      %v3889 = vunpack.c.h.b16 %v3320
      %v3890 = vunpack.c.l.b16 %v3321
      %v3891 = vunpack.c.h.b16 %v3321
      %v3892 = vunpack.c.l.b16 %v3322
      %v3893 = vunpack.c.h.b16 %v3322
      %v3894 = vunpack.c.l.b16 %v3323
      %v3895 = vunpack.c.h.b16 %v3323
      %v3896 = vunpack.c.l.b16 %v3324
      %v3897 = vunpack.c.h.b16 %v3324
      %v3898 = vunpack.c.l.b16 %v3325
      %v3899 = vunpack.c.h.b16 %v3325
      %v3900 = vunpack.c.l.b16 %v3326
      %v3901 = vunpack.c.h.b16 %v3326
      %v3902 = vunpack.c.l.b16 %v3327
      %v3903 = vunpack.c.h.b16 %v3327
      %v3904 = vunpack.c.l.b16 %v3328
      %v3905 = vunpack.c.h.b16 %v3328
      %v3906 = vunpack.c.l.b16 %v3329
      %v3907 = vunpack.c.h.b16 %v3329
      %v3908 = vunpack.c.l.b16 %v3330
      %v3909 = vunpack.c.h.b16 %v3330
      %v3910 = vunpack.c.l.b16 %v3331
      %v3911 = vunpack.c.h.b16 %v3331
      %v3912 = vunpack.c.l.b16 %v3332
      %v3913 = vunpack.c.h.b16 %v3332
      %v3914 = vunpack.c.l.b16 %v3333
      %v3915 = vunpack.c.h.b16 %v3333
      %v3916 = vunpack.c.l.b16 %v3334
      %v3917 = vunpack.c.h.b16 %v3334
      %v3918 = vunpack.c.l.b16 %v3335
      %v3919 = vunpack.c.h.b16 %v3335
      %v3920 = vunpack.c.l.b16 %v3336
      %v3921 = vunpack.c.h.b16 %v3336
      %v3922 = vunpack.c.l.b16 %v3337
      %v3923 = vunpack.c.h.b16 %v3337
      %v3924 = vunpack.c.l.b16 %v3338
      %v3925 = vunpack.c.h.b16 %v3338
      %v3926 = vunpack.c.l.b16 %v3339
      %v3927 = vunpack.c.h.b16 %v3339
      %v3928 = vunpack.c.l.b16 %v3340
      %v3929 = vunpack.c.h.b16 %v3340
      %v3930 = vunpack.c.l.b16 %v3341
      %v3931 = vunpack.c.h.b16 %v3341
      %v3932 = vunpack.c.l.b16 %v3342
      %v3933 = vunpack.c.h.b16 %v3342
      %v3934 = vunpack.c.l.b16 %v3343
      %v3935 = vunpack.c.h.b16 %v3343
      %v3936 = vunpack.c.l.b16 %v3344
      %v3937 = vunpack.c.h.b16 %v3344
      %v3938 = vunpack.c.l.b16 %v3345
      %v3939 = vunpack.c.h.b16 %v3345
      %v3940 = vunpack.c.l.b16 %v3346
      %v3941 = vunpack.c.h.b16 %v3346
      %v3942 = vunpack.c.l.b16 %v3347
      %v3943 = vunpack.c.h.b16 %v3347
      %v3944 = vunpack.c.l.b16 %v3348
      %v3945 = vunpack.c.h.b16 %v3348
      %v3946 = vunpack.c.l.b16 %v3349
      %v3947 = vunpack.c.h.b16 %v3349
      %v3948 = vunpack.c.l.b16 %v3350
      %v3949 = vunpack.c.h.b16 %v3350
      %v3950 = vunpack.c.l.b16 %v3351
      %v3951 = vunpack.c.h.b16 %v3351
      %v3952 = vunpack.c.l.b16 %v3352
      %v3953 = vunpack.c.h.b16 %v3352
      %v3954 = vunpack.c.l.b16 %v3353
      %v3955 = vunpack.c.h.b16 %v3353
      %v3956 = vunpack.c.l.b16 %v3354
      %v3957 = vunpack.c.h.b16 %v3354
      %v3958 = vunpack.c.l.b16 %v3355
      %v3959 = vunpack.c.h.b16 %v3355
      %v3960 = vunpack.c.l.b16 %v3356
      %v3961 = vunpack.c.h.b16 %v3356
      %v3962 = vunpack.c.l.b16 %v3357
      %v3963 = vunpack.c.h.b16 %v3357
      %v3964 = vunpack.c.l.b16 %v3358
      %v3965 = vunpack.c.h.b16 %v3358
      %v3966 = vunpack.c.l.b16 %v3359
      %v3967 = vunpack.c.h.b16 %v3359
      %v3968 = vunpack.c.l.b16 %v3360
      %v3969 = vunpack.c.h.b16 %v3360
      %v3970 = vunpack.c.l.b16 %v3361
      %v3971 = vunpack.c.h.b16 %v3361
      %v3972 = vunpack.c.l.b16 %v3362
      %v3973 = vunpack.c.h.b16 %v3362
      %v3974 = vunpack.c.l.b16 %v3363
      %v3975 = vunpack.c.h.b16 %v3363
      %v3976 = vunpack.c.l.b16 %v3364
      %v3977 = vunpack.c.h.b16 %v3364
      %v3978 = vunpack.c.l.b16 %v3365
      %v3979 = vunpack.c.h.b16 %v3365
      %v3980 = vunpack.c.l.b16 %v3366
      %v3981 = vunpack.c.h.b16 %v3366
      %v3982 = vunpack.c.l.b16 %v3367
      %v3983 = vunpack.c.h.b16 %v3367
      %v3984 = vunpack.c.l.b16 %v3368
      %v3985 = vunpack.c.h.b16 %v3368
      %v3986 = vunpack.c.l.b16 %v3369
      %v3987 = vunpack.c.h.b16 %v3369
      %v3988 = vunpack.c.l.b16 %v3370
      %v3989 = vunpack.c.h.b16 %v3370
      %v3990 = vunpack.c.l.b16 %v3371
      %v3991 = vunpack.c.h.b16 %v3371
      %v3992 = vunpack.c.l.b16 %v3372
      %v3993 = vunpack.c.h.b16 %v3372
      %v3994 = vunpack.c.l.b16 %v3373
      %v3995 = vunpack.c.h.b16 %v3373
      %v3996 = vunpack.c.l.b16 %v3374
      %v3997 = vunpack.c.h.b16 %v3374
      %v3998 = vunpack.c.l.b16 %v3375
      %v3999 = vunpack.c.h.b16 %v3375
      %v4000 = vunpack.c.l.b16 %v3376
      %v4001 = vunpack.c.h.b16 %v3376
      %v4002 = vunpack.c.l.b16 %v3377
      %v4003 = vunpack.c.h.b16 %v3377
      %v4004 = vunpack.c.l.b16 %v3378
      %v4005 = vunpack.c.h.b16 %v3378
      %v4006 = vunpack.c.l.b16 %v3379
      %v4007 = vunpack.c.h.b16 %v3379
      %v4008 = vunpack.c.l.b16 %v3380
      %v4009 = vunpack.c.h.b16 %v3380
      %v4010 = vunpack.c.l.b16 %v3381
      %v4011 = vunpack.c.h.b16 %v3381
      %v4012 = vunpack.c.l.b16 %v3382
      %v4013 = vunpack.c.h.b16 %v3382
      %v4014 = vunpack.c.l.b16 %v3383
      %v4015 = vunpack.c.h.b16 %v3383
      %v4016 = vunpack.c.l.b16 %v3384
      %v4017 = vunpack.c.h.b16 %v3384
      %v4018 = vunpack.c.l.b16 %v3385
      %v4019 = vunpack.c.h.b16 %v3385
      %v4020 = vunpack.c.l.b16 %v3386
      %v4021 = vunpack.c.h.b16 %v3386
      %v4022 = vunpack.c.l.b16 %v3387
      %v4023 = vunpack.c.h.b16 %v3387
      %v4024 = vunpack.c.l.b16 %v3388
      %v4025 = vunpack.c.h.b16 %v3388
      %v4026 = vunpack.c.l.b16 %v3389
      %v4027 = vunpack.c.h.b16 %v3389
      %v4028 = vunpack.c.l.b16 %v3390
      %v4029 = vunpack.c.h.b16 %v3390
      %v4030 = vunpack.c.l.b16 %v3391
      %v4031 = vunpack.c.h.b16 %v3391
      %v4032 = vunpack.c.l.b16 %v3392
      %v4033 = vunpack.c.h.b16 %v3392
      %v4034 = vunpack.c.l.b16 %v3393
      %v4035 = vunpack.c.h.b16 %v3393
      %v4036 = vunpack.c.l.b16 %v3394
      %v4037 = vunpack.c.h.b16 %v3394
      %v4038 = vunpack.c.l.b16 %v3395
      %v4039 = vunpack.c.h.b16 %v3395
      %v4040 = vunpack.c.l.b16 %v3396
      %v4041 = vunpack.c.h.b16 %v3396
      %v4042 = vunpack.c.l.b16 %v3397
      %v4043 = vunpack.c.h.b16 %v3397
      %v4044 = vunpack.c.l.b16 %v3398
      %v4045 = vunpack.c.h.b16 %v3398
      %v4046 = vunpack.c.l.b16 %v3399
      %v4047 = vunpack.c.h.b16 %v3399
      %v4048 = vunpack.c.l.b16 %v3400
      %v4049 = vunpack.c.h.b16 %v3400
      %v4050 = vunpack.c.l.b16 %v3401
      %v4051 = vunpack.c.h.b16 %v3401
      %v4052 = vunpack.c.l.b16 %v3402
      %v4053 = vunpack.c.h.b16 %v3402
      %v4054 = vunpack.c.l.b16 %v3403
      %v4055 = vunpack.c.h.b16 %v3403
      %v4056 = vunpack.c.l.b16 %v3404
      %v4057 = vunpack.c.h.b16 %v3404
      %v4058 = vunpack.c.l.b16 %v3405
      %v4059 = vunpack.c.h.b16 %v3405
      %v4060 = vunpack.c.l.b16 %v3406
      %v4061 = vunpack.c.h.b16 %v3406
      %v4062 = vunpack.c.l.b16 %v3407
      %v4063 = vunpack.c.h.b16 %v3407
      %v4064 = vunpack.c.l.b16 %v3408
      %v4065 = vunpack.c.h.b16 %v3408
      %v4066 = vunpack.c.l.b16 %v3409
      %v4067 = vunpack.c.h.b16 %v3409
      %v4068 = vunpack.c.l.b16 %v3410
      %v4069 = vunpack.c.h.b16 %v3410
      %v4070 = vunpack.c.l.b16 %v3411
      %v4071 = vunpack.c.h.b16 %v3411
      %v4072 = vunpack.c.l.b16 %v3412
      %v4073 = vunpack.c.h.b16 %v3412
      %v4074 = vunpack.c.l.b16 %v3413
      %v4075 = vunpack.c.h.b16 %v3413
      %v4076 = vunpack.c.l.b16 %v3414
      %v4077 = vunpack.c.h.b16 %v3414
      %v4078 = vunpack.c.l.b16 %v3415
      %v4079 = vunpack.c.h.b16 %v3415
      %v4080 = vunpack.c.l.b16 %v3416
      %v4081 = vunpack.c.h.b16 %v3416
      %v4082 = vunpack.c.l.b16 %v3417
      %v4083 = vunpack.c.h.b16 %v3417
      %v4084 = vunpack.c.l.b16 %v3418
      %v4085 = vunpack.c.h.b16 %v3418
      %v4086 = vunpack.c.l.b16 %v3419
      %v4087 = vunpack.c.h.b16 %v3419
      %v4088 = vunpack.c.l.b16 %v3420
      %v4089 = vunpack.c.h.b16 %v3420
      %v4090 = vunpack.c.l.b16 %v3421
      %v4091 = vunpack.c.h.b16 %v3421
      %v4092 = vunpack.c.l.b16 %v3422
      %v4093 = vunpack.c.h.b16 %v3422
      %v4094 = vunpack.c.l.b16 %v3423
      %v4095 = vunpack.c.h.b16 %v3423
      %v4096 = vunpack.c.l.b16 %v3424
      %v4097 = vunpack.c.h.b16 %v3424
      %v4098 = vunpack.c.l.b16 %v3425
      %v4099 = vunpack.c.h.b16 %v3425
      %v4100 = vunpack.c.l.b16 %v3426
      %v4101 = vunpack.c.h.b16 %v3426
      %v4102 = vunpack.c.l.b16 %v3427
      %v4103 = vunpack.c.h.b16 %v3427
      %v4104 = vunpack.c.l.b16 %v3428
      %v4105 = vunpack.c.h.b16 %v3428
      %v4106 = vunpack.c.l.b16 %v3429
      %v4107 = vunpack.c.h.b16 %v3429
      %v4108 = vunpack.c.l.b16 %v3430
      %v4109 = vunpack.c.h.b16 %v3430
      %v4110 = vunpack.c.l.b16 %v3431
      %v4111 = vunpack.c.h.b16 %v3431
      %v4112 = vunpack.c.l.b16 %v3432
      %v4113 = vunpack.c.h.b16 %v3432
      %v4114 = vunpack.c.l.b16 %v3433
      %v4115 = vunpack.c.h.b16 %v3433
      %v4116 = vunpack.c.l.b16 %v3434
      %v4117 = vunpack.c.h.b16 %v3434
      %v4118 = vunpack.c.l.b16 %v3435
      %v4119 = vunpack.c.h.b16 %v3435
      %v4120 = vunpack.c.l.b16 %v3436
      %v4121 = vunpack.c.h.b16 %v3436
      %v4122 = vunpack.c.l.b16 %v3437
      %v4123 = vunpack.c.h.b16 %v3437
      %v4124 = vunpack.c.l.b16 %v3438
      %v4125 = vunpack.c.h.b16 %v3438
      %v4126 = vunpack.c.l.b16 %v3439
      %v4127 = vunpack.c.h.b16 %v3439
      %v4128 = vunpack.c.l.b16 %v3440
      %v4129 = vunpack.c.h.b16 %v3440
      %v4130 = vunpack.c.l.b16 %v3441
      %v4131 = vunpack.c.h.b16 %v3441
      %v4132 = vunpack.c.l.b16 %v3442
      %v4133 = vunpack.c.h.b16 %v3442
      %v4134 = vunpack.c.l.b16 %v3443
      %v4135 = vunpack.c.h.b16 %v3443
      %v4136 = vunpack.c.l.b16 %v3444
      %v4137 = vunpack.c.h.b16 %v3444
      %v4138 = vunpack.c.l.b16 %v3445
      %v4139 = vunpack.c.h.b16 %v3445
      %v4140 = vunpack.c.l.b16 %v3446
      %v4141 = vunpack.c.h.b16 %v3446
      %v4142 = vunpack.c.l.b16 %v3447
      %v4143 = vunpack.c.h.b16 %v3447
      %v4144 = vunpack.c.l.b16 %v3448
      %v4145 = vunpack.c.h.b16 %v3448
      %v4146 = vunpack.c.l.b16 %v3449
      %v4147 = vunpack.c.h.b16 %v3449
      %v4148 = vunpack.c.l.b16 %v3450
      %v4149 = vunpack.c.h.b16 %v3450
      %v4150 = vunpack.c.l.b16 %v3451
      %v4151 = vunpack.c.h.b16 %v3451
      %v4152 = vunpack.c.l.b16 %v3452
      %v4153 = vunpack.c.h.b16 %v3452
      %v4154 = vunpack.c.l.b16 %v3453
      %v4155 = vunpack.c.h.b16 %v3453
      %v4156 = vunpack.c.l.b16 %v3454
      %v4157 = vunpack.c.h.b16 %v3454
      %v4158 = vunpack.c.l.b16 %v3455
      %v4159 = vunpack.c.h.b16 %v3455
      %v4160 = vunpack.c.l.b16 %v3456
      %v4161 = vunpack.c.h.b16 %v3456
      %v4162 = vunpack.c.l.b16 %v3457
      %v4163 = vunpack.c.h.b16 %v3457
      %v4164 = vunpack.c.l.b16 %v3458
      %v4165 = vunpack.c.h.b16 %v3458
      %v4166 = vunpack.c.l.b16 %v3459
      %v4167 = vunpack.c.h.b16 %v3459
      %v4168 = vunpack.c.l.b16 %v3460
      %v4169 = vunpack.c.h.b16 %v3460
      %v4170 = vunpack.c.l.b16 %v3461
      %v4171 = vunpack.c.h.b16 %v3461
      %v4172 = vunpack.c.l.b16 %v3462
      %v4173 = vunpack.c.h.b16 %v3462
      %v4174 = vunpack.c.l.b16 %v3463
      %v4175 = vunpack.c.h.b16 %v3463
      %v4176 = vunpack.c.l.b16 %v3464
      %v4177 = vunpack.c.h.b16 %v3464
      %v4178 = vunpack.c.l.b16 %v3465
      %v4179 = vunpack.c.h.b16 %v3465
      %v4180 = vunpack.c.l.b16 %v3466
      %v4181 = vunpack.c.h.b16 %v3466
      %v4182 = vunpack.c.l.b16 %v3467
      %v4183 = vunpack.c.h.b16 %v3467
      %v4184 = vunpack.c.l.b16 %v3468
      %v4185 = vunpack.c.h.b16 %v3468
      %v4186 = vunpack.c.l.b16 %v3469
      %v4187 = vunpack.c.h.b16 %v3469
      %v4188 = vunpack.c.l.b16 %v3470
      %v4189 = vunpack.c.h.b16 %v3470
      %v4190 = vunpack.c.l.b16 %v3471
      %v4191 = vunpack.c.h.b16 %v3471
      %v4192 = vunpack.c.l.b16 %v3472
      %v4193 = vunpack.c.h.b16 %v3472
      %v4194 = vunpack.c.l.b16 %v3473
      %v4195 = vunpack.c.h.b16 %v3473
      %v4196 = vunpack.c.l.b16 %v3474
      %v4197 = vunpack.c.h.b16 %v3474
      %v4198 = vunpack.c.l.b16 %v3475
      %v4199 = vunpack.c.h.b16 %v3475
      %v4200 = vunpack.c.l.b16 %v3476
      %v4201 = vunpack.c.h.b16 %v3476
      %v4202 = vunpack.c.l.b16 %v3477
      %v4203 = vunpack.c.h.b16 %v3477
      %v4204 = vunpack.c.l.b16 %v3478
      %v4205 = vunpack.c.h.b16 %v3478
      %v4206 = vunpack.c.l.b16 %v3479
      %v4207 = vunpack.c.h.b16 %v3479
      %v4208 = vunpack.c.l.b16 %v3480
      %v4209 = vunpack.c.h.b16 %v3480
      %v4210 = vunpack.c.l.b16 %v3481
      %v4211 = vunpack.c.h.b16 %v3481
      %v4212 = vunpack.c.l.b16 %v3482
      %v4213 = vunpack.c.h.b16 %v3482
      %v4214 = vunpack.c.l.b16 %v3483
      %v4215 = vunpack.c.h.b16 %v3483
      %v4216 = vunpack.c.l.b16 %v3484
      %v4217 = vunpack.c.h.b16 %v3484
      %v4218 = vunpack.c.l.b16 %v3485
      %v4219 = vunpack.c.h.b16 %v3485
      %v4220 = vunpack.c.l.b16 %v3486
      %v4221 = vunpack.c.h.b16 %v3486
      %v4222 = vunpack.c.l.b16 %v3487
      %v4223 = vunpack.c.h.b16 %v3487
      %v4224 = vunpack.c.l.b16 %v3488
      %v4225 = vunpack.c.h.b16 %v3488
      %v4226 = vunpack.c.l.b16 %v3489
      %v4227 = vunpack.c.h.b16 %v3489
      %v4228 = vunpack.c.l.b16 %v3490
      %v4229 = vunpack.c.h.b16 %v3490
      %v4230 = vunpack.c.l.b16 %v3491
      %v4231 = vunpack.c.h.b16 %v3491
      %v4232 = vunpack.c.l.b16 %v3492
      %v4233 = vunpack.c.h.b16 %v3492
      %v4234 = vunpack.c.l.b16 %v3493
      %v4235 = vunpack.c.h.b16 %v3493
      %v4236 = vunpack.c.l.b16 %v3494
      %v4237 = vunpack.c.h.b16 %v3494
      %v4238 = vunpack.c.l.b16 %v3495
      %v4239 = vunpack.c.h.b16 %v3495
      %v4240 = vunpack.c.l.b16 %v3496
      %v4241 = vunpack.c.h.b16 %v3496
      %v4242 = vunpack.c.l.b16 %v3497
      %v4243 = vunpack.c.h.b16 %v3497
      %v4244 = vunpack.c.l.b16 %v3498
      %v4245 = vunpack.c.h.b16 %v3498
      %v4246 = vunpack.c.l.b16 %v3499
      %v4247 = vunpack.c.h.b16 %v3499
      %v4248 = vunpack.c.l.b16 %v3500
      %v4249 = vunpack.c.h.b16 %v3500
      %v4250 = vunpack.c.l.b16 %v3501
      %v4251 = vunpack.c.h.b16 %v3501
      %v4252 = vunpack.c.l.b16 %v3502
      %v4253 = vunpack.c.h.b16 %v3502
      %v4254 = vunpack.c.l.b16 %v3503
      %v4255 = vunpack.c.h.b16 %v3503
      %v4256 = vunpack.c.l.b16 %v3504
      %v4257 = vunpack.c.h.b16 %v3504
      %v4258 = vunpack.c.l.b16 %v3505
      %v4259 = vunpack.c.h.b16 %v3505
      %v4260 = vunpack.c.l.b16 %v3506
      %v4261 = vunpack.c.h.b16 %v3506
      %v4262 = vunpack.c.l.b16 %v3507
      %v4263 = vunpack.c.h.b16 %v3507
      %v4264 = vunpack.c.l.b16 %v3508
      %v4265 = vunpack.c.h.b16 %v3508
      %v4266 = vunpack.c.l.b16 %v3509
      %v4267 = vunpack.c.h.b16 %v3509
      %v4268 = vunpack.c.l.b16 %v3510
      %v4269 = vunpack.c.h.b16 %v3510
      %v4270 = vunpack.c.l.b16 %v3511
      %v4271 = vunpack.c.h.b16 %v3511
      %v4272 = vunpack.c.l.b16 %v3512
      %v4273 = vunpack.c.h.b16 %v3512
      %v4274 = vunpack.c.l.b16 %v3513
      %v4275 = vunpack.c.h.b16 %v3513
      %v4276 = vunpack.c.l.b16 %v3514
      %v4277 = vunpack.c.h.b16 %v3514
      %v4278 = vunpack.c.l.b16 %v3515
      %v4279 = vunpack.c.h.b16 %v3515
      %v4280 = vunpack.c.l.b16 %v3516
      %v4281 = vunpack.c.h.b16 %v3516
      %v4282 = vunpack.c.l.b16 %v3517
      %v4283 = vunpack.c.h.b16 %v3517
      %v4284 = vunpack.c.l.b16 %v3518
      %v4285 = vunpack.c.h.b16 %v3518
      %v4286 = vunpack.c.l.b16 %v3519
      %v4287 = vunpack.c.h.b16 %v3519
      %v4288 = vunpack.c.l.b16 %v3520
      %v4289 = vunpack.c.h.b16 %v3520
      %v4290 = vunpack.c.l.b16 %v3521
      %v4291 = vunpack.c.h.b16 %v3521
      %v4292 = vunpack.c.l.b16 %v3522
      %v4293 = vunpack.c.h.b16 %v3522
      %v4294 = vunpack.c.l.b16 %v3523
      %v4295 = vunpack.c.h.b16 %v3523
      %v4296 = vunpack.c.l.b16 %v3524
      %v4297 = vunpack.c.h.b16 %v3524
      %v4298 = vunpack.c.l.b16 %v3525
      %v4299 = vunpack.c.h.b16 %v3525
      %v4300 = vunpack.c.l.b16 %v3526
      %v4301 = vunpack.c.h.b16 %v3526
      %v4302 = vunpack.c.l.b16 %v3527
      %v4303 = vunpack.c.h.b16 %v3527
      %v4304 = vunpack.c.l.b16 %v3528
      %v4305 = vunpack.c.h.b16 %v3528
      %v4306 = vunpack.c.l.b16 %v3529
      %v4307 = vunpack.c.h.b16 %v3529
      %v4308 = vunpack.c.l.b16 %v3530
      %v4309 = vunpack.c.h.b16 %v3530
      %v4310 = vunpack.c.l.b16 %v3531
      %v4311 = vunpack.c.h.b16 %v3531
      %v4312 = vunpack.c.l.b16 %v3532
      %v4313 = vunpack.c.h.b16 %v3532
      %v4314 = vunpack.c.l.b16 %v3533
      %v4315 = vunpack.c.h.b16 %v3533
      %v4316 = vunpack.c.l.b16 %v3534
      %v4317 = vunpack.c.h.b16 %v3534
      %v4318 = vunpack.c.l.b16 %v3535
      %v4319 = vunpack.c.h.b16 %v3535
      %v4320 = vunpack.c.l.b16 %v3536
      %v4321 = vunpack.c.h.b16 %v3536
      %v4322 = vunpack.c.l.b16 %v3537
      %v4323 = vunpack.c.h.b16 %v3537
      %v4324 = vunpack.c.l.b16 %v3538
      %v4325 = vunpack.c.h.b16 %v3538
      %v4326 = vunpack.c.l.b16 %v3539
      %v4327 = vunpack.c.h.b16 %v3539
      %v4328 = vunpack.c.l.b16 %v3540
      %v4329 = vunpack.c.h.b16 %v3540
      %v4330 = vunpack.c.l.b16 %v3541
      %v4331 = vunpack.c.h.b16 %v3541
      %v4332 = vpack.c.b16 %v3824, %v3820
      %v4333 = vpack.c.b16 %v3825, %v3821
      %v4334 = vpack.c.b16 %v3826, %v3822
      %v4335 = vpack.c.b16 %v3827, %v3823
      %v4336 = vpack.c.b16 %v3832, %v3828
      %v4337 = vpack.c.b16 %v3833, %v3829
      %v4338 = vpack.c.b16 %v3834, %v3830
      %v4339 = vpack.c.b16 %v3835, %v3831
      %v4340 = vpack.c.b16 %v3840, %v3836
      %v4341 = vpack.c.b16 %v3841, %v3837
      %v4342 = vpack.c.b16 %v3842, %v3838
      %v4343 = vpack.c.b16 %v3843, %v3839
      %v4344 = vpack.c.b16 %v3848, %v3844
      %v4345 = vpack.c.b16 %v3849, %v3845
      %v4346 = vpack.c.b16 %v3850, %v3846
      %v4347 = vpack.c.b16 %v3851, %v3847
      %v4348 = vpack.c.b16 %v3856, %v3852
      %v4349 = vpack.c.b16 %v3857, %v3853
      %v4350 = vpack.c.b16 %v3858, %v3854
      %v4351 = vpack.c.b16 %v3859, %v3855
      %v4352 = vpack.c.b16 %v3864, %v3860
      %v4353 = vpack.c.b16 %v3865, %v3861
      %v4354 = vpack.c.b16 %v3866, %v3862
      %v4355 = vpack.c.b16 %v3867, %v3863
      %v4356 = vpack.c.b16 %v3872, %v3868
      %v4357 = vpack.c.b16 %v3873, %v3869
      %v4358 = vpack.c.b16 %v3874, %v3870
      %v4359 = vpack.c.b16 %v3875, %v3871
      %v4360 = vpack.c.b16 %v3880, %v3876
      %v4361 = vpack.c.b16 %v3881, %v3877
      %v4362 = vpack.c.b16 %v3882, %v3878
      %v4363 = vpack.c.b16 %v3883, %v3879
      %v4364 = vpack.c.b16 %v3888, %v3884
      %v4365 = vpack.c.b16 %v3889, %v3885
      %v4366 = vpack.c.b16 %v3890, %v3886
      %v4367 = vpack.c.b16 %v3891, %v3887
      %v4368 = vpack.c.b16 %v3896, %v3892
      %v4369 = vpack.c.b16 %v3897, %v3893
      %v4370 = vpack.c.b16 %v3898, %v3894
      %v4371 = vpack.c.b16 %v3899, %v3895
      %v4372 = vpack.c.b16 %v3904, %v3900
      %v4373 = vpack.c.b16 %v3905, %v3901
      %v4374 = vpack.c.b16 %v3906, %v3902
      %v4375 = vpack.c.b16 %v3907, %v3903
      %v4376 = vpack.c.b16 %v3912, %v3908
      %v4377 = vpack.c.b16 %v3913, %v3909
      %v4378 = vpack.c.b16 %v3914, %v3910
      %v4379 = vpack.c.b16 %v3915, %v3911
      %v4380 = vpack.c.b16 %v3920, %v3916
      %v4381 = vpack.c.b16 %v3921, %v3917
      %v4382 = vpack.c.b16 %v3922, %v3918
      %v4383 = vpack.c.b16 %v3923, %v3919
      %v4384 = vpack.c.b16 %v3928, %v3924
      %v4385 = vpack.c.b16 %v3929, %v3925
      %v4386 = vpack.c.b16 %v3930, %v3926
      %v4387 = vpack.c.b16 %v3931, %v3927
      %v4388 = vpack.c.b16 %v3936, %v3932
      %v4389 = vpack.c.b16 %v3937, %v3933
      %v4390 = vpack.c.b16 %v3938, %v3934
      %v4391 = vpack.c.b16 %v3939, %v3935
      %v4392 = vpack.c.b16 %v3944, %v3940
      %v4393 = vpack.c.b16 %v3945, %v3941
      %v4394 = vpack.c.b16 %v3946, %v3942
      %v4395 = vpack.c.b16 %v3947, %v3943
      %v4396 = vpack.c.b16 %v3952, %v3948
      %v4397 = vpack.c.b16 %v3953, %v3949
      %v4398 = vpack.c.b16 %v3954, %v3950
      %v4399 = vpack.c.b16 %v3955, %v3951
      %v4400 = vpack.c.b16 %v3960, %v3956
      %v4401 = vpack.c.b16 %v3961, %v3957
      %v4402 = vpack.c.b16 %v3962, %v3958
      %v4403 = vpack.c.b16 %v3963, %v3959
      %v4404 = vpack.c.b16 %v3968, %v3964
      %v4405 = vpack.c.b16 %v3969, %v3965
      %v4406 = vpack.c.b16 %v3970, %v3966
      %v4407 = vpack.c.b16 %v3971, %v3967
      %v4408 = vpack.c.b16 %v3976, %v3972
      %v4409 = vpack.c.b16 %v3977, %v3973
      %v4410 = vpack.c.b16 %v3978, %v3974
      %v4411 = vpack.c.b16 %v3979, %v3975
      %v4412 = vpack.c.b16 %v3984, %v3980
      %v4413 = vpack.c.b16 %v3985, %v3981
      %v4414 = vpack.c.b16 %v3986, %v3982
      %v4415 = vpack.c.b16 %v3987, %v3983
      %v4416 = vpack.c.b16 %v3992, %v3988
      %v4417 = vpack.c.b16 %v3993, %v3989
      %v4418 = vpack.c.b16 %v3994, %v3990
      %v4419 = vpack.c.b16 %v3995, %v3991
      %v4420 = vpack.c.b16 %v4000, %v3996
      %v4421 = vpack.c.b16 %v4001, %v3997
      %v4422 = vpack.c.b16 %v4002, %v3998
      %v4423 = vpack.c.b16 %v4003, %v3999
      %v4424 = vpack.c.b16 %v4008, %v4004
      %v4425 = vpack.c.b16 %v4009, %v4005
      %v4426 = vpack.c.b16 %v4010, %v4006
      %v4427 = vpack.c.b16 %v4011, %v4007
      %v4428 = vpack.c.b16 %v4016, %v4012
      %v4429 = vpack.c.b16 %v4017, %v4013
      %v4430 = vpack.c.b16 %v4018, %v4014
      %v4431 = vpack.c.b16 %v4019, %v4015
      %v4432 = vpack.c.b16 %v4024, %v4020
      %v4433 = vpack.c.b16 %v4025, %v4021
      %v4434 = vpack.c.b16 %v4026, %v4022
      %v4435 = vpack.c.b16 %v4027, %v4023
      %v4436 = vpack.c.b16 %v4032, %v4028
      %v4437 = vpack.c.b16 %v4033, %v4029
      %v4438 = vpack.c.b16 %v4034, %v4030
      %v4439 = vpack.c.b16 %v4035, %v4031
      %v4440 = vpack.c.b16 %v4040, %v4036
      %v4441 = vpack.c.b16 %v4041, %v4037
      %v4442 = vpack.c.b16 %v4042, %v4038
      %v4443 = vpack.c.b16 %v4043, %v4039
      %v4444 = vpack.c.b16 %v4048, %v4044
      %v4445 = vpack.c.b16 %v4049, %v4045
      %v4446 = vpack.c.b16 %v4050, %v4046
      %v4447 = vpack.c.b16 %v4051, %v4047
      %v4448 = vpack.c.b16 %v4056, %v4052
      %v4449 = vpack.c.b16 %v4057, %v4053
      %v4450 = vpack.c.b16 %v4058, %v4054
      %v4451 = vpack.c.b16 %v4059, %v4055
      %v4452 = vpack.c.b16 %v4064, %v4060
      %v4453 = vpack.c.b16 %v4065, %v4061
      %v4454 = vpack.c.b16 %v4066, %v4062
      %v4455 = vpack.c.b16 %v4067, %v4063
      %v4456 = vpack.c.b16 %v4072, %v4068
      %v4457 = vpack.c.b16 %v4073, %v4069
      %v4458 = vpack.c.b16 %v4074, %v4070
      %v4459 = vpack.c.b16 %v4075, %v4071
      %v4460 = vpack.c.b16 %v4080, %v4076
      %v4461 = vpack.c.b16 %v4081, %v4077
      %v4462 = vpack.c.b16 %v4082, %v4078
      %v4463 = vpack.c.b16 %v4083, %v4079
      %v4464 = vpack.c.b16 %v4088, %v4084
      %v4465 = vpack.c.b16 %v4089, %v4085
      %v4466 = vpack.c.b16 %v4090, %v4086
      %v4467 = vpack.c.b16 %v4091, %v4087
      %v4468 = vpack.c.b16 %v4096, %v4092
      %v4469 = vpack.c.b16 %v4097, %v4093
      %v4470 = vpack.c.b16 %v4098, %v4094
      %v4471 = vpack.c.b16 %v4099, %v4095
      %v4472 = vpack.c.b16 %v4104, %v4100
      %v4473 = vpack.c.b16 %v4105, %v4101
      %v4474 = vpack.c.b16 %v4106, %v4102
      %v4475 = vpack.c.b16 %v4107, %v4103
      %v4476 = vpack.c.b16 %v4112, %v4108
      %v4477 = vpack.c.b16 %v4113, %v4109
      %v4478 = vpack.c.b16 %v4114, %v4110
      %v4479 = vpack.c.b16 %v4115, %v4111
      %v4480 = vpack.c.b16 %v4120, %v4116
      %v4481 = vpack.c.b16 %v4121, %v4117
      %v4482 = vpack.c.b16 %v4122, %v4118
      %v4483 = vpack.c.b16 %v4123, %v4119
      %v4484 = vpack.c.b16 %v4128, %v4124
      %v4485 = vpack.c.b16 %v4129, %v4125
      %v4486 = vpack.c.b16 %v4130, %v4126
      %v4487 = vpack.c.b16 %v4131, %v4127
      %v4488 = vpack.c.b16 %v4136, %v4132
      %v4489 = vpack.c.b16 %v4137, %v4133
      %v4490 = vpack.c.b16 %v4138, %v4134
      %v4491 = vpack.c.b16 %v4139, %v4135
      %v4492 = vpack.c.b16 %v4144, %v4140
      %v4493 = vpack.c.b16 %v4145, %v4141
      %v4494 = vpack.c.b16 %v4146, %v4142
      %v4495 = vpack.c.b16 %v4147, %v4143
      %v4496 = vpack.c.b16 %v4152, %v4148
      %v4497 = vpack.c.b16 %v4153, %v4149
      %v4498 = vpack.c.b16 %v4154, %v4150
      %v4499 = vpack.c.b16 %v4155, %v4151
      %v4500 = vpack.c.b16 %v4160, %v4156
      %v4501 = vpack.c.b16 %v4161, %v4157
      %v4502 = vpack.c.b16 %v4162, %v4158
      %v4503 = vpack.c.b16 %v4163, %v4159
      %v4504 = vpack.c.b16 %v4168, %v4164
      %v4505 = vpack.c.b16 %v4169, %v4165
      %v4506 = vpack.c.b16 %v4170, %v4166
      %v4507 = vpack.c.b16 %v4171, %v4167
      %v4508 = vpack.c.b16 %v4176, %v4172
      %v4509 = vpack.c.b16 %v4177, %v4173
      %v4510 = vpack.c.b16 %v4178, %v4174
      %v4511 = vpack.c.b16 %v4179, %v4175
      %v4512 = vpack.c.b16 %v4184, %v4180
      %v4513 = vpack.c.b16 %v4185, %v4181
      %v4514 = vpack.c.b16 %v4186, %v4182
      %v4515 = vpack.c.b16 %v4187, %v4183
      %v4516 = vpack.c.b16 %v4192, %v4188
      %v4517 = vpack.c.b16 %v4193, %v4189
      %v4518 = vpack.c.b16 %v4194, %v4190
      %v4519 = vpack.c.b16 %v4195, %v4191
      %v4520 = vpack.c.b16 %v4200, %v4196
      %v4521 = vpack.c.b16 %v4201, %v4197
      %v4522 = vpack.c.b16 %v4202, %v4198
      %v4523 = vpack.c.b16 %v4203, %v4199
      %v4524 = vpack.c.b16 %v4208, %v4204
      %v4525 = vpack.c.b16 %v4209, %v4205
      %v4526 = vpack.c.b16 %v4210, %v4206
      %v4527 = vpack.c.b16 %v4211, %v4207
      %v4528 = vpack.c.b16 %v4216, %v4212
      %v4529 = vpack.c.b16 %v4217, %v4213
      %v4530 = vpack.c.b16 %v4218, %v4214
      %v4531 = vpack.c.b16 %v4219, %v4215
      %v4532 = vpack.c.b16 %v4224, %v4220
      %v4533 = vpack.c.b16 %v4225, %v4221
      %v4534 = vpack.c.b16 %v4226, %v4222
      %v4535 = vpack.c.b16 %v4227, %v4223
      %v4536 = vpack.c.b16 %v4232, %v4228
      %v4537 = vpack.c.b16 %v4233, %v4229
      %v4538 = vpack.c.b16 %v4234, %v4230
      %v4539 = vpack.c.b16 %v4235, %v4231
      %v4540 = vpack.c.b16 %v4240, %v4236
      %v4541 = vpack.c.b16 %v4241, %v4237
      %v4542 = vpack.c.b16 %v4242, %v4238
      %v4543 = vpack.c.b16 %v4243, %v4239
      %v4544 = vpack.c.b16 %v4248, %v4244
      %v4545 = vpack.c.b16 %v4249, %v4245
      %v4546 = vpack.c.b16 %v4250, %v4246
      %v4547 = vpack.c.b16 %v4251, %v4247
      %v4548 = vpack.c.b16 %v4256, %v4252
      %v4549 = vpack.c.b16 %v4257, %v4253
      %v4550 = vpack.c.b16 %v4258, %v4254
      %v4551 = vpack.c.b16 %v4259, %v4255
      %v4552 = vpack.c.b16 %v4264, %v4260
      %v4553 = vpack.c.b16 %v4265, %v4261
      %v4554 = vpack.c.b16 %v4266, %v4262
      %v4555 = vpack.c.b16 %v4267, %v4263
      %v4556 = vpack.c.b16 %v4272, %v4268
      %v4557 = vpack.c.b16 %v4273, %v4269
      %v4558 = vpack.c.b16 %v4274, %v4270
      %v4559 = vpack.c.b16 %v4275, %v4271
      %v4560 = vpack.c.b16 %v4280, %v4276
      %v4561 = vpack.c.b16 %v4281, %v4277
      %v4562 = vpack.c.b16 %v4282, %v4278
      %v4563 = vpack.c.b16 %v4283, %v4279
      %v4564 = vpack.c.b16 %v4288, %v4284
      %v4565 = vpack.c.b16 %v4289, %v4285
      %v4566 = vpack.c.b16 %v4290, %v4286
      %v4567 = vpack.c.b16 %v4291, %v4287
      %v4568 = vpack.c.b16 %v4296, %v4292
      %v4569 = vpack.c.b16 %v4297, %v4293
      %v4570 = vpack.c.b16 %v4298, %v4294
      %v4571 = vpack.c.b16 %v4299, %v4295
      %v4572 = vpack.c.b16 %v4304, %v4300
      %v4573 = vpack.c.b16 %v4305, %v4301
      %v4574 = vpack.c.b16 %v4306, %v4302
      %v4575 = vpack.c.b16 %v4307, %v4303
      %v4576 = vpack.c.b16 %v4312, %v4308
      %v4577 = vpack.c.b16 %v4313, %v4309
      %v4578 = vpack.c.b16 %v4314, %v4310
      %v4579 = vpack.c.b16 %v4315, %v4311
      %v4580 = vpack.c.b16 %v4320, %v4316
      %v4581 = vpack.c.b16 %v4321, %v4317
      %v4582 = vpack.c.b16 %v4322, %v4318
      %v4583 = vpack.c.b16 %v4323, %v4319
      %v4584 = vpack.c.b16 %v4328, %v4324
      %v4585 = vpack.c.b16 %v4329, %v4325
      %v4586 = vpack.c.b16 %v4330, %v4326
      %v4587 = vpack.c.b16 %v4331, %v4327
      %4844 = vmatprep.subr.bf16.mxu0 %v4361
      %4845 = vmatpush1.bf16.msra.mxu0 %v4360
      %4846 = vmatprep.subr.bf16.mxu0 %v4357
      %4847 = vmatpush1.bf16.msra.mxu0 %v4356
      %4848 = vmatprep.subr.bf16.mxu0 %v4353
      %4849 = vmatpush1.bf16.msra.mxu0 %v4352
      %4850 = vmatprep.subr.bf16.mxu0 %v4349
      %4851 = vmatpush1.bf16.msra.mxu0 %v4348
      %4852 = vmatprep.subr.bf16.mxu0 %v4345
      %4853 = vmatpush1.bf16.msra.mxu0 %v4344
      %4854 = vmatprep.subr.bf16.mxu0 %v4341
      %4855 = vmatpush1.bf16.msra.mxu0 %v4340
      %4856 = vmatprep.subr.bf16.mxu0 %v4337
      %4857 = vmatpush1.bf16.msra.mxu0 %v4336
      %4858 = vmatprep.subr.bf16.mxu0 %v4333
      %4859 = vmatpush1.bf16.msra.mxu0 %v4332
      %4860 = vmatprep.subr.bf16.mxu0 %v4393
      %4861 = vmatpush2.bf16.msra.mxu0 %v4392
      %4862 = vmatprep.subr.bf16.mxu0 %v4389
      %4863 = vmatpush2.bf16.msra.mxu0 %v4388
      %4864 = vmatprep.subr.bf16.mxu0 %v4385
      %4865 = vmatpush2.bf16.msra.mxu0 %v4384
      %4866 = vmatprep.subr.bf16.mxu0 %v4381
      %4867 = vmatpush2.bf16.msra.mxu0 %v4380
      %4868 = vmatprep.subr.bf16.mxu0 %v4377
      %4869 = vmatpush2.bf16.msra.mxu0 %v4376
      %4870 = vmatprep.subr.bf16.mxu0 %v4373
      %4871 = vmatpush2.bf16.msra.mxu0 %v4372
      %4872 = vmatprep.subr.bf16.mxu0 %v4369
      %4873 = vmatpush2.bf16.msra.mxu0 %v4368
      %4874 = vmatprep.subr.bf16.mxu0 %v4365
      %4875 = vmatpush2.bf16.msra.mxu0 %v4364
      %4876 = vmatprep.mubr.bf16.mxu0 %v1955
      %4877 = vmatmul.mubr.bf16.gmra.mxu0 %v1954
      %v4878 = vpop.f32.mrf.mxu0
      %v4879 = vadd.f32 %v3547, %v4878
      %v4880 = vpop.f32.mrf.mxu0
      %v4881 = vadd.f32 %v3551, %v4880
      %v4882 = vpop.f32.mrf.mxu0
      %v4883 = vadd.f32 %v3547, %v4882
      %v4884 = vpop.f32.mrf.mxu0
      %v4885 = vadd.f32 %v3551, %v4884
      %4886 = vmatprep.mubr.bf16.mxu0 %v1963
      %4887 = vmatmul.mubr.bf16.gmra.mxu0 %v1962
      %v4888 = vpop.f32.mrf.mxu0
      %v4889 = vadd.f32 %v3547, %v4888
      %v4890 = vpop.f32.mrf.mxu0
      %v4891 = vadd.f32 %v3551, %v4890
      %v4892 = vpop.f32.mrf.mxu0
      %v4893 = vadd.f32 %v3547, %v4892
      %v4894 = vpop.f32.mrf.mxu0
      %v4895 = vadd.f32 %v3551, %v4894
      %4896 = vmatprep.mubr.bf16.mxu0 %v1971
      %4897 = vmatmul.mubr.bf16.gmra.mxu0 %v1970
      %v4898 = vpop.f32.mrf.mxu0
      %v4899 = vadd.f32 %v3547, %v4898
      %v4900 = vpop.f32.mrf.mxu0
      %v4901 = vadd.f32 %v3551, %v4900
      %v4902 = vpop.f32.mrf.mxu0
      %v4903 = vadd.f32 %v3547, %v4902
      %v4904 = vpop.f32.mrf.mxu0
      %v4905 = vadd.f32 %v3551, %v4904
      %4906 = vmatprep.mubr.bf16.mxu0 %v1979
      %4907 = vmatmul.mubr.bf16.gmra.mxu0 %v1978
      %v4908 = vpop.f32.mrf.mxu0
      %v4909 = vadd.f32 %v3547, %v4908
      %v4910 = vpop.f32.mrf.mxu0
      %v4911 = vadd.f32 %v3551, %v4910
      %v4912 = vpop.f32.mrf.mxu0
      %v4913 = vadd.f32 %v3547, %v4912
      %v4914 = vpop.f32.mrf.mxu0
      %v4915 = vadd.f32 %v3551, %v4914
      %4916 = vmatprep.mubr.bf16.mxu0 %v1987
      %4917 = vmatmul.mubr.bf16.gmra.mxu0 %v1986
      %v4918 = vpop.f32.mrf.mxu0
      %v4919 = vadd.f32 %v3547, %v4918
      %v4920 = vpop.f32.mrf.mxu0
      %v4921 = vadd.f32 %v3551, %v4920
      %v4922 = vpop.f32.mrf.mxu0
      %v4923 = vadd.f32 %v3547, %v4922
      %v4924 = vpop.f32.mrf.mxu0
      %v4925 = vadd.f32 %v3551, %v4924
      %4926 = vmatprep.mubr.bf16.mxu0 %v1995
      %4927 = vmatmul.mubr.bf16.gmra.mxu0 %v1994
      %v4928 = vpop.f32.mrf.mxu0
      %v4929 = vadd.f32 %v3547, %v4928
      %v4930 = vpop.f32.mrf.mxu0
      %v4931 = vadd.f32 %v3551, %v4930
      %v4932 = vpop.f32.mrf.mxu0
      %v4933 = vadd.f32 %v3547, %v4932
      %v4934 = vpop.f32.mrf.mxu0
      %v4935 = vadd.f32 %v3551, %v4934
      %4936 = vmatprep.mubr.bf16.mxu0 %v2003
      %4937 = vmatmul.mubr.bf16.gmra.mxu0 %v2002
      %v4938 = vpop.f32.mrf.mxu0
      %v4939 = vadd.f32 %v3547, %v4938
      %v4940 = vpop.f32.mrf.mxu0
      %v4941 = vadd.f32 %v3551, %v4940
      %v4942 = vpop.f32.mrf.mxu0
      %v4943 = vadd.f32 %v3547, %v4942
      %v4944 = vpop.f32.mrf.mxu0
      %v4945 = vadd.f32 %v3551, %v4944
      %4946 = vmatprep.mubr.bf16.mxu0 %v2011
      %4947 = vmatmul.mubr.bf16.gmra.mxu0 %v2010
      %v4948 = vpop.f32.mrf.mxu0
      %v4949 = vadd.f32 %v3547, %v4948
      %v4950 = vpop.f32.mrf.mxu0
      %v4951 = vadd.f32 %v3551, %v4950
      %v4952 = vpop.f32.mrf.mxu0
      %v4953 = vadd.f32 %v3547, %v4952
      %v4954 = vpop.f32.mrf.mxu0
      %v4955 = vadd.f32 %v3551, %v4954
      %4956 = vmatprep.mubr.bf16.mxu0 %v2019
      %4957 = vmatmul.mubr.bf16.gmra.mxu0 %v2018
      %v4958 = vpop.f32.mrf.mxu0
      %v4959 = vadd.f32 %v3547, %v4958
      %v4960 = vpop.f32.mrf.mxu0
      %v4961 = vadd.f32 %v3551, %v4960
      %v4962 = vpop.f32.mrf.mxu0
      %v4963 = vadd.f32 %v3547, %v4962
      %v4964 = vpop.f32.mrf.mxu0
      %v4965 = vadd.f32 %v3551, %v4964
      %4966 = vmatprep.mubr.bf16.mxu0 %v2027
      %4967 = vmatmul.mubr.bf16.gmra.mxu0 %v2026
      %v4968 = vpop.f32.mrf.mxu0
      %v4969 = vadd.f32 %v3547, %v4968
      %v4970 = vpop.f32.mrf.mxu0
      %v4971 = vadd.f32 %v3551, %v4970
      %v4972 = vpop.f32.mrf.mxu0
      %v4973 = vadd.f32 %v3547, %v4972
      %v4974 = vpop.f32.mrf.mxu0
      %v4975 = vadd.f32 %v3551, %v4974
      %4976 = vmatprep.mubr.bf16.mxu0 %v2035
      %4977 = vmatmul.mubr.bf16.gmra.mxu0 %v2034
      %v4978 = vpop.f32.mrf.mxu0
      %v4979 = vadd.f32 %v3547, %v4978
      %v4980 = vpop.f32.mrf.mxu0
      %v4981 = vadd.f32 %v3551, %v4980
      %v4982 = vpop.f32.mrf.mxu0
      %v4983 = vadd.f32 %v3547, %v4982
      %v4984 = vpop.f32.mrf.mxu0
      %v4985 = vadd.f32 %v3551, %v4984
      %4986 = vmatprep.mubr.bf16.mxu0 %v2043
      %4987 = vmatmul.mubr.bf16.gmra.mxu0 %v2042
      %v4988 = vpop.f32.mrf.mxu0
      %v4989 = vadd.f32 %v3547, %v4988
      %v4990 = vpop.f32.mrf.mxu0
      %v4991 = vadd.f32 %v3551, %v4990
      %v4992 = vpop.f32.mrf.mxu0
      %v4993 = vadd.f32 %v3547, %v4992
      %v4994 = vpop.f32.mrf.mxu0
      %v4995 = vadd.f32 %v3551, %v4994
      %4996 = vmatprep.mubr.bf16.mxu0 %v2051
      %4997 = vmatmul.mubr.bf16.gmra.mxu0 %v2050
      %v4998 = vpop.f32.mrf.mxu0
      %v4999 = vadd.f32 %v3547, %v4998
      %v5000 = vpop.f32.mrf.mxu0
      %v5001 = vadd.f32 %v3551, %v5000
      %v5002 = vpop.f32.mrf.mxu0
      %v5003 = vadd.f32 %v3547, %v5002
      %v5004 = vpop.f32.mrf.mxu0
      %v5005 = vadd.f32 %v3551, %v5004
      %5006 = vmatprep.mubr.bf16.mxu0 %v2059
      %5007 = vmatmul.mubr.bf16.gmra.mxu0 %v2058
      %v5008 = vpop.f32.mrf.mxu0
      %v5009 = vadd.f32 %v3547, %v5008
      %v5010 = vpop.f32.mrf.mxu0
      %v5011 = vadd.f32 %v3551, %v5010
      %v5012 = vpop.f32.mrf.mxu0
      %v5013 = vadd.f32 %v3547, %v5012
      %v5014 = vpop.f32.mrf.mxu0
      %v5015 = vadd.f32 %v3551, %v5014
      %5016 = vmatprep.mubr.bf16.mxu0 %v2067
      %5017 = vmatmul.mubr.bf16.gmra.mxu0 %v2066
      %v5018 = vpop.f32.mrf.mxu0
      %v5019 = vadd.f32 %v3547, %v5018
      %v5020 = vpop.f32.mrf.mxu0
      %v5021 = vadd.f32 %v3551, %v5020
      %v5022 = vpop.f32.mrf.mxu0
      %v5023 = vadd.f32 %v3547, %v5022
      %v5024 = vpop.f32.mrf.mxu0
      %v5025 = vadd.f32 %v3551, %v5024
      %5026 = vmatprep.mubr.bf16.mxu0 %v2075
      %5027 = vmatmul.mubr.bf16.gmra.mxu0 %v2074
      %v5028 = vpop.f32.mrf.mxu0
      %v5029 = vadd.f32 %v3547, %v5028
      %v5030 = vpop.f32.mrf.mxu0
      %v5031 = vadd.f32 %v3551, %v5030
      %v5032 = vpop.f32.mrf.mxu0
      %v5033 = vadd.f32 %v3547, %v5032
      %v5034 = vpop.f32.mrf.mxu0
      %v5035 = vadd.f32 %v3551, %v5034
      %5036 = vdwg.mxu0
      %5037 = vmatprep.subr.bf16.mxu0 %v4425
      %5038 = vmatpush1.bf16.msra.mxu0 %v4424
      %5039 = vmatprep.subr.bf16.mxu0 %v4421
      %5040 = vmatpush1.bf16.msra.mxu0 %v4420
      %5041 = vmatprep.subr.bf16.mxu0 %v4417
      %5042 = vmatpush1.bf16.msra.mxu0 %v4416
      %5043 = vmatprep.subr.bf16.mxu0 %v4413
      %5044 = vmatpush1.bf16.msra.mxu0 %v4412
      %5045 = vmatprep.subr.bf16.mxu0 %v4409
      %5046 = vmatpush1.bf16.msra.mxu0 %v4408
      %5047 = vmatprep.subr.bf16.mxu0 %v4405
      %5048 = vmatpush1.bf16.msra.mxu0 %v4404
      %5049 = vmatprep.subr.bf16.mxu0 %v4401
      %5050 = vmatpush1.bf16.msra.mxu0 %v4400
      %5051 = vmatprep.subr.bf16.mxu0 %v4397
      %5052 = vmatpush1.bf16.msra.mxu0 %v4396
      %5053 = vmatprep.subr.bf16.mxu0 %v4457
      %5054 = vmatpush2.bf16.msra.mxu0 %v4456
      %5055 = vmatprep.subr.bf16.mxu0 %v4453
      %5056 = vmatpush2.bf16.msra.mxu0 %v4452
      %5057 = vmatprep.subr.bf16.mxu0 %v4449
      %5058 = vmatpush2.bf16.msra.mxu0 %v4448
      %5059 = vmatprep.subr.bf16.mxu0 %v4445
      %5060 = vmatpush2.bf16.msra.mxu0 %v4444
      %5061 = vmatprep.subr.bf16.mxu0 %v4441
      %5062 = vmatpush2.bf16.msra.mxu0 %v4440
      %5063 = vmatprep.subr.bf16.mxu0 %v4437
      %5064 = vmatpush2.bf16.msra.mxu0 %v4436
      %5065 = vmatprep.subr.bf16.mxu0 %v4433
      %5066 = vmatpush2.bf16.msra.mxu0 %v4432
      %5067 = vmatprep.subr.bf16.mxu0 %v4429
      %5068 = vmatpush2.bf16.msra.mxu0 %v4428
      %5069 = vmatprep.mubr.bf16.mxu0 %v1957
      %5070 = vmatmul.mubr.bf16.gmra.mxu0 %v1956
      %v5071 = vpop.f32.mrf.mxu0
      %v5072 = vadd.f32 %v4879, %v5071
      %v5073 = vpop.f32.mrf.mxu0
      %v5074 = vadd.f32 %v4881, %v5073
      %v5075 = vpop.f32.mrf.mxu0
      %v5076 = vadd.f32 %v4883, %v5075
      %v5077 = vpop.f32.mrf.mxu0
      %v5078 = vadd.f32 %v4885, %v5077
      %5079 = vmatprep.mubr.bf16.mxu0 %v1965
      %5080 = vmatmul.mubr.bf16.gmra.mxu0 %v1964
      %v5081 = vpop.f32.mrf.mxu0
      %v5082 = vadd.f32 %v4889, %v5081
      %v5083 = vpop.f32.mrf.mxu0
      %v5084 = vadd.f32 %v4891, %v5083
      %v5085 = vpop.f32.mrf.mxu0
      %v5086 = vadd.f32 %v4893, %v5085
      %v5087 = vpop.f32.mrf.mxu0
      %v5088 = vadd.f32 %v4895, %v5087
      %5089 = vmatprep.mubr.bf16.mxu0 %v1973
      %5090 = vmatmul.mubr.bf16.gmra.mxu0 %v1972
      %v5091 = vpop.f32.mrf.mxu0
      %v5092 = vadd.f32 %v4899, %v5091
      %v5093 = vpop.f32.mrf.mxu0
      %v5094 = vadd.f32 %v4901, %v5093
      %v5095 = vpop.f32.mrf.mxu0
      %v5096 = vadd.f32 %v4903, %v5095
      %v5097 = vpop.f32.mrf.mxu0
      %v5098 = vadd.f32 %v4905, %v5097
      %5099 = vmatprep.mubr.bf16.mxu0 %v1981
      %5100 = vmatmul.mubr.bf16.gmra.mxu0 %v1980
      %v5101 = vpop.f32.mrf.mxu0
      %v5102 = vadd.f32 %v4909, %v5101
      %v5103 = vpop.f32.mrf.mxu0
      %v5104 = vadd.f32 %v4911, %v5103
      %v5105 = vpop.f32.mrf.mxu0
      %v5106 = vadd.f32 %v4913, %v5105
      %v5107 = vpop.f32.mrf.mxu0
      %v5108 = vadd.f32 %v4915, %v5107
      %5109 = vmatprep.mubr.bf16.mxu0 %v1989
      %5110 = vmatmul.mubr.bf16.gmra.mxu0 %v1988
      %v5111 = vpop.f32.mrf.mxu0
      %v5112 = vadd.f32 %v4919, %v5111
      %v5113 = vpop.f32.mrf.mxu0
      %v5114 = vadd.f32 %v4921, %v5113
      %v5115 = vpop.f32.mrf.mxu0
      %v5116 = vadd.f32 %v4923, %v5115
      %v5117 = vpop.f32.mrf.mxu0
      %v5118 = vadd.f32 %v4925, %v5117
      %5119 = vmatprep.mubr.bf16.mxu0 %v1997
      %5120 = vmatmul.mubr.bf16.gmra.mxu0 %v1996
      %v5121 = vpop.f32.mrf.mxu0
      %v5122 = vadd.f32 %v4929, %v5121
      %v5123 = vpop.f32.mrf.mxu0
      %v5124 = vadd.f32 %v4931, %v5123
      %v5125 = vpop.f32.mrf.mxu0
      %v5126 = vadd.f32 %v4933, %v5125
      %v5127 = vpop.f32.mrf.mxu0
      %v5128 = vadd.f32 %v4935, %v5127
      %5129 = vmatprep.mubr.bf16.mxu0 %v2005
      %5130 = vmatmul.mubr.bf16.gmra.mxu0 %v2004
      %v5131 = vpop.f32.mrf.mxu0
      %v5132 = vadd.f32 %v4939, %v5131
      %v5133 = vpop.f32.mrf.mxu0
      %v5134 = vadd.f32 %v4941, %v5133
      %v5135 = vpop.f32.mrf.mxu0
      %v5136 = vadd.f32 %v4943, %v5135
      %v5137 = vpop.f32.mrf.mxu0
      %v5138 = vadd.f32 %v4945, %v5137
      %5139 = vmatprep.mubr.bf16.mxu0 %v2013
      %5140 = vmatmul.mubr.bf16.gmra.mxu0 %v2012
      %v5141 = vpop.f32.mrf.mxu0
      %v5142 = vadd.f32 %v4949, %v5141
      %v5143 = vpop.f32.mrf.mxu0
      %v5144 = vadd.f32 %v4951, %v5143
      %v5145 = vpop.f32.mrf.mxu0
      %v5146 = vadd.f32 %v4953, %v5145
      %v5147 = vpop.f32.mrf.mxu0
      %v5148 = vadd.f32 %v4955, %v5147
      %5149 = vmatprep.mubr.bf16.mxu0 %v2021
      %5150 = vmatmul.mubr.bf16.gmra.mxu0 %v2020
      %v5151 = vpop.f32.mrf.mxu0
      %v5152 = vadd.f32 %v4959, %v5151
      %v5153 = vpop.f32.mrf.mxu0
      %v5154 = vadd.f32 %v4961, %v5153
      %v5155 = vpop.f32.mrf.mxu0
      %v5156 = vadd.f32 %v4963, %v5155
      %v5157 = vpop.f32.mrf.mxu0
      %v5158 = vadd.f32 %v4965, %v5157
      %5159 = vmatprep.mubr.bf16.mxu0 %v2029
      %5160 = vmatmul.mubr.bf16.gmra.mxu0 %v2028
      %v5161 = vpop.f32.mrf.mxu0
      %v5162 = vadd.f32 %v4969, %v5161
      %v5163 = vpop.f32.mrf.mxu0
      %v5164 = vadd.f32 %v4971, %v5163
      %v5165 = vpop.f32.mrf.mxu0
      %v5166 = vadd.f32 %v4973, %v5165
      %v5167 = vpop.f32.mrf.mxu0
      %v5168 = vadd.f32 %v4975, %v5167
      %5169 = vmatprep.mubr.bf16.mxu0 %v2037
      %5170 = vmatmul.mubr.bf16.gmra.mxu0 %v2036
      %v5171 = vpop.f32.mrf.mxu0
      %v5172 = vadd.f32 %v4979, %v5171
      %v5173 = vpop.f32.mrf.mxu0
      %v5174 = vadd.f32 %v4981, %v5173
      %v5175 = vpop.f32.mrf.mxu0
      %v5176 = vadd.f32 %v4983, %v5175
      %v5177 = vpop.f32.mrf.mxu0
      %v5178 = vadd.f32 %v4985, %v5177
      %5179 = vmatprep.mubr.bf16.mxu0 %v2045
      %5180 = vmatmul.mubr.bf16.gmra.mxu0 %v2044
      %v5181 = vpop.f32.mrf.mxu0
      %v5182 = vadd.f32 %v4989, %v5181
      %v5183 = vpop.f32.mrf.mxu0
      %v5184 = vadd.f32 %v4991, %v5183
      %v5185 = vpop.f32.mrf.mxu0
      %v5186 = vadd.f32 %v4993, %v5185
      %v5187 = vpop.f32.mrf.mxu0
      %v5188 = vadd.f32 %v4995, %v5187
      %5189 = vmatprep.mubr.bf16.mxu0 %v2053
      %5190 = vmatmul.mubr.bf16.gmra.mxu0 %v2052
      %v5191 = vpop.f32.mrf.mxu0
      %v5192 = vadd.f32 %v4999, %v5191
      %v5193 = vpop.f32.mrf.mxu0
      %v5194 = vadd.f32 %v5001, %v5193
      %v5195 = vpop.f32.mrf.mxu0
      %v5196 = vadd.f32 %v5003, %v5195
      %v5197 = vpop.f32.mrf.mxu0
      %v5198 = vadd.f32 %v5005, %v5197
      %5199 = vmatprep.mubr.bf16.mxu0 %v2061
      %5200 = vmatmul.mubr.bf16.gmra.mxu0 %v2060
      %v5201 = vpop.f32.mrf.mxu0
      %v5202 = vadd.f32 %v5009, %v5201
      %v5203 = vpop.f32.mrf.mxu0
      %v5204 = vadd.f32 %v5011, %v5203
      %v5205 = vpop.f32.mrf.mxu0
      %v5206 = vadd.f32 %v5013, %v5205
      %v5207 = vpop.f32.mrf.mxu0
      %v5208 = vadd.f32 %v5015, %v5207
      %5209 = vmatprep.mubr.bf16.mxu0 %v2069
      %5210 = vmatmul.mubr.bf16.gmra.mxu0 %v2068
      %v5211 = vpop.f32.mrf.mxu0
      %v5212 = vadd.f32 %v5019, %v5211
      %v5213 = vpop.f32.mrf.mxu0
      %v5214 = vadd.f32 %v5021, %v5213
      %v5215 = vpop.f32.mrf.mxu0
      %v5216 = vadd.f32 %v5023, %v5215
      %v5217 = vpop.f32.mrf.mxu0
      %v5218 = vadd.f32 %v5025, %v5217
      %5219 = vmatprep.mubr.bf16.mxu0 %v2077
      %5220 = vmatmul.mubr.bf16.gmra.mxu0 %v2076
      %v5221 = vpop.f32.mrf.mxu0
      %v5222 = vadd.f32 %v5029, %v5221
      %v5223 = vpop.f32.mrf.mxu0
      %v5224 = vadd.f32 %v5031, %v5223
      %v5225 = vpop.f32.mrf.mxu0
      %v5226 = vadd.f32 %v5033, %v5225
      %v5227 = vpop.f32.mrf.mxu0
      %v5228 = vadd.f32 %v5035, %v5227
      %5229 = vdwg.mxu0
      %5230 = vmatprep.subr.bf16.mxu0 %v4489
      %5231 = vmatpush1.bf16.msra.mxu0 %v4488
      %5232 = vmatprep.subr.bf16.mxu0 %v4485
      %5233 = vmatpush1.bf16.msra.mxu0 %v4484
      %5234 = vmatprep.subr.bf16.mxu0 %v4481
      %5235 = vmatpush1.bf16.msra.mxu0 %v4480
      %5236 = vmatprep.subr.bf16.mxu0 %v4477
      %5237 = vmatpush1.bf16.msra.mxu0 %v4476
      %5238 = vmatprep.subr.bf16.mxu0 %v4473
      %5239 = vmatpush1.bf16.msra.mxu0 %v4472
      %5240 = vmatprep.subr.bf16.mxu0 %v4469
      %5241 = vmatpush1.bf16.msra.mxu0 %v4468
      %5242 = vmatprep.subr.bf16.mxu0 %v4465
      %5243 = vmatpush1.bf16.msra.mxu0 %v4464
      %5244 = vmatprep.subr.bf16.mxu0 %v4461
      %5245 = vmatpush1.bf16.msra.mxu0 %v4460
      %5246 = vmatprep.subr.bf16.mxu0 %v4521
      %5247 = vmatpush2.bf16.msra.mxu0 %v4520
      %5248 = vmatprep.subr.bf16.mxu0 %v4517
      %5249 = vmatpush2.bf16.msra.mxu0 %v4516
      %5250 = vmatprep.subr.bf16.mxu0 %v4513
      %5251 = vmatpush2.bf16.msra.mxu0 %v4512
      %5252 = vmatprep.subr.bf16.mxu0 %v4509
      %5253 = vmatpush2.bf16.msra.mxu0 %v4508
      %5254 = vmatprep.subr.bf16.mxu0 %v4505
      %5255 = vmatpush2.bf16.msra.mxu0 %v4504
      %5256 = vmatprep.subr.bf16.mxu0 %v4501
      %5257 = vmatpush2.bf16.msra.mxu0 %v4500
      %5258 = vmatprep.subr.bf16.mxu0 %v4497
      %5259 = vmatpush2.bf16.msra.mxu0 %v4496
      %5260 = vmatprep.subr.bf16.mxu0 %v4493
      %5261 = vmatpush2.bf16.msra.mxu0 %v4492
      %5262 = vmatprep.mubr.bf16.mxu0 %v1959
      %5263 = vmatmul.mubr.bf16.gmra.mxu0 %v1958
      %v5264 = vpop.f32.mrf.mxu0
      %v5265 = vadd.f32 %v5072, %v5264
      %v5266 = vpop.f32.mrf.mxu0
      %v5267 = vadd.f32 %v5074, %v5266
      %v5268 = vpop.f32.mrf.mxu0
      %v5269 = vadd.f32 %v5076, %v5268
      %v5270 = vpop.f32.mrf.mxu0
      %v5271 = vadd.f32 %v5078, %v5270
      %5272 = vmatprep.mubr.bf16.mxu0 %v1967
      %5273 = vmatmul.mubr.bf16.gmra.mxu0 %v1966
      %v5274 = vpop.f32.mrf.mxu0
      %v5275 = vadd.f32 %v5082, %v5274
      %v5276 = vpop.f32.mrf.mxu0
      %v5277 = vadd.f32 %v5084, %v5276
      %v5278 = vpop.f32.mrf.mxu0
      %v5279 = vadd.f32 %v5086, %v5278
      %v5280 = vpop.f32.mrf.mxu0
      %v5281 = vadd.f32 %v5088, %v5280
      %5282 = vmatprep.mubr.bf16.mxu0 %v1975
      %5283 = vmatmul.mubr.bf16.gmra.mxu0 %v1974
      %v5284 = vpop.f32.mrf.mxu0
      %v5285 = vadd.f32 %v5092, %v5284
      %v5286 = vpop.f32.mrf.mxu0
      %v5287 = vadd.f32 %v5094, %v5286
      %v5288 = vpop.f32.mrf.mxu0
      %v5289 = vadd.f32 %v5096, %v5288
      %v5290 = vpop.f32.mrf.mxu0
      %v5291 = vadd.f32 %v5098, %v5290
      %5292 = vmatprep.mubr.bf16.mxu0 %v1983
      %5293 = vmatmul.mubr.bf16.gmra.mxu0 %v1982
      %v5294 = vpop.f32.mrf.mxu0
      %v5295 = vadd.f32 %v5102, %v5294
      %v5296 = vpop.f32.mrf.mxu0
      %v5297 = vadd.f32 %v5104, %v5296
      %v5298 = vpop.f32.mrf.mxu0
      %v5299 = vadd.f32 %v5106, %v5298
      %v5300 = vpop.f32.mrf.mxu0
      %v5301 = vadd.f32 %v5108, %v5300
      %5302 = vmatprep.mubr.bf16.mxu0 %v1991
      %5303 = vmatmul.mubr.bf16.gmra.mxu0 %v1990
      %v5304 = vpop.f32.mrf.mxu0
      %v5305 = vadd.f32 %v5112, %v5304
      %v5306 = vpop.f32.mrf.mxu0
      %v5307 = vadd.f32 %v5114, %v5306
      %v5308 = vpop.f32.mrf.mxu0
      %v5309 = vadd.f32 %v5116, %v5308
      %v5310 = vpop.f32.mrf.mxu0
      %v5311 = vadd.f32 %v5118, %v5310
      %5312 = vmatprep.mubr.bf16.mxu0 %v1999
      %5313 = vmatmul.mubr.bf16.gmra.mxu0 %v1998
      %v5314 = vpop.f32.mrf.mxu0
      %v5315 = vadd.f32 %v5122, %v5314
      %v5316 = vpop.f32.mrf.mxu0
      %v5317 = vadd.f32 %v5124, %v5316
      %v5318 = vpop.f32.mrf.mxu0
      %v5319 = vadd.f32 %v5126, %v5318
      %v5320 = vpop.f32.mrf.mxu0
      %v5321 = vadd.f32 %v5128, %v5320
      %5322 = vmatprep.mubr.bf16.mxu0 %v2007
      %5323 = vmatmul.mubr.bf16.gmra.mxu0 %v2006
      %v5324 = vpop.f32.mrf.mxu0
      %v5325 = vadd.f32 %v5132, %v5324
      %v5326 = vpop.f32.mrf.mxu0
      %v5327 = vadd.f32 %v5134, %v5326
      %v5328 = vpop.f32.mrf.mxu0
      %v5329 = vadd.f32 %v5136, %v5328
      %v5330 = vpop.f32.mrf.mxu0
      %v5331 = vadd.f32 %v5138, %v5330
      %5332 = vmatprep.mubr.bf16.mxu0 %v2015
      %5333 = vmatmul.mubr.bf16.gmra.mxu0 %v2014
      %v5334 = vpop.f32.mrf.mxu0
      %v5335 = vadd.f32 %v5142, %v5334
      %v5336 = vpop.f32.mrf.mxu0
      %v5337 = vadd.f32 %v5144, %v5336
      %v5338 = vpop.f32.mrf.mxu0
      %v5339 = vadd.f32 %v5146, %v5338
      %v5340 = vpop.f32.mrf.mxu0
      %v5341 = vadd.f32 %v5148, %v5340
      %5342 = vmatprep.mubr.bf16.mxu0 %v2023
      %5343 = vmatmul.mubr.bf16.gmra.mxu0 %v2022
      %v5344 = vpop.f32.mrf.mxu0
      %v5345 = vadd.f32 %v5152, %v5344
      %v5346 = vpop.f32.mrf.mxu0
      %v5347 = vadd.f32 %v5154, %v5346
      %v5348 = vpop.f32.mrf.mxu0
      %v5349 = vadd.f32 %v5156, %v5348
      %v5350 = vpop.f32.mrf.mxu0
      %v5351 = vadd.f32 %v5158, %v5350
      %5352 = vmatprep.mubr.bf16.mxu0 %v2031
      %5353 = vmatmul.mubr.bf16.gmra.mxu0 %v2030
      %v5354 = vpop.f32.mrf.mxu0
      %v5355 = vadd.f32 %v5162, %v5354
      %v5356 = vpop.f32.mrf.mxu0
      %v5357 = vadd.f32 %v5164, %v5356
      %v5358 = vpop.f32.mrf.mxu0
      %v5359 = vadd.f32 %v5166, %v5358
      %v5360 = vpop.f32.mrf.mxu0
      %v5361 = vadd.f32 %v5168, %v5360
      %5362 = vmatprep.mubr.bf16.mxu0 %v2039
      %5363 = vmatmul.mubr.bf16.gmra.mxu0 %v2038
      %v5364 = vpop.f32.mrf.mxu0
      %v5365 = vadd.f32 %v5172, %v5364
      %v5366 = vpop.f32.mrf.mxu0
      %v5367 = vadd.f32 %v5174, %v5366
      %v5368 = vpop.f32.mrf.mxu0
      %v5369 = vadd.f32 %v5176, %v5368
      %v5370 = vpop.f32.mrf.mxu0
      %v5371 = vadd.f32 %v5178, %v5370
      %5372 = vmatprep.mubr.bf16.mxu0 %v2047
      %5373 = vmatmul.mubr.bf16.gmra.mxu0 %v2046
      %v5374 = vpop.f32.mrf.mxu0
      %v5375 = vadd.f32 %v5182, %v5374
      %v5376 = vpop.f32.mrf.mxu0
      %v5377 = vadd.f32 %v5184, %v5376
      %v5378 = vpop.f32.mrf.mxu0
      %v5379 = vadd.f32 %v5186, %v5378
      %v5380 = vpop.f32.mrf.mxu0
      %v5381 = vadd.f32 %v5188, %v5380
      %5382 = vmatprep.mubr.bf16.mxu0 %v2055
      %5383 = vmatmul.mubr.bf16.gmra.mxu0 %v2054
      %v5384 = vpop.f32.mrf.mxu0
      %v5385 = vadd.f32 %v5192, %v5384
      %v5386 = vpop.f32.mrf.mxu0
      %v5387 = vadd.f32 %v5194, %v5386
      %v5388 = vpop.f32.mrf.mxu0
      %v5389 = vadd.f32 %v5196, %v5388
      %v5390 = vpop.f32.mrf.mxu0
      %v5391 = vadd.f32 %v5198, %v5390
      %5392 = vmatprep.mubr.bf16.mxu0 %v2063
      %5393 = vmatmul.mubr.bf16.gmra.mxu0 %v2062
      %v5394 = vpop.f32.mrf.mxu0
      %v5395 = vadd.f32 %v5202, %v5394
      %v5396 = vpop.f32.mrf.mxu0
      %v5397 = vadd.f32 %v5204, %v5396
      %v5398 = vpop.f32.mrf.mxu0
      %v5399 = vadd.f32 %v5206, %v5398
      %v5400 = vpop.f32.mrf.mxu0
      %v5401 = vadd.f32 %v5208, %v5400
      %5402 = vmatprep.mubr.bf16.mxu0 %v2071
      %5403 = vmatmul.mubr.bf16.gmra.mxu0 %v2070
      %v5404 = vpop.f32.mrf.mxu0
      %v5405 = vadd.f32 %v5212, %v5404
      %v5406 = vpop.f32.mrf.mxu0
      %v5407 = vadd.f32 %v5214, %v5406
      %v5408 = vpop.f32.mrf.mxu0
      %v5409 = vadd.f32 %v5216, %v5408
      %v5410 = vpop.f32.mrf.mxu0
      %v5411 = vadd.f32 %v5218, %v5410
      %5412 = vmatprep.mubr.bf16.mxu0 %v2079
      %5413 = vmatmul.mubr.bf16.gmra.mxu0 %v2078
      %v5414 = vpop.f32.mrf.mxu0
      %v5415 = vadd.f32 %v5222, %v5414
      %v5416 = vpop.f32.mrf.mxu0
      %v5417 = vadd.f32 %v5224, %v5416
      %v5418 = vpop.f32.mrf.mxu0
      %v5419 = vadd.f32 %v5226, %v5418
      %v5420 = vpop.f32.mrf.mxu0
      %v5421 = vadd.f32 %v5228, %v5420
      %5422 = vdwg.mxu0
      %5423 = vmatprep.subr.bf16.mxu0 %v4553
      %5424 = vmatpush1.bf16.msra.mxu0 %v4552
      %5425 = vmatprep.subr.bf16.mxu0 %v4549
      %5426 = vmatpush1.bf16.msra.mxu0 %v4548
      %5427 = vmatprep.subr.bf16.mxu0 %v4545
      %5428 = vmatpush1.bf16.msra.mxu0 %v4544
      %5429 = vmatprep.subr.bf16.mxu0 %v4541
      %5430 = vmatpush1.bf16.msra.mxu0 %v4540
      %5431 = vmatprep.subr.bf16.mxu0 %v4537
      %5432 = vmatpush1.bf16.msra.mxu0 %v4536
      %5433 = vmatprep.subr.bf16.mxu0 %v4533
      %5434 = vmatpush1.bf16.msra.mxu0 %v4532
      %5435 = vmatprep.subr.bf16.mxu0 %v4529
      %5436 = vmatpush1.bf16.msra.mxu0 %v4528
      %5437 = vmatprep.subr.bf16.mxu0 %v4525
      %5438 = vmatpush1.bf16.msra.mxu0 %v4524
      %5439 = vmatprep.subr.bf16.mxu0 %v4585
      %5440 = vmatpush2.bf16.msra.mxu0 %v4584
      %5441 = vmatprep.subr.bf16.mxu0 %v4581
      %5442 = vmatpush2.bf16.msra.mxu0 %v4580
      %5443 = vmatprep.subr.bf16.mxu0 %v4577
      %5444 = vmatpush2.bf16.msra.mxu0 %v4576
      %5445 = vmatprep.subr.bf16.mxu0 %v4573
      %5446 = vmatpush2.bf16.msra.mxu0 %v4572
      %5447 = vmatprep.subr.bf16.mxu0 %v4569
      %5448 = vmatpush2.bf16.msra.mxu0 %v4568
      %5449 = vmatprep.subr.bf16.mxu0 %v4565
      %5450 = vmatpush2.bf16.msra.mxu0 %v4564
      %5451 = vmatprep.subr.bf16.mxu0 %v4561
      %5452 = vmatpush2.bf16.msra.mxu0 %v4560
      %5453 = vmatprep.subr.bf16.mxu0 %v4557
      %5454 = vmatpush2.bf16.msra.mxu0 %v4556
      %5455 = vmatprep.mubr.bf16.mxu0 %v1961
      %5456 = vmatmul.mubr.bf16.gmra.mxu0 %v1960
      %v5457 = vpop.f32.mrf.mxu0
      %v5458 = vadd.f32 %v5265, %v5457
      %v5459 = vpop.f32.mrf.mxu0
      %v5460 = vadd.f32 %v5267, %v5459
      %v5461 = vpop.f32.mrf.mxu0
      %v5462 = vadd.f32 %v5269, %v5461
      %v5463 = vpop.f32.mrf.mxu0
      %v5464 = vadd.f32 %v5271, %v5463
      %5465 = vmatprep.mubr.bf16.mxu0 %v1969
      %5466 = vmatmul.mubr.bf16.gmra.mxu0 %v1968
      %v5467 = vpop.f32.mrf.mxu0
      %v5468 = vadd.f32 %v5275, %v5467
      %v5469 = vpop.f32.mrf.mxu0
      %v5470 = vadd.f32 %v5277, %v5469
      %v5471 = vpop.f32.mrf.mxu0
      %v5472 = vadd.f32 %v5279, %v5471
      %v5473 = vpop.f32.mrf.mxu0
      %v5474 = vadd.f32 %v5281, %v5473
      %5475 = vmatprep.mubr.bf16.mxu0 %v1977
      %5476 = vmatmul.mubr.bf16.gmra.mxu0 %v1976
      %v5477 = vpop.f32.mrf.mxu0
      %v5478 = vadd.f32 %v5285, %v5477
      %v5479 = vpop.f32.mrf.mxu0
      %v5480 = vadd.f32 %v5287, %v5479
      %v5481 = vpop.f32.mrf.mxu0
      %v5482 = vadd.f32 %v5289, %v5481
      %v5483 = vpop.f32.mrf.mxu0
      %v5484 = vadd.f32 %v5291, %v5483
      %5485 = vmatprep.mubr.bf16.mxu0 %v1985
      %5486 = vmatmul.mubr.bf16.gmra.mxu0 %v1984
      %v5487 = vpop.f32.mrf.mxu0
      %v5488 = vadd.f32 %v5295, %v5487
      %v5489 = vpop.f32.mrf.mxu0
      %v5490 = vadd.f32 %v5297, %v5489
      %v5491 = vpop.f32.mrf.mxu0
      %v5492 = vadd.f32 %v5299, %v5491
      %v5493 = vpop.f32.mrf.mxu0
      %v5494 = vadd.f32 %v5301, %v5493
      %5495 = vmatprep.mubr.bf16.mxu0 %v1993
      %5496 = vmatmul.mubr.bf16.gmra.mxu0 %v1992
      %v5497 = vpop.f32.mrf.mxu0
      %v5498 = vadd.f32 %v5305, %v5497
      %v5499 = vpop.f32.mrf.mxu0
      %v5500 = vadd.f32 %v5307, %v5499
      %v5501 = vpop.f32.mrf.mxu0
      %v5502 = vadd.f32 %v5309, %v5501
      %v5503 = vpop.f32.mrf.mxu0
      %v5504 = vadd.f32 %v5311, %v5503
      %5505 = vmatprep.mubr.bf16.mxu0 %v2001
      %5506 = vmatmul.mubr.bf16.gmra.mxu0 %v2000
      %v5507 = vpop.f32.mrf.mxu0
      %v5508 = vadd.f32 %v5315, %v5507
      %v5509 = vpop.f32.mrf.mxu0
      %v5510 = vadd.f32 %v5317, %v5509
      %v5511 = vpop.f32.mrf.mxu0
      %v5512 = vadd.f32 %v5319, %v5511
      %v5513 = vpop.f32.mrf.mxu0
      %v5514 = vadd.f32 %v5321, %v5513
      %5515 = vmatprep.mubr.bf16.mxu0 %v2009
      %5516 = vmatmul.mubr.bf16.gmra.mxu0 %v2008
      %v5517 = vpop.f32.mrf.mxu0
      %v5518 = vadd.f32 %v5325, %v5517
      %v5519 = vpop.f32.mrf.mxu0
      %v5520 = vadd.f32 %v5327, %v5519
      %v5521 = vpop.f32.mrf.mxu0
      %v5522 = vadd.f32 %v5329, %v5521
      %v5523 = vpop.f32.mrf.mxu0
      %v5524 = vadd.f32 %v5331, %v5523
      %5525 = vmatprep.mubr.bf16.mxu0 %v2017
      %5526 = vmatmul.mubr.bf16.gmra.mxu0 %v2016
      %v5527 = vpop.f32.mrf.mxu0
      %v5528 = vadd.f32 %v5335, %v5527
      %v5529 = vpop.f32.mrf.mxu0
      %v5530 = vadd.f32 %v5337, %v5529
      %v5531 = vpop.f32.mrf.mxu0
      %v5532 = vadd.f32 %v5339, %v5531
      %v5533 = vpop.f32.mrf.mxu0
      %v5534 = vadd.f32 %v5341, %v5533
      %5535 = vmatprep.mubr.bf16.mxu0 %v2025
      %5536 = vmatmul.mubr.bf16.gmra.mxu0 %v2024
      %v5537 = vpop.f32.mrf.mxu0
      %v5538 = vadd.f32 %v5345, %v5537
      %v5539 = vpop.f32.mrf.mxu0
      %v5540 = vadd.f32 %v5347, %v5539
      %v5541 = vpop.f32.mrf.mxu0
      %v5542 = vadd.f32 %v5349, %v5541
      %v5543 = vpop.f32.mrf.mxu0
      %v5544 = vadd.f32 %v5351, %v5543
      %5545 = vmatprep.mubr.bf16.mxu0 %v2033
      %5546 = vmatmul.mubr.bf16.gmra.mxu0 %v2032
      %v5547 = vpop.f32.mrf.mxu0
      %v5548 = vadd.f32 %v5355, %v5547
      %v5549 = vpop.f32.mrf.mxu0
      %v5550 = vadd.f32 %v5357, %v5549
      %v5551 = vpop.f32.mrf.mxu0
      %v5552 = vadd.f32 %v5359, %v5551
      %v5553 = vpop.f32.mrf.mxu0
      %v5554 = vadd.f32 %v5361, %v5553
      %5555 = vmatprep.mubr.bf16.mxu0 %v2041
      %5556 = vmatmul.mubr.bf16.gmra.mxu0 %v2040
      %v5557 = vpop.f32.mrf.mxu0
      %v5558 = vadd.f32 %v5365, %v5557
      %v5559 = vpop.f32.mrf.mxu0
      %v5560 = vadd.f32 %v5367, %v5559
      %v5561 = vpop.f32.mrf.mxu0
      %v5562 = vadd.f32 %v5369, %v5561
      %v5563 = vpop.f32.mrf.mxu0
      %v5564 = vadd.f32 %v5371, %v5563
      %5565 = vmatprep.mubr.bf16.mxu0 %v2049
      %5566 = vmatmul.mubr.bf16.gmra.mxu0 %v2048
      %v5567 = vpop.f32.mrf.mxu0
      %v5568 = vadd.f32 %v5375, %v5567
      %v5569 = vpop.f32.mrf.mxu0
      %v5570 = vadd.f32 %v5377, %v5569
      %v5571 = vpop.f32.mrf.mxu0
      %v5572 = vadd.f32 %v5379, %v5571
      %v5573 = vpop.f32.mrf.mxu0
      %v5574 = vadd.f32 %v5381, %v5573
      %5575 = vmatprep.mubr.bf16.mxu0 %v2057
      %5576 = vmatmul.mubr.bf16.gmra.mxu0 %v2056
      %v5577 = vpop.f32.mrf.mxu0
      %v5578 = vadd.f32 %v5385, %v5577
      %v5579 = vpop.f32.mrf.mxu0
      %v5580 = vadd.f32 %v5387, %v5579
      %v5581 = vpop.f32.mrf.mxu0
      %v5582 = vadd.f32 %v5389, %v5581
      %v5583 = vpop.f32.mrf.mxu0
      %v5584 = vadd.f32 %v5391, %v5583
      %5585 = vmatprep.mubr.bf16.mxu0 %v2065
      %5586 = vmatmul.mubr.bf16.gmra.mxu0 %v2064
      %v5587 = vpop.f32.mrf.mxu0
      %v5588 = vadd.f32 %v5395, %v5587
      %v5589 = vpop.f32.mrf.mxu0
      %v5590 = vadd.f32 %v5397, %v5589
      %v5591 = vpop.f32.mrf.mxu0
      %v5592 = vadd.f32 %v5399, %v5591
      %v5593 = vpop.f32.mrf.mxu0
      %v5594 = vadd.f32 %v5401, %v5593
      %5595 = vmatprep.mubr.bf16.mxu0 %v2073
      %5596 = vmatmul.mubr.bf16.gmra.mxu0 %v2072
      %v5597 = vpop.f32.mrf.mxu0
      %v5598 = vadd.f32 %v5405, %v5597
      %v5599 = vpop.f32.mrf.mxu0
      %v5600 = vadd.f32 %v5407, %v5599
      %v5601 = vpop.f32.mrf.mxu0
      %v5602 = vadd.f32 %v5409, %v5601
      %v5603 = vpop.f32.mrf.mxu0
      %v5604 = vadd.f32 %v5411, %v5603
      %5605 = vmatprep.mubr.bf16.mxu0 %v2081
      %5606 = vmatmul.mubr.bf16.gmra.mxu0 %v2080
      %v5607 = vpop.f32.mrf.mxu0
      %v5608 = vadd.f32 %v5415, %v5607
      %v5609 = vpop.f32.mrf.mxu0
      %v5610 = vadd.f32 %v5417, %v5609
      %v5611 = vpop.f32.mrf.mxu0
      %v5612 = vadd.f32 %v5419, %v5611
      %v5613 = vpop.f32.mrf.mxu0
      %v5614 = vadd.f32 %v5421, %v5613
      %5615 = vdwg.mxu0
      %5616 = vmatprep.subr.bf16.mxu0 %v4363
      %5617 = vmatpush1.bf16.msra.mxu0 %v4362
      %5618 = vmatprep.subr.bf16.mxu0 %v4359
      %5619 = vmatpush1.bf16.msra.mxu0 %v4358
      %5620 = vmatprep.subr.bf16.mxu0 %v4355
      %5621 = vmatpush1.bf16.msra.mxu0 %v4354
      %5622 = vmatprep.subr.bf16.mxu0 %v4351
      %5623 = vmatpush1.bf16.msra.mxu0 %v4350
      %5624 = vmatprep.subr.bf16.mxu0 %v4347
      %5625 = vmatpush1.bf16.msra.mxu0 %v4346
      %5626 = vmatprep.subr.bf16.mxu0 %v4343
      %5627 = vmatpush1.bf16.msra.mxu0 %v4342
      %5628 = vmatprep.subr.bf16.mxu0 %v4339
      %5629 = vmatpush1.bf16.msra.mxu0 %v4338
      %5630 = vmatprep.subr.bf16.mxu0 %v4335
      %5631 = vmatpush1.bf16.msra.mxu0 %v4334
      %5632 = vmatprep.subr.bf16.mxu0 %v4395
      %5633 = vmatpush2.bf16.msra.mxu0 %v4394
      %5634 = vmatprep.subr.bf16.mxu0 %v4391
      %5635 = vmatpush2.bf16.msra.mxu0 %v4390
      %5636 = vmatprep.subr.bf16.mxu0 %v4387
      %5637 = vmatpush2.bf16.msra.mxu0 %v4386
      %5638 = vmatprep.subr.bf16.mxu0 %v4383
      %5639 = vmatpush2.bf16.msra.mxu0 %v4382
      %5640 = vmatprep.subr.bf16.mxu0 %v4379
      %5641 = vmatpush2.bf16.msra.mxu0 %v4378
      %5642 = vmatprep.subr.bf16.mxu0 %v4375
      %5643 = vmatpush2.bf16.msra.mxu0 %v4374
      %5644 = vmatprep.subr.bf16.mxu0 %v4371
      %5645 = vmatpush2.bf16.msra.mxu0 %v4370
      %5646 = vmatprep.subr.bf16.mxu0 %v4367
      %5647 = vmatpush2.bf16.msra.mxu0 %v4366
      %5648 = vmatprep.mubr.bf16.mxu0 %v1955
      %5649 = vmatmul.mubr.bf16.gmra.mxu0 %v1954
      %v5650 = vpop.f32.mrf.mxu0
      %v5651 = vadd.f32 %v3555, %v5650
      %v5652 = vpop.f32.mrf.mxu0
      %v5653 = vadd.f32 %v3559, %v5652
      %v5654 = vpop.f32.mrf.mxu0
      %v5655 = vadd.f32 %v3555, %v5654
      %v5656 = vpop.f32.mrf.mxu0
      %v5657 = vadd.f32 %v3559, %v5656
      %5658 = vmatprep.mubr.bf16.mxu0 %v1963
      %5659 = vmatmul.mubr.bf16.gmra.mxu0 %v1962
      %v5660 = vpop.f32.mrf.mxu0
      %v5661 = vadd.f32 %v3555, %v5660
      %v5662 = vpop.f32.mrf.mxu0
      %v5663 = vadd.f32 %v3559, %v5662
      %v5664 = vpop.f32.mrf.mxu0
      %v5665 = vadd.f32 %v3555, %v5664
      %v5666 = vpop.f32.mrf.mxu0
      %v5667 = vadd.f32 %v3559, %v5666
      %5668 = vmatprep.mubr.bf16.mxu0 %v1971
      %5669 = vmatmul.mubr.bf16.gmra.mxu0 %v1970
      %v5670 = vpop.f32.mrf.mxu0
      %v5671 = vadd.f32 %v3555, %v5670
      %v5672 = vpop.f32.mrf.mxu0
      %v5673 = vadd.f32 %v3559, %v5672
      %v5674 = vpop.f32.mrf.mxu0
      %v5675 = vadd.f32 %v3555, %v5674
      %v5676 = vpop.f32.mrf.mxu0
      %v5677 = vadd.f32 %v3559, %v5676
      %5678 = vmatprep.mubr.bf16.mxu0 %v1979
      %5679 = vmatmul.mubr.bf16.gmra.mxu0 %v1978
      %v5680 = vpop.f32.mrf.mxu0
      %v5681 = vadd.f32 %v3555, %v5680
      %v5682 = vpop.f32.mrf.mxu0
      %v5683 = vadd.f32 %v3559, %v5682
      %v5684 = vpop.f32.mrf.mxu0
      %v5685 = vadd.f32 %v3555, %v5684
      %v5686 = vpop.f32.mrf.mxu0
      %v5687 = vadd.f32 %v3559, %v5686
      %5688 = vmatprep.mubr.bf16.mxu0 %v1987
      %5689 = vmatmul.mubr.bf16.gmra.mxu0 %v1986
      %v5690 = vpop.f32.mrf.mxu0
      %v5691 = vadd.f32 %v3555, %v5690
      %v5692 = vpop.f32.mrf.mxu0
      %v5693 = vadd.f32 %v3559, %v5692
      %v5694 = vpop.f32.mrf.mxu0
      %v5695 = vadd.f32 %v3555, %v5694
      %v5696 = vpop.f32.mrf.mxu0
      %v5697 = vadd.f32 %v3559, %v5696
      %5698 = vmatprep.mubr.bf16.mxu0 %v1995
      %5699 = vmatmul.mubr.bf16.gmra.mxu0 %v1994
      %v5700 = vpop.f32.mrf.mxu0
      %v5701 = vadd.f32 %v3555, %v5700
      %v5702 = vpop.f32.mrf.mxu0
      %v5703 = vadd.f32 %v3559, %v5702
      %v5704 = vpop.f32.mrf.mxu0
      %v5705 = vadd.f32 %v3555, %v5704
      %v5706 = vpop.f32.mrf.mxu0
      %v5707 = vadd.f32 %v3559, %v5706
      %5708 = vmatprep.mubr.bf16.mxu0 %v2003
      %5709 = vmatmul.mubr.bf16.gmra.mxu0 %v2002
      %v5710 = vpop.f32.mrf.mxu0
      %v5711 = vadd.f32 %v3555, %v5710
      %v5712 = vpop.f32.mrf.mxu0
      %v5713 = vadd.f32 %v3559, %v5712
      %v5714 = vpop.f32.mrf.mxu0
      %v5715 = vadd.f32 %v3555, %v5714
      %v5716 = vpop.f32.mrf.mxu0
      %v5717 = vadd.f32 %v3559, %v5716
      %5718 = vmatprep.mubr.bf16.mxu0 %v2011
      %5719 = vmatmul.mubr.bf16.gmra.mxu0 %v2010
      %v5720 = vpop.f32.mrf.mxu0
      %v5721 = vadd.f32 %v3555, %v5720
      %v5722 = vpop.f32.mrf.mxu0
      %v5723 = vadd.f32 %v3559, %v5722
      %v5724 = vpop.f32.mrf.mxu0
      %v5725 = vadd.f32 %v3555, %v5724
      %v5726 = vpop.f32.mrf.mxu0
      %v5727 = vadd.f32 %v3559, %v5726
      %5728 = vmatprep.mubr.bf16.mxu0 %v2019
      %5729 = vmatmul.mubr.bf16.gmra.mxu0 %v2018
      %v5730 = vpop.f32.mrf.mxu0
      %v5731 = vadd.f32 %v3555, %v5730
      %v5732 = vpop.f32.mrf.mxu0
      %v5733 = vadd.f32 %v3559, %v5732
      %v5734 = vpop.f32.mrf.mxu0
      %v5735 = vadd.f32 %v3555, %v5734
      %v5736 = vpop.f32.mrf.mxu0
      %v5737 = vadd.f32 %v3559, %v5736
      %5738 = vmatprep.mubr.bf16.mxu0 %v2027
      %5739 = vmatmul.mubr.bf16.gmra.mxu0 %v2026
      %v5740 = vpop.f32.mrf.mxu0
      %v5741 = vadd.f32 %v3555, %v5740
      %v5742 = vpop.f32.mrf.mxu0
      %v5743 = vadd.f32 %v3559, %v5742
      %v5744 = vpop.f32.mrf.mxu0
      %v5745 = vadd.f32 %v3555, %v5744
      %v5746 = vpop.f32.mrf.mxu0
      %v5747 = vadd.f32 %v3559, %v5746
      %5748 = vmatprep.mubr.bf16.mxu0 %v2035
      %5749 = vmatmul.mubr.bf16.gmra.mxu0 %v2034
      %v5750 = vpop.f32.mrf.mxu0
      %v5751 = vadd.f32 %v3555, %v5750
      %v5752 = vpop.f32.mrf.mxu0
      %v5753 = vadd.f32 %v3559, %v5752
      %v5754 = vpop.f32.mrf.mxu0
      %v5755 = vadd.f32 %v3555, %v5754
      %v5756 = vpop.f32.mrf.mxu0
      %v5757 = vadd.f32 %v3559, %v5756
      %5758 = vmatprep.mubr.bf16.mxu0 %v2043
      %5759 = vmatmul.mubr.bf16.gmra.mxu0 %v2042
      %v5760 = vpop.f32.mrf.mxu0
      %v5761 = vadd.f32 %v3555, %v5760
      %v5762 = vpop.f32.mrf.mxu0
      %v5763 = vadd.f32 %v3559, %v5762
      %v5764 = vpop.f32.mrf.mxu0
      %v5765 = vadd.f32 %v3555, %v5764
      %v5766 = vpop.f32.mrf.mxu0
      %v5767 = vadd.f32 %v3559, %v5766
      %5768 = vmatprep.mubr.bf16.mxu0 %v2051
      %5769 = vmatmul.mubr.bf16.gmra.mxu0 %v2050
      %v5770 = vpop.f32.mrf.mxu0
      %v5771 = vadd.f32 %v3555, %v5770
      %v5772 = vpop.f32.mrf.mxu0
      %v5773 = vadd.f32 %v3559, %v5772
      %v5774 = vpop.f32.mrf.mxu0
      %v5775 = vadd.f32 %v3555, %v5774
      %v5776 = vpop.f32.mrf.mxu0
      %v5777 = vadd.f32 %v3559, %v5776
      %5778 = vmatprep.mubr.bf16.mxu0 %v2059
      %5779 = vmatmul.mubr.bf16.gmra.mxu0 %v2058
      %v5780 = vpop.f32.mrf.mxu0
      %v5781 = vadd.f32 %v3555, %v5780
      %v5782 = vpop.f32.mrf.mxu0
      %v5783 = vadd.f32 %v3559, %v5782
      %v5784 = vpop.f32.mrf.mxu0
      %v5785 = vadd.f32 %v3555, %v5784
      %v5786 = vpop.f32.mrf.mxu0
      %v5787 = vadd.f32 %v3559, %v5786
      %5788 = vmatprep.mubr.bf16.mxu0 %v2067
      %5789 = vmatmul.mubr.bf16.gmra.mxu0 %v2066
      %v5790 = vpop.f32.mrf.mxu0
      %v5791 = vadd.f32 %v3555, %v5790
      %v5792 = vpop.f32.mrf.mxu0
      %v5793 = vadd.f32 %v3559, %v5792
      %v5794 = vpop.f32.mrf.mxu0
      %v5795 = vadd.f32 %v3555, %v5794
      %v5796 = vpop.f32.mrf.mxu0
      %v5797 = vadd.f32 %v3559, %v5796
      %5798 = vmatprep.mubr.bf16.mxu0 %v2075
      %5799 = vmatmul.mubr.bf16.gmra.mxu0 %v2074
      %v5800 = vpop.f32.mrf.mxu0
      %v5801 = vadd.f32 %v3555, %v5800
      %v5802 = vpop.f32.mrf.mxu0
      %v5803 = vadd.f32 %v3559, %v5802
      %v5804 = vpop.f32.mrf.mxu0
      %v5805 = vadd.f32 %v3555, %v5804
      %v5806 = vpop.f32.mrf.mxu0
      %v5807 = vadd.f32 %v3559, %v5806
      %5808 = vdwg.mxu0
      %5809 = vmatprep.subr.bf16.mxu0 %v4427
      %5810 = vmatpush1.bf16.msra.mxu0 %v4426
      %5811 = vmatprep.subr.bf16.mxu0 %v4423
      %5812 = vmatpush1.bf16.msra.mxu0 %v4422
      %5813 = vmatprep.subr.bf16.mxu0 %v4419
      %5814 = vmatpush1.bf16.msra.mxu0 %v4418
      %5815 = vmatprep.subr.bf16.mxu0 %v4415
      %5816 = vmatpush1.bf16.msra.mxu0 %v4414
      %5817 = vmatprep.subr.bf16.mxu0 %v4411
      %5818 = vmatpush1.bf16.msra.mxu0 %v4410
      %5819 = vmatprep.subr.bf16.mxu0 %v4407
      %5820 = vmatpush1.bf16.msra.mxu0 %v4406
      %5821 = vmatprep.subr.bf16.mxu0 %v4403
      %5822 = vmatpush1.bf16.msra.mxu0 %v4402
      %5823 = vmatprep.subr.bf16.mxu0 %v4399
      %5824 = vmatpush1.bf16.msra.mxu0 %v4398
      %5825 = vmatprep.subr.bf16.mxu0 %v4459
      %5826 = vmatpush2.bf16.msra.mxu0 %v4458
      %5827 = vmatprep.subr.bf16.mxu0 %v4455
      %5828 = vmatpush2.bf16.msra.mxu0 %v4454
      %5829 = vmatprep.subr.bf16.mxu0 %v4451
      %5830 = vmatpush2.bf16.msra.mxu0 %v4450
      %5831 = vmatprep.subr.bf16.mxu0 %v4447
      %5832 = vmatpush2.bf16.msra.mxu0 %v4446
      %5833 = vmatprep.subr.bf16.mxu0 %v4443
      %5834 = vmatpush2.bf16.msra.mxu0 %v4442
      %5835 = vmatprep.subr.bf16.mxu0 %v4439
      %5836 = vmatpush2.bf16.msra.mxu0 %v4438
      %5837 = vmatprep.subr.bf16.mxu0 %v4435
      %5838 = vmatpush2.bf16.msra.mxu0 %v4434
      %5839 = vmatprep.subr.bf16.mxu0 %v4431
      %5840 = vmatpush2.bf16.msra.mxu0 %v4430
      %5841 = vmatprep.mubr.bf16.mxu0 %v1957
      %5842 = vmatmul.mubr.bf16.gmra.mxu0 %v1956
      %v5843 = vpop.f32.mrf.mxu0
      %v5844 = vadd.f32 %v5651, %v5843
      %v5845 = vpop.f32.mrf.mxu0
      %v5846 = vadd.f32 %v5653, %v5845
      %v5847 = vpop.f32.mrf.mxu0
      %v5848 = vadd.f32 %v5655, %v5847
      %v5849 = vpop.f32.mrf.mxu0
      %v5850 = vadd.f32 %v5657, %v5849
      %5851 = vmatprep.mubr.bf16.mxu0 %v1965
      %5852 = vmatmul.mubr.bf16.gmra.mxu0 %v1964
      %v5853 = vpop.f32.mrf.mxu0
      %v5854 = vadd.f32 %v5661, %v5853
      %v5855 = vpop.f32.mrf.mxu0
      %v5856 = vadd.f32 %v5663, %v5855
      %v5857 = vpop.f32.mrf.mxu0
      %v5858 = vadd.f32 %v5665, %v5857
      %v5859 = vpop.f32.mrf.mxu0
      %v5860 = vadd.f32 %v5667, %v5859
      %5861 = vmatprep.mubr.bf16.mxu0 %v1973
      %5862 = vmatmul.mubr.bf16.gmra.mxu0 %v1972
      %v5863 = vpop.f32.mrf.mxu0
      %v5864 = vadd.f32 %v5671, %v5863
      %v5865 = vpop.f32.mrf.mxu0
      %v5866 = vadd.f32 %v5673, %v5865
      %v5867 = vpop.f32.mrf.mxu0
      %v5868 = vadd.f32 %v5675, %v5867
      %v5869 = vpop.f32.mrf.mxu0
      %v5870 = vadd.f32 %v5677, %v5869
      %5871 = vmatprep.mubr.bf16.mxu0 %v1981
      %5872 = vmatmul.mubr.bf16.gmra.mxu0 %v1980
      %v5873 = vpop.f32.mrf.mxu0
      %v5874 = vadd.f32 %v5681, %v5873
      %v5875 = vpop.f32.mrf.mxu0
      %v5876 = vadd.f32 %v5683, %v5875
      %v5877 = vpop.f32.mrf.mxu0
      %v5878 = vadd.f32 %v5685, %v5877
      %v5879 = vpop.f32.mrf.mxu0
      %v5880 = vadd.f32 %v5687, %v5879
      %5881 = vmatprep.mubr.bf16.mxu0 %v1989
      %5882 = vmatmul.mubr.bf16.gmra.mxu0 %v1988
      %v5883 = vpop.f32.mrf.mxu0
      %v5884 = vadd.f32 %v5691, %v5883
      %v5885 = vpop.f32.mrf.mxu0
      %v5886 = vadd.f32 %v5693, %v5885
      %v5887 = vpop.f32.mrf.mxu0
      %v5888 = vadd.f32 %v5695, %v5887
      %v5889 = vpop.f32.mrf.mxu0
      %v5890 = vadd.f32 %v5697, %v5889
      %5891 = vmatprep.mubr.bf16.mxu0 %v1997
      %5892 = vmatmul.mubr.bf16.gmra.mxu0 %v1996
      %v5893 = vpop.f32.mrf.mxu0
      %v5894 = vadd.f32 %v5701, %v5893
      %v5895 = vpop.f32.mrf.mxu0
      %v5896 = vadd.f32 %v5703, %v5895
      %v5897 = vpop.f32.mrf.mxu0
      %v5898 = vadd.f32 %v5705, %v5897
      %v5899 = vpop.f32.mrf.mxu0
      %v5900 = vadd.f32 %v5707, %v5899
      %5901 = vmatprep.mubr.bf16.mxu0 %v2005
      %5902 = vmatmul.mubr.bf16.gmra.mxu0 %v2004
      %v5903 = vpop.f32.mrf.mxu0
      %v5904 = vadd.f32 %v5711, %v5903
      %v5905 = vpop.f32.mrf.mxu0
      %v5906 = vadd.f32 %v5713, %v5905
      %v5907 = vpop.f32.mrf.mxu0
      %v5908 = vadd.f32 %v5715, %v5907
      %v5909 = vpop.f32.mrf.mxu0
      %v5910 = vadd.f32 %v5717, %v5909
      %5911 = vmatprep.mubr.bf16.mxu0 %v2013
      %5912 = vmatmul.mubr.bf16.gmra.mxu0 %v2012
      %v5913 = vpop.f32.mrf.mxu0
      %v5914 = vadd.f32 %v5721, %v5913
      %v5915 = vpop.f32.mrf.mxu0
      %v5916 = vadd.f32 %v5723, %v5915
      %v5917 = vpop.f32.mrf.mxu0
      %v5918 = vadd.f32 %v5725, %v5917
      %v5919 = vpop.f32.mrf.mxu0
      %v5920 = vadd.f32 %v5727, %v5919
      %5921 = vmatprep.mubr.bf16.mxu0 %v2021
      %5922 = vmatmul.mubr.bf16.gmra.mxu0 %v2020
      %v5923 = vpop.f32.mrf.mxu0
      %v5924 = vadd.f32 %v5731, %v5923
      %v5925 = vpop.f32.mrf.mxu0
      %v5926 = vadd.f32 %v5733, %v5925
      %v5927 = vpop.f32.mrf.mxu0
      %v5928 = vadd.f32 %v5735, %v5927
      %v5929 = vpop.f32.mrf.mxu0
      %v5930 = vadd.f32 %v5737, %v5929
      %5931 = vmatprep.mubr.bf16.mxu0 %v2029
      %5932 = vmatmul.mubr.bf16.gmra.mxu0 %v2028
      %v5933 = vpop.f32.mrf.mxu0
      %v5934 = vadd.f32 %v5741, %v5933
      %v5935 = vpop.f32.mrf.mxu0
      %v5936 = vadd.f32 %v5743, %v5935
      %v5937 = vpop.f32.mrf.mxu0
      %v5938 = vadd.f32 %v5745, %v5937
      %v5939 = vpop.f32.mrf.mxu0
      %v5940 = vadd.f32 %v5747, %v5939
      %5941 = vmatprep.mubr.bf16.mxu0 %v2037
      %5942 = vmatmul.mubr.bf16.gmra.mxu0 %v2036
      %v5943 = vpop.f32.mrf.mxu0
      %v5944 = vadd.f32 %v5751, %v5943
      %v5945 = vpop.f32.mrf.mxu0
      %v5946 = vadd.f32 %v5753, %v5945
      %v5947 = vpop.f32.mrf.mxu0
      %v5948 = vadd.f32 %v5755, %v5947
      %v5949 = vpop.f32.mrf.mxu0
      %v5950 = vadd.f32 %v5757, %v5949
      %5951 = vmatprep.mubr.bf16.mxu0 %v2045
      %5952 = vmatmul.mubr.bf16.gmra.mxu0 %v2044
      %v5953 = vpop.f32.mrf.mxu0
      %v5954 = vadd.f32 %v5761, %v5953
      %v5955 = vpop.f32.mrf.mxu0
      %v5956 = vadd.f32 %v5763, %v5955
      %v5957 = vpop.f32.mrf.mxu0
      %v5958 = vadd.f32 %v5765, %v5957
      %v5959 = vpop.f32.mrf.mxu0
      %v5960 = vadd.f32 %v5767, %v5959
      %5961 = vmatprep.mubr.bf16.mxu0 %v2053
      %5962 = vmatmul.mubr.bf16.gmra.mxu0 %v2052
      %v5963 = vpop.f32.mrf.mxu0
      %v5964 = vadd.f32 %v5771, %v5963
      %v5965 = vpop.f32.mrf.mxu0
      %v5966 = vadd.f32 %v5773, %v5965
      %v5967 = vpop.f32.mrf.mxu0
      %v5968 = vadd.f32 %v5775, %v5967
      %v5969 = vpop.f32.mrf.mxu0
      %v5970 = vadd.f32 %v5777, %v5969
      %5971 = vmatprep.mubr.bf16.mxu0 %v2061
      %5972 = vmatmul.mubr.bf16.gmra.mxu0 %v2060
      %v5973 = vpop.f32.mrf.mxu0
      %v5974 = vadd.f32 %v5781, %v5973
      %v5975 = vpop.f32.mrf.mxu0
      %v5976 = vadd.f32 %v5783, %v5975
      %v5977 = vpop.f32.mrf.mxu0
      %v5978 = vadd.f32 %v5785, %v5977
      %v5979 = vpop.f32.mrf.mxu0
      %v5980 = vadd.f32 %v5787, %v5979
      %5981 = vmatprep.mubr.bf16.mxu0 %v2069
      %5982 = vmatmul.mubr.bf16.gmra.mxu0 %v2068
      %v5983 = vpop.f32.mrf.mxu0
      %v5984 = vadd.f32 %v5791, %v5983
      %v5985 = vpop.f32.mrf.mxu0
      %v5986 = vadd.f32 %v5793, %v5985
      %v5987 = vpop.f32.mrf.mxu0
      %v5988 = vadd.f32 %v5795, %v5987
      %v5989 = vpop.f32.mrf.mxu0
      %v5990 = vadd.f32 %v5797, %v5989
      %5991 = vmatprep.mubr.bf16.mxu0 %v2077
      %5992 = vmatmul.mubr.bf16.gmra.mxu0 %v2076
      %v5993 = vpop.f32.mrf.mxu0
      %v5994 = vadd.f32 %v5801, %v5993
      %v5995 = vpop.f32.mrf.mxu0
      %v5996 = vadd.f32 %v5803, %v5995
      %v5997 = vpop.f32.mrf.mxu0
      %v5998 = vadd.f32 %v5805, %v5997
      %v5999 = vpop.f32.mrf.mxu0
      %v6000 = vadd.f32 %v5807, %v5999
      %6001 = vdwg.mxu0
      %6002 = vmatprep.subr.bf16.mxu0 %v4491
      %6003 = vmatpush1.bf16.msra.mxu0 %v4490
      %6004 = vmatprep.subr.bf16.mxu0 %v4487
      %6005 = vmatpush1.bf16.msra.mxu0 %v4486
      %6006 = vmatprep.subr.bf16.mxu0 %v4483
      %6007 = vmatpush1.bf16.msra.mxu0 %v4482
      %6008 = vmatprep.subr.bf16.mxu0 %v4479
      %6009 = vmatpush1.bf16.msra.mxu0 %v4478
      %6010 = vmatprep.subr.bf16.mxu0 %v4475
      %6011 = vmatpush1.bf16.msra.mxu0 %v4474
      %6012 = vmatprep.subr.bf16.mxu0 %v4471
      %6013 = vmatpush1.bf16.msra.mxu0 %v4470
      %6014 = vmatprep.subr.bf16.mxu0 %v4467
      %6015 = vmatpush1.bf16.msra.mxu0 %v4466
      %6016 = vmatprep.subr.bf16.mxu0 %v4463
      %6017 = vmatpush1.bf16.msra.mxu0 %v4462
      %6018 = vmatprep.subr.bf16.mxu0 %v4523
      %6019 = vmatpush2.bf16.msra.mxu0 %v4522
      %6020 = vmatprep.subr.bf16.mxu0 %v4519
      %6021 = vmatpush2.bf16.msra.mxu0 %v4518
      %6022 = vmatprep.subr.bf16.mxu0 %v4515
      %6023 = vmatpush2.bf16.msra.mxu0 %v4514
      %6024 = vmatprep.subr.bf16.mxu0 %v4511
      %6025 = vmatpush2.bf16.msra.mxu0 %v4510
      %6026 = vmatprep.subr.bf16.mxu0 %v4507
      %6027 = vmatpush2.bf16.msra.mxu0 %v4506
      %6028 = vmatprep.subr.bf16.mxu0 %v4503
      %6029 = vmatpush2.bf16.msra.mxu0 %v4502
      %6030 = vmatprep.subr.bf16.mxu0 %v4499
      %6031 = vmatpush2.bf16.msra.mxu0 %v4498
      %6032 = vmatprep.subr.bf16.mxu0 %v4495
      %6033 = vmatpush2.bf16.msra.mxu0 %v4494
      %6034 = vmatprep.mubr.bf16.mxu0 %v1959
      %6035 = vmatmul.mubr.bf16.gmra.mxu0 %v1958
      %v6036 = vpop.f32.mrf.mxu0
      %v6037 = vadd.f32 %v5844, %v6036
      %v6038 = vpop.f32.mrf.mxu0
      %v6039 = vadd.f32 %v5846, %v6038
      %v6040 = vpop.f32.mrf.mxu0
      %v6041 = vadd.f32 %v5848, %v6040
      %v6042 = vpop.f32.mrf.mxu0
      %v6043 = vadd.f32 %v5850, %v6042
      %6044 = vmatprep.mubr.bf16.mxu0 %v1967
      %6045 = vmatmul.mubr.bf16.gmra.mxu0 %v1966
      %v6046 = vpop.f32.mrf.mxu0
      %v6047 = vadd.f32 %v5854, %v6046
      %v6048 = vpop.f32.mrf.mxu0
      %v6049 = vadd.f32 %v5856, %v6048
      %v6050 = vpop.f32.mrf.mxu0
      %v6051 = vadd.f32 %v5858, %v6050
      %v6052 = vpop.f32.mrf.mxu0
      %v6053 = vadd.f32 %v5860, %v6052
      %6054 = vmatprep.mubr.bf16.mxu0 %v1975
      %6055 = vmatmul.mubr.bf16.gmra.mxu0 %v1974
      %v6056 = vpop.f32.mrf.mxu0
      %v6057 = vadd.f32 %v5864, %v6056
      %v6058 = vpop.f32.mrf.mxu0
      %v6059 = vadd.f32 %v5866, %v6058
      %v6060 = vpop.f32.mrf.mxu0
      %v6061 = vadd.f32 %v5868, %v6060
      %v6062 = vpop.f32.mrf.mxu0
      %v6063 = vadd.f32 %v5870, %v6062
      %6064 = vmatprep.mubr.bf16.mxu0 %v1983
      %6065 = vmatmul.mubr.bf16.gmra.mxu0 %v1982
      %v6066 = vpop.f32.mrf.mxu0
      %v6067 = vadd.f32 %v5874, %v6066
      %v6068 = vpop.f32.mrf.mxu0
      %v6069 = vadd.f32 %v5876, %v6068
      %v6070 = vpop.f32.mrf.mxu0
      %v6071 = vadd.f32 %v5878, %v6070
      %v6072 = vpop.f32.mrf.mxu0
      %v6073 = vadd.f32 %v5880, %v6072
      %6074 = vmatprep.mubr.bf16.mxu0 %v1991
      %6075 = vmatmul.mubr.bf16.gmra.mxu0 %v1990
      %v6076 = vpop.f32.mrf.mxu0
      %v6077 = vadd.f32 %v5884, %v6076
      %v6078 = vpop.f32.mrf.mxu0
      %v6079 = vadd.f32 %v5886, %v6078
      %v6080 = vpop.f32.mrf.mxu0
      %v6081 = vadd.f32 %v5888, %v6080
      %v6082 = vpop.f32.mrf.mxu0
      %v6083 = vadd.f32 %v5890, %v6082
      %6084 = vmatprep.mubr.bf16.mxu0 %v1999
      %6085 = vmatmul.mubr.bf16.gmra.mxu0 %v1998
      %v6086 = vpop.f32.mrf.mxu0
      %v6087 = vadd.f32 %v5894, %v6086
      %v6088 = vpop.f32.mrf.mxu0
      %v6089 = vadd.f32 %v5896, %v6088
      %v6090 = vpop.f32.mrf.mxu0
      %v6091 = vadd.f32 %v5898, %v6090
      %v6092 = vpop.f32.mrf.mxu0
      %v6093 = vadd.f32 %v5900, %v6092
      %6094 = vmatprep.mubr.bf16.mxu0 %v2007
      %6095 = vmatmul.mubr.bf16.gmra.mxu0 %v2006
      %v6096 = vpop.f32.mrf.mxu0
      %v6097 = vadd.f32 %v5904, %v6096
      %v6098 = vpop.f32.mrf.mxu0
      %v6099 = vadd.f32 %v5906, %v6098
      %v6100 = vpop.f32.mrf.mxu0
      %v6101 = vadd.f32 %v5908, %v6100
      %v6102 = vpop.f32.mrf.mxu0
      %v6103 = vadd.f32 %v5910, %v6102
      %6104 = vmatprep.mubr.bf16.mxu0 %v2015
      %6105 = vmatmul.mubr.bf16.gmra.mxu0 %v2014
      %v6106 = vpop.f32.mrf.mxu0
      %v6107 = vadd.f32 %v5914, %v6106
      %v6108 = vpop.f32.mrf.mxu0
      %v6109 = vadd.f32 %v5916, %v6108
      %v6110 = vpop.f32.mrf.mxu0
      %v6111 = vadd.f32 %v5918, %v6110
      %v6112 = vpop.f32.mrf.mxu0
      %v6113 = vadd.f32 %v5920, %v6112
      %6114 = vmatprep.mubr.bf16.mxu0 %v2023
      %6115 = vmatmul.mubr.bf16.gmra.mxu0 %v2022
      %v6116 = vpop.f32.mrf.mxu0
      %v6117 = vadd.f32 %v5924, %v6116
      %v6118 = vpop.f32.mrf.mxu0
      %v6119 = vadd.f32 %v5926, %v6118
      %v6120 = vpop.f32.mrf.mxu0
      %v6121 = vadd.f32 %v5928, %v6120
      %v6122 = vpop.f32.mrf.mxu0
      %v6123 = vadd.f32 %v5930, %v6122
      %6124 = vmatprep.mubr.bf16.mxu0 %v2031
      %6125 = vmatmul.mubr.bf16.gmra.mxu0 %v2030
      %v6126 = vpop.f32.mrf.mxu0
      %v6127 = vadd.f32 %v5934, %v6126
      %v6128 = vpop.f32.mrf.mxu0
      %v6129 = vadd.f32 %v5936, %v6128
      %v6130 = vpop.f32.mrf.mxu0
      %v6131 = vadd.f32 %v5938, %v6130
      %v6132 = vpop.f32.mrf.mxu0
      %v6133 = vadd.f32 %v5940, %v6132
      %6134 = vmatprep.mubr.bf16.mxu0 %v2039
      %6135 = vmatmul.mubr.bf16.gmra.mxu0 %v2038
      %v6136 = vpop.f32.mrf.mxu0
      %v6137 = vadd.f32 %v5944, %v6136
      %v6138 = vpop.f32.mrf.mxu0
      %v6139 = vadd.f32 %v5946, %v6138
      %v6140 = vpop.f32.mrf.mxu0
      %v6141 = vadd.f32 %v5948, %v6140
      %v6142 = vpop.f32.mrf.mxu0
      %v6143 = vadd.f32 %v5950, %v6142
      %6144 = vmatprep.mubr.bf16.mxu0 %v2047
      %6145 = vmatmul.mubr.bf16.gmra.mxu0 %v2046
      %v6146 = vpop.f32.mrf.mxu0
      %v6147 = vadd.f32 %v5954, %v6146
      %v6148 = vpop.f32.mrf.mxu0
      %v6149 = vadd.f32 %v5956, %v6148
      %v6150 = vpop.f32.mrf.mxu0
      %v6151 = vadd.f32 %v5958, %v6150
      %v6152 = vpop.f32.mrf.mxu0
      %v6153 = vadd.f32 %v5960, %v6152
      %6154 = vmatprep.mubr.bf16.mxu0 %v2055
      %6155 = vmatmul.mubr.bf16.gmra.mxu0 %v2054
      %v6156 = vpop.f32.mrf.mxu0
      %v6157 = vadd.f32 %v5964, %v6156
      %v6158 = vpop.f32.mrf.mxu0
      %v6159 = vadd.f32 %v5966, %v6158
      %v6160 = vpop.f32.mrf.mxu0
      %v6161 = vadd.f32 %v5968, %v6160
      %v6162 = vpop.f32.mrf.mxu0
      %v6163 = vadd.f32 %v5970, %v6162
      %6164 = vmatprep.mubr.bf16.mxu0 %v2063
      %6165 = vmatmul.mubr.bf16.gmra.mxu0 %v2062
      %v6166 = vpop.f32.mrf.mxu0
      %v6167 = vadd.f32 %v5974, %v6166
      %v6168 = vpop.f32.mrf.mxu0
      %v6169 = vadd.f32 %v5976, %v6168
      %v6170 = vpop.f32.mrf.mxu0
      %v6171 = vadd.f32 %v5978, %v6170
      %v6172 = vpop.f32.mrf.mxu0
      %v6173 = vadd.f32 %v5980, %v6172
      %6174 = vmatprep.mubr.bf16.mxu0 %v2071
      %6175 = vmatmul.mubr.bf16.gmra.mxu0 %v2070
      %v6176 = vpop.f32.mrf.mxu0
      %v6177 = vadd.f32 %v5984, %v6176
      %v6178 = vpop.f32.mrf.mxu0
      %v6179 = vadd.f32 %v5986, %v6178
      %v6180 = vpop.f32.mrf.mxu0
      %v6181 = vadd.f32 %v5988, %v6180
      %v6182 = vpop.f32.mrf.mxu0
      %v6183 = vadd.f32 %v5990, %v6182
      %6184 = vmatprep.mubr.bf16.mxu0 %v2079
      %6185 = vmatmul.mubr.bf16.gmra.mxu0 %v2078
      %v6186 = vpop.f32.mrf.mxu0
      %v6187 = vadd.f32 %v5994, %v6186
      %v6188 = vpop.f32.mrf.mxu0
      %v6189 = vadd.f32 %v5996, %v6188
      %v6190 = vpop.f32.mrf.mxu0
      %v6191 = vadd.f32 %v5998, %v6190
      %v6192 = vpop.f32.mrf.mxu0
      %v6193 = vadd.f32 %v6000, %v6192
      %6194 = vdwg.mxu0
      %6195 = vmatprep.subr.bf16.mxu0 %v4555
      %6196 = vmatpush1.bf16.msra.mxu0 %v4554
      %6197 = vmatprep.subr.bf16.mxu0 %v4551
      %6198 = vmatpush1.bf16.msra.mxu0 %v4550
      %6199 = vmatprep.subr.bf16.mxu0 %v4547
      %6200 = vmatpush1.bf16.msra.mxu0 %v4546
      %6201 = vmatprep.subr.bf16.mxu0 %v4543
      %6202 = vmatpush1.bf16.msra.mxu0 %v4542
      %6203 = vmatprep.subr.bf16.mxu0 %v4539
      %6204 = vmatpush1.bf16.msra.mxu0 %v4538
      %6205 = vmatprep.subr.bf16.mxu0 %v4535
      %6206 = vmatpush1.bf16.msra.mxu0 %v4534
      %6207 = vmatprep.subr.bf16.mxu0 %v4531
      %6208 = vmatpush1.bf16.msra.mxu0 %v4530
      %6209 = vmatprep.subr.bf16.mxu0 %v4527
      %6210 = vmatpush1.bf16.msra.mxu0 %v4526
      %6211 = vmatprep.subr.bf16.mxu0 %v4587
      %6212 = vmatpush2.bf16.msra.mxu0 %v4586
      %6213 = vmatprep.subr.bf16.mxu0 %v4583
      %6214 = vmatpush2.bf16.msra.mxu0 %v4582
      %6215 = vmatprep.subr.bf16.mxu0 %v4579
      %6216 = vmatpush2.bf16.msra.mxu0 %v4578
      %6217 = vmatprep.subr.bf16.mxu0 %v4575
      %6218 = vmatpush2.bf16.msra.mxu0 %v4574
      %6219 = vmatprep.subr.bf16.mxu0 %v4571
      %6220 = vmatpush2.bf16.msra.mxu0 %v4570
      %6221 = vmatprep.subr.bf16.mxu0 %v4567
      %6222 = vmatpush2.bf16.msra.mxu0 %v4566
      %6223 = vmatprep.subr.bf16.mxu0 %v4563
      %6224 = vmatpush2.bf16.msra.mxu0 %v4562
      %6225 = vmatprep.subr.bf16.mxu0 %v4559
      %6226 = vmatpush2.bf16.msra.mxu0 %v4558
      %6227 = vmatprep.mubr.bf16.mxu0 %v1961
      %6228 = vmatmul.mubr.bf16.gmra.mxu0 %v1960
      %v6229 = vpop.f32.mrf.mxu0
      %v6230 = vadd.f32 %v6037, %v6229
      %v6231 = vpop.f32.mrf.mxu0
      %v6232 = vadd.f32 %v6039, %v6231
      %v6233 = vpop.f32.mrf.mxu0
      %v6234 = vadd.f32 %v6041, %v6233
      %v6235 = vpop.f32.mrf.mxu0
      %v6236 = vadd.f32 %v6043, %v6235
      %6237 = vmatprep.mubr.bf16.mxu0 %v1969
      %6238 = vmatmul.mubr.bf16.gmra.mxu0 %v1968
      %v6239 = vpop.f32.mrf.mxu0
      %v6240 = vadd.f32 %v6047, %v6239
      %v6241 = vpop.f32.mrf.mxu0
      %v6242 = vadd.f32 %v6049, %v6241
      %v6243 = vpop.f32.mrf.mxu0
      %v6244 = vadd.f32 %v6051, %v6243
      %v6245 = vpop.f32.mrf.mxu0
      %v6246 = vadd.f32 %v6053, %v6245
      %6247 = vmatprep.mubr.bf16.mxu0 %v1977
      %6248 = vmatmul.mubr.bf16.gmra.mxu0 %v1976
      %v6249 = vpop.f32.mrf.mxu0
      %v6250 = vadd.f32 %v6057, %v6249
      %v6251 = vpop.f32.mrf.mxu0
      %v6252 = vadd.f32 %v6059, %v6251
      %v6253 = vpop.f32.mrf.mxu0
      %v6254 = vadd.f32 %v6061, %v6253
      %v6255 = vpop.f32.mrf.mxu0
      %v6256 = vadd.f32 %v6063, %v6255
      %6257 = vmatprep.mubr.bf16.mxu0 %v1985
      %6258 = vmatmul.mubr.bf16.gmra.mxu0 %v1984
      %v6259 = vpop.f32.mrf.mxu0
      %v6260 = vadd.f32 %v6067, %v6259
      %v6261 = vpop.f32.mrf.mxu0
      %v6262 = vadd.f32 %v6069, %v6261
      %v6263 = vpop.f32.mrf.mxu0
      %v6264 = vadd.f32 %v6071, %v6263
      %v6265 = vpop.f32.mrf.mxu0
      %v6266 = vadd.f32 %v6073, %v6265
      %6267 = vmatprep.mubr.bf16.mxu0 %v1993
      %6268 = vmatmul.mubr.bf16.gmra.mxu0 %v1992
      %v6269 = vpop.f32.mrf.mxu0
      %v6270 = vadd.f32 %v6077, %v6269
      %v6271 = vpop.f32.mrf.mxu0
      %v6272 = vadd.f32 %v6079, %v6271
      %v6273 = vpop.f32.mrf.mxu0
      %v6274 = vadd.f32 %v6081, %v6273
      %v6275 = vpop.f32.mrf.mxu0
      %v6276 = vadd.f32 %v6083, %v6275
      %6277 = vmatprep.mubr.bf16.mxu0 %v2001
      %6278 = vmatmul.mubr.bf16.gmra.mxu0 %v2000
      %v6279 = vpop.f32.mrf.mxu0
      %v6280 = vadd.f32 %v6087, %v6279
      %v6281 = vpop.f32.mrf.mxu0
      %v6282 = vadd.f32 %v6089, %v6281
      %v6283 = vpop.f32.mrf.mxu0
      %v6284 = vadd.f32 %v6091, %v6283
      %v6285 = vpop.f32.mrf.mxu0
      %v6286 = vadd.f32 %v6093, %v6285
      %6287 = vmatprep.mubr.bf16.mxu0 %v2009
      %6288 = vmatmul.mubr.bf16.gmra.mxu0 %v2008
      %v6289 = vpop.f32.mrf.mxu0
      %v6290 = vadd.f32 %v6097, %v6289
      %v6291 = vpop.f32.mrf.mxu0
      %v6292 = vadd.f32 %v6099, %v6291
      %v6293 = vpop.f32.mrf.mxu0
      %v6294 = vadd.f32 %v6101, %v6293
      %v6295 = vpop.f32.mrf.mxu0
      %v6296 = vadd.f32 %v6103, %v6295
      %6297 = vmatprep.mubr.bf16.mxu0 %v2017
      %6298 = vmatmul.mubr.bf16.gmra.mxu0 %v2016
      %v6299 = vpop.f32.mrf.mxu0
      %v6300 = vadd.f32 %v6107, %v6299
      %v6301 = vpop.f32.mrf.mxu0
      %v6302 = vadd.f32 %v6109, %v6301
      %v6303 = vpop.f32.mrf.mxu0
      %v6304 = vadd.f32 %v6111, %v6303
      %v6305 = vpop.f32.mrf.mxu0
      %v6306 = vadd.f32 %v6113, %v6305
      %6307 = vmatprep.mubr.bf16.mxu0 %v2025
      %6308 = vmatmul.mubr.bf16.gmra.mxu0 %v2024
      %v6309 = vpop.f32.mrf.mxu0
      %v6310 = vadd.f32 %v6117, %v6309
      %v6311 = vpop.f32.mrf.mxu0
      %v6312 = vadd.f32 %v6119, %v6311
      %v6313 = vpop.f32.mrf.mxu0
      %v6314 = vadd.f32 %v6121, %v6313
      %v6315 = vpop.f32.mrf.mxu0
      %v6316 = vadd.f32 %v6123, %v6315
      %6317 = vmatprep.mubr.bf16.mxu0 %v2033
      %6318 = vmatmul.mubr.bf16.gmra.mxu0 %v2032
      %v6319 = vpop.f32.mrf.mxu0
      %v6320 = vadd.f32 %v6127, %v6319
      %v6321 = vpop.f32.mrf.mxu0
      %v6322 = vadd.f32 %v6129, %v6321
      %v6323 = vpop.f32.mrf.mxu0
      %v6324 = vadd.f32 %v6131, %v6323
      %v6325 = vpop.f32.mrf.mxu0
      %v6326 = vadd.f32 %v6133, %v6325
      %6327 = vmatprep.mubr.bf16.mxu0 %v2041
      %6328 = vmatmul.mubr.bf16.gmra.mxu0 %v2040
      %v6329 = vpop.f32.mrf.mxu0
      %v6330 = vadd.f32 %v6137, %v6329
      %v6331 = vpop.f32.mrf.mxu0
      %v6332 = vadd.f32 %v6139, %v6331
      %v6333 = vpop.f32.mrf.mxu0
      %v6334 = vadd.f32 %v6141, %v6333
      %v6335 = vpop.f32.mrf.mxu0
      %v6336 = vadd.f32 %v6143, %v6335
      %6337 = vmatprep.mubr.bf16.mxu0 %v2049
      %6338 = vmatmul.mubr.bf16.gmra.mxu0 %v2048
      %v6339 = vpop.f32.mrf.mxu0
      %v6340 = vadd.f32 %v6147, %v6339
      %v6341 = vpop.f32.mrf.mxu0
      %v6342 = vadd.f32 %v6149, %v6341
      %v6343 = vpop.f32.mrf.mxu0
      %v6344 = vadd.f32 %v6151, %v6343
      %v6345 = vpop.f32.mrf.mxu0
      %v6346 = vadd.f32 %v6153, %v6345
      %6347 = vmatprep.mubr.bf16.mxu0 %v2057
      %6348 = vmatmul.mubr.bf16.gmra.mxu0 %v2056
      %v6349 = vpop.f32.mrf.mxu0
      %v6350 = vadd.f32 %v6157, %v6349
      %v6351 = vpop.f32.mrf.mxu0
      %v6352 = vadd.f32 %v6159, %v6351
      %v6353 = vpop.f32.mrf.mxu0
      %v6354 = vadd.f32 %v6161, %v6353
      %v6355 = vpop.f32.mrf.mxu0
      %v6356 = vadd.f32 %v6163, %v6355
      %6357 = vmatprep.mubr.bf16.mxu0 %v2065
      %6358 = vmatmul.mubr.bf16.gmra.mxu0 %v2064
      %v6359 = vpop.f32.mrf.mxu0
      %v6360 = vadd.f32 %v6167, %v6359
      %v6361 = vpop.f32.mrf.mxu0
      %v6362 = vadd.f32 %v6169, %v6361
      %v6363 = vpop.f32.mrf.mxu0
      %v6364 = vadd.f32 %v6171, %v6363
      %v6365 = vpop.f32.mrf.mxu0
      %v6366 = vadd.f32 %v6173, %v6365
      %6367 = vmatprep.mubr.bf16.mxu0 %v2073
      %6368 = vmatmul.mubr.bf16.gmra.mxu0 %v2072
      %v6369 = vpop.f32.mrf.mxu0
      %v6370 = vadd.f32 %v6177, %v6369
      %v6371 = vpop.f32.mrf.mxu0
      %v6372 = vadd.f32 %v6179, %v6371
      %v6373 = vpop.f32.mrf.mxu0
      %v6374 = vadd.f32 %v6181, %v6373
      %v6375 = vpop.f32.mrf.mxu0
      %v6376 = vadd.f32 %v6183, %v6375
      %6377 = vmatprep.mubr.bf16.mxu0 %v2081
      %6378 = vmatmul.mubr.bf16.gmra.mxu0 %v2080
      %v6379 = vpop.f32.mrf.mxu0
      %v6380 = vadd.f32 %v6187, %v6379
      %v6381 = vpop.f32.mrf.mxu0
      %v6382 = vadd.f32 %v6189, %v6381
      %v6383 = vpop.f32.mrf.mxu0
      %v6384 = vadd.f32 %v6191, %v6383
      %v6385 = vpop.f32.mrf.mxu0
      %v6386 = vadd.f32 %v6193, %v6385
      %6387 = vdwg.mxu0
      %v6388 = vmax.f32 %v5458, 0.0
      %v6389 = vmax.f32 %v5460, 0.0
      %v6390 = vmax.f32 %v6230, 0.0
      %v6391 = vmax.f32 %v6232, 0.0
      %v6392 = vmax.f32 %v5462, 0.0
      %v6393 = vmax.f32 %v5464, 0.0
      %v6394 = vmax.f32 %v6234, 0.0
      %v6395 = vmax.f32 %v6236, 0.0
      %v6396 = vmax.f32 %v5468, 0.0
      %v6397 = vmax.f32 %v5470, 0.0
      %v6398 = vmax.f32 %v6240, 0.0
      %v6399 = vmax.f32 %v6242, 0.0
      %v6400 = vmax.f32 %v5472, 0.0
      %v6401 = vmax.f32 %v5474, 0.0
      %v6402 = vmax.f32 %v6244, 0.0
      %v6403 = vmax.f32 %v6246, 0.0
      %v6404 = vmax.f32 %v5478, 0.0
      %v6405 = vmax.f32 %v5480, 0.0
      %v6406 = vmax.f32 %v6250, 0.0
      %v6407 = vmax.f32 %v6252, 0.0
      %v6408 = vmax.f32 %v5482, 0.0
      %v6409 = vmax.f32 %v5484, 0.0
      %v6410 = vmax.f32 %v6254, 0.0
      %v6411 = vmax.f32 %v6256, 0.0
      %v6412 = vmax.f32 %v5488, 0.0
      %v6413 = vmax.f32 %v5490, 0.0
      %v6414 = vmax.f32 %v6260, 0.0
      %v6415 = vmax.f32 %v6262, 0.0
      %v6416 = vmax.f32 %v5492, 0.0
      %v6417 = vmax.f32 %v5494, 0.0
      %v6418 = vmax.f32 %v6264, 0.0
      %v6419 = vmax.f32 %v6266, 0.0
      %v6420 = vmax.f32 %v5498, 0.0
      %v6421 = vmax.f32 %v5500, 0.0
      %v6422 = vmax.f32 %v6270, 0.0
      %v6423 = vmax.f32 %v6272, 0.0
      %v6424 = vmax.f32 %v5502, 0.0
      %v6425 = vmax.f32 %v5504, 0.0
      %v6426 = vmax.f32 %v6274, 0.0
      %v6427 = vmax.f32 %v6276, 0.0
      %v6428 = vmax.f32 %v5508, 0.0
      %v6429 = vmax.f32 %v5510, 0.0
      %v6430 = vmax.f32 %v6280, 0.0
      %v6431 = vmax.f32 %v6282, 0.0
      %v6432 = vmax.f32 %v5512, 0.0
      %v6433 = vmax.f32 %v5514, 0.0
      %v6434 = vmax.f32 %v6284, 0.0
      %v6435 = vmax.f32 %v6286, 0.0
      %v6436 = vmax.f32 %v5518, 0.0
      %v6437 = vmax.f32 %v5520, 0.0
      %v6438 = vmax.f32 %v6290, 0.0
      %v6439 = vmax.f32 %v6292, 0.0
      %v6440 = vmax.f32 %v5522, 0.0
      %v6441 = vmax.f32 %v5524, 0.0
      %v6442 = vmax.f32 %v6294, 0.0
      %v6443 = vmax.f32 %v6296, 0.0
      %v6444 = vmax.f32 %v5528, 0.0
      %v6445 = vmax.f32 %v5530, 0.0
      %v6446 = vmax.f32 %v6300, 0.0
      %v6447 = vmax.f32 %v6302, 0.0
      %v6448 = vmax.f32 %v5532, 0.0
      %v6449 = vmax.f32 %v5534, 0.0
      %v6450 = vmax.f32 %v6304, 0.0
      %v6451 = vmax.f32 %v6306, 0.0
      %v6452 = vmax.f32 %v5538, 0.0
      %v6453 = vmax.f32 %v5540, 0.0
      %v6454 = vmax.f32 %v6310, 0.0
      %v6455 = vmax.f32 %v6312, 0.0
      %v6456 = vmax.f32 %v5542, 0.0
      %v6457 = vmax.f32 %v5544, 0.0
      %v6458 = vmax.f32 %v6314, 0.0
      %v6459 = vmax.f32 %v6316, 0.0
      %v6460 = vmax.f32 %v5548, 0.0
      %v6461 = vmax.f32 %v5550, 0.0
      %v6462 = vmax.f32 %v6320, 0.0
      %v6463 = vmax.f32 %v6322, 0.0
      %v6464 = vmax.f32 %v5552, 0.0
      %v6465 = vmax.f32 %v5554, 0.0
      %v6466 = vmax.f32 %v6324, 0.0
      %v6467 = vmax.f32 %v6326, 0.0
      %v6468 = vmax.f32 %v5558, 0.0
      %v6469 = vmax.f32 %v5560, 0.0
      %v6470 = vmax.f32 %v6330, 0.0
      %v6471 = vmax.f32 %v6332, 0.0
      %v6472 = vmax.f32 %v5562, 0.0
      %v6473 = vmax.f32 %v5564, 0.0
      %v6474 = vmax.f32 %v6334, 0.0
      %v6475 = vmax.f32 %v6336, 0.0
      %v6476 = vmax.f32 %v5568, 0.0
      %v6477 = vmax.f32 %v5570, 0.0
      %v6478 = vmax.f32 %v6340, 0.0
      %v6479 = vmax.f32 %v6342, 0.0
      %v6480 = vmax.f32 %v5572, 0.0
      %v6481 = vmax.f32 %v5574, 0.0
      %v6482 = vmax.f32 %v6344, 0.0
      %v6483 = vmax.f32 %v6346, 0.0
      %v6484 = vmax.f32 %v5578, 0.0
      %v6485 = vmax.f32 %v5580, 0.0
      %v6486 = vmax.f32 %v6350, 0.0
      %v6487 = vmax.f32 %v6352, 0.0
      %v6488 = vmax.f32 %v5582, 0.0
      %v6489 = vmax.f32 %v5584, 0.0
      %v6490 = vmax.f32 %v6354, 0.0
      %v6491 = vmax.f32 %v6356, 0.0
      %v6492 = vmax.f32 %v5588, 0.0
      %v6493 = vmax.f32 %v5590, 0.0
      %v6494 = vmax.f32 %v6360, 0.0
      %v6495 = vmax.f32 %v6362, 0.0
      %v6496 = vmax.f32 %v5592, 0.0
      %v6497 = vmax.f32 %v5594, 0.0
      %v6498 = vmax.f32 %v6364, 0.0
      %v6499 = vmax.f32 %v6366, 0.0
      %v6500 = vmax.f32 %v5598, 0.0
      %v6501 = vmax.f32 %v5600, 0.0
      %v6502 = vmax.f32 %v6370, 0.0
      %v6503 = vmax.f32 %v6372, 0.0
      %v6504 = vmax.f32 %v5602, 0.0
      %v6505 = vmax.f32 %v5604, 0.0
      %v6506 = vmax.f32 %v6374, 0.0
      %v6507 = vmax.f32 %v6376, 0.0
      %v6508 = vmax.f32 %v5608, 0.0
      %v6509 = vmax.f32 %v5610, 0.0
      %v6510 = vmax.f32 %v6380, 0.0
      %v6511 = vmax.f32 %v6382, 0.0
      %v6512 = vmax.f32 %v5612, 0.0
      %v6513 = vmax.f32 %v5614, 0.0
      %v6514 = vmax.f32 %v6384, 0.0
      %v6515 = vmax.f32 %v6386, 0.0
      %v6516 = vpack.c.bf16 %v6392, %v6388
      %v6517 = vpack.c.bf16 %v6393, %v6389
      %v6518 = vpack.c.bf16 %v6394, %v6390
      %v6519 = vpack.c.bf16 %v6395, %v6391
      %v6520 = vpack.c.bf16 %v6400, %v6396
      %v6521 = vpack.c.bf16 %v6401, %v6397
      %v6522 = vpack.c.bf16 %v6402, %v6398
      %v6523 = vpack.c.bf16 %v6403, %v6399
      %v6524 = vpack.c.bf16 %v6408, %v6404
      %v6525 = vpack.c.bf16 %v6409, %v6405
      %v6526 = vpack.c.bf16 %v6410, %v6406
      %v6527 = vpack.c.bf16 %v6411, %v6407
      %v6528 = vpack.c.bf16 %v6416, %v6412
      %v6529 = vpack.c.bf16 %v6417, %v6413
      %v6530 = vpack.c.bf16 %v6418, %v6414
      %v6531 = vpack.c.bf16 %v6419, %v6415
      %v6532 = vpack.c.bf16 %v6424, %v6420
      %v6533 = vpack.c.bf16 %v6425, %v6421
      %v6534 = vpack.c.bf16 %v6426, %v6422
      %v6535 = vpack.c.bf16 %v6427, %v6423
      %v6536 = vpack.c.bf16 %v6432, %v6428
      %v6537 = vpack.c.bf16 %v6433, %v6429
      %v6538 = vpack.c.bf16 %v6434, %v6430
      %v6539 = vpack.c.bf16 %v6435, %v6431
      %v6540 = vpack.c.bf16 %v6440, %v6436
      %v6541 = vpack.c.bf16 %v6441, %v6437
      %v6542 = vpack.c.bf16 %v6442, %v6438
      %v6543 = vpack.c.bf16 %v6443, %v6439
      %v6544 = vpack.c.bf16 %v6448, %v6444
      %v6545 = vpack.c.bf16 %v6449, %v6445
      %v6546 = vpack.c.bf16 %v6450, %v6446
      %v6547 = vpack.c.bf16 %v6451, %v6447
      %v6548 = vpack.c.bf16 %v6456, %v6452
      %v6549 = vpack.c.bf16 %v6457, %v6453
      %v6550 = vpack.c.bf16 %v6458, %v6454
      %v6551 = vpack.c.bf16 %v6459, %v6455
      %v6552 = vpack.c.bf16 %v6464, %v6460
      %v6553 = vpack.c.bf16 %v6465, %v6461
      %v6554 = vpack.c.bf16 %v6466, %v6462
      %v6555 = vpack.c.bf16 %v6467, %v6463
      %v6556 = vpack.c.bf16 %v6472, %v6468
      %v6557 = vpack.c.bf16 %v6473, %v6469
      %v6558 = vpack.c.bf16 %v6474, %v6470
      %v6559 = vpack.c.bf16 %v6475, %v6471
      %v6560 = vpack.c.bf16 %v6480, %v6476
      %v6561 = vpack.c.bf16 %v6481, %v6477
      %v6562 = vpack.c.bf16 %v6482, %v6478
      %v6563 = vpack.c.bf16 %v6483, %v6479
      %v6564 = vpack.c.bf16 %v6488, %v6484
      %v6565 = vpack.c.bf16 %v6489, %v6485
      %v6566 = vpack.c.bf16 %v6490, %v6486
      %v6567 = vpack.c.bf16 %v6491, %v6487
      %v6568 = vpack.c.bf16 %v6496, %v6492
      %v6569 = vpack.c.bf16 %v6497, %v6493
      %v6570 = vpack.c.bf16 %v6498, %v6494
      %v6571 = vpack.c.bf16 %v6499, %v6495
      %v6572 = vpack.c.bf16 %v6504, %v6500
      %v6573 = vpack.c.bf16 %v6505, %v6501
      %v6574 = vpack.c.bf16 %v6506, %v6502
      %v6575 = vpack.c.bf16 %v6507, %v6503
      %v6576 = vpack.c.bf16 %v6512, %v6508
      %v6577 = vpack.c.bf16 %v6513, %v6509
      %v6578 = vpack.c.bf16 %v6514, %v6510
      %v6579 = vpack.c.bf16 %v6515, %v6511
      %6580 = vmatprep.subr.bf16.mxu0 %v4361
      %6581 = vmatpush1.bf16.msra.mxu0 %v4360
      %6582 = vmatprep.subr.bf16.mxu0 %v4357
      %6583 = vmatpush1.bf16.msra.mxu0 %v4356
      %6584 = vmatprep.subr.bf16.mxu0 %v4353
      %6585 = vmatpush1.bf16.msra.mxu0 %v4352
      %6586 = vmatprep.subr.bf16.mxu0 %v4349
      %6587 = vmatpush1.bf16.msra.mxu0 %v4348
      %6588 = vmatprep.subr.bf16.mxu0 %v4345
      %6589 = vmatpush1.bf16.msra.mxu0 %v4344
      %6590 = vmatprep.subr.bf16.mxu0 %v4341
      %6591 = vmatpush1.bf16.msra.mxu0 %v4340
      %6592 = vmatprep.subr.bf16.mxu0 %v4337
      %6593 = vmatpush1.bf16.msra.mxu0 %v4336
      %6594 = vmatprep.subr.bf16.mxu0 %v4333
      %6595 = vmatpush1.bf16.msra.mxu0 %v4332
      %6596 = vmatprep.subr.bf16.mxu0 %v4393
      %6597 = vmatpush2.bf16.msra.mxu0 %v4392
      %6598 = vmatprep.subr.bf16.mxu0 %v4389
      %6599 = vmatpush2.bf16.msra.mxu0 %v4388
      %6600 = vmatprep.subr.bf16.mxu0 %v4385
      %6601 = vmatpush2.bf16.msra.mxu0 %v4384
      %6602 = vmatprep.subr.bf16.mxu0 %v4381
      %6603 = vmatpush2.bf16.msra.mxu0 %v4380
      %6604 = vmatprep.subr.bf16.mxu0 %v4377
      %6605 = vmatpush2.bf16.msra.mxu0 %v4376
      %6606 = vmatprep.subr.bf16.mxu0 %v4373
      %6607 = vmatpush2.bf16.msra.mxu0 %v4372
      %6608 = vmatprep.subr.bf16.mxu0 %v4369
      %6609 = vmatpush2.bf16.msra.mxu0 %v4368
      %6610 = vmatprep.subr.bf16.mxu0 %v4365
      %6611 = vmatpush2.bf16.msra.mxu0 %v4364
      %6612 = vmatprep.mubr.bf16.mxu0 %v3159
      %6613 = vmatmul.mubr.bf16.gmra.mxu0 %v3158
      %v6614 = vpop.f32.mrf.mxu0
      %v6615 = vadd.f32 %v3547, %v6614
      %v6616 = vpop.f32.mrf.mxu0
      %v6617 = vadd.f32 %v3551, %v6616
      %v6618 = vpop.f32.mrf.mxu0
      %v6619 = vadd.f32 %v3547, %v6618
      %v6620 = vpop.f32.mrf.mxu0
      %v6621 = vadd.f32 %v3551, %v6620
      %6622 = vmatprep.mubr.bf16.mxu0 %v3167
      %6623 = vmatmul.mubr.bf16.gmra.mxu0 %v3166
      %v6624 = vpop.f32.mrf.mxu0
      %v6625 = vadd.f32 %v3547, %v6624
      %v6626 = vpop.f32.mrf.mxu0
      %v6627 = vadd.f32 %v3551, %v6626
      %v6628 = vpop.f32.mrf.mxu0
      %v6629 = vadd.f32 %v3547, %v6628
      %v6630 = vpop.f32.mrf.mxu0
      %v6631 = vadd.f32 %v3551, %v6630
      %6632 = vmatprep.mubr.bf16.mxu0 %v3175
      %6633 = vmatmul.mubr.bf16.gmra.mxu0 %v3174
      %v6634 = vpop.f32.mrf.mxu0
      %v6635 = vadd.f32 %v3547, %v6634
      %v6636 = vpop.f32.mrf.mxu0
      %v6637 = vadd.f32 %v3551, %v6636
      %v6638 = vpop.f32.mrf.mxu0
      %v6639 = vadd.f32 %v3547, %v6638
      %v6640 = vpop.f32.mrf.mxu0
      %v6641 = vadd.f32 %v3551, %v6640
      %6642 = vmatprep.mubr.bf16.mxu0 %v3183
      %6643 = vmatmul.mubr.bf16.gmra.mxu0 %v3182
      %v6644 = vpop.f32.mrf.mxu0
      %v6645 = vadd.f32 %v3547, %v6644
      %v6646 = vpop.f32.mrf.mxu0
      %v6647 = vadd.f32 %v3551, %v6646
      %v6648 = vpop.f32.mrf.mxu0
      %v6649 = vadd.f32 %v3547, %v6648
      %v6650 = vpop.f32.mrf.mxu0
      %v6651 = vadd.f32 %v3551, %v6650
      %6652 = vmatprep.mubr.bf16.mxu0 %v3191
      %6653 = vmatmul.mubr.bf16.gmra.mxu0 %v3190
      %v6654 = vpop.f32.mrf.mxu0
      %v6655 = vadd.f32 %v3547, %v6654
      %v6656 = vpop.f32.mrf.mxu0
      %v6657 = vadd.f32 %v3551, %v6656
      %v6658 = vpop.f32.mrf.mxu0
      %v6659 = vadd.f32 %v3547, %v6658
      %v6660 = vpop.f32.mrf.mxu0
      %v6661 = vadd.f32 %v3551, %v6660
      %6662 = vmatprep.mubr.bf16.mxu0 %v3199
      %6663 = vmatmul.mubr.bf16.gmra.mxu0 %v3198
      %v6664 = vpop.f32.mrf.mxu0
      %v6665 = vadd.f32 %v3547, %v6664
      %v6666 = vpop.f32.mrf.mxu0
      %v6667 = vadd.f32 %v3551, %v6666
      %v6668 = vpop.f32.mrf.mxu0
      %v6669 = vadd.f32 %v3547, %v6668
      %v6670 = vpop.f32.mrf.mxu0
      %v6671 = vadd.f32 %v3551, %v6670
      %6672 = vmatprep.mubr.bf16.mxu0 %v3207
      %6673 = vmatmul.mubr.bf16.gmra.mxu0 %v3206
      %v6674 = vpop.f32.mrf.mxu0
      %v6675 = vadd.f32 %v3547, %v6674
      %v6676 = vpop.f32.mrf.mxu0
      %v6677 = vadd.f32 %v3551, %v6676
      %v6678 = vpop.f32.mrf.mxu0
      %v6679 = vadd.f32 %v3547, %v6678
      %v6680 = vpop.f32.mrf.mxu0
      %v6681 = vadd.f32 %v3551, %v6680
      %6682 = vmatprep.mubr.bf16.mxu0 %v3215
      %6683 = vmatmul.mubr.bf16.gmra.mxu0 %v3214
      %v6684 = vpop.f32.mrf.mxu0
      %v6685 = vadd.f32 %v3547, %v6684
      %v6686 = vpop.f32.mrf.mxu0
      %v6687 = vadd.f32 %v3551, %v6686
      %v6688 = vpop.f32.mrf.mxu0
      %v6689 = vadd.f32 %v3547, %v6688
      %v6690 = vpop.f32.mrf.mxu0
      %v6691 = vadd.f32 %v3551, %v6690
      %6692 = vmatprep.mubr.bf16.mxu0 %v3223
      %6693 = vmatmul.mubr.bf16.gmra.mxu0 %v3222
      %v6694 = vpop.f32.mrf.mxu0
      %v6695 = vadd.f32 %v3547, %v6694
      %v6696 = vpop.f32.mrf.mxu0
      %v6697 = vadd.f32 %v3551, %v6696
      %v6698 = vpop.f32.mrf.mxu0
      %v6699 = vadd.f32 %v3547, %v6698
      %v6700 = vpop.f32.mrf.mxu0
      %v6701 = vadd.f32 %v3551, %v6700
      %6702 = vmatprep.mubr.bf16.mxu0 %v3231
      %6703 = vmatmul.mubr.bf16.gmra.mxu0 %v3230
      %v6704 = vpop.f32.mrf.mxu0
      %v6705 = vadd.f32 %v3547, %v6704
      %v6706 = vpop.f32.mrf.mxu0
      %v6707 = vadd.f32 %v3551, %v6706
      %v6708 = vpop.f32.mrf.mxu0
      %v6709 = vadd.f32 %v3547, %v6708
      %v6710 = vpop.f32.mrf.mxu0
      %v6711 = vadd.f32 %v3551, %v6710
      %6712 = vmatprep.mubr.bf16.mxu0 %v3239
      %6713 = vmatmul.mubr.bf16.gmra.mxu0 %v3238
      %v6714 = vpop.f32.mrf.mxu0
      %v6715 = vadd.f32 %v3547, %v6714
      %v6716 = vpop.f32.mrf.mxu0
      %v6717 = vadd.f32 %v3551, %v6716
      %v6718 = vpop.f32.mrf.mxu0
      %v6719 = vadd.f32 %v3547, %v6718
      %v6720 = vpop.f32.mrf.mxu0
      %v6721 = vadd.f32 %v3551, %v6720
      %6722 = vmatprep.mubr.bf16.mxu0 %v3247
      %6723 = vmatmul.mubr.bf16.gmra.mxu0 %v3246
      %v6724 = vpop.f32.mrf.mxu0
      %v6725 = vadd.f32 %v3547, %v6724
      %v6726 = vpop.f32.mrf.mxu0
      %v6727 = vadd.f32 %v3551, %v6726
      %v6728 = vpop.f32.mrf.mxu0
      %v6729 = vadd.f32 %v3547, %v6728
      %v6730 = vpop.f32.mrf.mxu0
      %v6731 = vadd.f32 %v3551, %v6730
      %6732 = vmatprep.mubr.bf16.mxu0 %v3255
      %6733 = vmatmul.mubr.bf16.gmra.mxu0 %v3254
      %v6734 = vpop.f32.mrf.mxu0
      %v6735 = vadd.f32 %v3547, %v6734
      %v6736 = vpop.f32.mrf.mxu0
      %v6737 = vadd.f32 %v3551, %v6736
      %v6738 = vpop.f32.mrf.mxu0
      %v6739 = vadd.f32 %v3547, %v6738
      %v6740 = vpop.f32.mrf.mxu0
      %v6741 = vadd.f32 %v3551, %v6740
      %6742 = vmatprep.mubr.bf16.mxu0 %v3263
      %6743 = vmatmul.mubr.bf16.gmra.mxu0 %v3262
      %v6744 = vpop.f32.mrf.mxu0
      %v6745 = vadd.f32 %v3547, %v6744
      %v6746 = vpop.f32.mrf.mxu0
      %v6747 = vadd.f32 %v3551, %v6746
      %v6748 = vpop.f32.mrf.mxu0
      %v6749 = vadd.f32 %v3547, %v6748
      %v6750 = vpop.f32.mrf.mxu0
      %v6751 = vadd.f32 %v3551, %v6750
      %6752 = vmatprep.mubr.bf16.mxu0 %v3271
      %6753 = vmatmul.mubr.bf16.gmra.mxu0 %v3270
      %v6754 = vpop.f32.mrf.mxu0
      %v6755 = vadd.f32 %v3547, %v6754
      %v6756 = vpop.f32.mrf.mxu0
      %v6757 = vadd.f32 %v3551, %v6756
      %v6758 = vpop.f32.mrf.mxu0
      %v6759 = vadd.f32 %v3547, %v6758
      %v6760 = vpop.f32.mrf.mxu0
      %v6761 = vadd.f32 %v3551, %v6760
      %6762 = vmatprep.mubr.bf16.mxu0 %v3279
      %6763 = vmatmul.mubr.bf16.gmra.mxu0 %v3278
      %v6764 = vpop.f32.mrf.mxu0
      %v6765 = vadd.f32 %v3547, %v6764
      %v6766 = vpop.f32.mrf.mxu0
      %v6767 = vadd.f32 %v3551, %v6766
      %v6768 = vpop.f32.mrf.mxu0
      %v6769 = vadd.f32 %v3547, %v6768
      %v6770 = vpop.f32.mrf.mxu0
      %v6771 = vadd.f32 %v3551, %v6770
      %6772 = vdwg.mxu0
      %6773 = vmatprep.subr.bf16.mxu0 %v4425
      %6774 = vmatpush1.bf16.msra.mxu0 %v4424
      %6775 = vmatprep.subr.bf16.mxu0 %v4421
      %6776 = vmatpush1.bf16.msra.mxu0 %v4420
      %6777 = vmatprep.subr.bf16.mxu0 %v4417
      %6778 = vmatpush1.bf16.msra.mxu0 %v4416
      %6779 = vmatprep.subr.bf16.mxu0 %v4413
      %6780 = vmatpush1.bf16.msra.mxu0 %v4412
      %6781 = vmatprep.subr.bf16.mxu0 %v4409
      %6782 = vmatpush1.bf16.msra.mxu0 %v4408
      %6783 = vmatprep.subr.bf16.mxu0 %v4405
      %6784 = vmatpush1.bf16.msra.mxu0 %v4404
      %6785 = vmatprep.subr.bf16.mxu0 %v4401
      %6786 = vmatpush1.bf16.msra.mxu0 %v4400
      %6787 = vmatprep.subr.bf16.mxu0 %v4397
      %6788 = vmatpush1.bf16.msra.mxu0 %v4396
      %6789 = vmatprep.subr.bf16.mxu0 %v4457
      %6790 = vmatpush2.bf16.msra.mxu0 %v4456
      %6791 = vmatprep.subr.bf16.mxu0 %v4453
      %6792 = vmatpush2.bf16.msra.mxu0 %v4452
      %6793 = vmatprep.subr.bf16.mxu0 %v4449
      %6794 = vmatpush2.bf16.msra.mxu0 %v4448
      %6795 = vmatprep.subr.bf16.mxu0 %v4445
      %6796 = vmatpush2.bf16.msra.mxu0 %v4444
      %6797 = vmatprep.subr.bf16.mxu0 %v4441
      %6798 = vmatpush2.bf16.msra.mxu0 %v4440
      %6799 = vmatprep.subr.bf16.mxu0 %v4437
      %6800 = vmatpush2.bf16.msra.mxu0 %v4436
      %6801 = vmatprep.subr.bf16.mxu0 %v4433
      %6802 = vmatpush2.bf16.msra.mxu0 %v4432
      %6803 = vmatprep.subr.bf16.mxu0 %v4429
      %6804 = vmatpush2.bf16.msra.mxu0 %v4428
      %6805 = vmatprep.mubr.bf16.mxu0 %v3161
      %6806 = vmatmul.mubr.bf16.gmra.mxu0 %v3160
      %v6807 = vpop.f32.mrf.mxu0
      %v6808 = vadd.f32 %v6615, %v6807
      %v6809 = vpop.f32.mrf.mxu0
      %v6810 = vadd.f32 %v6617, %v6809
      %v6811 = vpop.f32.mrf.mxu0
      %v6812 = vadd.f32 %v6619, %v6811
      %v6813 = vpop.f32.mrf.mxu0
      %v6814 = vadd.f32 %v6621, %v6813
      %6815 = vmatprep.mubr.bf16.mxu0 %v3169
      %6816 = vmatmul.mubr.bf16.gmra.mxu0 %v3168
      %v6817 = vpop.f32.mrf.mxu0
      %v6818 = vadd.f32 %v6625, %v6817
      %v6819 = vpop.f32.mrf.mxu0
      %v6820 = vadd.f32 %v6627, %v6819
      %v6821 = vpop.f32.mrf.mxu0
      %v6822 = vadd.f32 %v6629, %v6821
      %v6823 = vpop.f32.mrf.mxu0
      %v6824 = vadd.f32 %v6631, %v6823
      %6825 = vmatprep.mubr.bf16.mxu0 %v3177
      %6826 = vmatmul.mubr.bf16.gmra.mxu0 %v3176
      %v6827 = vpop.f32.mrf.mxu0
      %v6828 = vadd.f32 %v6635, %v6827
      %v6829 = vpop.f32.mrf.mxu0
      %v6830 = vadd.f32 %v6637, %v6829
      %v6831 = vpop.f32.mrf.mxu0
      %v6832 = vadd.f32 %v6639, %v6831
      %v6833 = vpop.f32.mrf.mxu0
      %v6834 = vadd.f32 %v6641, %v6833
      %6835 = vmatprep.mubr.bf16.mxu0 %v3185
      %6836 = vmatmul.mubr.bf16.gmra.mxu0 %v3184
      %v6837 = vpop.f32.mrf.mxu0
      %v6838 = vadd.f32 %v6645, %v6837
      %v6839 = vpop.f32.mrf.mxu0
      %v6840 = vadd.f32 %v6647, %v6839
      %v6841 = vpop.f32.mrf.mxu0
      %v6842 = vadd.f32 %v6649, %v6841
      %v6843 = vpop.f32.mrf.mxu0
      %v6844 = vadd.f32 %v6651, %v6843
      %6845 = vmatprep.mubr.bf16.mxu0 %v3193
      %6846 = vmatmul.mubr.bf16.gmra.mxu0 %v3192
      %v6847 = vpop.f32.mrf.mxu0
      %v6848 = vadd.f32 %v6655, %v6847
      %v6849 = vpop.f32.mrf.mxu0
      %v6850 = vadd.f32 %v6657, %v6849
      %v6851 = vpop.f32.mrf.mxu0
      %v6852 = vadd.f32 %v6659, %v6851
      %v6853 = vpop.f32.mrf.mxu0
      %v6854 = vadd.f32 %v6661, %v6853
      %6855 = vmatprep.mubr.bf16.mxu0 %v3201
      %6856 = vmatmul.mubr.bf16.gmra.mxu0 %v3200
      %v6857 = vpop.f32.mrf.mxu0
      %v6858 = vadd.f32 %v6665, %v6857
      %v6859 = vpop.f32.mrf.mxu0
      %v6860 = vadd.f32 %v6667, %v6859
      %v6861 = vpop.f32.mrf.mxu0
      %v6862 = vadd.f32 %v6669, %v6861
      %v6863 = vpop.f32.mrf.mxu0
      %v6864 = vadd.f32 %v6671, %v6863
      %6865 = vmatprep.mubr.bf16.mxu0 %v3209
      %6866 = vmatmul.mubr.bf16.gmra.mxu0 %v3208
      %v6867 = vpop.f32.mrf.mxu0
      %v6868 = vadd.f32 %v6675, %v6867
      %v6869 = vpop.f32.mrf.mxu0
      %v6870 = vadd.f32 %v6677, %v6869
      %v6871 = vpop.f32.mrf.mxu0
      %v6872 = vadd.f32 %v6679, %v6871
      %v6873 = vpop.f32.mrf.mxu0
      %v6874 = vadd.f32 %v6681, %v6873
      %6875 = vmatprep.mubr.bf16.mxu0 %v3217
      %6876 = vmatmul.mubr.bf16.gmra.mxu0 %v3216
      %v6877 = vpop.f32.mrf.mxu0
      %v6878 = vadd.f32 %v6685, %v6877
      %v6879 = vpop.f32.mrf.mxu0
      %v6880 = vadd.f32 %v6687, %v6879
      %v6881 = vpop.f32.mrf.mxu0
      %v6882 = vadd.f32 %v6689, %v6881
      %v6883 = vpop.f32.mrf.mxu0
      %v6884 = vadd.f32 %v6691, %v6883
      %6885 = vmatprep.mubr.bf16.mxu0 %v3225
      %6886 = vmatmul.mubr.bf16.gmra.mxu0 %v3224
      %v6887 = vpop.f32.mrf.mxu0
      %v6888 = vadd.f32 %v6695, %v6887
      %v6889 = vpop.f32.mrf.mxu0
      %v6890 = vadd.f32 %v6697, %v6889
      %v6891 = vpop.f32.mrf.mxu0
      %v6892 = vadd.f32 %v6699, %v6891
      %v6893 = vpop.f32.mrf.mxu0
      %v6894 = vadd.f32 %v6701, %v6893
      %6895 = vmatprep.mubr.bf16.mxu0 %v3233
      %6896 = vmatmul.mubr.bf16.gmra.mxu0 %v3232
      %v6897 = vpop.f32.mrf.mxu0
      %v6898 = vadd.f32 %v6705, %v6897
      %v6899 = vpop.f32.mrf.mxu0
      %v6900 = vadd.f32 %v6707, %v6899
      %v6901 = vpop.f32.mrf.mxu0
      %v6902 = vadd.f32 %v6709, %v6901
      %v6903 = vpop.f32.mrf.mxu0
      %v6904 = vadd.f32 %v6711, %v6903
      %6905 = vmatprep.mubr.bf16.mxu0 %v3241
      %6906 = vmatmul.mubr.bf16.gmra.mxu0 %v3240
      %v6907 = vpop.f32.mrf.mxu0
      %v6908 = vadd.f32 %v6715, %v6907
      %v6909 = vpop.f32.mrf.mxu0
      %v6910 = vadd.f32 %v6717, %v6909
      %v6911 = vpop.f32.mrf.mxu0
      %v6912 = vadd.f32 %v6719, %v6911
      %v6913 = vpop.f32.mrf.mxu0
      %v6914 = vadd.f32 %v6721, %v6913
      %6915 = vmatprep.mubr.bf16.mxu0 %v3249
      %6916 = vmatmul.mubr.bf16.gmra.mxu0 %v3248
      %v6917 = vpop.f32.mrf.mxu0
      %v6918 = vadd.f32 %v6725, %v6917
      %v6919 = vpop.f32.mrf.mxu0
      %v6920 = vadd.f32 %v6727, %v6919
      %v6921 = vpop.f32.mrf.mxu0
      %v6922 = vadd.f32 %v6729, %v6921
      %v6923 = vpop.f32.mrf.mxu0
      %v6924 = vadd.f32 %v6731, %v6923
      %6925 = vmatprep.mubr.bf16.mxu0 %v3257
      %6926 = vmatmul.mubr.bf16.gmra.mxu0 %v3256
      %v6927 = vpop.f32.mrf.mxu0
      %v6928 = vadd.f32 %v6735, %v6927
      %v6929 = vpop.f32.mrf.mxu0
      %v6930 = vadd.f32 %v6737, %v6929
      %v6931 = vpop.f32.mrf.mxu0
      %v6932 = vadd.f32 %v6739, %v6931
      %v6933 = vpop.f32.mrf.mxu0
      %v6934 = vadd.f32 %v6741, %v6933
      %6935 = vmatprep.mubr.bf16.mxu0 %v3265
      %6936 = vmatmul.mubr.bf16.gmra.mxu0 %v3264
      %v6937 = vpop.f32.mrf.mxu0
      %v6938 = vadd.f32 %v6745, %v6937
      %v6939 = vpop.f32.mrf.mxu0
      %v6940 = vadd.f32 %v6747, %v6939
      %v6941 = vpop.f32.mrf.mxu0
      %v6942 = vadd.f32 %v6749, %v6941
      %v6943 = vpop.f32.mrf.mxu0
      %v6944 = vadd.f32 %v6751, %v6943
      %6945 = vmatprep.mubr.bf16.mxu0 %v3273
      %6946 = vmatmul.mubr.bf16.gmra.mxu0 %v3272
      %v6947 = vpop.f32.mrf.mxu0
      %v6948 = vadd.f32 %v6755, %v6947
      %v6949 = vpop.f32.mrf.mxu0
      %v6950 = vadd.f32 %v6757, %v6949
      %v6951 = vpop.f32.mrf.mxu0
      %v6952 = vadd.f32 %v6759, %v6951
      %v6953 = vpop.f32.mrf.mxu0
      %v6954 = vadd.f32 %v6761, %v6953
      %6955 = vmatprep.mubr.bf16.mxu0 %v3281
      %6956 = vmatmul.mubr.bf16.gmra.mxu0 %v3280
      %v6957 = vpop.f32.mrf.mxu0
      %v6958 = vadd.f32 %v6765, %v6957
      %v6959 = vpop.f32.mrf.mxu0
      %v6960 = vadd.f32 %v6767, %v6959
      %v6961 = vpop.f32.mrf.mxu0
      %v6962 = vadd.f32 %v6769, %v6961
      %v6963 = vpop.f32.mrf.mxu0
      %v6964 = vadd.f32 %v6771, %v6963
      %6965 = vdwg.mxu0
      %6966 = vmatprep.subr.bf16.mxu0 %v4489
      %6967 = vmatpush1.bf16.msra.mxu0 %v4488
      %6968 = vmatprep.subr.bf16.mxu0 %v4485
      %6969 = vmatpush1.bf16.msra.mxu0 %v4484
      %6970 = vmatprep.subr.bf16.mxu0 %v4481
      %6971 = vmatpush1.bf16.msra.mxu0 %v4480
      %6972 = vmatprep.subr.bf16.mxu0 %v4477
      %6973 = vmatpush1.bf16.msra.mxu0 %v4476
      %6974 = vmatprep.subr.bf16.mxu0 %v4473
      %6975 = vmatpush1.bf16.msra.mxu0 %v4472
      %6976 = vmatprep.subr.bf16.mxu0 %v4469
      %6977 = vmatpush1.bf16.msra.mxu0 %v4468
      %6978 = vmatprep.subr.bf16.mxu0 %v4465
      %6979 = vmatpush1.bf16.msra.mxu0 %v4464
      %6980 = vmatprep.subr.bf16.mxu0 %v4461
      %6981 = vmatpush1.bf16.msra.mxu0 %v4460
      %6982 = vmatprep.subr.bf16.mxu0 %v4521
      %6983 = vmatpush2.bf16.msra.mxu0 %v4520
      %6984 = vmatprep.subr.bf16.mxu0 %v4517
      %6985 = vmatpush2.bf16.msra.mxu0 %v4516
      %6986 = vmatprep.subr.bf16.mxu0 %v4513
      %6987 = vmatpush2.bf16.msra.mxu0 %v4512
      %6988 = vmatprep.subr.bf16.mxu0 %v4509
      %6989 = vmatpush2.bf16.msra.mxu0 %v4508
      %6990 = vmatprep.subr.bf16.mxu0 %v4505
      %6991 = vmatpush2.bf16.msra.mxu0 %v4504
      %6992 = vmatprep.subr.bf16.mxu0 %v4501
      %6993 = vmatpush2.bf16.msra.mxu0 %v4500
      %6994 = vmatprep.subr.bf16.mxu0 %v4497
      %6995 = vmatpush2.bf16.msra.mxu0 %v4496
      %6996 = vmatprep.subr.bf16.mxu0 %v4493
      %6997 = vmatpush2.bf16.msra.mxu0 %v4492
      %6998 = vmatprep.mubr.bf16.mxu0 %v3163
      %6999 = vmatmul.mubr.bf16.gmra.mxu0 %v3162
      %v7000 = vpop.f32.mrf.mxu0
      %v7001 = vadd.f32 %v6808, %v7000
      %v7002 = vpop.f32.mrf.mxu0
      %v7003 = vadd.f32 %v6810, %v7002
      %v7004 = vpop.f32.mrf.mxu0
      %v7005 = vadd.f32 %v6812, %v7004
      %v7006 = vpop.f32.mrf.mxu0
      %v7007 = vadd.f32 %v6814, %v7006
      %7008 = vmatprep.mubr.bf16.mxu0 %v3171
      %7009 = vmatmul.mubr.bf16.gmra.mxu0 %v3170
      %v7010 = vpop.f32.mrf.mxu0
      %v7011 = vadd.f32 %v6818, %v7010
      %v7012 = vpop.f32.mrf.mxu0
      %v7013 = vadd.f32 %v6820, %v7012
      %v7014 = vpop.f32.mrf.mxu0
      %v7015 = vadd.f32 %v6822, %v7014
      %v7016 = vpop.f32.mrf.mxu0
      %v7017 = vadd.f32 %v6824, %v7016
      %7018 = vmatprep.mubr.bf16.mxu0 %v3179
      %7019 = vmatmul.mubr.bf16.gmra.mxu0 %v3178
      %v7020 = vpop.f32.mrf.mxu0
      %v7021 = vadd.f32 %v6828, %v7020
      %v7022 = vpop.f32.mrf.mxu0
      %v7023 = vadd.f32 %v6830, %v7022
      %v7024 = vpop.f32.mrf.mxu0
      %v7025 = vadd.f32 %v6832, %v7024
      %v7026 = vpop.f32.mrf.mxu0
      %v7027 = vadd.f32 %v6834, %v7026
      %7028 = vmatprep.mubr.bf16.mxu0 %v3187
      %7029 = vmatmul.mubr.bf16.gmra.mxu0 %v3186
      %v7030 = vpop.f32.mrf.mxu0
      %v7031 = vadd.f32 %v6838, %v7030
      %v7032 = vpop.f32.mrf.mxu0
      %v7033 = vadd.f32 %v6840, %v7032
      %v7034 = vpop.f32.mrf.mxu0
      %v7035 = vadd.f32 %v6842, %v7034
      %v7036 = vpop.f32.mrf.mxu0
      %v7037 = vadd.f32 %v6844, %v7036
      %7038 = vmatprep.mubr.bf16.mxu0 %v3195
      %7039 = vmatmul.mubr.bf16.gmra.mxu0 %v3194
      %v7040 = vpop.f32.mrf.mxu0
      %v7041 = vadd.f32 %v6848, %v7040
      %v7042 = vpop.f32.mrf.mxu0
      %v7043 = vadd.f32 %v6850, %v7042
      %v7044 = vpop.f32.mrf.mxu0
      %v7045 = vadd.f32 %v6852, %v7044
      %v7046 = vpop.f32.mrf.mxu0
      %v7047 = vadd.f32 %v6854, %v7046
      %7048 = vmatprep.mubr.bf16.mxu0 %v3203
      %7049 = vmatmul.mubr.bf16.gmra.mxu0 %v3202
      %v7050 = vpop.f32.mrf.mxu0
      %v7051 = vadd.f32 %v6858, %v7050
      %v7052 = vpop.f32.mrf.mxu0
      %v7053 = vadd.f32 %v6860, %v7052
      %v7054 = vpop.f32.mrf.mxu0
      %v7055 = vadd.f32 %v6862, %v7054
      %v7056 = vpop.f32.mrf.mxu0
      %v7057 = vadd.f32 %v6864, %v7056
      %7058 = vmatprep.mubr.bf16.mxu0 %v3211
      %7059 = vmatmul.mubr.bf16.gmra.mxu0 %v3210
      %v7060 = vpop.f32.mrf.mxu0
      %v7061 = vadd.f32 %v6868, %v7060
      %v7062 = vpop.f32.mrf.mxu0
      %v7063 = vadd.f32 %v6870, %v7062
      %v7064 = vpop.f32.mrf.mxu0
      %v7065 = vadd.f32 %v6872, %v7064
      %v7066 = vpop.f32.mrf.mxu0
      %v7067 = vadd.f32 %v6874, %v7066
      %7068 = vmatprep.mubr.bf16.mxu0 %v3219
      %7069 = vmatmul.mubr.bf16.gmra.mxu0 %v3218
      %v7070 = vpop.f32.mrf.mxu0
      %v7071 = vadd.f32 %v6878, %v7070
      %v7072 = vpop.f32.mrf.mxu0
      %v7073 = vadd.f32 %v6880, %v7072
      %v7074 = vpop.f32.mrf.mxu0
      %v7075 = vadd.f32 %v6882, %v7074
      %v7076 = vpop.f32.mrf.mxu0
      %v7077 = vadd.f32 %v6884, %v7076
      %7078 = vmatprep.mubr.bf16.mxu0 %v3227
      %7079 = vmatmul.mubr.bf16.gmra.mxu0 %v3226
      %v7080 = vpop.f32.mrf.mxu0
      %v7081 = vadd.f32 %v6888, %v7080
      %v7082 = vpop.f32.mrf.mxu0
      %v7083 = vadd.f32 %v6890, %v7082
      %v7084 = vpop.f32.mrf.mxu0
      %v7085 = vadd.f32 %v6892, %v7084
      %v7086 = vpop.f32.mrf.mxu0
      %v7087 = vadd.f32 %v6894, %v7086
      %7088 = vmatprep.mubr.bf16.mxu0 %v3235
      %7089 = vmatmul.mubr.bf16.gmra.mxu0 %v3234
      %v7090 = vpop.f32.mrf.mxu0
      %v7091 = vadd.f32 %v6898, %v7090
      %v7092 = vpop.f32.mrf.mxu0
      %v7093 = vadd.f32 %v6900, %v7092
      %v7094 = vpop.f32.mrf.mxu0
      %v7095 = vadd.f32 %v6902, %v7094
      %v7096 = vpop.f32.mrf.mxu0
      %v7097 = vadd.f32 %v6904, %v7096
      %7098 = vmatprep.mubr.bf16.mxu0 %v3243
      %7099 = vmatmul.mubr.bf16.gmra.mxu0 %v3242
      %v7100 = vpop.f32.mrf.mxu0
      %v7101 = vadd.f32 %v6908, %v7100
      %v7102 = vpop.f32.mrf.mxu0
      %v7103 = vadd.f32 %v6910, %v7102
      %v7104 = vpop.f32.mrf.mxu0
      %v7105 = vadd.f32 %v6912, %v7104
      %v7106 = vpop.f32.mrf.mxu0
      %v7107 = vadd.f32 %v6914, %v7106
      %7108 = vmatprep.mubr.bf16.mxu0 %v3251
      %7109 = vmatmul.mubr.bf16.gmra.mxu0 %v3250
      %v7110 = vpop.f32.mrf.mxu0
      %v7111 = vadd.f32 %v6918, %v7110
      %v7112 = vpop.f32.mrf.mxu0
      %v7113 = vadd.f32 %v6920, %v7112
      %v7114 = vpop.f32.mrf.mxu0
      %v7115 = vadd.f32 %v6922, %v7114
      %v7116 = vpop.f32.mrf.mxu0
      %v7117 = vadd.f32 %v6924, %v7116
      %7118 = vmatprep.mubr.bf16.mxu0 %v3259
      %7119 = vmatmul.mubr.bf16.gmra.mxu0 %v3258
      %v7120 = vpop.f32.mrf.mxu0
      %v7121 = vadd.f32 %v6928, %v7120
      %v7122 = vpop.f32.mrf.mxu0
      %v7123 = vadd.f32 %v6930, %v7122
      %v7124 = vpop.f32.mrf.mxu0
      %v7125 = vadd.f32 %v6932, %v7124
      %v7126 = vpop.f32.mrf.mxu0
      %v7127 = vadd.f32 %v6934, %v7126
      %7128 = vmatprep.mubr.bf16.mxu0 %v3267
      %7129 = vmatmul.mubr.bf16.gmra.mxu0 %v3266
      %v7130 = vpop.f32.mrf.mxu0
      %v7131 = vadd.f32 %v6938, %v7130
      %v7132 = vpop.f32.mrf.mxu0
      %v7133 = vadd.f32 %v6940, %v7132
      %v7134 = vpop.f32.mrf.mxu0
      %v7135 = vadd.f32 %v6942, %v7134
      %v7136 = vpop.f32.mrf.mxu0
      %v7137 = vadd.f32 %v6944, %v7136
      %7138 = vmatprep.mubr.bf16.mxu0 %v3275
      %7139 = vmatmul.mubr.bf16.gmra.mxu0 %v3274
      %v7140 = vpop.f32.mrf.mxu0
      %v7141 = vadd.f32 %v6948, %v7140
      %v7142 = vpop.f32.mrf.mxu0
      %v7143 = vadd.f32 %v6950, %v7142
      %v7144 = vpop.f32.mrf.mxu0
      %v7145 = vadd.f32 %v6952, %v7144
      %v7146 = vpop.f32.mrf.mxu0
      %v7147 = vadd.f32 %v6954, %v7146
      %7148 = vmatprep.mubr.bf16.mxu0 %v3283
      %7149 = vmatmul.mubr.bf16.gmra.mxu0 %v3282
      %v7150 = vpop.f32.mrf.mxu0
      %v7151 = vadd.f32 %v6958, %v7150
      %v7152 = vpop.f32.mrf.mxu0
      %v7153 = vadd.f32 %v6960, %v7152
      %v7154 = vpop.f32.mrf.mxu0
      %v7155 = vadd.f32 %v6962, %v7154
      %v7156 = vpop.f32.mrf.mxu0
      %v7157 = vadd.f32 %v6964, %v7156
      %7158 = vdwg.mxu0
      %7159 = vmatprep.subr.bf16.mxu0 %v4553
      %7160 = vmatpush1.bf16.msra.mxu0 %v4552
      %7161 = vmatprep.subr.bf16.mxu0 %v4549
      %7162 = vmatpush1.bf16.msra.mxu0 %v4548
      %7163 = vmatprep.subr.bf16.mxu0 %v4545
      %7164 = vmatpush1.bf16.msra.mxu0 %v4544
      %7165 = vmatprep.subr.bf16.mxu0 %v4541
      %7166 = vmatpush1.bf16.msra.mxu0 %v4540
      %7167 = vmatprep.subr.bf16.mxu0 %v4537
      %7168 = vmatpush1.bf16.msra.mxu0 %v4536
      %7169 = vmatprep.subr.bf16.mxu0 %v4533
      %7170 = vmatpush1.bf16.msra.mxu0 %v4532
      %7171 = vmatprep.subr.bf16.mxu0 %v4529
      %7172 = vmatpush1.bf16.msra.mxu0 %v4528
      %7173 = vmatprep.subr.bf16.mxu0 %v4525
      %7174 = vmatpush1.bf16.msra.mxu0 %v4524
      %7175 = vmatprep.subr.bf16.mxu0 %v4585
      %7176 = vmatpush2.bf16.msra.mxu0 %v4584
      %7177 = vmatprep.subr.bf16.mxu0 %v4581
      %7178 = vmatpush2.bf16.msra.mxu0 %v4580
      %7179 = vmatprep.subr.bf16.mxu0 %v4577
      %7180 = vmatpush2.bf16.msra.mxu0 %v4576
      %7181 = vmatprep.subr.bf16.mxu0 %v4573
      %7182 = vmatpush2.bf16.msra.mxu0 %v4572
      %7183 = vmatprep.subr.bf16.mxu0 %v4569
      %7184 = vmatpush2.bf16.msra.mxu0 %v4568
      %7185 = vmatprep.subr.bf16.mxu0 %v4565
      %7186 = vmatpush2.bf16.msra.mxu0 %v4564
      %7187 = vmatprep.subr.bf16.mxu0 %v4561
      %7188 = vmatpush2.bf16.msra.mxu0 %v4560
      %7189 = vmatprep.subr.bf16.mxu0 %v4557
      %7190 = vmatpush2.bf16.msra.mxu0 %v4556
      %7191 = vmatprep.mubr.bf16.mxu0 %v3165
      %7192 = vmatmul.mubr.bf16.gmra.mxu0 %v3164
      %v7193 = vpop.f32.mrf.mxu0
      %v7194 = vadd.f32 %v7001, %v7193
      %v7195 = vpop.f32.mrf.mxu0
      %v7196 = vadd.f32 %v7003, %v7195
      %v7197 = vpop.f32.mrf.mxu0
      %v7198 = vadd.f32 %v7005, %v7197
      %v7199 = vpop.f32.mrf.mxu0
      %v7200 = vadd.f32 %v7007, %v7199
      %7201 = vmatprep.mubr.bf16.mxu0 %v3173
      %7202 = vmatmul.mubr.bf16.gmra.mxu0 %v3172
      %v7203 = vpop.f32.mrf.mxu0
      %v7204 = vadd.f32 %v7011, %v7203
      %v7205 = vpop.f32.mrf.mxu0
      %v7206 = vadd.f32 %v7013, %v7205
      %v7207 = vpop.f32.mrf.mxu0
      %v7208 = vadd.f32 %v7015, %v7207
      %v7209 = vpop.f32.mrf.mxu0
      %v7210 = vadd.f32 %v7017, %v7209
      %7211 = vmatprep.mubr.bf16.mxu0 %v3181
      %7212 = vmatmul.mubr.bf16.gmra.mxu0 %v3180
      %v7213 = vpop.f32.mrf.mxu0
      %v7214 = vadd.f32 %v7021, %v7213
      %v7215 = vpop.f32.mrf.mxu0
      %v7216 = vadd.f32 %v7023, %v7215
      %v7217 = vpop.f32.mrf.mxu0
      %v7218 = vadd.f32 %v7025, %v7217
      %v7219 = vpop.f32.mrf.mxu0
      %v7220 = vadd.f32 %v7027, %v7219
      %7221 = vmatprep.mubr.bf16.mxu0 %v3189
      %7222 = vmatmul.mubr.bf16.gmra.mxu0 %v3188
      %v7223 = vpop.f32.mrf.mxu0
      %v7224 = vadd.f32 %v7031, %v7223
      %v7225 = vpop.f32.mrf.mxu0
      %v7226 = vadd.f32 %v7033, %v7225
      %v7227 = vpop.f32.mrf.mxu0
      %v7228 = vadd.f32 %v7035, %v7227
      %v7229 = vpop.f32.mrf.mxu0
      %v7230 = vadd.f32 %v7037, %v7229
      %7231 = vmatprep.mubr.bf16.mxu0 %v3197
      %7232 = vmatmul.mubr.bf16.gmra.mxu0 %v3196
      %v7233 = vpop.f32.mrf.mxu0
      %v7234 = vadd.f32 %v7041, %v7233
      %v7235 = vpop.f32.mrf.mxu0
      %v7236 = vadd.f32 %v7043, %v7235
      %v7237 = vpop.f32.mrf.mxu0
      %v7238 = vadd.f32 %v7045, %v7237
      %v7239 = vpop.f32.mrf.mxu0
      %v7240 = vadd.f32 %v7047, %v7239
      %7241 = vmatprep.mubr.bf16.mxu0 %v3205
      %7242 = vmatmul.mubr.bf16.gmra.mxu0 %v3204
      %v7243 = vpop.f32.mrf.mxu0
      %v7244 = vadd.f32 %v7051, %v7243
      %v7245 = vpop.f32.mrf.mxu0
      %v7246 = vadd.f32 %v7053, %v7245
      %v7247 = vpop.f32.mrf.mxu0
      %v7248 = vadd.f32 %v7055, %v7247
      %v7249 = vpop.f32.mrf.mxu0
      %v7250 = vadd.f32 %v7057, %v7249
      %7251 = vmatprep.mubr.bf16.mxu0 %v3213
      %7252 = vmatmul.mubr.bf16.gmra.mxu0 %v3212
      %v7253 = vpop.f32.mrf.mxu0
      %v7254 = vadd.f32 %v7061, %v7253
      %v7255 = vpop.f32.mrf.mxu0
      %v7256 = vadd.f32 %v7063, %v7255
      %v7257 = vpop.f32.mrf.mxu0
      %v7258 = vadd.f32 %v7065, %v7257
      %v7259 = vpop.f32.mrf.mxu0
      %v7260 = vadd.f32 %v7067, %v7259
      %7261 = vmatprep.mubr.bf16.mxu0 %v3221
      %7262 = vmatmul.mubr.bf16.gmra.mxu0 %v3220
      %v7263 = vpop.f32.mrf.mxu0
      %v7264 = vadd.f32 %v7071, %v7263
      %v7265 = vpop.f32.mrf.mxu0
      %v7266 = vadd.f32 %v7073, %v7265
      %v7267 = vpop.f32.mrf.mxu0
      %v7268 = vadd.f32 %v7075, %v7267
      %v7269 = vpop.f32.mrf.mxu0
      %v7270 = vadd.f32 %v7077, %v7269
      %7271 = vmatprep.mubr.bf16.mxu0 %v3229
      %7272 = vmatmul.mubr.bf16.gmra.mxu0 %v3228
      %v7273 = vpop.f32.mrf.mxu0
      %v7274 = vadd.f32 %v7081, %v7273
      %v7275 = vpop.f32.mrf.mxu0
      %v7276 = vadd.f32 %v7083, %v7275
      %v7277 = vpop.f32.mrf.mxu0
      %v7278 = vadd.f32 %v7085, %v7277
      %v7279 = vpop.f32.mrf.mxu0
      %v7280 = vadd.f32 %v7087, %v7279
      %7281 = vmatprep.mubr.bf16.mxu0 %v3237
      %7282 = vmatmul.mubr.bf16.gmra.mxu0 %v3236
      %v7283 = vpop.f32.mrf.mxu0
      %v7284 = vadd.f32 %v7091, %v7283
      %v7285 = vpop.f32.mrf.mxu0
      %v7286 = vadd.f32 %v7093, %v7285
      %v7287 = vpop.f32.mrf.mxu0
      %v7288 = vadd.f32 %v7095, %v7287
      %v7289 = vpop.f32.mrf.mxu0
      %v7290 = vadd.f32 %v7097, %v7289
      %7291 = vmatprep.mubr.bf16.mxu0 %v3245
      %7292 = vmatmul.mubr.bf16.gmra.mxu0 %v3244
      %v7293 = vpop.f32.mrf.mxu0
      %v7294 = vadd.f32 %v7101, %v7293
      %v7295 = vpop.f32.mrf.mxu0
      %v7296 = vadd.f32 %v7103, %v7295
      %v7297 = vpop.f32.mrf.mxu0
      %v7298 = vadd.f32 %v7105, %v7297
      %v7299 = vpop.f32.mrf.mxu0
      %v7300 = vadd.f32 %v7107, %v7299
      %7301 = vmatprep.mubr.bf16.mxu0 %v3253
      %7302 = vmatmul.mubr.bf16.gmra.mxu0 %v3252
      %v7303 = vpop.f32.mrf.mxu0
      %v7304 = vadd.f32 %v7111, %v7303
      %v7305 = vpop.f32.mrf.mxu0
      %v7306 = vadd.f32 %v7113, %v7305
      %v7307 = vpop.f32.mrf.mxu0
      %v7308 = vadd.f32 %v7115, %v7307
      %v7309 = vpop.f32.mrf.mxu0
      %v7310 = vadd.f32 %v7117, %v7309
      %7311 = vmatprep.mubr.bf16.mxu0 %v3261
      %7312 = vmatmul.mubr.bf16.gmra.mxu0 %v3260
      %v7313 = vpop.f32.mrf.mxu0
      %v7314 = vadd.f32 %v7121, %v7313
      %v7315 = vpop.f32.mrf.mxu0
      %v7316 = vadd.f32 %v7123, %v7315
      %v7317 = vpop.f32.mrf.mxu0
      %v7318 = vadd.f32 %v7125, %v7317
      %v7319 = vpop.f32.mrf.mxu0
      %v7320 = vadd.f32 %v7127, %v7319
      %7321 = vmatprep.mubr.bf16.mxu0 %v3269
      %7322 = vmatmul.mubr.bf16.gmra.mxu0 %v3268
      %v7323 = vpop.f32.mrf.mxu0
      %v7324 = vadd.f32 %v7131, %v7323
      %v7325 = vpop.f32.mrf.mxu0
      %v7326 = vadd.f32 %v7133, %v7325
      %v7327 = vpop.f32.mrf.mxu0
      %v7328 = vadd.f32 %v7135, %v7327
      %v7329 = vpop.f32.mrf.mxu0
      %v7330 = vadd.f32 %v7137, %v7329
      %7331 = vmatprep.mubr.bf16.mxu0 %v3277
      %7332 = vmatmul.mubr.bf16.gmra.mxu0 %v3276
      %v7333 = vpop.f32.mrf.mxu0
      %v7334 = vadd.f32 %v7141, %v7333
      %v7335 = vpop.f32.mrf.mxu0
      %v7336 = vadd.f32 %v7143, %v7335
      %v7337 = vpop.f32.mrf.mxu0
      %v7338 = vadd.f32 %v7145, %v7337
      %v7339 = vpop.f32.mrf.mxu0
      %v7340 = vadd.f32 %v7147, %v7339
      %7341 = vmatprep.mubr.bf16.mxu0 %v3285
      %7342 = vmatmul.mubr.bf16.gmra.mxu0 %v3284
      %v7343 = vpop.f32.mrf.mxu0
      %v7344 = vadd.f32 %v7151, %v7343
      %v7345 = vpop.f32.mrf.mxu0
      %v7346 = vadd.f32 %v7153, %v7345
      %v7347 = vpop.f32.mrf.mxu0
      %v7348 = vadd.f32 %v7155, %v7347
      %v7349 = vpop.f32.mrf.mxu0
      %v7350 = vadd.f32 %v7157, %v7349
      %7351 = vdwg.mxu0
      %7352 = vmatprep.subr.bf16.mxu0 %v4363
      %7353 = vmatpush1.bf16.msra.mxu0 %v4362
      %7354 = vmatprep.subr.bf16.mxu0 %v4359
      %7355 = vmatpush1.bf16.msra.mxu0 %v4358
      %7356 = vmatprep.subr.bf16.mxu0 %v4355
      %7357 = vmatpush1.bf16.msra.mxu0 %v4354
      %7358 = vmatprep.subr.bf16.mxu0 %v4351
      %7359 = vmatpush1.bf16.msra.mxu0 %v4350
      %7360 = vmatprep.subr.bf16.mxu0 %v4347
      %7361 = vmatpush1.bf16.msra.mxu0 %v4346
      %7362 = vmatprep.subr.bf16.mxu0 %v4343
      %7363 = vmatpush1.bf16.msra.mxu0 %v4342
      %7364 = vmatprep.subr.bf16.mxu0 %v4339
      %7365 = vmatpush1.bf16.msra.mxu0 %v4338
      %7366 = vmatprep.subr.bf16.mxu0 %v4335
      %7367 = vmatpush1.bf16.msra.mxu0 %v4334
      %7368 = vmatprep.subr.bf16.mxu0 %v4395
      %7369 = vmatpush2.bf16.msra.mxu0 %v4394
      %7370 = vmatprep.subr.bf16.mxu0 %v4391
      %7371 = vmatpush2.bf16.msra.mxu0 %v4390
      %7372 = vmatprep.subr.bf16.mxu0 %v4387
      %7373 = vmatpush2.bf16.msra.mxu0 %v4386
      %7374 = vmatprep.subr.bf16.mxu0 %v4383
      %7375 = vmatpush2.bf16.msra.mxu0 %v4382
      %7376 = vmatprep.subr.bf16.mxu0 %v4379
      %7377 = vmatpush2.bf16.msra.mxu0 %v4378
      %7378 = vmatprep.subr.bf16.mxu0 %v4375
      %7379 = vmatpush2.bf16.msra.mxu0 %v4374
      %7380 = vmatprep.subr.bf16.mxu0 %v4371
      %7381 = vmatpush2.bf16.msra.mxu0 %v4370
      %7382 = vmatprep.subr.bf16.mxu0 %v4367
      %7383 = vmatpush2.bf16.msra.mxu0 %v4366
      %7384 = vmatprep.mubr.bf16.mxu0 %v3159
      %7385 = vmatmul.mubr.bf16.gmra.mxu0 %v3158
      %v7386 = vpop.f32.mrf.mxu0
      %v7387 = vadd.f32 %v3555, %v7386
      %v7388 = vpop.f32.mrf.mxu0
      %v7389 = vadd.f32 %v3559, %v7388
      %v7390 = vpop.f32.mrf.mxu0
      %v7391 = vadd.f32 %v3555, %v7390
      %v7392 = vpop.f32.mrf.mxu0
      %v7393 = vadd.f32 %v3559, %v7392
      %7394 = vmatprep.mubr.bf16.mxu0 %v3167
      %7395 = vmatmul.mubr.bf16.gmra.mxu0 %v3166
      %v7396 = vpop.f32.mrf.mxu0
      %v7397 = vadd.f32 %v3555, %v7396
      %v7398 = vpop.f32.mrf.mxu0
      %v7399 = vadd.f32 %v3559, %v7398
      %v7400 = vpop.f32.mrf.mxu0
      %v7401 = vadd.f32 %v3555, %v7400
      %v7402 = vpop.f32.mrf.mxu0
      %v7403 = vadd.f32 %v3559, %v7402
      %7404 = vmatprep.mubr.bf16.mxu0 %v3175
      %7405 = vmatmul.mubr.bf16.gmra.mxu0 %v3174
      %v7406 = vpop.f32.mrf.mxu0
      %v7407 = vadd.f32 %v3555, %v7406
      %v7408 = vpop.f32.mrf.mxu0
      %v7409 = vadd.f32 %v3559, %v7408
      %v7410 = vpop.f32.mrf.mxu0
      %v7411 = vadd.f32 %v3555, %v7410
      %v7412 = vpop.f32.mrf.mxu0
      %v7413 = vadd.f32 %v3559, %v7412
      %7414 = vmatprep.mubr.bf16.mxu0 %v3183
      %7415 = vmatmul.mubr.bf16.gmra.mxu0 %v3182
      %v7416 = vpop.f32.mrf.mxu0
      %v7417 = vadd.f32 %v3555, %v7416
      %v7418 = vpop.f32.mrf.mxu0
      %v7419 = vadd.f32 %v3559, %v7418
      %v7420 = vpop.f32.mrf.mxu0
      %v7421 = vadd.f32 %v3555, %v7420
      %v7422 = vpop.f32.mrf.mxu0
      %v7423 = vadd.f32 %v3559, %v7422
      %7424 = vmatprep.mubr.bf16.mxu0 %v3191
      %7425 = vmatmul.mubr.bf16.gmra.mxu0 %v3190
      %v7426 = vpop.f32.mrf.mxu0
      %v7427 = vadd.f32 %v3555, %v7426
      %v7428 = vpop.f32.mrf.mxu0
      %v7429 = vadd.f32 %v3559, %v7428
      %v7430 = vpop.f32.mrf.mxu0
      %v7431 = vadd.f32 %v3555, %v7430
      %v7432 = vpop.f32.mrf.mxu0
      %v7433 = vadd.f32 %v3559, %v7432
      %7434 = vmatprep.mubr.bf16.mxu0 %v3199
      %7435 = vmatmul.mubr.bf16.gmra.mxu0 %v3198
      %v7436 = vpop.f32.mrf.mxu0
      %v7437 = vadd.f32 %v3555, %v7436
      %v7438 = vpop.f32.mrf.mxu0
      %v7439 = vadd.f32 %v3559, %v7438
      %v7440 = vpop.f32.mrf.mxu0
      %v7441 = vadd.f32 %v3555, %v7440
      %v7442 = vpop.f32.mrf.mxu0
      %v7443 = vadd.f32 %v3559, %v7442
      %7444 = vmatprep.mubr.bf16.mxu0 %v3207
      %7445 = vmatmul.mubr.bf16.gmra.mxu0 %v3206
      %v7446 = vpop.f32.mrf.mxu0
      %v7447 = vadd.f32 %v3555, %v7446
      %v7448 = vpop.f32.mrf.mxu0
      %v7449 = vadd.f32 %v3559, %v7448
      %v7450 = vpop.f32.mrf.mxu0
      %v7451 = vadd.f32 %v3555, %v7450
      %v7452 = vpop.f32.mrf.mxu0
      %v7453 = vadd.f32 %v3559, %v7452
      %7454 = vmatprep.mubr.bf16.mxu0 %v3215
      %7455 = vmatmul.mubr.bf16.gmra.mxu0 %v3214
      %v7456 = vpop.f32.mrf.mxu0
      %v7457 = vadd.f32 %v3555, %v7456
      %v7458 = vpop.f32.mrf.mxu0
      %v7459 = vadd.f32 %v3559, %v7458
      %v7460 = vpop.f32.mrf.mxu0
      %v7461 = vadd.f32 %v3555, %v7460
      %v7462 = vpop.f32.mrf.mxu0
      %v7463 = vadd.f32 %v3559, %v7462
      %7464 = vmatprep.mubr.bf16.mxu0 %v3223
      %7465 = vmatmul.mubr.bf16.gmra.mxu0 %v3222
      %v7466 = vpop.f32.mrf.mxu0
      %v7467 = vadd.f32 %v3555, %v7466
      %v7468 = vpop.f32.mrf.mxu0
      %v7469 = vadd.f32 %v3559, %v7468
      %v7470 = vpop.f32.mrf.mxu0
      %v7471 = vadd.f32 %v3555, %v7470
      %v7472 = vpop.f32.mrf.mxu0
      %v7473 = vadd.f32 %v3559, %v7472
      %7474 = vmatprep.mubr.bf16.mxu0 %v3231
      %7475 = vmatmul.mubr.bf16.gmra.mxu0 %v3230
      %v7476 = vpop.f32.mrf.mxu0
      %v7477 = vadd.f32 %v3555, %v7476
      %v7478 = vpop.f32.mrf.mxu0
      %v7479 = vadd.f32 %v3559, %v7478
      %v7480 = vpop.f32.mrf.mxu0
      %v7481 = vadd.f32 %v3555, %v7480
      %v7482 = vpop.f32.mrf.mxu0
      %v7483 = vadd.f32 %v3559, %v7482
      %7484 = vmatprep.mubr.bf16.mxu0 %v3239
      %7485 = vmatmul.mubr.bf16.gmra.mxu0 %v3238
      %v7486 = vpop.f32.mrf.mxu0
      %v7487 = vadd.f32 %v3555, %v7486
      %v7488 = vpop.f32.mrf.mxu0
      %v7489 = vadd.f32 %v3559, %v7488
      %v7490 = vpop.f32.mrf.mxu0
      %v7491 = vadd.f32 %v3555, %v7490
      %v7492 = vpop.f32.mrf.mxu0
      %v7493 = vadd.f32 %v3559, %v7492
      %7494 = vmatprep.mubr.bf16.mxu0 %v3247
      %7495 = vmatmul.mubr.bf16.gmra.mxu0 %v3246
      %v7496 = vpop.f32.mrf.mxu0
      %v7497 = vadd.f32 %v3555, %v7496
      %v7498 = vpop.f32.mrf.mxu0
      %v7499 = vadd.f32 %v3559, %v7498
      %v7500 = vpop.f32.mrf.mxu0
      %v7501 = vadd.f32 %v3555, %v7500
      %v7502 = vpop.f32.mrf.mxu0
      %v7503 = vadd.f32 %v3559, %v7502
      %7504 = vmatprep.mubr.bf16.mxu0 %v3255
      %7505 = vmatmul.mubr.bf16.gmra.mxu0 %v3254
      %v7506 = vpop.f32.mrf.mxu0
      %v7507 = vadd.f32 %v3555, %v7506
      %v7508 = vpop.f32.mrf.mxu0
      %v7509 = vadd.f32 %v3559, %v7508
      %v7510 = vpop.f32.mrf.mxu0
      %v7511 = vadd.f32 %v3555, %v7510
      %v7512 = vpop.f32.mrf.mxu0
      %v7513 = vadd.f32 %v3559, %v7512
      %7514 = vmatprep.mubr.bf16.mxu0 %v3263
      %7515 = vmatmul.mubr.bf16.gmra.mxu0 %v3262
      %v7516 = vpop.f32.mrf.mxu0
      %v7517 = vadd.f32 %v3555, %v7516
      %v7518 = vpop.f32.mrf.mxu0
      %v7519 = vadd.f32 %v3559, %v7518
      %v7520 = vpop.f32.mrf.mxu0
      %v7521 = vadd.f32 %v3555, %v7520
      %v7522 = vpop.f32.mrf.mxu0
      %v7523 = vadd.f32 %v3559, %v7522
      %7524 = vmatprep.mubr.bf16.mxu0 %v3271
      %7525 = vmatmul.mubr.bf16.gmra.mxu0 %v3270
      %v7526 = vpop.f32.mrf.mxu0
      %v7527 = vadd.f32 %v3555, %v7526
      %v7528 = vpop.f32.mrf.mxu0
      %v7529 = vadd.f32 %v3559, %v7528
      %v7530 = vpop.f32.mrf.mxu0
      %v7531 = vadd.f32 %v3555, %v7530
      %v7532 = vpop.f32.mrf.mxu0
      %v7533 = vadd.f32 %v3559, %v7532
      %7534 = vmatprep.mubr.bf16.mxu0 %v3279
      %7535 = vmatmul.mubr.bf16.gmra.mxu0 %v3278
      %v7536 = vpop.f32.mrf.mxu0
      %v7537 = vadd.f32 %v3555, %v7536
      %v7538 = vpop.f32.mrf.mxu0
      %v7539 = vadd.f32 %v3559, %v7538
      %v7540 = vpop.f32.mrf.mxu0
      %v7541 = vadd.f32 %v3555, %v7540
      %v7542 = vpop.f32.mrf.mxu0
      %v7543 = vadd.f32 %v3559, %v7542
      %7544 = vdwg.mxu0
      %7545 = vmatprep.subr.bf16.mxu0 %v4427
      %7546 = vmatpush1.bf16.msra.mxu0 %v4426
      %7547 = vmatprep.subr.bf16.mxu0 %v4423
      %7548 = vmatpush1.bf16.msra.mxu0 %v4422
      %7549 = vmatprep.subr.bf16.mxu0 %v4419
      %7550 = vmatpush1.bf16.msra.mxu0 %v4418
      %7551 = vmatprep.subr.bf16.mxu0 %v4415
      %7552 = vmatpush1.bf16.msra.mxu0 %v4414
      %7553 = vmatprep.subr.bf16.mxu0 %v4411
      %7554 = vmatpush1.bf16.msra.mxu0 %v4410
      %7555 = vmatprep.subr.bf16.mxu0 %v4407
      %7556 = vmatpush1.bf16.msra.mxu0 %v4406
      %7557 = vmatprep.subr.bf16.mxu0 %v4403
      %7558 = vmatpush1.bf16.msra.mxu0 %v4402
      %7559 = vmatprep.subr.bf16.mxu0 %v4399
      %7560 = vmatpush1.bf16.msra.mxu0 %v4398
      %7561 = vmatprep.subr.bf16.mxu0 %v4459
      %7562 = vmatpush2.bf16.msra.mxu0 %v4458
      %7563 = vmatprep.subr.bf16.mxu0 %v4455
      %7564 = vmatpush2.bf16.msra.mxu0 %v4454
      %7565 = vmatprep.subr.bf16.mxu0 %v4451
      %7566 = vmatpush2.bf16.msra.mxu0 %v4450
      %7567 = vmatprep.subr.bf16.mxu0 %v4447
      %7568 = vmatpush2.bf16.msra.mxu0 %v4446
      %7569 = vmatprep.subr.bf16.mxu0 %v4443
      %7570 = vmatpush2.bf16.msra.mxu0 %v4442
      %7571 = vmatprep.subr.bf16.mxu0 %v4439
      %7572 = vmatpush2.bf16.msra.mxu0 %v4438
      %7573 = vmatprep.subr.bf16.mxu0 %v4435
      %7574 = vmatpush2.bf16.msra.mxu0 %v4434
      %7575 = vmatprep.subr.bf16.mxu0 %v4431
      %7576 = vmatpush2.bf16.msra.mxu0 %v4430
      %7577 = vmatprep.mubr.bf16.mxu0 %v3161
      %7578 = vmatmul.mubr.bf16.gmra.mxu0 %v3160
      %v7579 = vpop.f32.mrf.mxu0
      %v7580 = vadd.f32 %v7387, %v7579
      %v7581 = vpop.f32.mrf.mxu0
      %v7582 = vadd.f32 %v7389, %v7581
      %v7583 = vpop.f32.mrf.mxu0
      %v7584 = vadd.f32 %v7391, %v7583
      %v7585 = vpop.f32.mrf.mxu0
      %v7586 = vadd.f32 %v7393, %v7585
      %7587 = vmatprep.mubr.bf16.mxu0 %v3169
      %7588 = vmatmul.mubr.bf16.gmra.mxu0 %v3168
      %v7589 = vpop.f32.mrf.mxu0
      %v7590 = vadd.f32 %v7397, %v7589
      %v7591 = vpop.f32.mrf.mxu0
      %v7592 = vadd.f32 %v7399, %v7591
      %v7593 = vpop.f32.mrf.mxu0
      %v7594 = vadd.f32 %v7401, %v7593
      %v7595 = vpop.f32.mrf.mxu0
      %v7596 = vadd.f32 %v7403, %v7595
      %7597 = vmatprep.mubr.bf16.mxu0 %v3177
      %7598 = vmatmul.mubr.bf16.gmra.mxu0 %v3176
      %v7599 = vpop.f32.mrf.mxu0
      %v7600 = vadd.f32 %v7407, %v7599
      %v7601 = vpop.f32.mrf.mxu0
      %v7602 = vadd.f32 %v7409, %v7601
      %v7603 = vpop.f32.mrf.mxu0
      %v7604 = vadd.f32 %v7411, %v7603
      %v7605 = vpop.f32.mrf.mxu0
      %v7606 = vadd.f32 %v7413, %v7605
      %7607 = vmatprep.mubr.bf16.mxu0 %v3185
      %7608 = vmatmul.mubr.bf16.gmra.mxu0 %v3184
      %v7609 = vpop.f32.mrf.mxu0
      %v7610 = vadd.f32 %v7417, %v7609
      %v7611 = vpop.f32.mrf.mxu0
      %v7612 = vadd.f32 %v7419, %v7611
      %v7613 = vpop.f32.mrf.mxu0
      %v7614 = vadd.f32 %v7421, %v7613
      %v7615 = vpop.f32.mrf.mxu0
      %v7616 = vadd.f32 %v7423, %v7615
      %7617 = vmatprep.mubr.bf16.mxu0 %v3193
      %7618 = vmatmul.mubr.bf16.gmra.mxu0 %v3192
      %v7619 = vpop.f32.mrf.mxu0
      %v7620 = vadd.f32 %v7427, %v7619
      %v7621 = vpop.f32.mrf.mxu0
      %v7622 = vadd.f32 %v7429, %v7621
      %v7623 = vpop.f32.mrf.mxu0
      %v7624 = vadd.f32 %v7431, %v7623
      %v7625 = vpop.f32.mrf.mxu0
      %v7626 = vadd.f32 %v7433, %v7625
      %7627 = vmatprep.mubr.bf16.mxu0 %v3201
      %7628 = vmatmul.mubr.bf16.gmra.mxu0 %v3200
      %v7629 = vpop.f32.mrf.mxu0
      %v7630 = vadd.f32 %v7437, %v7629
      %v7631 = vpop.f32.mrf.mxu0
      %v7632 = vadd.f32 %v7439, %v7631
      %v7633 = vpop.f32.mrf.mxu0
      %v7634 = vadd.f32 %v7441, %v7633
      %v7635 = vpop.f32.mrf.mxu0
      %v7636 = vadd.f32 %v7443, %v7635
      %7637 = vmatprep.mubr.bf16.mxu0 %v3209
      %7638 = vmatmul.mubr.bf16.gmra.mxu0 %v3208
      %v7639 = vpop.f32.mrf.mxu0
      %v7640 = vadd.f32 %v7447, %v7639
      %v7641 = vpop.f32.mrf.mxu0
      %v7642 = vadd.f32 %v7449, %v7641
      %v7643 = vpop.f32.mrf.mxu0
      %v7644 = vadd.f32 %v7451, %v7643
      %v7645 = vpop.f32.mrf.mxu0
      %v7646 = vadd.f32 %v7453, %v7645
      %7647 = vmatprep.mubr.bf16.mxu0 %v3217
      %7648 = vmatmul.mubr.bf16.gmra.mxu0 %v3216
      %v7649 = vpop.f32.mrf.mxu0
      %v7650 = vadd.f32 %v7457, %v7649
      %v7651 = vpop.f32.mrf.mxu0
      %v7652 = vadd.f32 %v7459, %v7651
      %v7653 = vpop.f32.mrf.mxu0
      %v7654 = vadd.f32 %v7461, %v7653
      %v7655 = vpop.f32.mrf.mxu0
      %v7656 = vadd.f32 %v7463, %v7655
      %7657 = vmatprep.mubr.bf16.mxu0 %v3225
      %7658 = vmatmul.mubr.bf16.gmra.mxu0 %v3224
      %v7659 = vpop.f32.mrf.mxu0
      %v7660 = vadd.f32 %v7467, %v7659
      %v7661 = vpop.f32.mrf.mxu0
      %v7662 = vadd.f32 %v7469, %v7661
      %v7663 = vpop.f32.mrf.mxu0
      %v7664 = vadd.f32 %v7471, %v7663
      %v7665 = vpop.f32.mrf.mxu0
      %v7666 = vadd.f32 %v7473, %v7665
      %7667 = vmatprep.mubr.bf16.mxu0 %v3233
      %7668 = vmatmul.mubr.bf16.gmra.mxu0 %v3232
      %v7669 = vpop.f32.mrf.mxu0
      %v7670 = vadd.f32 %v7477, %v7669
      %v7671 = vpop.f32.mrf.mxu0
      %v7672 = vadd.f32 %v7479, %v7671
      %v7673 = vpop.f32.mrf.mxu0
      %v7674 = vadd.f32 %v7481, %v7673
      %v7675 = vpop.f32.mrf.mxu0
      %v7676 = vadd.f32 %v7483, %v7675
      %7677 = vmatprep.mubr.bf16.mxu0 %v3241
      %7678 = vmatmul.mubr.bf16.gmra.mxu0 %v3240
      %v7679 = vpop.f32.mrf.mxu0
      %v7680 = vadd.f32 %v7487, %v7679
      %v7681 = vpop.f32.mrf.mxu0
      %v7682 = vadd.f32 %v7489, %v7681
      %v7683 = vpop.f32.mrf.mxu0
      %v7684 = vadd.f32 %v7491, %v7683
      %v7685 = vpop.f32.mrf.mxu0
      %v7686 = vadd.f32 %v7493, %v7685
      %7687 = vmatprep.mubr.bf16.mxu0 %v3249
      %7688 = vmatmul.mubr.bf16.gmra.mxu0 %v3248
      %v7689 = vpop.f32.mrf.mxu0
      %v7690 = vadd.f32 %v7497, %v7689
      %v7691 = vpop.f32.mrf.mxu0
      %v7692 = vadd.f32 %v7499, %v7691
      %v7693 = vpop.f32.mrf.mxu0
      %v7694 = vadd.f32 %v7501, %v7693
      %v7695 = vpop.f32.mrf.mxu0
      %v7696 = vadd.f32 %v7503, %v7695
      %7697 = vmatprep.mubr.bf16.mxu0 %v3257
      %7698 = vmatmul.mubr.bf16.gmra.mxu0 %v3256
      %v7699 = vpop.f32.mrf.mxu0
      %v7700 = vadd.f32 %v7507, %v7699
      %v7701 = vpop.f32.mrf.mxu0
      %v7702 = vadd.f32 %v7509, %v7701
      %v7703 = vpop.f32.mrf.mxu0
      %v7704 = vadd.f32 %v7511, %v7703
      %v7705 = vpop.f32.mrf.mxu0
      %v7706 = vadd.f32 %v7513, %v7705
      %7707 = vmatprep.mubr.bf16.mxu0 %v3265
      %7708 = vmatmul.mubr.bf16.gmra.mxu0 %v3264
      %v7709 = vpop.f32.mrf.mxu0
      %v7710 = vadd.f32 %v7517, %v7709
      %v7711 = vpop.f32.mrf.mxu0
      %v7712 = vadd.f32 %v7519, %v7711
      %v7713 = vpop.f32.mrf.mxu0
      %v7714 = vadd.f32 %v7521, %v7713
      %v7715 = vpop.f32.mrf.mxu0
      %v7716 = vadd.f32 %v7523, %v7715
      %7717 = vmatprep.mubr.bf16.mxu0 %v3273
      %7718 = vmatmul.mubr.bf16.gmra.mxu0 %v3272
      %v7719 = vpop.f32.mrf.mxu0
      %v7720 = vadd.f32 %v7527, %v7719
      %v7721 = vpop.f32.mrf.mxu0
      %v7722 = vadd.f32 %v7529, %v7721
      %v7723 = vpop.f32.mrf.mxu0
      %v7724 = vadd.f32 %v7531, %v7723
      %v7725 = vpop.f32.mrf.mxu0
      %v7726 = vadd.f32 %v7533, %v7725
      %7727 = vmatprep.mubr.bf16.mxu0 %v3281
      %7728 = vmatmul.mubr.bf16.gmra.mxu0 %v3280
      %v7729 = vpop.f32.mrf.mxu0
      %v7730 = vadd.f32 %v7537, %v7729
      %v7731 = vpop.f32.mrf.mxu0
      %v7732 = vadd.f32 %v7539, %v7731
      %v7733 = vpop.f32.mrf.mxu0
      %v7734 = vadd.f32 %v7541, %v7733
      %v7735 = vpop.f32.mrf.mxu0
      %v7736 = vadd.f32 %v7543, %v7735
      %7737 = vdwg.mxu0
      %7738 = vmatprep.subr.bf16.mxu0 %v4491
      %7739 = vmatpush1.bf16.msra.mxu0 %v4490
      %7740 = vmatprep.subr.bf16.mxu0 %v4487
      %7741 = vmatpush1.bf16.msra.mxu0 %v4486
      %7742 = vmatprep.subr.bf16.mxu0 %v4483
      %7743 = vmatpush1.bf16.msra.mxu0 %v4482
      %7744 = vmatprep.subr.bf16.mxu0 %v4479
      %7745 = vmatpush1.bf16.msra.mxu0 %v4478
      %7746 = vmatprep.subr.bf16.mxu0 %v4475
      %7747 = vmatpush1.bf16.msra.mxu0 %v4474
      %7748 = vmatprep.subr.bf16.mxu0 %v4471
      %7749 = vmatpush1.bf16.msra.mxu0 %v4470
      %7750 = vmatprep.subr.bf16.mxu0 %v4467
      %7751 = vmatpush1.bf16.msra.mxu0 %v4466
      %7752 = vmatprep.subr.bf16.mxu0 %v4463
      %7753 = vmatpush1.bf16.msra.mxu0 %v4462
      %7754 = vmatprep.subr.bf16.mxu0 %v4523
      %7755 = vmatpush2.bf16.msra.mxu0 %v4522
      %7756 = vmatprep.subr.bf16.mxu0 %v4519
      %7757 = vmatpush2.bf16.msra.mxu0 %v4518
      %7758 = vmatprep.subr.bf16.mxu0 %v4515
      %7759 = vmatpush2.bf16.msra.mxu0 %v4514
      %7760 = vmatprep.subr.bf16.mxu0 %v4511
      %7761 = vmatpush2.bf16.msra.mxu0 %v4510
      %7762 = vmatprep.subr.bf16.mxu0 %v4507
      %7763 = vmatpush2.bf16.msra.mxu0 %v4506
      %7764 = vmatprep.subr.bf16.mxu0 %v4503
      %7765 = vmatpush2.bf16.msra.mxu0 %v4502
      %7766 = vmatprep.subr.bf16.mxu0 %v4499
      %7767 = vmatpush2.bf16.msra.mxu0 %v4498
      %7768 = vmatprep.subr.bf16.mxu0 %v4495
      %7769 = vmatpush2.bf16.msra.mxu0 %v4494
      %7770 = vmatprep.mubr.bf16.mxu0 %v3163
      %7771 = vmatmul.mubr.bf16.gmra.mxu0 %v3162
      %v7772 = vpop.f32.mrf.mxu0
      %v7773 = vadd.f32 %v7580, %v7772
      %v7774 = vpop.f32.mrf.mxu0
      %v7775 = vadd.f32 %v7582, %v7774
      %v7776 = vpop.f32.mrf.mxu0
      %v7777 = vadd.f32 %v7584, %v7776
      %v7778 = vpop.f32.mrf.mxu0
      %v7779 = vadd.f32 %v7586, %v7778
      %7780 = vmatprep.mubr.bf16.mxu0 %v3171
      %7781 = vmatmul.mubr.bf16.gmra.mxu0 %v3170
      %v7782 = vpop.f32.mrf.mxu0
      %v7783 = vadd.f32 %v7590, %v7782
      %v7784 = vpop.f32.mrf.mxu0
      %v7785 = vadd.f32 %v7592, %v7784
      %v7786 = vpop.f32.mrf.mxu0
      %v7787 = vadd.f32 %v7594, %v7786
      %v7788 = vpop.f32.mrf.mxu0
      %v7789 = vadd.f32 %v7596, %v7788
      %7790 = vmatprep.mubr.bf16.mxu0 %v3179
      %7791 = vmatmul.mubr.bf16.gmra.mxu0 %v3178
      %v7792 = vpop.f32.mrf.mxu0
      %v7793 = vadd.f32 %v7600, %v7792
      %v7794 = vpop.f32.mrf.mxu0
      %v7795 = vadd.f32 %v7602, %v7794
      %v7796 = vpop.f32.mrf.mxu0
      %v7797 = vadd.f32 %v7604, %v7796
      %v7798 = vpop.f32.mrf.mxu0
      %v7799 = vadd.f32 %v7606, %v7798
      %7800 = vmatprep.mubr.bf16.mxu0 %v3187
      %7801 = vmatmul.mubr.bf16.gmra.mxu0 %v3186
      %v7802 = vpop.f32.mrf.mxu0
      %v7803 = vadd.f32 %v7610, %v7802
      %v7804 = vpop.f32.mrf.mxu0
      %v7805 = vadd.f32 %v7612, %v7804
      %v7806 = vpop.f32.mrf.mxu0
      %v7807 = vadd.f32 %v7614, %v7806
      %v7808 = vpop.f32.mrf.mxu0
      %v7809 = vadd.f32 %v7616, %v7808
      %7810 = vmatprep.mubr.bf16.mxu0 %v3195
      %7811 = vmatmul.mubr.bf16.gmra.mxu0 %v3194
      %v7812 = vpop.f32.mrf.mxu0
      %v7813 = vadd.f32 %v7620, %v7812
      %v7814 = vpop.f32.mrf.mxu0
      %v7815 = vadd.f32 %v7622, %v7814
      %v7816 = vpop.f32.mrf.mxu0
      %v7817 = vadd.f32 %v7624, %v7816
      %v7818 = vpop.f32.mrf.mxu0
      %v7819 = vadd.f32 %v7626, %v7818
      %7820 = vmatprep.mubr.bf16.mxu0 %v3203
      %7821 = vmatmul.mubr.bf16.gmra.mxu0 %v3202
      %v7822 = vpop.f32.mrf.mxu0
      %v7823 = vadd.f32 %v7630, %v7822
      %v7824 = vpop.f32.mrf.mxu0
      %v7825 = vadd.f32 %v7632, %v7824
      %v7826 = vpop.f32.mrf.mxu0
      %v7827 = vadd.f32 %v7634, %v7826
      %v7828 = vpop.f32.mrf.mxu0
      %v7829 = vadd.f32 %v7636, %v7828
      %7830 = vmatprep.mubr.bf16.mxu0 %v3211
      %7831 = vmatmul.mubr.bf16.gmra.mxu0 %v3210
      %v7832 = vpop.f32.mrf.mxu0
      %v7833 = vadd.f32 %v7640, %v7832
      %v7834 = vpop.f32.mrf.mxu0
      %v7835 = vadd.f32 %v7642, %v7834
      %v7836 = vpop.f32.mrf.mxu0
      %v7837 = vadd.f32 %v7644, %v7836
      %v7838 = vpop.f32.mrf.mxu0
      %v7839 = vadd.f32 %v7646, %v7838
      %7840 = vmatprep.mubr.bf16.mxu0 %v3219
      %7841 = vmatmul.mubr.bf16.gmra.mxu0 %v3218
      %v7842 = vpop.f32.mrf.mxu0
      %v7843 = vadd.f32 %v7650, %v7842
      %v7844 = vpop.f32.mrf.mxu0
      %v7845 = vadd.f32 %v7652, %v7844
      %v7846 = vpop.f32.mrf.mxu0
      %v7847 = vadd.f32 %v7654, %v7846
      %v7848 = vpop.f32.mrf.mxu0
      %v7849 = vadd.f32 %v7656, %v7848
      %7850 = vmatprep.mubr.bf16.mxu0 %v3227
      %7851 = vmatmul.mubr.bf16.gmra.mxu0 %v3226
      %v7852 = vpop.f32.mrf.mxu0
      %v7853 = vadd.f32 %v7660, %v7852
      %v7854 = vpop.f32.mrf.mxu0
      %v7855 = vadd.f32 %v7662, %v7854
      %v7856 = vpop.f32.mrf.mxu0
      %v7857 = vadd.f32 %v7664, %v7856
      %v7858 = vpop.f32.mrf.mxu0
      %v7859 = vadd.f32 %v7666, %v7858
      %7860 = vmatprep.mubr.bf16.mxu0 %v3235
      %7861 = vmatmul.mubr.bf16.gmra.mxu0 %v3234
      %v7862 = vpop.f32.mrf.mxu0
      %v7863 = vadd.f32 %v7670, %v7862
      %v7864 = vpop.f32.mrf.mxu0
      %v7865 = vadd.f32 %v7672, %v7864
      %v7866 = vpop.f32.mrf.mxu0
      %v7867 = vadd.f32 %v7674, %v7866
      %v7868 = vpop.f32.mrf.mxu0
      %v7869 = vadd.f32 %v7676, %v7868
      %7870 = vmatprep.mubr.bf16.mxu0 %v3243
      %7871 = vmatmul.mubr.bf16.gmra.mxu0 %v3242
      %v7872 = vpop.f32.mrf.mxu0
      %v7873 = vadd.f32 %v7680, %v7872
      %v7874 = vpop.f32.mrf.mxu0
      %v7875 = vadd.f32 %v7682, %v7874
      %v7876 = vpop.f32.mrf.mxu0
      %v7877 = vadd.f32 %v7684, %v7876
      %v7878 = vpop.f32.mrf.mxu0
      %v7879 = vadd.f32 %v7686, %v7878
      %7880 = vmatprep.mubr.bf16.mxu0 %v3251
      %7881 = vmatmul.mubr.bf16.gmra.mxu0 %v3250
      %v7882 = vpop.f32.mrf.mxu0
      %v7883 = vadd.f32 %v7690, %v7882
      %v7884 = vpop.f32.mrf.mxu0
      %v7885 = vadd.f32 %v7692, %v7884
      %v7886 = vpop.f32.mrf.mxu0
      %v7887 = vadd.f32 %v7694, %v7886
      %v7888 = vpop.f32.mrf.mxu0
      %v7889 = vadd.f32 %v7696, %v7888
      %7890 = vmatprep.mubr.bf16.mxu0 %v3259
      %7891 = vmatmul.mubr.bf16.gmra.mxu0 %v3258
      %v7892 = vpop.f32.mrf.mxu0
      %v7893 = vadd.f32 %v7700, %v7892
      %v7894 = vpop.f32.mrf.mxu0
      %v7895 = vadd.f32 %v7702, %v7894
      %v7896 = vpop.f32.mrf.mxu0
      %v7897 = vadd.f32 %v7704, %v7896
      %v7898 = vpop.f32.mrf.mxu0
      %v7899 = vadd.f32 %v7706, %v7898
      %7900 = vmatprep.mubr.bf16.mxu0 %v3267
      %7901 = vmatmul.mubr.bf16.gmra.mxu0 %v3266
      %v7902 = vpop.f32.mrf.mxu0
      %v7903 = vadd.f32 %v7710, %v7902
      %v7904 = vpop.f32.mrf.mxu0
      %v7905 = vadd.f32 %v7712, %v7904
      %v7906 = vpop.f32.mrf.mxu0
      %v7907 = vadd.f32 %v7714, %v7906
      %v7908 = vpop.f32.mrf.mxu0
      %v7909 = vadd.f32 %v7716, %v7908
      %7910 = vmatprep.mubr.bf16.mxu0 %v3275
      %7911 = vmatmul.mubr.bf16.gmra.mxu0 %v3274
      %v7912 = vpop.f32.mrf.mxu0
      %v7913 = vadd.f32 %v7720, %v7912
      %v7914 = vpop.f32.mrf.mxu0
      %v7915 = vadd.f32 %v7722, %v7914
      %v7916 = vpop.f32.mrf.mxu0
      %v7917 = vadd.f32 %v7724, %v7916
      %v7918 = vpop.f32.mrf.mxu0
      %v7919 = vadd.f32 %v7726, %v7918
      %7920 = vmatprep.mubr.bf16.mxu0 %v3283
      %7921 = vmatmul.mubr.bf16.gmra.mxu0 %v3282
      %v7922 = vpop.f32.mrf.mxu0
      %v7923 = vadd.f32 %v7730, %v7922
      %v7924 = vpop.f32.mrf.mxu0
      %v7925 = vadd.f32 %v7732, %v7924
      %v7926 = vpop.f32.mrf.mxu0
      %v7927 = vadd.f32 %v7734, %v7926
      %v7928 = vpop.f32.mrf.mxu0
      %v7929 = vadd.f32 %v7736, %v7928
      %7930 = vdwg.mxu0
      %7931 = vmatprep.subr.bf16.mxu0 %v4555
      %7932 = vmatpush1.bf16.msra.mxu0 %v4554
      %7933 = vmatprep.subr.bf16.mxu0 %v4551
      %7934 = vmatpush1.bf16.msra.mxu0 %v4550
      %7935 = vmatprep.subr.bf16.mxu0 %v4547
      %7936 = vmatpush1.bf16.msra.mxu0 %v4546
      %7937 = vmatprep.subr.bf16.mxu0 %v4543
      %7938 = vmatpush1.bf16.msra.mxu0 %v4542
      %7939 = vmatprep.subr.bf16.mxu0 %v4539
      %7940 = vmatpush1.bf16.msra.mxu0 %v4538
      %7941 = vmatprep.subr.bf16.mxu0 %v4535
      %7942 = vmatpush1.bf16.msra.mxu0 %v4534
      %7943 = vmatprep.subr.bf16.mxu0 %v4531
      %7944 = vmatpush1.bf16.msra.mxu0 %v4530
      %7945 = vmatprep.subr.bf16.mxu0 %v4527
      %7946 = vmatpush1.bf16.msra.mxu0 %v4526
      %7947 = vmatprep.subr.bf16.mxu0 %v4587
      %7948 = vmatpush2.bf16.msra.mxu0 %v4586
      %7949 = vmatprep.subr.bf16.mxu0 %v4583
      %7950 = vmatpush2.bf16.msra.mxu0 %v4582
      %7951 = vmatprep.subr.bf16.mxu0 %v4579
      %7952 = vmatpush2.bf16.msra.mxu0 %v4578
      %7953 = vmatprep.subr.bf16.mxu0 %v4575
      %7954 = vmatpush2.bf16.msra.mxu0 %v4574
      %7955 = vmatprep.subr.bf16.mxu0 %v4571
      %7956 = vmatpush2.bf16.msra.mxu0 %v4570
      %7957 = vmatprep.subr.bf16.mxu0 %v4567
      %7958 = vmatpush2.bf16.msra.mxu0 %v4566
      %7959 = vmatprep.subr.bf16.mxu0 %v4563
      %7960 = vmatpush2.bf16.msra.mxu0 %v4562
      %7961 = vmatprep.subr.bf16.mxu0 %v4559
      %7962 = vmatpush2.bf16.msra.mxu0 %v4558
      %7963 = vmatprep.mubr.bf16.mxu0 %v3165
      %7964 = vmatmul.mubr.bf16.gmra.mxu0 %v3164
      %v7965 = vpop.f32.mrf.mxu0
      %v7966 = vadd.f32 %v7773, %v7965
      %v7967 = vpop.f32.mrf.mxu0
      %v7968 = vadd.f32 %v7775, %v7967
      %v7969 = vpop.f32.mrf.mxu0
      %v7970 = vadd.f32 %v7777, %v7969
      %v7971 = vpop.f32.mrf.mxu0
      %v7972 = vadd.f32 %v7779, %v7971
      %7973 = vmatprep.mubr.bf16.mxu0 %v3173
      %7974 = vmatmul.mubr.bf16.gmra.mxu0 %v3172
      %v7975 = vpop.f32.mrf.mxu0
      %v7976 = vadd.f32 %v7783, %v7975
      %v7977 = vpop.f32.mrf.mxu0
      %v7978 = vadd.f32 %v7785, %v7977
      %v7979 = vpop.f32.mrf.mxu0
      %v7980 = vadd.f32 %v7787, %v7979
      %v7981 = vpop.f32.mrf.mxu0
      %v7982 = vadd.f32 %v7789, %v7981
      %7983 = vmatprep.mubr.bf16.mxu0 %v3181
      %7984 = vmatmul.mubr.bf16.gmra.mxu0 %v3180
      %v7985 = vpop.f32.mrf.mxu0
      %v7986 = vadd.f32 %v7793, %v7985
      %v7987 = vpop.f32.mrf.mxu0
      %v7988 = vadd.f32 %v7795, %v7987
      %v7989 = vpop.f32.mrf.mxu0
      %v7990 = vadd.f32 %v7797, %v7989
      %v7991 = vpop.f32.mrf.mxu0
      %v7992 = vadd.f32 %v7799, %v7991
      %7993 = vmatprep.mubr.bf16.mxu0 %v3189
      %7994 = vmatmul.mubr.bf16.gmra.mxu0 %v3188
      %v7995 = vpop.f32.mrf.mxu0
      %v7996 = vadd.f32 %v7803, %v7995
      %v7997 = vpop.f32.mrf.mxu0
      %v7998 = vadd.f32 %v7805, %v7997
      %v7999 = vpop.f32.mrf.mxu0
      %v8000 = vadd.f32 %v7807, %v7999
      %v8001 = vpop.f32.mrf.mxu0
      %v8002 = vadd.f32 %v7809, %v8001
      %8003 = vmatprep.mubr.bf16.mxu0 %v3197
      %8004 = vmatmul.mubr.bf16.gmra.mxu0 %v3196
      %v8005 = vpop.f32.mrf.mxu0
      %v8006 = vadd.f32 %v7813, %v8005
      %v8007 = vpop.f32.mrf.mxu0
      %v8008 = vadd.f32 %v7815, %v8007
      %v8009 = vpop.f32.mrf.mxu0
      %v8010 = vadd.f32 %v7817, %v8009
      %v8011 = vpop.f32.mrf.mxu0
      %v8012 = vadd.f32 %v7819, %v8011
      %8013 = vmatprep.mubr.bf16.mxu0 %v3205
      %8014 = vmatmul.mubr.bf16.gmra.mxu0 %v3204
      %v8015 = vpop.f32.mrf.mxu0
      %v8016 = vadd.f32 %v7823, %v8015
      %v8017 = vpop.f32.mrf.mxu0
      %v8018 = vadd.f32 %v7825, %v8017
      %v8019 = vpop.f32.mrf.mxu0
      %v8020 = vadd.f32 %v7827, %v8019
      %v8021 = vpop.f32.mrf.mxu0
      %v8022 = vadd.f32 %v7829, %v8021
      %8023 = vmatprep.mubr.bf16.mxu0 %v3213
      %8024 = vmatmul.mubr.bf16.gmra.mxu0 %v3212
      %v8025 = vpop.f32.mrf.mxu0
      %v8026 = vadd.f32 %v7833, %v8025
      %v8027 = vpop.f32.mrf.mxu0
      %v8028 = vadd.f32 %v7835, %v8027
      %v8029 = vpop.f32.mrf.mxu0
      %v8030 = vadd.f32 %v7837, %v8029
      %v8031 = vpop.f32.mrf.mxu0
      %v8032 = vadd.f32 %v7839, %v8031
      %8033 = vmatprep.mubr.bf16.mxu0 %v3221
      %8034 = vmatmul.mubr.bf16.gmra.mxu0 %v3220
      %v8035 = vpop.f32.mrf.mxu0
      %v8036 = vadd.f32 %v7843, %v8035
      %v8037 = vpop.f32.mrf.mxu0
      %v8038 = vadd.f32 %v7845, %v8037
      %v8039 = vpop.f32.mrf.mxu0
      %v8040 = vadd.f32 %v7847, %v8039
      %v8041 = vpop.f32.mrf.mxu0
      %v8042 = vadd.f32 %v7849, %v8041
      %8043 = vmatprep.mubr.bf16.mxu0 %v3229
      %8044 = vmatmul.mubr.bf16.gmra.mxu0 %v3228
      %v8045 = vpop.f32.mrf.mxu0
      %v8046 = vadd.f32 %v7853, %v8045
      %v8047 = vpop.f32.mrf.mxu0
      %v8048 = vadd.f32 %v7855, %v8047
      %v8049 = vpop.f32.mrf.mxu0
      %v8050 = vadd.f32 %v7857, %v8049
      %v8051 = vpop.f32.mrf.mxu0
      %v8052 = vadd.f32 %v7859, %v8051
      %8053 = vmatprep.mubr.bf16.mxu0 %v3237
      %8054 = vmatmul.mubr.bf16.gmra.mxu0 %v3236
      %v8055 = vpop.f32.mrf.mxu0
      %v8056 = vadd.f32 %v7863, %v8055
      %v8057 = vpop.f32.mrf.mxu0
      %v8058 = vadd.f32 %v7865, %v8057
      %v8059 = vpop.f32.mrf.mxu0
      %v8060 = vadd.f32 %v7867, %v8059
      %v8061 = vpop.f32.mrf.mxu0
      %v8062 = vadd.f32 %v7869, %v8061
      %8063 = vmatprep.mubr.bf16.mxu0 %v3245
      %8064 = vmatmul.mubr.bf16.gmra.mxu0 %v3244
      %v8065 = vpop.f32.mrf.mxu0
      %v8066 = vadd.f32 %v7873, %v8065
      %v8067 = vpop.f32.mrf.mxu0
      %v8068 = vadd.f32 %v7875, %v8067
      %v8069 = vpop.f32.mrf.mxu0
      %v8070 = vadd.f32 %v7877, %v8069
      %v8071 = vpop.f32.mrf.mxu0
      %v8072 = vadd.f32 %v7879, %v8071
      %8073 = vmatprep.mubr.bf16.mxu0 %v3253
      %8074 = vmatmul.mubr.bf16.gmra.mxu0 %v3252
      %v8075 = vpop.f32.mrf.mxu0
      %v8076 = vadd.f32 %v7883, %v8075
      %v8077 = vpop.f32.mrf.mxu0
      %v8078 = vadd.f32 %v7885, %v8077
      %v8079 = vpop.f32.mrf.mxu0
      %v8080 = vadd.f32 %v7887, %v8079
      %v8081 = vpop.f32.mrf.mxu0
      %v8082 = vadd.f32 %v7889, %v8081
      %8083 = vmatprep.mubr.bf16.mxu0 %v3261
      %8084 = vmatmul.mubr.bf16.gmra.mxu0 %v3260
      %v8085 = vpop.f32.mrf.mxu0
      %v8086 = vadd.f32 %v7893, %v8085
      %v8087 = vpop.f32.mrf.mxu0
      %v8088 = vadd.f32 %v7895, %v8087
      %v8089 = vpop.f32.mrf.mxu0
      %v8090 = vadd.f32 %v7897, %v8089
      %v8091 = vpop.f32.mrf.mxu0
      %v8092 = vadd.f32 %v7899, %v8091
      %8093 = vmatprep.mubr.bf16.mxu0 %v3269
      %8094 = vmatmul.mubr.bf16.gmra.mxu0 %v3268
      %v8095 = vpop.f32.mrf.mxu0
      %v8096 = vadd.f32 %v7903, %v8095
      %v8097 = vpop.f32.mrf.mxu0
      %v8098 = vadd.f32 %v7905, %v8097
      %v8099 = vpop.f32.mrf.mxu0
      %v8100 = vadd.f32 %v7907, %v8099
      %v8101 = vpop.f32.mrf.mxu0
      %v8102 = vadd.f32 %v7909, %v8101
      %8103 = vmatprep.mubr.bf16.mxu0 %v3277
      %8104 = vmatmul.mubr.bf16.gmra.mxu0 %v3276
      %v8105 = vpop.f32.mrf.mxu0
      %v8106 = vadd.f32 %v7913, %v8105
      %v8107 = vpop.f32.mrf.mxu0
      %v8108 = vadd.f32 %v7915, %v8107
      %v8109 = vpop.f32.mrf.mxu0
      %v8110 = vadd.f32 %v7917, %v8109
      %v8111 = vpop.f32.mrf.mxu0
      %v8112 = vadd.f32 %v7919, %v8111
      %8113 = vmatprep.mubr.bf16.mxu0 %v3285
      %8114 = vmatmul.mubr.bf16.gmra.mxu0 %v3284
      %v8115 = vpop.f32.mrf.mxu0
      %v8116 = vadd.f32 %v7923, %v8115
      %v8117 = vpop.f32.mrf.mxu0
      %v8118 = vadd.f32 %v7925, %v8117
      %v8119 = vpop.f32.mrf.mxu0
      %v8120 = vadd.f32 %v7927, %v8119
      %v8121 = vpop.f32.mrf.mxu0
      %v8122 = vadd.f32 %v7929, %v8121
      %8123 = vdwg.mxu0
      %v8124 = vmax.f32 %v7194, 0.0
      %v8125 = vmax.f32 %v7196, 0.0
      %v8126 = vmax.f32 %v7966, 0.0
      %v8127 = vmax.f32 %v7968, 0.0
      %v8128 = vmax.f32 %v7198, 0.0
      %v8129 = vmax.f32 %v7200, 0.0
      %v8130 = vmax.f32 %v7970, 0.0
      %v8131 = vmax.f32 %v7972, 0.0
      %v8132 = vmax.f32 %v7204, 0.0
      %v8133 = vmax.f32 %v7206, 0.0
      %v8134 = vmax.f32 %v7976, 0.0
      %v8135 = vmax.f32 %v7978, 0.0
      %v8136 = vmax.f32 %v7208, 0.0
      %v8137 = vmax.f32 %v7210, 0.0
      %v8138 = vmax.f32 %v7980, 0.0
      %v8139 = vmax.f32 %v7982, 0.0
      %v8140 = vmax.f32 %v7214, 0.0
      %v8141 = vmax.f32 %v7216, 0.0
      %v8142 = vmax.f32 %v7986, 0.0
      %v8143 = vmax.f32 %v7988, 0.0
      %v8144 = vmax.f32 %v7218, 0.0
      %v8145 = vmax.f32 %v7220, 0.0
      %v8146 = vmax.f32 %v7990, 0.0
      %v8147 = vmax.f32 %v7992, 0.0
      %v8148 = vmax.f32 %v7224, 0.0
      %v8149 = vmax.f32 %v7226, 0.0
      %v8150 = vmax.f32 %v7996, 0.0
      %v8151 = vmax.f32 %v7998, 0.0
      %v8152 = vmax.f32 %v7228, 0.0
      %v8153 = vmax.f32 %v7230, 0.0
      %v8154 = vmax.f32 %v8000, 0.0
      %v8155 = vmax.f32 %v8002, 0.0
      %v8156 = vmax.f32 %v7234, 0.0
      %v8157 = vmax.f32 %v7236, 0.0
      %v8158 = vmax.f32 %v8006, 0.0
      %v8159 = vmax.f32 %v8008, 0.0
      %v8160 = vmax.f32 %v7238, 0.0
      %v8161 = vmax.f32 %v7240, 0.0
      %v8162 = vmax.f32 %v8010, 0.0
      %v8163 = vmax.f32 %v8012, 0.0
      %v8164 = vmax.f32 %v7244, 0.0
      %v8165 = vmax.f32 %v7246, 0.0
      %v8166 = vmax.f32 %v8016, 0.0
      %v8167 = vmax.f32 %v8018, 0.0
      %v8168 = vmax.f32 %v7248, 0.0
      %v8169 = vmax.f32 %v7250, 0.0
      %v8170 = vmax.f32 %v8020, 0.0
      %v8171 = vmax.f32 %v8022, 0.0
      %v8172 = vmax.f32 %v7254, 0.0
      %v8173 = vmax.f32 %v7256, 0.0
      %v8174 = vmax.f32 %v8026, 0.0
      %v8175 = vmax.f32 %v8028, 0.0
      %v8176 = vmax.f32 %v7258, 0.0
      %v8177 = vmax.f32 %v7260, 0.0
      %v8178 = vmax.f32 %v8030, 0.0
      %v8179 = vmax.f32 %v8032, 0.0
      %v8180 = vmax.f32 %v7264, 0.0
      %v8181 = vmax.f32 %v7266, 0.0
      %v8182 = vmax.f32 %v8036, 0.0
      %v8183 = vmax.f32 %v8038, 0.0
      %v8184 = vmax.f32 %v7268, 0.0
      %v8185 = vmax.f32 %v7270, 0.0
      %v8186 = vmax.f32 %v8040, 0.0
      %v8187 = vmax.f32 %v8042, 0.0
      %v8188 = vmax.f32 %v7274, 0.0
      %v8189 = vmax.f32 %v7276, 0.0
      %v8190 = vmax.f32 %v8046, 0.0
      %v8191 = vmax.f32 %v8048, 0.0
      %v8192 = vmax.f32 %v7278, 0.0
      %v8193 = vmax.f32 %v7280, 0.0
      %v8194 = vmax.f32 %v8050, 0.0
      %v8195 = vmax.f32 %v8052, 0.0
      %v8196 = vmax.f32 %v7284, 0.0
      %v8197 = vmax.f32 %v7286, 0.0
      %v8198 = vmax.f32 %v8056, 0.0
      %v8199 = vmax.f32 %v8058, 0.0
      %v8200 = vmax.f32 %v7288, 0.0
      %v8201 = vmax.f32 %v7290, 0.0
      %v8202 = vmax.f32 %v8060, 0.0
      %v8203 = vmax.f32 %v8062, 0.0
      %v8204 = vmax.f32 %v7294, 0.0
      %v8205 = vmax.f32 %v7296, 0.0
      %v8206 = vmax.f32 %v8066, 0.0
      %v8207 = vmax.f32 %v8068, 0.0
      %v8208 = vmax.f32 %v7298, 0.0
      %v8209 = vmax.f32 %v7300, 0.0
      %v8210 = vmax.f32 %v8070, 0.0
      %v8211 = vmax.f32 %v8072, 0.0
      %v8212 = vmax.f32 %v7304, 0.0
      %v8213 = vmax.f32 %v7306, 0.0
      %v8214 = vmax.f32 %v8076, 0.0
      %v8215 = vmax.f32 %v8078, 0.0
      %v8216 = vmax.f32 %v7308, 0.0
      %v8217 = vmax.f32 %v7310, 0.0
      %v8218 = vmax.f32 %v8080, 0.0
      %v8219 = vmax.f32 %v8082, 0.0
      %v8220 = vmax.f32 %v7314, 0.0
      %v8221 = vmax.f32 %v7316, 0.0
      %v8222 = vmax.f32 %v8086, 0.0
      %v8223 = vmax.f32 %v8088, 0.0
      %v8224 = vmax.f32 %v7318, 0.0
      %v8225 = vmax.f32 %v7320, 0.0
      %v8226 = vmax.f32 %v8090, 0.0
      %v8227 = vmax.f32 %v8092, 0.0
      %v8228 = vmax.f32 %v7324, 0.0
      %v8229 = vmax.f32 %v7326, 0.0
      %v8230 = vmax.f32 %v8096, 0.0
      %v8231 = vmax.f32 %v8098, 0.0
      %v8232 = vmax.f32 %v7328, 0.0
      %v8233 = vmax.f32 %v7330, 0.0
      %v8234 = vmax.f32 %v8100, 0.0
      %v8235 = vmax.f32 %v8102, 0.0
      %v8236 = vmax.f32 %v7334, 0.0
      %v8237 = vmax.f32 %v7336, 0.0
      %v8238 = vmax.f32 %v8106, 0.0
      %v8239 = vmax.f32 %v8108, 0.0
      %v8240 = vmax.f32 %v7338, 0.0
      %v8241 = vmax.f32 %v7340, 0.0
      %v8242 = vmax.f32 %v8110, 0.0
      %v8243 = vmax.f32 %v8112, 0.0
      %v8244 = vmax.f32 %v7344, 0.0
      %v8245 = vmax.f32 %v7346, 0.0
      %v8246 = vmax.f32 %v8116, 0.0
      %v8247 = vmax.f32 %v8118, 0.0
      %v8248 = vmax.f32 %v7348, 0.0
      %v8249 = vmax.f32 %v7350, 0.0
      %v8250 = vmax.f32 %v8120, 0.0
      %v8251 = vmax.f32 %v8122, 0.0
      %v8252 = vpack.c.bf16 %v8128, %v8124
      %v8253 = vpack.c.bf16 %v8129, %v8125
      %v8254 = vpack.c.bf16 %v8130, %v8126
      %v8255 = vpack.c.bf16 %v8131, %v8127
      %v8256 = vpack.c.bf16 %v8136, %v8132
      %v8257 = vpack.c.bf16 %v8137, %v8133
      %v8258 = vpack.c.bf16 %v8138, %v8134
      %v8259 = vpack.c.bf16 %v8139, %v8135
      %v8260 = vpack.c.bf16 %v8144, %v8140
      %v8261 = vpack.c.bf16 %v8145, %v8141
      %v8262 = vpack.c.bf16 %v8146, %v8142
      %v8263 = vpack.c.bf16 %v8147, %v8143
      %v8264 = vpack.c.bf16 %v8152, %v8148
      %v8265 = vpack.c.bf16 %v8153, %v8149
      %v8266 = vpack.c.bf16 %v8154, %v8150
      %v8267 = vpack.c.bf16 %v8155, %v8151
      %v8268 = vpack.c.bf16 %v8160, %v8156
      %v8269 = vpack.c.bf16 %v8161, %v8157
      %v8270 = vpack.c.bf16 %v8162, %v8158
      %v8271 = vpack.c.bf16 %v8163, %v8159
      %v8272 = vpack.c.bf16 %v8168, %v8164
      %v8273 = vpack.c.bf16 %v8169, %v8165
      %v8274 = vpack.c.bf16 %v8170, %v8166
      %v8275 = vpack.c.bf16 %v8171, %v8167
      %v8276 = vpack.c.bf16 %v8176, %v8172
      %v8277 = vpack.c.bf16 %v8177, %v8173
      %v8278 = vpack.c.bf16 %v8178, %v8174
      %v8279 = vpack.c.bf16 %v8179, %v8175
      %v8280 = vpack.c.bf16 %v8184, %v8180
      %v8281 = vpack.c.bf16 %v8185, %v8181
      %v8282 = vpack.c.bf16 %v8186, %v8182
      %v8283 = vpack.c.bf16 %v8187, %v8183
      %v8284 = vpack.c.bf16 %v8192, %v8188
      %v8285 = vpack.c.bf16 %v8193, %v8189
      %v8286 = vpack.c.bf16 %v8194, %v8190
      %v8287 = vpack.c.bf16 %v8195, %v8191
      %v8288 = vpack.c.bf16 %v8200, %v8196
      %v8289 = vpack.c.bf16 %v8201, %v8197
      %v8290 = vpack.c.bf16 %v8202, %v8198
      %v8291 = vpack.c.bf16 %v8203, %v8199
      %v8292 = vpack.c.bf16 %v8208, %v8204
      %v8293 = vpack.c.bf16 %v8209, %v8205
      %v8294 = vpack.c.bf16 %v8210, %v8206
      %v8295 = vpack.c.bf16 %v8211, %v8207
      %v8296 = vpack.c.bf16 %v8216, %v8212
      %v8297 = vpack.c.bf16 %v8217, %v8213
      %v8298 = vpack.c.bf16 %v8218, %v8214
      %v8299 = vpack.c.bf16 %v8219, %v8215
      %v8300 = vpack.c.bf16 %v8224, %v8220
      %v8301 = vpack.c.bf16 %v8225, %v8221
      %v8302 = vpack.c.bf16 %v8226, %v8222
      %v8303 = vpack.c.bf16 %v8227, %v8223
      %v8304 = vpack.c.bf16 %v8232, %v8228
      %v8305 = vpack.c.bf16 %v8233, %v8229
      %v8306 = vpack.c.bf16 %v8234, %v8230
      %v8307 = vpack.c.bf16 %v8235, %v8231
      %v8308 = vpack.c.bf16 %v8240, %v8236
      %v8309 = vpack.c.bf16 %v8241, %v8237
      %v8310 = vpack.c.bf16 %v8242, %v8238
      %v8311 = vpack.c.bf16 %v8243, %v8239
      %v8312 = vpack.c.bf16 %v8248, %v8244
      %v8313 = vpack.c.bf16 %v8249, %v8245
      %v8314 = vpack.c.bf16 %v8250, %v8246
      %v8315 = vpack.c.bf16 %v8251, %v8247
      %v8316 = vld [vmem:[%s5] sm:$0xff]
      %v8317 = vld [vmem:[%s5 + $0x8] sm:$0xff]
      %v8318 = vld [vmem:[%s5 + $0x10] sm:$0xff]
      %v8319 = vld [vmem:[%s5 + $0x18] sm:$0xff]
      %v8320 = vld [vmem:[%s5 + $0x20] sm:$0xff]
      %v8321 = vld [vmem:[%s5 + $0x28] sm:$0xff]
      %v8322 = vld [vmem:[%s5 + $0x30] sm:$0xff]
      %v8323 = vld [vmem:[%s5 + $0x38] sm:$0xff]
      %v8324 = vld [vmem:[%s5 + $0x40] sm:$0xff]
      %v8325 = vld [vmem:[%s5 + $0x48] sm:$0xff]
      %v8326 = vld [vmem:[%s5 + $0x50] sm:$0xff]
      %v8327 = vld [vmem:[%s5 + $0x58] sm:$0xff]
      %v8328 = vld [vmem:[%s5 + $0x60] sm:$0xff]
      %v8329 = vld [vmem:[%s5 + $0x68] sm:$0xff]
      %v8330 = vld [vmem:[%s5 + $0x70] sm:$0xff]
      %v8331 = vld [vmem:[%s5 + $0x78] sm:$0xff]
      %v8332 = vld [vmem:[%s5 + $0x80] sm:$0xff]
      %v8333 = vld [vmem:[%s5 + $0x88] sm:$0xff]
      %v8334 = vld [vmem:[%s5 + $0x90] sm:$0xff]
      %v8335 = vld [vmem:[%s5 + $0x98] sm:$0xff]
      %v8336 = vld [vmem:[%s5 + $0xa0] sm:$0xff]
      %v8337 = vld [vmem:[%s5 + $0xa8] sm:$0xff]
      %v8338 = vld [vmem:[%s5 + $0xb0] sm:$0xff]
      %v8339 = vld [vmem:[%s5 + $0xb8] sm:$0xff]
      %v8340 = vld [vmem:[%s5 + $0xc0] sm:$0xff]
      %v8341 = vld [vmem:[%s5 + $0xc8] sm:$0xff]
      %v8342 = vld [vmem:[%s5 + $0xd0] sm:$0xff]
      %v8343 = vld [vmem:[%s5 + $0xd8] sm:$0xff]
      %v8344 = vld [vmem:[%s5 + $0xe0] sm:$0xff]
      %v8345 = vld [vmem:[%s5 + $0xe8] sm:$0xff]
      %v8346 = vld [vmem:[%s5 + $0xf0] sm:$0xff]
      %v8347 = vld [vmem:[%s5 + $0xf8] sm:$0xff]
      %v8348 = vld [vmem:[%s5 + $0x100] sm:$0xff]
      %v8349 = vld [vmem:[%s5 + $0x108] sm:$0xff]
      %v8350 = vld [vmem:[%s5 + $0x110] sm:$0xff]
      %v8351 = vld [vmem:[%s5 + $0x118] sm:$0xff]
      %v8352 = vld [vmem:[%s5 + $0x120] sm:$0xff]
      %v8353 = vld [vmem:[%s5 + $0x128] sm:$0xff]
      %v8354 = vld [vmem:[%s5 + $0x130] sm:$0xff]
      %v8355 = vld [vmem:[%s5 + $0x138] sm:$0xff]
      %v8356 = vld [vmem:[%s5 + $0x140] sm:$0xff]
      %v8357 = vld [vmem:[%s5 + $0x148] sm:$0xff]
      %v8358 = vld [vmem:[%s5 + $0x150] sm:$0xff]
      %v8359 = vld [vmem:[%s5 + $0x158] sm:$0xff]
      %v8360 = vld [vmem:[%s5 + $0x160] sm:$0xff]
      %v8361 = vld [vmem:[%s5 + $0x168] sm:$0xff]
      %v8362 = vld [vmem:[%s5 + $0x170] sm:$0xff]
      %v8363 = vld [vmem:[%s5 + $0x178] sm:$0xff]
      %v8364 = vld [vmem:[%s5 + $0x180] sm:$0xff]
      %v8365 = vld [vmem:[%s5 + $0x188] sm:$0xff]
      %v8366 = vld [vmem:[%s5 + $0x190] sm:$0xff]
      %v8367 = vld [vmem:[%s5 + $0x198] sm:$0xff]
      %v8368 = vld [vmem:[%s5 + $0x1a0] sm:$0xff]
      %v8369 = vld [vmem:[%s5 + $0x1a8] sm:$0xff]
      %v8370 = vld [vmem:[%s5 + $0x1b0] sm:$0xff]
      %v8371 = vld [vmem:[%s5 + $0x1b8] sm:$0xff]
      %v8372 = vld [vmem:[%s5 + $0x1c0] sm:$0xff]
      %v8373 = vld [vmem:[%s5 + $0x1c8] sm:$0xff]
      %v8374 = vld [vmem:[%s5 + $0x1d0] sm:$0xff]
      %v8375 = vld [vmem:[%s5 + $0x1d8] sm:$0xff]
      %v8376 = vld [vmem:[%s5 + $0x1e0] sm:$0xff]
      %v8377 = vld [vmem:[%s5 + $0x1e8] sm:$0xff]
      %v8378 = vld [vmem:[%s5 + $0x1f0] sm:$0xff]
      %v8379 = vld [vmem:[%s5 + $0x1f8] sm:$0xff]
      %v8380 = vld [vmem:[%s6] sm:$0x3]
      %v8382 = vlaneseq
      %v8383 = vshrl.u32 %v8382, 7
      %v8384 = vsub.s32 0, %v8383
      %v8385 = vrot.slane %v8380, %v8384
      %v8386 = vlaneseq
      %v8387 = vshrl.u32 %v8386, 7
      %v8388 = vsub.s32 1, %v8387
      %v8389 = vrot.slane %v8380, %v8388
      %v8456 = vunpack.c.l.b16 %v8316
      %v8457 = vunpack.c.h.b16 %v8316
      %v8458 = vunpack.c.l.b16 %v8317
      %v8459 = vunpack.c.h.b16 %v8317
      %v8460 = vunpack.c.l.b16 %v8318
      %v8461 = vunpack.c.h.b16 %v8318
      %v8462 = vunpack.c.l.b16 %v8319
      %v8463 = vunpack.c.h.b16 %v8319
      %v8464 = vunpack.c.l.b16 %v8320
      %v8465 = vunpack.c.h.b16 %v8320
      %v8466 = vunpack.c.l.b16 %v8321
      %v8467 = vunpack.c.h.b16 %v8321
      %v8468 = vunpack.c.l.b16 %v8322
      %v8469 = vunpack.c.h.b16 %v8322
      %v8470 = vunpack.c.l.b16 %v8323
      %v8471 = vunpack.c.h.b16 %v8323
      %v8472 = vunpack.c.l.b16 %v8324
      %v8473 = vunpack.c.h.b16 %v8324
      %v8474 = vunpack.c.l.b16 %v8325
      %v8475 = vunpack.c.h.b16 %v8325
      %v8476 = vunpack.c.l.b16 %v8326
      %v8477 = vunpack.c.h.b16 %v8326
      %v8478 = vunpack.c.l.b16 %v8327
      %v8479 = vunpack.c.h.b16 %v8327
      %v8480 = vunpack.c.l.b16 %v8328
      %v8481 = vunpack.c.h.b16 %v8328
      %v8482 = vunpack.c.l.b16 %v8329
      %v8483 = vunpack.c.h.b16 %v8329
      %v8484 = vunpack.c.l.b16 %v8330
      %v8485 = vunpack.c.h.b16 %v8330
      %v8486 = vunpack.c.l.b16 %v8331
      %v8487 = vunpack.c.h.b16 %v8331
      %v8488 = vunpack.c.l.b16 %v8332
      %v8489 = vunpack.c.h.b16 %v8332
      %v8490 = vunpack.c.l.b16 %v8333
      %v8491 = vunpack.c.h.b16 %v8333
      %v8492 = vunpack.c.l.b16 %v8334
      %v8493 = vunpack.c.h.b16 %v8334
      %v8494 = vunpack.c.l.b16 %v8335
      %v8495 = vunpack.c.h.b16 %v8335
      %v8496 = vunpack.c.l.b16 %v8336
      %v8497 = vunpack.c.h.b16 %v8336
      %v8498 = vunpack.c.l.b16 %v8337
      %v8499 = vunpack.c.h.b16 %v8337
      %v8500 = vunpack.c.l.b16 %v8338
      %v8501 = vunpack.c.h.b16 %v8338
      %v8502 = vunpack.c.l.b16 %v8339
      %v8503 = vunpack.c.h.b16 %v8339
      %v8504 = vunpack.c.l.b16 %v8340
      %v8505 = vunpack.c.h.b16 %v8340
      %v8506 = vunpack.c.l.b16 %v8341
      %v8507 = vunpack.c.h.b16 %v8341
      %v8508 = vunpack.c.l.b16 %v8342
      %v8509 = vunpack.c.h.b16 %v8342
      %v8510 = vunpack.c.l.b16 %v8343
      %v8511 = vunpack.c.h.b16 %v8343
      %v8512 = vunpack.c.l.b16 %v8344
      %v8513 = vunpack.c.h.b16 %v8344
      %v8514 = vunpack.c.l.b16 %v8345
      %v8515 = vunpack.c.h.b16 %v8345
      %v8516 = vunpack.c.l.b16 %v8346
      %v8517 = vunpack.c.h.b16 %v8346
      %v8518 = vunpack.c.l.b16 %v8347
      %v8519 = vunpack.c.h.b16 %v8347
      %v8520 = vunpack.c.l.b16 %v8348
      %v8521 = vunpack.c.h.b16 %v8348
      %v8522 = vunpack.c.l.b16 %v8349
      %v8523 = vunpack.c.h.b16 %v8349
      %v8524 = vunpack.c.l.b16 %v8350
      %v8525 = vunpack.c.h.b16 %v8350
      %v8526 = vunpack.c.l.b16 %v8351
      %v8527 = vunpack.c.h.b16 %v8351
      %v8528 = vunpack.c.l.b16 %v8352
      %v8529 = vunpack.c.h.b16 %v8352
      %v8530 = vunpack.c.l.b16 %v8353
      %v8531 = vunpack.c.h.b16 %v8353
      %v8532 = vunpack.c.l.b16 %v8354
      %v8533 = vunpack.c.h.b16 %v8354
      %v8534 = vunpack.c.l.b16 %v8355
      %v8535 = vunpack.c.h.b16 %v8355
      %v8536 = vunpack.c.l.b16 %v8356
      %v8537 = vunpack.c.h.b16 %v8356
      %v8538 = vunpack.c.l.b16 %v8357
      %v8539 = vunpack.c.h.b16 %v8357
      %v8540 = vunpack.c.l.b16 %v8358
      %v8541 = vunpack.c.h.b16 %v8358
      %v8542 = vunpack.c.l.b16 %v8359
      %v8543 = vunpack.c.h.b16 %v8359
      %v8544 = vunpack.c.l.b16 %v8360
      %v8545 = vunpack.c.h.b16 %v8360
      %v8546 = vunpack.c.l.b16 %v8361
      %v8547 = vunpack.c.h.b16 %v8361
      %v8548 = vunpack.c.l.b16 %v8362
      %v8549 = vunpack.c.h.b16 %v8362
      %v8550 = vunpack.c.l.b16 %v8363
      %v8551 = vunpack.c.h.b16 %v8363
      %v8552 = vunpack.c.l.b16 %v8364
      %v8553 = vunpack.c.h.b16 %v8364
      %v8554 = vunpack.c.l.b16 %v8365
      %v8555 = vunpack.c.h.b16 %v8365
      %v8556 = vunpack.c.l.b16 %v8366
      %v8557 = vunpack.c.h.b16 %v8366
      %v8558 = vunpack.c.l.b16 %v8367
      %v8559 = vunpack.c.h.b16 %v8367
      %v8560 = vunpack.c.l.b16 %v8368
      %v8561 = vunpack.c.h.b16 %v8368
      %v8562 = vunpack.c.l.b16 %v8369
      %v8563 = vunpack.c.h.b16 %v8369
      %v8564 = vunpack.c.l.b16 %v8370
      %v8565 = vunpack.c.h.b16 %v8370
      %v8566 = vunpack.c.l.b16 %v8371
      %v8567 = vunpack.c.h.b16 %v8371
      %v8568 = vunpack.c.l.b16 %v8372
      %v8569 = vunpack.c.h.b16 %v8372
      %v8570 = vunpack.c.l.b16 %v8373
      %v8571 = vunpack.c.h.b16 %v8373
      %v8572 = vunpack.c.l.b16 %v8374
      %v8573 = vunpack.c.h.b16 %v8374
      %v8574 = vunpack.c.l.b16 %v8375
      %v8575 = vunpack.c.h.b16 %v8375
      %v8576 = vunpack.c.l.b16 %v8376
      %v8577 = vunpack.c.h.b16 %v8376
      %v8578 = vunpack.c.l.b16 %v8377
      %v8579 = vunpack.c.h.b16 %v8377
      %v8580 = vunpack.c.l.b16 %v8378
      %v8581 = vunpack.c.h.b16 %v8378
      %v8582 = vunpack.c.l.b16 %v8379
      %v8583 = vunpack.c.h.b16 %v8379
      %v8584 = vpack.c.b16 %v8458, %v8456
      %v8585 = vpack.c.b16 %v8459, %v8457
      %v8586 = vpack.c.b16 %v8462, %v8460
      %v8587 = vpack.c.b16 %v8463, %v8461
      %v8588 = vpack.c.b16 %v8466, %v8464
      %v8589 = vpack.c.b16 %v8467, %v8465
      %v8590 = vpack.c.b16 %v8470, %v8468
      %v8591 = vpack.c.b16 %v8471, %v8469
      %v8592 = vpack.c.b16 %v8474, %v8472
      %v8593 = vpack.c.b16 %v8475, %v8473
      %v8594 = vpack.c.b16 %v8478, %v8476
      %v8595 = vpack.c.b16 %v8479, %v8477
      %v8596 = vpack.c.b16 %v8482, %v8480
      %v8597 = vpack.c.b16 %v8483, %v8481
      %v8598 = vpack.c.b16 %v8486, %v8484
      %v8599 = vpack.c.b16 %v8487, %v8485
      %v8600 = vpack.c.b16 %v8490, %v8488
      %v8601 = vpack.c.b16 %v8491, %v8489
      %v8602 = vpack.c.b16 %v8494, %v8492
      %v8603 = vpack.c.b16 %v8495, %v8493
      %v8604 = vpack.c.b16 %v8498, %v8496
      %v8605 = vpack.c.b16 %v8499, %v8497
      %v8606 = vpack.c.b16 %v8502, %v8500
      %v8607 = vpack.c.b16 %v8503, %v8501
      %v8608 = vpack.c.b16 %v8506, %v8504
      %v8609 = vpack.c.b16 %v8507, %v8505
      %v8610 = vpack.c.b16 %v8510, %v8508
      %v8611 = vpack.c.b16 %v8511, %v8509
      %v8612 = vpack.c.b16 %v8514, %v8512
      %v8613 = vpack.c.b16 %v8515, %v8513
      %v8614 = vpack.c.b16 %v8518, %v8516
      %v8615 = vpack.c.b16 %v8519, %v8517
      %v8616 = vpack.c.b16 %v8522, %v8520
      %v8617 = vpack.c.b16 %v8523, %v8521
      %v8618 = vpack.c.b16 %v8526, %v8524
      %v8619 = vpack.c.b16 %v8527, %v8525
      %v8620 = vpack.c.b16 %v8530, %v8528
      %v8621 = vpack.c.b16 %v8531, %v8529
      %v8622 = vpack.c.b16 %v8534, %v8532
      %v8623 = vpack.c.b16 %v8535, %v8533
      %v8624 = vpack.c.b16 %v8538, %v8536
      %v8625 = vpack.c.b16 %v8539, %v8537
      %v8626 = vpack.c.b16 %v8542, %v8540
      %v8627 = vpack.c.b16 %v8543, %v8541
      %v8628 = vpack.c.b16 %v8546, %v8544
      %v8629 = vpack.c.b16 %v8547, %v8545
      %v8630 = vpack.c.b16 %v8550, %v8548
      %v8631 = vpack.c.b16 %v8551, %v8549
      %v8632 = vpack.c.b16 %v8554, %v8552
      %v8633 = vpack.c.b16 %v8555, %v8553
      %v8634 = vpack.c.b16 %v8558, %v8556
      %v8635 = vpack.c.b16 %v8559, %v8557
      %v8636 = vpack.c.b16 %v8562, %v8560
      %v8637 = vpack.c.b16 %v8563, %v8561
      %v8638 = vpack.c.b16 %v8566, %v8564
      %v8639 = vpack.c.b16 %v8567, %v8565
      %v8640 = vpack.c.b16 %v8570, %v8568
      %v8641 = vpack.c.b16 %v8571, %v8569
      %v8642 = vpack.c.b16 %v8574, %v8572
      %v8643 = vpack.c.b16 %v8575, %v8573
      %v8644 = vpack.c.b16 %v8578, %v8576
      %v8645 = vpack.c.b16 %v8579, %v8577
      %v8646 = vpack.c.b16 %v8582, %v8580
      %v8647 = vpack.c.b16 %v8583, %v8581
      %8712 = vmatprep.subr.bf16.mxu0 %v8599
      %8713 = vmatpush1.bf16.msra.mxu0 %v8598
      %8714 = vmatprep.subr.bf16.mxu0 %v8597
      %8715 = vmatpush1.bf16.msra.mxu0 %v8596
      %8716 = vmatprep.subr.bf16.mxu0 %v8595
      %8717 = vmatpush1.bf16.msra.mxu0 %v8594
      %8718 = vmatprep.subr.bf16.mxu0 %v8593
      %8719 = vmatpush1.bf16.msra.mxu0 %v8592
      %8720 = vmatprep.subr.bf16.mxu0 %v8591
      %8721 = vmatpush1.bf16.msra.mxu0 %v8590
      %8722 = vmatprep.subr.bf16.mxu0 %v8589
      %8723 = vmatpush1.bf16.msra.mxu0 %v8588
      %8724 = vmatprep.subr.bf16.mxu0 %v8587
      %8725 = vmatpush1.bf16.msra.mxu0 %v8586
      %8726 = vmatprep.subr.bf16.mxu0 %v8585
      %8727 = vmatpush1.bf16.msra.mxu0 %v8584
      %8728 = vmatprep.subr.bf16.mxu0 %v8615
      %8729 = vmatpush2.bf16.msra.mxu0 %v8614
      %8730 = vmatprep.subr.bf16.mxu0 %v8613
      %8731 = vmatpush2.bf16.msra.mxu0 %v8612
      %8732 = vmatprep.subr.bf16.mxu0 %v8611
      %8733 = vmatpush2.bf16.msra.mxu0 %v8610
      %8734 = vmatprep.subr.bf16.mxu0 %v8609
      %8735 = vmatpush2.bf16.msra.mxu0 %v8608
      %8736 = vmatprep.subr.bf16.mxu0 %v8607
      %8737 = vmatpush2.bf16.msra.mxu0 %v8606
      %8738 = vmatprep.subr.bf16.mxu0 %v8605
      %8739 = vmatpush2.bf16.msra.mxu0 %v8604
      %8740 = vmatprep.subr.bf16.mxu0 %v8603
      %8741 = vmatpush2.bf16.msra.mxu0 %v8602
      %8742 = vmatprep.subr.bf16.mxu0 %v8601
      %8743 = vmatpush2.bf16.msra.mxu0 %v8600
      %8744 = vmatprep.mubr.bf16.mxu0 %v6517
      %8745 = vmatmul.mubr.bf16.gmra.mxu0 %v6516
      %v8746 = vpop.f32.mrf.mxu0
      %v8747 = vadd.f32 %v8385, %v8746
      %v8748 = vpop.f32.mrf.mxu0
      %v8749 = vadd.f32 %v8389, %v8748
      %v8750 = vpop.f32.mrf.mxu0
      %v8751 = vadd.f32 %v8385, %v8750
      %v8752 = vpop.f32.mrf.mxu0
      %v8753 = vadd.f32 %v8389, %v8752
      %8754 = vmatprep.mubr.bf16.mxu0 %v6521
      %8755 = vmatmul.mubr.bf16.gmra.mxu0 %v6520
      %v8756 = vpop.f32.mrf.mxu0
      %v8757 = vadd.f32 %v8385, %v8756
      %v8758 = vpop.f32.mrf.mxu0
      %v8759 = vadd.f32 %v8389, %v8758
      %v8760 = vpop.f32.mrf.mxu0
      %v8761 = vadd.f32 %v8385, %v8760
      %v8762 = vpop.f32.mrf.mxu0
      %v8763 = vadd.f32 %v8389, %v8762
      %8764 = vmatprep.mubr.bf16.mxu0 %v6525
      %8765 = vmatmul.mubr.bf16.gmra.mxu0 %v6524
      %v8766 = vpop.f32.mrf.mxu0
      %v8767 = vadd.f32 %v8385, %v8766
      %v8768 = vpop.f32.mrf.mxu0
      %v8769 = vadd.f32 %v8389, %v8768
      %v8770 = vpop.f32.mrf.mxu0
      %v8771 = vadd.f32 %v8385, %v8770
      %v8772 = vpop.f32.mrf.mxu0
      %v8773 = vadd.f32 %v8389, %v8772
      %8774 = vmatprep.mubr.bf16.mxu0 %v6529
      %8775 = vmatmul.mubr.bf16.gmra.mxu0 %v6528
      %v8776 = vpop.f32.mrf.mxu0
      %v8777 = vadd.f32 %v8385, %v8776
      %v8778 = vpop.f32.mrf.mxu0
      %v8779 = vadd.f32 %v8389, %v8778
      %v8780 = vpop.f32.mrf.mxu0
      %v8781 = vadd.f32 %v8385, %v8780
      %v8782 = vpop.f32.mrf.mxu0
      %v8783 = vadd.f32 %v8389, %v8782
      %8784 = vmatprep.mubr.bf16.mxu0 %v6533
      %8785 = vmatmul.mubr.bf16.gmra.mxu0 %v6532
      %v8786 = vpop.f32.mrf.mxu0
      %v8787 = vadd.f32 %v8385, %v8786
      %v8788 = vpop.f32.mrf.mxu0
      %v8789 = vadd.f32 %v8389, %v8788
      %v8790 = vpop.f32.mrf.mxu0
      %v8791 = vadd.f32 %v8385, %v8790
      %v8792 = vpop.f32.mrf.mxu0
      %v8793 = vadd.f32 %v8389, %v8792
      %8794 = vmatprep.mubr.bf16.mxu0 %v6537
      %8795 = vmatmul.mubr.bf16.gmra.mxu0 %v6536
      %v8796 = vpop.f32.mrf.mxu0
      %v8797 = vadd.f32 %v8385, %v8796
      %v8798 = vpop.f32.mrf.mxu0
      %v8799 = vadd.f32 %v8389, %v8798
      %v8800 = vpop.f32.mrf.mxu0
      %v8801 = vadd.f32 %v8385, %v8800
      %v8802 = vpop.f32.mrf.mxu0
      %v8803 = vadd.f32 %v8389, %v8802
      %8804 = vmatprep.mubr.bf16.mxu0 %v6541
      %8805 = vmatmul.mubr.bf16.gmra.mxu0 %v6540
      %v8806 = vpop.f32.mrf.mxu0
      %v8807 = vadd.f32 %v8385, %v8806
      %v8808 = vpop.f32.mrf.mxu0
      %v8809 = vadd.f32 %v8389, %v8808
      %v8810 = vpop.f32.mrf.mxu0
      %v8811 = vadd.f32 %v8385, %v8810
      %v8812 = vpop.f32.mrf.mxu0
      %v8813 = vadd.f32 %v8389, %v8812
      %8814 = vmatprep.mubr.bf16.mxu0 %v6545
      %8815 = vmatmul.mubr.bf16.gmra.mxu0 %v6544
      %v8816 = vpop.f32.mrf.mxu0
      %v8817 = vadd.f32 %v8385, %v8816
      %v8818 = vpop.f32.mrf.mxu0
      %v8819 = vadd.f32 %v8389, %v8818
      %v8820 = vpop.f32.mrf.mxu0
      %v8821 = vadd.f32 %v8385, %v8820
      %v8822 = vpop.f32.mrf.mxu0
      %v8823 = vadd.f32 %v8389, %v8822
      %8824 = vmatprep.mubr.bf16.mxu0 %v6549
      %8825 = vmatmul.mubr.bf16.gmra.mxu0 %v6548
      %v8826 = vpop.f32.mrf.mxu0
      %v8827 = vadd.f32 %v8385, %v8826
      %v8828 = vpop.f32.mrf.mxu0
      %v8829 = vadd.f32 %v8389, %v8828
      %v8830 = vpop.f32.mrf.mxu0
      %v8831 = vadd.f32 %v8385, %v8830
      %v8832 = vpop.f32.mrf.mxu0
      %v8833 = vadd.f32 %v8389, %v8832
      %8834 = vmatprep.mubr.bf16.mxu0 %v6553
      %8835 = vmatmul.mubr.bf16.gmra.mxu0 %v6552
      %v8836 = vpop.f32.mrf.mxu0
      %v8837 = vadd.f32 %v8385, %v8836
      %v8838 = vpop.f32.mrf.mxu0
      %v8839 = vadd.f32 %v8389, %v8838
      %v8840 = vpop.f32.mrf.mxu0
      %v8841 = vadd.f32 %v8385, %v8840
      %v8842 = vpop.f32.mrf.mxu0
      %v8843 = vadd.f32 %v8389, %v8842
      %8844 = vmatprep.mubr.bf16.mxu0 %v6557
      %8845 = vmatmul.mubr.bf16.gmra.mxu0 %v6556
      %v8846 = vpop.f32.mrf.mxu0
      %v8847 = vadd.f32 %v8385, %v8846
      %v8848 = vpop.f32.mrf.mxu0
      %v8849 = vadd.f32 %v8389, %v8848
      %v8850 = vpop.f32.mrf.mxu0
      %v8851 = vadd.f32 %v8385, %v8850
      %v8852 = vpop.f32.mrf.mxu0
      %v8853 = vadd.f32 %v8389, %v8852
      %8854 = vmatprep.mubr.bf16.mxu0 %v6561
      %8855 = vmatmul.mubr.bf16.gmra.mxu0 %v6560
      %v8856 = vpop.f32.mrf.mxu0
      %v8857 = vadd.f32 %v8385, %v8856
      %v8858 = vpop.f32.mrf.mxu0
      %v8859 = vadd.f32 %v8389, %v8858
      %v8860 = vpop.f32.mrf.mxu0
      %v8861 = vadd.f32 %v8385, %v8860
      %v8862 = vpop.f32.mrf.mxu0
      %v8863 = vadd.f32 %v8389, %v8862
      %8864 = vmatprep.mubr.bf16.mxu0 %v6565
      %8865 = vmatmul.mubr.bf16.gmra.mxu0 %v6564
      %v8866 = vpop.f32.mrf.mxu0
      %v8867 = vadd.f32 %v8385, %v8866
      %v8868 = vpop.f32.mrf.mxu0
      %v8869 = vadd.f32 %v8389, %v8868
      %v8870 = vpop.f32.mrf.mxu0
      %v8871 = vadd.f32 %v8385, %v8870
      %v8872 = vpop.f32.mrf.mxu0
      %v8873 = vadd.f32 %v8389, %v8872
      %8874 = vmatprep.mubr.bf16.mxu0 %v6569
      %8875 = vmatmul.mubr.bf16.gmra.mxu0 %v6568
      %v8876 = vpop.f32.mrf.mxu0
      %v8877 = vadd.f32 %v8385, %v8876
      %v8878 = vpop.f32.mrf.mxu0
      %v8879 = vadd.f32 %v8389, %v8878
      %v8880 = vpop.f32.mrf.mxu0
      %v8881 = vadd.f32 %v8385, %v8880
      %v8882 = vpop.f32.mrf.mxu0
      %v8883 = vadd.f32 %v8389, %v8882
      %8884 = vmatprep.mubr.bf16.mxu0 %v6573
      %8885 = vmatmul.mubr.bf16.gmra.mxu0 %v6572
      %v8886 = vpop.f32.mrf.mxu0
      %v8887 = vadd.f32 %v8385, %v8886
      %v8888 = vpop.f32.mrf.mxu0
      %v8889 = vadd.f32 %v8389, %v8888
      %v8890 = vpop.f32.mrf.mxu0
      %v8891 = vadd.f32 %v8385, %v8890
      %v8892 = vpop.f32.mrf.mxu0
      %v8893 = vadd.f32 %v8389, %v8892
      %8894 = vmatprep.mubr.bf16.mxu0 %v6577
      %8895 = vmatmul.mubr.bf16.gmra.mxu0 %v6576
      %v8896 = vpop.f32.mrf.mxu0
      %v8897 = vadd.f32 %v8385, %v8896
      %v8898 = vpop.f32.mrf.mxu0
      %v8899 = vadd.f32 %v8389, %v8898
      %v8900 = vpop.f32.mrf.mxu0
      %v8901 = vadd.f32 %v8385, %v8900
      %v8902 = vpop.f32.mrf.mxu0
      %v8903 = vadd.f32 %v8389, %v8902
      %8904 = vdwg.mxu0
      %8905 = vmatprep.subr.bf16.mxu0 %v8631
      %8906 = vmatpush1.bf16.msra.mxu0 %v8630
      %8907 = vmatprep.subr.bf16.mxu0 %v8629
      %8908 = vmatpush1.bf16.msra.mxu0 %v8628
      %8909 = vmatprep.subr.bf16.mxu0 %v8627
      %8910 = vmatpush1.bf16.msra.mxu0 %v8626
      %8911 = vmatprep.subr.bf16.mxu0 %v8625
      %8912 = vmatpush1.bf16.msra.mxu0 %v8624
      %8913 = vmatprep.subr.bf16.mxu0 %v8623
      %8914 = vmatpush1.bf16.msra.mxu0 %v8622
      %8915 = vmatprep.subr.bf16.mxu0 %v8621
      %8916 = vmatpush1.bf16.msra.mxu0 %v8620
      %8917 = vmatprep.subr.bf16.mxu0 %v8619
      %8918 = vmatpush1.bf16.msra.mxu0 %v8618
      %8919 = vmatprep.subr.bf16.mxu0 %v8617
      %8920 = vmatpush1.bf16.msra.mxu0 %v8616
      %8921 = vmatprep.subr.bf16.mxu0 %v8647
      %8922 = vmatpush2.bf16.msra.mxu0 %v8646
      %8923 = vmatprep.subr.bf16.mxu0 %v8645
      %8924 = vmatpush2.bf16.msra.mxu0 %v8644
      %8925 = vmatprep.subr.bf16.mxu0 %v8643
      %8926 = vmatpush2.bf16.msra.mxu0 %v8642
      %8927 = vmatprep.subr.bf16.mxu0 %v8641
      %8928 = vmatpush2.bf16.msra.mxu0 %v8640
      %8929 = vmatprep.subr.bf16.mxu0 %v8639
      %8930 = vmatpush2.bf16.msra.mxu0 %v8638
      %8931 = vmatprep.subr.bf16.mxu0 %v8637
      %8932 = vmatpush2.bf16.msra.mxu0 %v8636
      %8933 = vmatprep.subr.bf16.mxu0 %v8635
      %8934 = vmatpush2.bf16.msra.mxu0 %v8634
      %8935 = vmatprep.subr.bf16.mxu0 %v8633
      %8936 = vmatpush2.bf16.msra.mxu0 %v8632
      %8937 = vmatprep.mubr.bf16.mxu0 %v6519
      %8938 = vmatmul.mubr.bf16.gmra.mxu0 %v6518
      %v8939 = vpop.f32.mrf.mxu0
      %v8940 = vadd.f32 %v8747, %v8939
      %v8941 = vpop.f32.mrf.mxu0
      %v8942 = vadd.f32 %v8749, %v8941
      %v8943 = vpop.f32.mrf.mxu0
      %v8944 = vadd.f32 %v8751, %v8943
      %v8945 = vpop.f32.mrf.mxu0
      %v8946 = vadd.f32 %v8753, %v8945
      %8947 = vmatprep.mubr.bf16.mxu0 %v6523
      %8948 = vmatmul.mubr.bf16.gmra.mxu0 %v6522
      %v8949 = vpop.f32.mrf.mxu0
      %v8950 = vadd.f32 %v8757, %v8949
      %v8951 = vpop.f32.mrf.mxu0
      %v8952 = vadd.f32 %v8759, %v8951
      %v8953 = vpop.f32.mrf.mxu0
      %v8954 = vadd.f32 %v8761, %v8953
      %v8955 = vpop.f32.mrf.mxu0
      %v8956 = vadd.f32 %v8763, %v8955
      %8957 = vmatprep.mubr.bf16.mxu0 %v6527
      %8958 = vmatmul.mubr.bf16.gmra.mxu0 %v6526
      %v8959 = vpop.f32.mrf.mxu0
      %v8960 = vadd.f32 %v8767, %v8959
      %v8961 = vpop.f32.mrf.mxu0
      %v8962 = vadd.f32 %v8769, %v8961
      %v8963 = vpop.f32.mrf.mxu0
      %v8964 = vadd.f32 %v8771, %v8963
      %v8965 = vpop.f32.mrf.mxu0
      %v8966 = vadd.f32 %v8773, %v8965
      %8967 = vmatprep.mubr.bf16.mxu0 %v6531
      %8968 = vmatmul.mubr.bf16.gmra.mxu0 %v6530
      %v8969 = vpop.f32.mrf.mxu0
      %v8970 = vadd.f32 %v8777, %v8969
      %v8971 = vpop.f32.mrf.mxu0
      %v8972 = vadd.f32 %v8779, %v8971
      %v8973 = vpop.f32.mrf.mxu0
      %v8974 = vadd.f32 %v8781, %v8973
      %v8975 = vpop.f32.mrf.mxu0
      %v8976 = vadd.f32 %v8783, %v8975
      %8977 = vmatprep.mubr.bf16.mxu0 %v6535
      %8978 = vmatmul.mubr.bf16.gmra.mxu0 %v6534
      %v8979 = vpop.f32.mrf.mxu0
      %v8980 = vadd.f32 %v8787, %v8979
      %v8981 = vpop.f32.mrf.mxu0
      %v8982 = vadd.f32 %v8789, %v8981
      %v8983 = vpop.f32.mrf.mxu0
      %v8984 = vadd.f32 %v8791, %v8983
      %v8985 = vpop.f32.mrf.mxu0
      %v8986 = vadd.f32 %v8793, %v8985
      %8987 = vmatprep.mubr.bf16.mxu0 %v6539
      %8988 = vmatmul.mubr.bf16.gmra.mxu0 %v6538
      %v8989 = vpop.f32.mrf.mxu0
      %v8990 = vadd.f32 %v8797, %v8989
      %v8991 = vpop.f32.mrf.mxu0
      %v8992 = vadd.f32 %v8799, %v8991
      %v8993 = vpop.f32.mrf.mxu0
      %v8994 = vadd.f32 %v8801, %v8993
      %v8995 = vpop.f32.mrf.mxu0
      %v8996 = vadd.f32 %v8803, %v8995
      %8997 = vmatprep.mubr.bf16.mxu0 %v6543
      %8998 = vmatmul.mubr.bf16.gmra.mxu0 %v6542
      %v8999 = vpop.f32.mrf.mxu0
      %v9000 = vadd.f32 %v8807, %v8999
      %v9001 = vpop.f32.mrf.mxu0
      %v9002 = vadd.f32 %v8809, %v9001
      %v9003 = vpop.f32.mrf.mxu0
      %v9004 = vadd.f32 %v8811, %v9003
      %v9005 = vpop.f32.mrf.mxu0
      %v9006 = vadd.f32 %v8813, %v9005
      %9007 = vmatprep.mubr.bf16.mxu0 %v6547
      %9008 = vmatmul.mubr.bf16.gmra.mxu0 %v6546
      %v9009 = vpop.f32.mrf.mxu0
      %v9010 = vadd.f32 %v8817, %v9009
      %v9011 = vpop.f32.mrf.mxu0
      %v9012 = vadd.f32 %v8819, %v9011
      %v9013 = vpop.f32.mrf.mxu0
      %v9014 = vadd.f32 %v8821, %v9013
      %v9015 = vpop.f32.mrf.mxu0
      %v9016 = vadd.f32 %v8823, %v9015
      %9017 = vmatprep.mubr.bf16.mxu0 %v6551
      %9018 = vmatmul.mubr.bf16.gmra.mxu0 %v6550
      %v9019 = vpop.f32.mrf.mxu0
      %v9020 = vadd.f32 %v8827, %v9019
      %v9021 = vpop.f32.mrf.mxu0
      %v9022 = vadd.f32 %v8829, %v9021
      %v9023 = vpop.f32.mrf.mxu0
      %v9024 = vadd.f32 %v8831, %v9023
      %v9025 = vpop.f32.mrf.mxu0
      %v9026 = vadd.f32 %v8833, %v9025
      %9027 = vmatprep.mubr.bf16.mxu0 %v6555
      %9028 = vmatmul.mubr.bf16.gmra.mxu0 %v6554
      %v9029 = vpop.f32.mrf.mxu0
      %v9030 = vadd.f32 %v8837, %v9029
      %v9031 = vpop.f32.mrf.mxu0
      %v9032 = vadd.f32 %v8839, %v9031
      %v9033 = vpop.f32.mrf.mxu0
      %v9034 = vadd.f32 %v8841, %v9033
      %v9035 = vpop.f32.mrf.mxu0
      %v9036 = vadd.f32 %v8843, %v9035
      %9037 = vmatprep.mubr.bf16.mxu0 %v6559
      %9038 = vmatmul.mubr.bf16.gmra.mxu0 %v6558
      %v9039 = vpop.f32.mrf.mxu0
      %v9040 = vadd.f32 %v8847, %v9039
      %v9041 = vpop.f32.mrf.mxu0
      %v9042 = vadd.f32 %v8849, %v9041
      %v9043 = vpop.f32.mrf.mxu0
      %v9044 = vadd.f32 %v8851, %v9043
      %v9045 = vpop.f32.mrf.mxu0
      %v9046 = vadd.f32 %v8853, %v9045
      %9047 = vmatprep.mubr.bf16.mxu0 %v6563
      %9048 = vmatmul.mubr.bf16.gmra.mxu0 %v6562
      %v9049 = vpop.f32.mrf.mxu0
      %v9050 = vadd.f32 %v8857, %v9049
      %v9051 = vpop.f32.mrf.mxu0
      %v9052 = vadd.f32 %v8859, %v9051
      %v9053 = vpop.f32.mrf.mxu0
      %v9054 = vadd.f32 %v8861, %v9053
      %v9055 = vpop.f32.mrf.mxu0
      %v9056 = vadd.f32 %v8863, %v9055
      %9057 = vmatprep.mubr.bf16.mxu0 %v6567
      %9058 = vmatmul.mubr.bf16.gmra.mxu0 %v6566
      %v9059 = vpop.f32.mrf.mxu0
      %v9060 = vadd.f32 %v8867, %v9059
      %v9061 = vpop.f32.mrf.mxu0
      %v9062 = vadd.f32 %v8869, %v9061
      %v9063 = vpop.f32.mrf.mxu0
      %v9064 = vadd.f32 %v8871, %v9063
      %v9065 = vpop.f32.mrf.mxu0
      %v9066 = vadd.f32 %v8873, %v9065
      %9067 = vmatprep.mubr.bf16.mxu0 %v6571
      %9068 = vmatmul.mubr.bf16.gmra.mxu0 %v6570
      %v9069 = vpop.f32.mrf.mxu0
      %v9070 = vadd.f32 %v8877, %v9069
      %v9071 = vpop.f32.mrf.mxu0
      %v9072 = vadd.f32 %v8879, %v9071
      %v9073 = vpop.f32.mrf.mxu0
      %v9074 = vadd.f32 %v8881, %v9073
      %v9075 = vpop.f32.mrf.mxu0
      %v9076 = vadd.f32 %v8883, %v9075
      %9077 = vmatprep.mubr.bf16.mxu0 %v6575
      %9078 = vmatmul.mubr.bf16.gmra.mxu0 %v6574
      %v9079 = vpop.f32.mrf.mxu0
      %v9080 = vadd.f32 %v8887, %v9079
      %v9081 = vpop.f32.mrf.mxu0
      %v9082 = vadd.f32 %v8889, %v9081
      %v9083 = vpop.f32.mrf.mxu0
      %v9084 = vadd.f32 %v8891, %v9083
      %v9085 = vpop.f32.mrf.mxu0
      %v9086 = vadd.f32 %v8893, %v9085
      %9087 = vmatprep.mubr.bf16.mxu0 %v6579
      %9088 = vmatmul.mubr.bf16.gmra.mxu0 %v6578
      %v9089 = vpop.f32.mrf.mxu0
      %v9090 = vadd.f32 %v8897, %v9089
      %v9091 = vpop.f32.mrf.mxu0
      %v9092 = vadd.f32 %v8899, %v9091
      %v9093 = vpop.f32.mrf.mxu0
      %v9094 = vadd.f32 %v8901, %v9093
      %v9095 = vpop.f32.mrf.mxu0
      %v9096 = vadd.f32 %v8903, %v9095
      %9097 = vdwg.mxu0
      %v9098 = vmax.f32 %v8940, 0.0
      %v9099 = vmax.f32 %v8942, 0.0
      %v9100 = vmax.f32 %v8944, 0.0
      %v9101 = vmax.f32 %v8946, 0.0
      %v9102 = vmax.f32 %v8950, 0.0
      %v9103 = vmax.f32 %v8952, 0.0
      %v9104 = vmax.f32 %v8954, 0.0
      %v9105 = vmax.f32 %v8956, 0.0
      %v9106 = vmax.f32 %v8960, 0.0
      %v9107 = vmax.f32 %v8962, 0.0
      %v9108 = vmax.f32 %v8964, 0.0
      %v9109 = vmax.f32 %v8966, 0.0
      %v9110 = vmax.f32 %v8970, 0.0
      %v9111 = vmax.f32 %v8972, 0.0
      %v9112 = vmax.f32 %v8974, 0.0
      %v9113 = vmax.f32 %v8976, 0.0
      %v9114 = vmax.f32 %v8980, 0.0
      %v9115 = vmax.f32 %v8982, 0.0
      %v9116 = vmax.f32 %v8984, 0.0
      %v9117 = vmax.f32 %v8986, 0.0
      %v9118 = vmax.f32 %v8990, 0.0
      %v9119 = vmax.f32 %v8992, 0.0
      %v9120 = vmax.f32 %v8994, 0.0
      %v9121 = vmax.f32 %v8996, 0.0
      %v9122 = vmax.f32 %v9000, 0.0
      %v9123 = vmax.f32 %v9002, 0.0
      %v9124 = vmax.f32 %v9004, 0.0
      %v9125 = vmax.f32 %v9006, 0.0
      %v9126 = vmax.f32 %v9010, 0.0
      %v9127 = vmax.f32 %v9012, 0.0
      %v9128 = vmax.f32 %v9014, 0.0
      %v9129 = vmax.f32 %v9016, 0.0
      %v9130 = vmax.f32 %v9020, 0.0
      %v9131 = vmax.f32 %v9022, 0.0
      %v9132 = vmax.f32 %v9024, 0.0
      %v9133 = vmax.f32 %v9026, 0.0
      %v9134 = vmax.f32 %v9030, 0.0
      %v9135 = vmax.f32 %v9032, 0.0
      %v9136 = vmax.f32 %v9034, 0.0
      %v9137 = vmax.f32 %v9036, 0.0
      %v9138 = vmax.f32 %v9040, 0.0
      %v9139 = vmax.f32 %v9042, 0.0
      %v9140 = vmax.f32 %v9044, 0.0
      %v9141 = vmax.f32 %v9046, 0.0
      %v9142 = vmax.f32 %v9050, 0.0
      %v9143 = vmax.f32 %v9052, 0.0
      %v9144 = vmax.f32 %v9054, 0.0
      %v9145 = vmax.f32 %v9056, 0.0
      %v9146 = vmax.f32 %v9060, 0.0
      %v9147 = vmax.f32 %v9062, 0.0
      %v9148 = vmax.f32 %v9064, 0.0
      %v9149 = vmax.f32 %v9066, 0.0
      %v9150 = vmax.f32 %v9070, 0.0
      %v9151 = vmax.f32 %v9072, 0.0
      %v9152 = vmax.f32 %v9074, 0.0
      %v9153 = vmax.f32 %v9076, 0.0
      %v9154 = vmax.f32 %v9080, 0.0
      %v9155 = vmax.f32 %v9082, 0.0
      %v9156 = vmax.f32 %v9084, 0.0
      %v9157 = vmax.f32 %v9086, 0.0
      %v9158 = vmax.f32 %v9090, 0.0
      %v9159 = vmax.f32 %v9092, 0.0
      %v9160 = vmax.f32 %v9094, 0.0
      %v9161 = vmax.f32 %v9096, 0.0
      %v9162 = vpack.c.bf16 %v9100, %v9098
      %v9163 = vpack.c.bf16 %v9101, %v9099
      %v9164 = vpack.c.bf16 %v9104, %v9102
      %v9165 = vpack.c.bf16 %v9105, %v9103
      %v9166 = vpack.c.bf16 %v9108, %v9106
      %v9167 = vpack.c.bf16 %v9109, %v9107
      %v9168 = vpack.c.bf16 %v9112, %v9110
      %v9169 = vpack.c.bf16 %v9113, %v9111
      %v9170 = vpack.c.bf16 %v9116, %v9114
      %v9171 = vpack.c.bf16 %v9117, %v9115
      %v9172 = vpack.c.bf16 %v9120, %v9118
      %v9173 = vpack.c.bf16 %v9121, %v9119
      %v9174 = vpack.c.bf16 %v9124, %v9122
      %v9175 = vpack.c.bf16 %v9125, %v9123
      %v9176 = vpack.c.bf16 %v9128, %v9126
      %v9177 = vpack.c.bf16 %v9129, %v9127
      %v9178 = vpack.c.bf16 %v9132, %v9130
      %v9179 = vpack.c.bf16 %v9133, %v9131
      %v9180 = vpack.c.bf16 %v9136, %v9134
      %v9181 = vpack.c.bf16 %v9137, %v9135
      %v9182 = vpack.c.bf16 %v9140, %v9138
      %v9183 = vpack.c.bf16 %v9141, %v9139
      %v9184 = vpack.c.bf16 %v9144, %v9142
      %v9185 = vpack.c.bf16 %v9145, %v9143
      %v9186 = vpack.c.bf16 %v9148, %v9146
      %v9187 = vpack.c.bf16 %v9149, %v9147
      %v9188 = vpack.c.bf16 %v9152, %v9150
      %v9189 = vpack.c.bf16 %v9153, %v9151
      %v9190 = vpack.c.bf16 %v9156, %v9154
      %v9191 = vpack.c.bf16 %v9157, %v9155
      %v9192 = vpack.c.bf16 %v9160, %v9158
      %v9193 = vpack.c.bf16 %v9161, %v9159
      %9194 = vmatprep.subr.bf16.mxu0 %v8599
      %9195 = vmatpush1.bf16.msra.mxu0 %v8598
      %9196 = vmatprep.subr.bf16.mxu0 %v8597
      %9197 = vmatpush1.bf16.msra.mxu0 %v8596
      %9198 = vmatprep.subr.bf16.mxu0 %v8595
      %9199 = vmatpush1.bf16.msra.mxu0 %v8594
      %9200 = vmatprep.subr.bf16.mxu0 %v8593
      %9201 = vmatpush1.bf16.msra.mxu0 %v8592
      %9202 = vmatprep.subr.bf16.mxu0 %v8591
      %9203 = vmatpush1.bf16.msra.mxu0 %v8590
      %9204 = vmatprep.subr.bf16.mxu0 %v8589
      %9205 = vmatpush1.bf16.msra.mxu0 %v8588
      %9206 = vmatprep.subr.bf16.mxu0 %v8587
      %9207 = vmatpush1.bf16.msra.mxu0 %v8586
      %9208 = vmatprep.subr.bf16.mxu0 %v8585
      %9209 = vmatpush1.bf16.msra.mxu0 %v8584
      %9210 = vmatprep.subr.bf16.mxu0 %v8615
      %9211 = vmatpush2.bf16.msra.mxu0 %v8614
      %9212 = vmatprep.subr.bf16.mxu0 %v8613
      %9213 = vmatpush2.bf16.msra.mxu0 %v8612
      %9214 = vmatprep.subr.bf16.mxu0 %v8611
      %9215 = vmatpush2.bf16.msra.mxu0 %v8610
      %9216 = vmatprep.subr.bf16.mxu0 %v8609
      %9217 = vmatpush2.bf16.msra.mxu0 %v8608
      %9218 = vmatprep.subr.bf16.mxu0 %v8607
      %9219 = vmatpush2.bf16.msra.mxu0 %v8606
      %9220 = vmatprep.subr.bf16.mxu0 %v8605
      %9221 = vmatpush2.bf16.msra.mxu0 %v8604
      %9222 = vmatprep.subr.bf16.mxu0 %v8603
      %9223 = vmatpush2.bf16.msra.mxu0 %v8602
      %9224 = vmatprep.subr.bf16.mxu0 %v8601
      %9225 = vmatpush2.bf16.msra.mxu0 %v8600
      %9226 = vmatprep.mubr.bf16.mxu0 %v8253
      %9227 = vmatmul.mubr.bf16.gmra.mxu0 %v8252
      %v9228 = vpop.f32.mrf.mxu0
      %v9229 = vadd.f32 %v8385, %v9228
      %v9230 = vpop.f32.mrf.mxu0
      %v9231 = vadd.f32 %v8389, %v9230
      %v9232 = vpop.f32.mrf.mxu0
      %v9233 = vadd.f32 %v8385, %v9232
      %v9234 = vpop.f32.mrf.mxu0
      %v9235 = vadd.f32 %v8389, %v9234
      %9236 = vmatprep.mubr.bf16.mxu0 %v8257
      %9237 = vmatmul.mubr.bf16.gmra.mxu0 %v8256
      %v9238 = vpop.f32.mrf.mxu0
      %v9239 = vadd.f32 %v8385, %v9238
      %v9240 = vpop.f32.mrf.mxu0
      %v9241 = vadd.f32 %v8389, %v9240
      %v9242 = vpop.f32.mrf.mxu0
      %v9243 = vadd.f32 %v8385, %v9242
      %v9244 = vpop.f32.mrf.mxu0
      %v9245 = vadd.f32 %v8389, %v9244
      %9246 = vmatprep.mubr.bf16.mxu0 %v8261
      %9247 = vmatmul.mubr.bf16.gmra.mxu0 %v8260
      %v9248 = vpop.f32.mrf.mxu0
      %v9249 = vadd.f32 %v8385, %v9248
      %v9250 = vpop.f32.mrf.mxu0
      %v9251 = vadd.f32 %v8389, %v9250
      %v9252 = vpop.f32.mrf.mxu0
      %v9253 = vadd.f32 %v8385, %v9252
      %v9254 = vpop.f32.mrf.mxu0
      %v9255 = vadd.f32 %v8389, %v9254
      %9256 = vmatprep.mubr.bf16.mxu0 %v8265
      %9257 = vmatmul.mubr.bf16.gmra.mxu0 %v8264
      %v9258 = vpop.f32.mrf.mxu0
      %v9259 = vadd.f32 %v8385, %v9258
      %v9260 = vpop.f32.mrf.mxu0
      %v9261 = vadd.f32 %v8389, %v9260
      %v9262 = vpop.f32.mrf.mxu0
      %v9263 = vadd.f32 %v8385, %v9262
      %v9264 = vpop.f32.mrf.mxu0
      %v9265 = vadd.f32 %v8389, %v9264
      %9266 = vmatprep.mubr.bf16.mxu0 %v8269
      %9267 = vmatmul.mubr.bf16.gmra.mxu0 %v8268
      %v9268 = vpop.f32.mrf.mxu0
      %v9269 = vadd.f32 %v8385, %v9268
      %v9270 = vpop.f32.mrf.mxu0
      %v9271 = vadd.f32 %v8389, %v9270
      %v9272 = vpop.f32.mrf.mxu0
      %v9273 = vadd.f32 %v8385, %v9272
      %v9274 = vpop.f32.mrf.mxu0
      %v9275 = vadd.f32 %v8389, %v9274
      %9276 = vmatprep.mubr.bf16.mxu0 %v8273
      %9277 = vmatmul.mubr.bf16.gmra.mxu0 %v8272
      %v9278 = vpop.f32.mrf.mxu0
      %v9279 = vadd.f32 %v8385, %v9278
      %v9280 = vpop.f32.mrf.mxu0
      %v9281 = vadd.f32 %v8389, %v9280
      %v9282 = vpop.f32.mrf.mxu0
      %v9283 = vadd.f32 %v8385, %v9282
      %v9284 = vpop.f32.mrf.mxu0
      %v9285 = vadd.f32 %v8389, %v9284
      %9286 = vmatprep.mubr.bf16.mxu0 %v8277
      %9287 = vmatmul.mubr.bf16.gmra.mxu0 %v8276
      %v9288 = vpop.f32.mrf.mxu0
      %v9289 = vadd.f32 %v8385, %v9288
      %v9290 = vpop.f32.mrf.mxu0
      %v9291 = vadd.f32 %v8389, %v9290
      %v9292 = vpop.f32.mrf.mxu0
      %v9293 = vadd.f32 %v8385, %v9292
      %v9294 = vpop.f32.mrf.mxu0
      %v9295 = vadd.f32 %v8389, %v9294
      %9296 = vmatprep.mubr.bf16.mxu0 %v8281
      %9297 = vmatmul.mubr.bf16.gmra.mxu0 %v8280
      %v9298 = vpop.f32.mrf.mxu0
      %v9299 = vadd.f32 %v8385, %v9298
      %v9300 = vpop.f32.mrf.mxu0
      %v9301 = vadd.f32 %v8389, %v9300
      %v9302 = vpop.f32.mrf.mxu0
      %v9303 = vadd.f32 %v8385, %v9302
      %v9304 = vpop.f32.mrf.mxu0
      %v9305 = vadd.f32 %v8389, %v9304
      %9306 = vmatprep.mubr.bf16.mxu0 %v8285
      %9307 = vmatmul.mubr.bf16.gmra.mxu0 %v8284
      %v9308 = vpop.f32.mrf.mxu0
      %v9309 = vadd.f32 %v8385, %v9308
      %v9310 = vpop.f32.mrf.mxu0
      %v9311 = vadd.f32 %v8389, %v9310
      %v9312 = vpop.f32.mrf.mxu0
      %v9313 = vadd.f32 %v8385, %v9312
      %v9314 = vpop.f32.mrf.mxu0
      %v9315 = vadd.f32 %v8389, %v9314
      %9316 = vmatprep.mubr.bf16.mxu0 %v8289
      %9317 = vmatmul.mubr.bf16.gmra.mxu0 %v8288
      %v9318 = vpop.f32.mrf.mxu0
      %v9319 = vadd.f32 %v8385, %v9318
      %v9320 = vpop.f32.mrf.mxu0
      %v9321 = vadd.f32 %v8389, %v9320
      %v9322 = vpop.f32.mrf.mxu0
      %v9323 = vadd.f32 %v8385, %v9322
      %v9324 = vpop.f32.mrf.mxu0
      %v9325 = vadd.f32 %v8389, %v9324
      %9326 = vmatprep.mubr.bf16.mxu0 %v8293
      %9327 = vmatmul.mubr.bf16.gmra.mxu0 %v8292
      %v9328 = vpop.f32.mrf.mxu0
      %v9329 = vadd.f32 %v8385, %v9328
      %v9330 = vpop.f32.mrf.mxu0
      %v9331 = vadd.f32 %v8389, %v9330
      %v9332 = vpop.f32.mrf.mxu0
      %v9333 = vadd.f32 %v8385, %v9332
      %v9334 = vpop.f32.mrf.mxu0
      %v9335 = vadd.f32 %v8389, %v9334
      %9336 = vmatprep.mubr.bf16.mxu0 %v8297
      %9337 = vmatmul.mubr.bf16.gmra.mxu0 %v8296
      %v9338 = vpop.f32.mrf.mxu0
      %v9339 = vadd.f32 %v8385, %v9338
      %v9340 = vpop.f32.mrf.mxu0
      %v9341 = vadd.f32 %v8389, %v9340
      %v9342 = vpop.f32.mrf.mxu0
      %v9343 = vadd.f32 %v8385, %v9342
      %v9344 = vpop.f32.mrf.mxu0
      %v9345 = vadd.f32 %v8389, %v9344
      %9346 = vmatprep.mubr.bf16.mxu0 %v8301
      %9347 = vmatmul.mubr.bf16.gmra.mxu0 %v8300
      %v9348 = vpop.f32.mrf.mxu0
      %v9349 = vadd.f32 %v8385, %v9348
      %v9350 = vpop.f32.mrf.mxu0
      %v9351 = vadd.f32 %v8389, %v9350
      %v9352 = vpop.f32.mrf.mxu0
      %v9353 = vadd.f32 %v8385, %v9352
      %v9354 = vpop.f32.mrf.mxu0
      %v9355 = vadd.f32 %v8389, %v9354
      %9356 = vmatprep.mubr.bf16.mxu0 %v8305
      %9357 = vmatmul.mubr.bf16.gmra.mxu0 %v8304
      %v9358 = vpop.f32.mrf.mxu0
      %v9359 = vadd.f32 %v8385, %v9358
      %v9360 = vpop.f32.mrf.mxu0
      %v9361 = vadd.f32 %v8389, %v9360
      %v9362 = vpop.f32.mrf.mxu0
      %v9363 = vadd.f32 %v8385, %v9362
      %v9364 = vpop.f32.mrf.mxu0
      %v9365 = vadd.f32 %v8389, %v9364
      %9366 = vmatprep.mubr.bf16.mxu0 %v8309
      %9367 = vmatmul.mubr.bf16.gmra.mxu0 %v8308
      %v9368 = vpop.f32.mrf.mxu0
      %v9369 = vadd.f32 %v8385, %v9368
      %v9370 = vpop.f32.mrf.mxu0
      %v9371 = vadd.f32 %v8389, %v9370
      %v9372 = vpop.f32.mrf.mxu0
      %v9373 = vadd.f32 %v8385, %v9372
      %v9374 = vpop.f32.mrf.mxu0
      %v9375 = vadd.f32 %v8389, %v9374
      %9376 = vmatprep.mubr.bf16.mxu0 %v8313
      %9377 = vmatmul.mubr.bf16.gmra.mxu0 %v8312
      %v9378 = vpop.f32.mrf.mxu0
      %v9379 = vadd.f32 %v8385, %v9378
      %v9380 = vpop.f32.mrf.mxu0
      %v9381 = vadd.f32 %v8389, %v9380
      %v9382 = vpop.f32.mrf.mxu0
      %v9383 = vadd.f32 %v8385, %v9382
      %v9384 = vpop.f32.mrf.mxu0
      %v9385 = vadd.f32 %v8389, %v9384
      %9386 = vdwg.mxu0
      %9387 = vmatprep.subr.bf16.mxu0 %v8631
      %9388 = vmatpush1.bf16.msra.mxu0 %v8630
      %9389 = vmatprep.subr.bf16.mxu0 %v8629
      %9390 = vmatpush1.bf16.msra.mxu0 %v8628
      %9391 = vmatprep.subr.bf16.mxu0 %v8627
      %9392 = vmatpush1.bf16.msra.mxu0 %v8626
      %9393 = vmatprep.subr.bf16.mxu0 %v8625
      %9394 = vmatpush1.bf16.msra.mxu0 %v8624
      %9395 = vmatprep.subr.bf16.mxu0 %v8623
      %9396 = vmatpush1.bf16.msra.mxu0 %v8622
      %9397 = vmatprep.subr.bf16.mxu0 %v8621
      %9398 = vmatpush1.bf16.msra.mxu0 %v8620
      %9399 = vmatprep.subr.bf16.mxu0 %v8619
      %9400 = vmatpush1.bf16.msra.mxu0 %v8618
      %9401 = vmatprep.subr.bf16.mxu0 %v8617
      %9402 = vmatpush1.bf16.msra.mxu0 %v8616
      %9403 = vmatprep.subr.bf16.mxu0 %v8647
      %9404 = vmatpush2.bf16.msra.mxu0 %v8646
      %9405 = vmatprep.subr.bf16.mxu0 %v8645
      %9406 = vmatpush2.bf16.msra.mxu0 %v8644
      %9407 = vmatprep.subr.bf16.mxu0 %v8643
      %9408 = vmatpush2.bf16.msra.mxu0 %v8642
      %9409 = vmatprep.subr.bf16.mxu0 %v8641
      %9410 = vmatpush2.bf16.msra.mxu0 %v8640
      %9411 = vmatprep.subr.bf16.mxu0 %v8639
      %9412 = vmatpush2.bf16.msra.mxu0 %v8638
      %9413 = vmatprep.subr.bf16.mxu0 %v8637
      %9414 = vmatpush2.bf16.msra.mxu0 %v8636
      %9415 = vmatprep.subr.bf16.mxu0 %v8635
      %9416 = vmatpush2.bf16.msra.mxu0 %v8634
      %9417 = vmatprep.subr.bf16.mxu0 %v8633
      %9418 = vmatpush2.bf16.msra.mxu0 %v8632
      %9419 = vmatprep.mubr.bf16.mxu0 %v8255
      %9420 = vmatmul.mubr.bf16.gmra.mxu0 %v8254
      %v9421 = vpop.f32.mrf.mxu0
      %v9422 = vadd.f32 %v9229, %v9421
      %v9423 = vpop.f32.mrf.mxu0
      %v9424 = vadd.f32 %v9231, %v9423
      %v9425 = vpop.f32.mrf.mxu0
      %v9426 = vadd.f32 %v9233, %v9425
      %v9427 = vpop.f32.mrf.mxu0
      %v9428 = vadd.f32 %v9235, %v9427
      %9429 = vmatprep.mubr.bf16.mxu0 %v8259
      %9430 = vmatmul.mubr.bf16.gmra.mxu0 %v8258
      %v9431 = vpop.f32.mrf.mxu0
      %v9432 = vadd.f32 %v9239, %v9431
      %v9433 = vpop.f32.mrf.mxu0
      %v9434 = vadd.f32 %v9241, %v9433
      %v9435 = vpop.f32.mrf.mxu0
      %v9436 = vadd.f32 %v9243, %v9435
      %v9437 = vpop.f32.mrf.mxu0
      %v9438 = vadd.f32 %v9245, %v9437
      %9439 = vmatprep.mubr.bf16.mxu0 %v8263
      %9440 = vmatmul.mubr.bf16.gmra.mxu0 %v8262
      %v9441 = vpop.f32.mrf.mxu0
      %v9442 = vadd.f32 %v9249, %v9441
      %v9443 = vpop.f32.mrf.mxu0
      %v9444 = vadd.f32 %v9251, %v9443
      %v9445 = vpop.f32.mrf.mxu0
      %v9446 = vadd.f32 %v9253, %v9445
      %v9447 = vpop.f32.mrf.mxu0
      %v9448 = vadd.f32 %v9255, %v9447
      %9449 = vmatprep.mubr.bf16.mxu0 %v8267
      %9450 = vmatmul.mubr.bf16.gmra.mxu0 %v8266
      %v9451 = vpop.f32.mrf.mxu0
      %v9452 = vadd.f32 %v9259, %v9451
      %v9453 = vpop.f32.mrf.mxu0
      %v9454 = vadd.f32 %v9261, %v9453
      %v9455 = vpop.f32.mrf.mxu0
      %v9456 = vadd.f32 %v9263, %v9455
      %v9457 = vpop.f32.mrf.mxu0
      %v9458 = vadd.f32 %v9265, %v9457
      %9459 = vmatprep.mubr.bf16.mxu0 %v8271
      %9460 = vmatmul.mubr.bf16.gmra.mxu0 %v8270
      %v9461 = vpop.f32.mrf.mxu0
      %v9462 = vadd.f32 %v9269, %v9461
      %v9463 = vpop.f32.mrf.mxu0
      %v9464 = vadd.f32 %v9271, %v9463
      %v9465 = vpop.f32.mrf.mxu0
      %v9466 = vadd.f32 %v9273, %v9465
      %v9467 = vpop.f32.mrf.mxu0
      %v9468 = vadd.f32 %v9275, %v9467
      %9469 = vmatprep.mubr.bf16.mxu0 %v8275
      %9470 = vmatmul.mubr.bf16.gmra.mxu0 %v8274
      %v9471 = vpop.f32.mrf.mxu0
      %v9472 = vadd.f32 %v9279, %v9471
      %v9473 = vpop.f32.mrf.mxu0
      %v9474 = vadd.f32 %v9281, %v9473
      %v9475 = vpop.f32.mrf.mxu0
      %v9476 = vadd.f32 %v9283, %v9475
      %v9477 = vpop.f32.mrf.mxu0
      %v9478 = vadd.f32 %v9285, %v9477
      %9479 = vmatprep.mubr.bf16.mxu0 %v8279
      %9480 = vmatmul.mubr.bf16.gmra.mxu0 %v8278
      %v9481 = vpop.f32.mrf.mxu0
      %v9482 = vadd.f32 %v9289, %v9481
      %v9483 = vpop.f32.mrf.mxu0
      %v9484 = vadd.f32 %v9291, %v9483
      %v9485 = vpop.f32.mrf.mxu0
      %v9486 = vadd.f32 %v9293, %v9485
      %v9487 = vpop.f32.mrf.mxu0
      %v9488 = vadd.f32 %v9295, %v9487
      %9489 = vmatprep.mubr.bf16.mxu0 %v8283
      %9490 = vmatmul.mubr.bf16.gmra.mxu0 %v8282
      %v9491 = vpop.f32.mrf.mxu0
      %v9492 = vadd.f32 %v9299, %v9491
      %v9493 = vpop.f32.mrf.mxu0
      %v9494 = vadd.f32 %v9301, %v9493
      %v9495 = vpop.f32.mrf.mxu0
      %v9496 = vadd.f32 %v9303, %v9495
      %v9497 = vpop.f32.mrf.mxu0
      %v9498 = vadd.f32 %v9305, %v9497
      %9499 = vmatprep.mubr.bf16.mxu0 %v8287
      %9500 = vmatmul.mubr.bf16.gmra.mxu0 %v8286
      %v9501 = vpop.f32.mrf.mxu0
      %v9502 = vadd.f32 %v9309, %v9501
      %v9503 = vpop.f32.mrf.mxu0
      %v9504 = vadd.f32 %v9311, %v9503
      %v9505 = vpop.f32.mrf.mxu0
      %v9506 = vadd.f32 %v9313, %v9505
      %v9507 = vpop.f32.mrf.mxu0
      %v9508 = vadd.f32 %v9315, %v9507
      %9509 = vmatprep.mubr.bf16.mxu0 %v8291
      %9510 = vmatmul.mubr.bf16.gmra.mxu0 %v8290
      %v9511 = vpop.f32.mrf.mxu0
      %v9512 = vadd.f32 %v9319, %v9511
      %v9513 = vpop.f32.mrf.mxu0
      %v9514 = vadd.f32 %v9321, %v9513
      %v9515 = vpop.f32.mrf.mxu0
      %v9516 = vadd.f32 %v9323, %v9515
      %v9517 = vpop.f32.mrf.mxu0
      %v9518 = vadd.f32 %v9325, %v9517
      %9519 = vmatprep.mubr.bf16.mxu0 %v8295
      %9520 = vmatmul.mubr.bf16.gmra.mxu0 %v8294
      %v9521 = vpop.f32.mrf.mxu0
      %v9522 = vadd.f32 %v9329, %v9521
      %v9523 = vpop.f32.mrf.mxu0
      %v9524 = vadd.f32 %v9331, %v9523
      %v9525 = vpop.f32.mrf.mxu0
      %v9526 = vadd.f32 %v9333, %v9525
      %v9527 = vpop.f32.mrf.mxu0
      %v9528 = vadd.f32 %v9335, %v9527
      %9529 = vmatprep.mubr.bf16.mxu0 %v8299
      %9530 = vmatmul.mubr.bf16.gmra.mxu0 %v8298
      %v9531 = vpop.f32.mrf.mxu0
      %v9532 = vadd.f32 %v9339, %v9531
      %v9533 = vpop.f32.mrf.mxu0
      %v9534 = vadd.f32 %v9341, %v9533
      %v9535 = vpop.f32.mrf.mxu0
      %v9536 = vadd.f32 %v9343, %v9535
      %v9537 = vpop.f32.mrf.mxu0
      %v9538 = vadd.f32 %v9345, %v9537
      %9539 = vmatprep.mubr.bf16.mxu0 %v8303
      %9540 = vmatmul.mubr.bf16.gmra.mxu0 %v8302
      %v9541 = vpop.f32.mrf.mxu0
      %v9542 = vadd.f32 %v9349, %v9541
      %v9543 = vpop.f32.mrf.mxu0
      %v9544 = vadd.f32 %v9351, %v9543
      %v9545 = vpop.f32.mrf.mxu0
      %v9546 = vadd.f32 %v9353, %v9545
      %v9547 = vpop.f32.mrf.mxu0
      %v9548 = vadd.f32 %v9355, %v9547
      %9549 = vmatprep.mubr.bf16.mxu0 %v8307
      %9550 = vmatmul.mubr.bf16.gmra.mxu0 %v8306
      %v9551 = vpop.f32.mrf.mxu0
      %v9552 = vadd.f32 %v9359, %v9551
      %v9553 = vpop.f32.mrf.mxu0
      %v9554 = vadd.f32 %v9361, %v9553
      %v9555 = vpop.f32.mrf.mxu0
      %v9556 = vadd.f32 %v9363, %v9555
      %v9557 = vpop.f32.mrf.mxu0
      %v9558 = vadd.f32 %v9365, %v9557
      %9559 = vmatprep.mubr.bf16.mxu0 %v8311
      %9560 = vmatmul.mubr.bf16.gmra.mxu0 %v8310
      %v9561 = vpop.f32.mrf.mxu0
      %v9562 = vadd.f32 %v9369, %v9561
      %v9563 = vpop.f32.mrf.mxu0
      %v9564 = vadd.f32 %v9371, %v9563
      %v9565 = vpop.f32.mrf.mxu0
      %v9566 = vadd.f32 %v9373, %v9565
      %v9567 = vpop.f32.mrf.mxu0
      %v9568 = vadd.f32 %v9375, %v9567
      %9569 = vmatprep.mubr.bf16.mxu0 %v8315
      %9570 = vmatmul.mubr.bf16.gmra.mxu0 %v8314
      %v9571 = vpop.f32.mrf.mxu0
      %v9572 = vadd.f32 %v9379, %v9571
      %v9573 = vpop.f32.mrf.mxu0
      %v9574 = vadd.f32 %v9381, %v9573
      %v9575 = vpop.f32.mrf.mxu0
      %v9576 = vadd.f32 %v9383, %v9575
      %v9577 = vpop.f32.mrf.mxu0
      %v9578 = vadd.f32 %v9385, %v9577
      %9579 = vdwg.mxu0
      %v9580 = vmax.f32 %v9422, 0.0
      %v9581 = vmax.f32 %v9424, 0.0
      %v9582 = vmax.f32 %v9426, 0.0
      %v9583 = vmax.f32 %v9428, 0.0
      %v9584 = vmax.f32 %v9432, 0.0
      %v9585 = vmax.f32 %v9434, 0.0
      %v9586 = vmax.f32 %v9436, 0.0
      %v9587 = vmax.f32 %v9438, 0.0
      %v9588 = vmax.f32 %v9442, 0.0
      %v9589 = vmax.f32 %v9444, 0.0
      %v9590 = vmax.f32 %v9446, 0.0
      %v9591 = vmax.f32 %v9448, 0.0
      %v9592 = vmax.f32 %v9452, 0.0
      %v9593 = vmax.f32 %v9454, 0.0
      %v9594 = vmax.f32 %v9456, 0.0
      %v9595 = vmax.f32 %v9458, 0.0
      %v9596 = vmax.f32 %v9462, 0.0
      %v9597 = vmax.f32 %v9464, 0.0
      %v9598 = vmax.f32 %v9466, 0.0
      %v9599 = vmax.f32 %v9468, 0.0
      %v9600 = vmax.f32 %v9472, 0.0
      %v9601 = vmax.f32 %v9474, 0.0
      %v9602 = vmax.f32 %v9476, 0.0
      %v9603 = vmax.f32 %v9478, 0.0
      %v9604 = vmax.f32 %v9482, 0.0
      %v9605 = vmax.f32 %v9484, 0.0
      %v9606 = vmax.f32 %v9486, 0.0
      %v9607 = vmax.f32 %v9488, 0.0
      %v9608 = vmax.f32 %v9492, 0.0
      %v9609 = vmax.f32 %v9494, 0.0
      %v9610 = vmax.f32 %v9496, 0.0
      %v9611 = vmax.f32 %v9498, 0.0
      %v9612 = vmax.f32 %v9502, 0.0
      %v9613 = vmax.f32 %v9504, 0.0
      %v9614 = vmax.f32 %v9506, 0.0
      %v9615 = vmax.f32 %v9508, 0.0
      %v9616 = vmax.f32 %v9512, 0.0
      %v9617 = vmax.f32 %v9514, 0.0
      %v9618 = vmax.f32 %v9516, 0.0
      %v9619 = vmax.f32 %v9518, 0.0
      %v9620 = vmax.f32 %v9522, 0.0
      %v9621 = vmax.f32 %v9524, 0.0
      %v9622 = vmax.f32 %v9526, 0.0
      %v9623 = vmax.f32 %v9528, 0.0
      %v9624 = vmax.f32 %v9532, 0.0
      %v9625 = vmax.f32 %v9534, 0.0
      %v9626 = vmax.f32 %v9536, 0.0
      %v9627 = vmax.f32 %v9538, 0.0
      %v9628 = vmax.f32 %v9542, 0.0
      %v9629 = vmax.f32 %v9544, 0.0
      %v9630 = vmax.f32 %v9546, 0.0
      %v9631 = vmax.f32 %v9548, 0.0
      %v9632 = vmax.f32 %v9552, 0.0
      %v9633 = vmax.f32 %v9554, 0.0
      %v9634 = vmax.f32 %v9556, 0.0
      %v9635 = vmax.f32 %v9558, 0.0
      %v9636 = vmax.f32 %v9562, 0.0
      %v9637 = vmax.f32 %v9564, 0.0
      %v9638 = vmax.f32 %v9566, 0.0
      %v9639 = vmax.f32 %v9568, 0.0
      %v9640 = vmax.f32 %v9572, 0.0
      %v9641 = vmax.f32 %v9574, 0.0
      %v9642 = vmax.f32 %v9576, 0.0
      %v9643 = vmax.f32 %v9578, 0.0
      %v9644 = vpack.c.bf16 %v9582, %v9580
      %v9645 = vpack.c.bf16 %v9583, %v9581
      %v9646 = vpack.c.bf16 %v9586, %v9584
      %v9647 = vpack.c.bf16 %v9587, %v9585
      %v9648 = vpack.c.bf16 %v9590, %v9588
      %v9649 = vpack.c.bf16 %v9591, %v9589
      %v9650 = vpack.c.bf16 %v9594, %v9592
      %v9651 = vpack.c.bf16 %v9595, %v9593
      %v9652 = vpack.c.bf16 %v9598, %v9596
      %v9653 = vpack.c.bf16 %v9599, %v9597
      %v9654 = vpack.c.bf16 %v9602, %v9600
      %v9655 = vpack.c.bf16 %v9603, %v9601
      %v9656 = vpack.c.bf16 %v9606, %v9604
      %v9657 = vpack.c.bf16 %v9607, %v9605
      %v9658 = vpack.c.bf16 %v9610, %v9608
      %v9659 = vpack.c.bf16 %v9611, %v9609
      %v9660 = vpack.c.bf16 %v9614, %v9612
      %v9661 = vpack.c.bf16 %v9615, %v9613
      %v9662 = vpack.c.bf16 %v9618, %v9616
      %v9663 = vpack.c.bf16 %v9619, %v9617
      %v9664 = vpack.c.bf16 %v9622, %v9620
      %v9665 = vpack.c.bf16 %v9623, %v9621
      %v9666 = vpack.c.bf16 %v9626, %v9624
      %v9667 = vpack.c.bf16 %v9627, %v9625
      %v9668 = vpack.c.bf16 %v9630, %v9628
      %v9669 = vpack.c.bf16 %v9631, %v9629
      %v9670 = vpack.c.bf16 %v9634, %v9632
      %v9671 = vpack.c.bf16 %v9635, %v9633
      %v9672 = vpack.c.bf16 %v9638, %v9636
      %v9673 = vpack.c.bf16 %v9639, %v9637
      %v9674 = vpack.c.bf16 %v9642, %v9640
      %v9675 = vpack.c.bf16 %v9643, %v9641
      %v9676 = vld [vmem:[%s7] sm:$0xf]
      %v9677 = vld [vmem:[%s7 + $0x4] sm:$0xf]
      %v9678 = vld [vmem:[%s7 + $0x8] sm:$0xf]
      %v9679 = vld [vmem:[%s7 + $0xc] sm:$0xf]
      %v9680 = vld [vmem:[%s7 + $0x10] sm:$0xf]
      %v9681 = vld [vmem:[%s7 + $0x14] sm:$0xf]
      %v9682 = vld [vmem:[%s7 + $0x18] sm:$0xf]
      %v9683 = vld [vmem:[%s7 + $0x1c] sm:$0xf]
      %v9684 = vld [vmem:[%s7 + $0x20] sm:$0xf]
      %v9685 = vld [vmem:[%s7 + $0x24] sm:$0xf]
      %v9686 = vld [vmem:[%s7 + $0x28] sm:$0xf]
      %v9687 = vld [vmem:[%s7 + $0x2c] sm:$0xf]
      %v9688 = vld [vmem:[%s7 + $0x30] sm:$0xf]
      %v9689 = vld [vmem:[%s7 + $0x34] sm:$0xf]
      %v9690 = vld [vmem:[%s7 + $0x38] sm:$0xf]
      %v9691 = vld [vmem:[%s7 + $0x3c] sm:$0xf]
      %v9692 = vld [vmem:[%s7 + $0x40] sm:$0xf]
      %v9693 = vld [vmem:[%s7 + $0x44] sm:$0xf]
      %v9694 = vld [vmem:[%s7 + $0x48] sm:$0xf]
      %v9695 = vld [vmem:[%s7 + $0x4c] sm:$0xf]
      %v9696 = vld [vmem:[%s7 + $0x50] sm:$0xf]
      %v9697 = vld [vmem:[%s7 + $0x54] sm:$0xf]
      %v9698 = vld [vmem:[%s7 + $0x58] sm:$0xf]
      %v9699 = vld [vmem:[%s7 + $0x5c] sm:$0xf]
      %v9700 = vld [vmem:[%s7 + $0x60] sm:$0xf]
      %v9701 = vld [vmem:[%s7 + $0x64] sm:$0xf]
      %v9702 = vld [vmem:[%s7 + $0x68] sm:$0xf]
      %v9703 = vld [vmem:[%s7 + $0x6c] sm:$0xf]
      %v9704 = vld [vmem:[%s7 + $0x70] sm:$0xf]
      %v9705 = vld [vmem:[%s7 + $0x74] sm:$0xf]
      %v9706 = vld [vmem:[%s7 + $0x78] sm:$0xf]
      %v9707 = vld [vmem:[%s7 + $0x7c] sm:$0xf]
      %v9708 = vld [vmem:[%s8] sm:$0x1]
      %v9710 = vlaneseq
      %v9711 = vshrl.u32 %v9710, 7
      %v9712 = vsub.s32 0, %v9711
      %v9713 = vrot.slane %v9708, %v9712
      %v9747 = vunpack.c.l.b16 %v9676
      %v9748 = vunpack.c.l.b16 %v9677
      %v9749 = vunpack.c.l.b16 %v9678
      %v9750 = vunpack.c.l.b16 %v9679
      %v9751 = vunpack.c.l.b16 %v9680
      %v9752 = vunpack.c.l.b16 %v9681
      %v9753 = vunpack.c.l.b16 %v9682
      %v9754 = vunpack.c.l.b16 %v9683
      %v9755 = vunpack.c.l.b16 %v9684
      %v9756 = vunpack.c.l.b16 %v9685
      %v9757 = vunpack.c.l.b16 %v9686
      %v9758 = vunpack.c.l.b16 %v9687
      %v9759 = vunpack.c.l.b16 %v9688
      %v9760 = vunpack.c.l.b16 %v9689
      %v9761 = vunpack.c.l.b16 %v9690
      %v9762 = vunpack.c.l.b16 %v9691
      %v9763 = vunpack.c.l.b16 %v9692
      %v9764 = vunpack.c.l.b16 %v9693
      %v9765 = vunpack.c.l.b16 %v9694
      %v9766 = vunpack.c.l.b16 %v9695
      %v9767 = vunpack.c.l.b16 %v9696
      %v9768 = vunpack.c.l.b16 %v9697
      %v9769 = vunpack.c.l.b16 %v9698
      %v9770 = vunpack.c.l.b16 %v9699
      %v9771 = vunpack.c.l.b16 %v9700
      %v9772 = vunpack.c.l.b16 %v9701
      %v9773 = vunpack.c.l.b16 %v9702
      %v9774 = vunpack.c.l.b16 %v9703
      %v9775 = vunpack.c.l.b16 %v9704
      %v9776 = vunpack.c.l.b16 %v9705
      %v9777 = vunpack.c.l.b16 %v9706
      %v9778 = vunpack.c.l.b16 %v9707
      %v9779 = vpack.c.b16 %v9748, %v9747
      %v9780 = vpack.c.b16 %v9750, %v9749
      %v9781 = vpack.c.b16 %v9752, %v9751
      %v9782 = vpack.c.b16 %v9754, %v9753
      %v9783 = vpack.c.b16 %v9756, %v9755
      %v9784 = vpack.c.b16 %v9758, %v9757
      %v9785 = vpack.c.b16 %v9760, %v9759
      %v9786 = vpack.c.b16 %v9762, %v9761
      %v9787 = vpack.c.b16 %v9764, %v9763
      %v9788 = vpack.c.b16 %v9766, %v9765
      %v9789 = vpack.c.b16 %v9768, %v9767
      %v9790 = vpack.c.b16 %v9770, %v9769
      %v9791 = vpack.c.b16 %v9772, %v9771
      %v9792 = vpack.c.b16 %v9774, %v9773
      %v9793 = vpack.c.b16 %v9776, %v9775
      %v9794 = vpack.c.b16 %v9778, %v9777
      %9811 = vmatprep.subr.bf16.mxu0 0
      %9812 = vmatpush1.bf16.msra.mxu0 %v9786
      %9813 = vmatprep.subr.bf16.mxu0 0
      %9814 = vmatpush1.bf16.msra.mxu0 %v9785
      %9815 = vmatprep.subr.bf16.mxu0 0
      %9816 = vmatpush1.bf16.msra.mxu0 %v9784
      %9817 = vmatprep.subr.bf16.mxu0 0
      %9818 = vmatpush1.bf16.msra.mxu0 %v9783
      %9819 = vmatprep.subr.bf16.mxu0 0
      %9820 = vmatpush1.bf16.msra.mxu0 %v9782
      %9821 = vmatprep.subr.bf16.mxu0 0
      %9822 = vmatpush1.bf16.msra.mxu0 %v9781
      %9823 = vmatprep.subr.bf16.mxu0 0
      %9824 = vmatpush1.bf16.msra.mxu0 %v9780
      %9825 = vmatprep.subr.bf16.mxu0 0
      %9826 = vmatpush1.bf16.msra.mxu0 %v9779
      %9827 = vmatprep.subr.bf16.mxu0 0
      %9828 = vmatpush2.bf16.msra.mxu0 %v9794
      %9829 = vmatprep.subr.bf16.mxu0 0
      %9830 = vmatpush2.bf16.msra.mxu0 %v9793
      %9831 = vmatprep.subr.bf16.mxu0 0
      %9832 = vmatpush2.bf16.msra.mxu0 %v9792
      %9833 = vmatprep.subr.bf16.mxu0 0
      %9834 = vmatpush2.bf16.msra.mxu0 %v9791
      %9835 = vmatprep.subr.bf16.mxu0 0
      %9836 = vmatpush2.bf16.msra.mxu0 %v9790
      %9837 = vmatprep.subr.bf16.mxu0 0
      %9838 = vmatpush2.bf16.msra.mxu0 %v9789
      %9839 = vmatprep.subr.bf16.mxu0 0
      %9840 = vmatpush2.bf16.msra.mxu0 %v9788
      %9841 = vmatprep.subr.bf16.mxu0 0
      %9842 = vmatpush2.bf16.msra.mxu0 %v9787
      %9843 = vmatprep.mubr.bf16.mxu0 %v9163
      %9844 = vmatmul.mubr.bf16.gmra.mxu0 %v9162
      %v9845 = vpop.f32.mrf.mxu0
      %v9846 = vadd.f32 %v9713, %v9845
      %v9847 = vpop.f32.mrf.mxu0
      %v9848 = vpop.f32.mrf.mxu0
      %v9849 = vadd.f32 %v9713, %v9848
      %v9850 = vpop.f32.mrf.mxu0
      %9851 = vmatprep.mubr.bf16.mxu0 %v9165
      %9852 = vmatmul.mubr.bf16.gmra.mxu0 %v9164
      %v9853 = vpop.f32.mrf.mxu0
      %v9854 = vadd.f32 %v9713, %v9853
      %v9855 = vpop.f32.mrf.mxu0
      %v9856 = vpop.f32.mrf.mxu0
      %v9857 = vadd.f32 %v9713, %v9856
      %v9858 = vpop.f32.mrf.mxu0
      %9859 = vmatprep.mubr.bf16.mxu0 %v9167
      %9860 = vmatmul.mubr.bf16.gmra.mxu0 %v9166
      %v9861 = vpop.f32.mrf.mxu0
      %v9862 = vadd.f32 %v9713, %v9861
      %v9863 = vpop.f32.mrf.mxu0
      %v9864 = vpop.f32.mrf.mxu0
      %v9865 = vadd.f32 %v9713, %v9864
      %v9866 = vpop.f32.mrf.mxu0
      %9867 = vmatprep.mubr.bf16.mxu0 %v9169
      %9868 = vmatmul.mubr.bf16.gmra.mxu0 %v9168
      %v9869 = vpop.f32.mrf.mxu0
      %v9870 = vadd.f32 %v9713, %v9869
      %v9871 = vpop.f32.mrf.mxu0
      %v9872 = vpop.f32.mrf.mxu0
      %v9873 = vadd.f32 %v9713, %v9872
      %v9874 = vpop.f32.mrf.mxu0
      %9875 = vmatprep.mubr.bf16.mxu0 %v9171
      %9876 = vmatmul.mubr.bf16.gmra.mxu0 %v9170
      %v9877 = vpop.f32.mrf.mxu0
      %v9878 = vadd.f32 %v9713, %v9877
      %v9879 = vpop.f32.mrf.mxu0
      %v9880 = vpop.f32.mrf.mxu0
      %v9881 = vadd.f32 %v9713, %v9880
      %v9882 = vpop.f32.mrf.mxu0
      %9883 = vmatprep.mubr.bf16.mxu0 %v9173
      %9884 = vmatmul.mubr.bf16.gmra.mxu0 %v9172
      %v9885 = vpop.f32.mrf.mxu0
      %v9886 = vadd.f32 %v9713, %v9885
      %v9887 = vpop.f32.mrf.mxu0
      %v9888 = vpop.f32.mrf.mxu0
      %v9889 = vadd.f32 %v9713, %v9888
      %v9890 = vpop.f32.mrf.mxu0
      %9891 = vmatprep.mubr.bf16.mxu0 %v9175
      %9892 = vmatmul.mubr.bf16.gmra.mxu0 %v9174
      %v9893 = vpop.f32.mrf.mxu0
      %v9894 = vadd.f32 %v9713, %v9893
      %v9895 = vpop.f32.mrf.mxu0
      %v9896 = vpop.f32.mrf.mxu0
      %v9897 = vadd.f32 %v9713, %v9896
      %v9898 = vpop.f32.mrf.mxu0
      %9899 = vmatprep.mubr.bf16.mxu0 %v9177
      %9900 = vmatmul.mubr.bf16.gmra.mxu0 %v9176
      %v9901 = vpop.f32.mrf.mxu0
      %v9902 = vadd.f32 %v9713, %v9901
      %v9903 = vpop.f32.mrf.mxu0
      %v9904 = vpop.f32.mrf.mxu0
      %v9905 = vadd.f32 %v9713, %v9904
      %v9906 = vpop.f32.mrf.mxu0
      %9907 = vmatprep.mubr.bf16.mxu0 %v9179
      %9908 = vmatmul.mubr.bf16.gmra.mxu0 %v9178
      %v9909 = vpop.f32.mrf.mxu0
      %v9910 = vadd.f32 %v9713, %v9909
      %v9911 = vpop.f32.mrf.mxu0
      %v9912 = vpop.f32.mrf.mxu0
      %v9913 = vadd.f32 %v9713, %v9912
      %v9914 = vpop.f32.mrf.mxu0
      %9915 = vmatprep.mubr.bf16.mxu0 %v9181
      %9916 = vmatmul.mubr.bf16.gmra.mxu0 %v9180
      %v9917 = vpop.f32.mrf.mxu0
      %v9918 = vadd.f32 %v9713, %v9917
      %v9919 = vpop.f32.mrf.mxu0
      %v9920 = vpop.f32.mrf.mxu0
      %v9921 = vadd.f32 %v9713, %v9920
      %v9922 = vpop.f32.mrf.mxu0
      %9923 = vmatprep.mubr.bf16.mxu0 %v9183
      %9924 = vmatmul.mubr.bf16.gmra.mxu0 %v9182
      %v9925 = vpop.f32.mrf.mxu0
      %v9926 = vadd.f32 %v9713, %v9925
      %v9927 = vpop.f32.mrf.mxu0
      %v9928 = vpop.f32.mrf.mxu0
      %v9929 = vadd.f32 %v9713, %v9928
      %v9930 = vpop.f32.mrf.mxu0
      %9931 = vmatprep.mubr.bf16.mxu0 %v9185
      %9932 = vmatmul.mubr.bf16.gmra.mxu0 %v9184
      %v9933 = vpop.f32.mrf.mxu0
      %v9934 = vadd.f32 %v9713, %v9933
      %v9935 = vpop.f32.mrf.mxu0
      %v9936 = vpop.f32.mrf.mxu0
      %v9937 = vadd.f32 %v9713, %v9936
      %v9938 = vpop.f32.mrf.mxu0
      %9939 = vmatprep.mubr.bf16.mxu0 %v9187
      %9940 = vmatmul.mubr.bf16.gmra.mxu0 %v9186
      %v9941 = vpop.f32.mrf.mxu0
      %v9942 = vadd.f32 %v9713, %v9941
      %v9943 = vpop.f32.mrf.mxu0
      %v9944 = vpop.f32.mrf.mxu0
      %v9945 = vadd.f32 %v9713, %v9944
      %v9946 = vpop.f32.mrf.mxu0
      %9947 = vmatprep.mubr.bf16.mxu0 %v9189
      %9948 = vmatmul.mubr.bf16.gmra.mxu0 %v9188
      %v9949 = vpop.f32.mrf.mxu0
      %v9950 = vadd.f32 %v9713, %v9949
      %v9951 = vpop.f32.mrf.mxu0
      %v9952 = vpop.f32.mrf.mxu0
      %v9953 = vadd.f32 %v9713, %v9952
      %v9954 = vpop.f32.mrf.mxu0
      %9955 = vmatprep.mubr.bf16.mxu0 %v9191
      %9956 = vmatmul.mubr.bf16.gmra.mxu0 %v9190
      %v9957 = vpop.f32.mrf.mxu0
      %v9958 = vadd.f32 %v9713, %v9957
      %v9959 = vpop.f32.mrf.mxu0
      %v9960 = vpop.f32.mrf.mxu0
      %v9961 = vadd.f32 %v9713, %v9960
      %v9962 = vpop.f32.mrf.mxu0
      %9963 = vmatprep.mubr.bf16.mxu0 %v9193
      %9964 = vmatmul.mubr.bf16.gmra.mxu0 %v9192
      %v9965 = vpop.f32.mrf.mxu0
      %v9966 = vadd.f32 %v9713, %v9965
      %v9967 = vpop.f32.mrf.mxu0
      %v9968 = vpop.f32.mrf.mxu0
      %v9969 = vadd.f32 %v9713, %v9968
      %v9970 = vpop.f32.mrf.mxu0
      %9971 = vdwg.mxu0
      %v9972 = vmax.f32 %v9846, 0.0
      %v9973 = vmax.f32 %v9849, 0.0
      %v9974 = vmax.f32 %v9854, 0.0
      %v9975 = vmax.f32 %v9857, 0.0
      %v9976 = vmax.f32 %v9862, 0.0
      %v9977 = vmax.f32 %v9865, 0.0
      %v9978 = vmax.f32 %v9870, 0.0
      %v9979 = vmax.f32 %v9873, 0.0
      %v9980 = vmax.f32 %v9878, 0.0
      %v9981 = vmax.f32 %v9881, 0.0
      %v9982 = vmax.f32 %v9886, 0.0
      %v9983 = vmax.f32 %v9889, 0.0
      %v9984 = vmax.f32 %v9894, 0.0
      %v9985 = vmax.f32 %v9897, 0.0
      %v9986 = vmax.f32 %v9902, 0.0
      %v9987 = vmax.f32 %v9905, 0.0
      %v9988 = vmax.f32 %v9910, 0.0
      %v9989 = vmax.f32 %v9913, 0.0
      %v9990 = vmax.f32 %v9918, 0.0
      %v9991 = vmax.f32 %v9921, 0.0
      %v9992 = vmax.f32 %v9926, 0.0
      %v9993 = vmax.f32 %v9929, 0.0
      %v9994 = vmax.f32 %v9934, 0.0
      %v9995 = vmax.f32 %v9937, 0.0
      %v9996 = vmax.f32 %v9942, 0.0
      %v9997 = vmax.f32 %v9945, 0.0
      %v9998 = vmax.f32 %v9950, 0.0
      %v9999 = vmax.f32 %v9953, 0.0
      %v10000 = vmax.f32 %v9958, 0.0
      %v10001 = vmax.f32 %v9961, 0.0
      %v10002 = vmax.f32 %v9966, 0.0
      %v10003 = vmax.f32 %v9969, 0.0
      %v10004 = vpack.c.bf16 %v9973, %v9972
      %v10005 = vpack.c.bf16 %v9975, %v9974
      %v10006 = vpack.c.bf16 %v9977, %v9976
      %v10007 = vpack.c.bf16 %v9979, %v9978
      %v10008 = vpack.c.bf16 %v9981, %v9980
      %v10009 = vpack.c.bf16 %v9983, %v9982
      %v10010 = vpack.c.bf16 %v9985, %v9984
      %v10011 = vpack.c.bf16 %v9987, %v9986
      %v10012 = vpack.c.bf16 %v9989, %v9988
      %v10013 = vpack.c.bf16 %v9991, %v9990
      %v10014 = vpack.c.bf16 %v9993, %v9992
      %v10015 = vpack.c.bf16 %v9995, %v9994
      %v10016 = vpack.c.bf16 %v9997, %v9996
      %v10017 = vpack.c.bf16 %v9999, %v9998
      %v10018 = vpack.c.bf16 %v10001, %v10000
      %v10019 = vpack.c.bf16 %v10003, %v10002
      %10020 = vmatprep.subr.bf16.mxu0 0
      %10021 = vmatpush1.bf16.msra.mxu0 %v9786
      %10022 = vmatprep.subr.bf16.mxu0 0
      %10023 = vmatpush1.bf16.msra.mxu0 %v9785
      %10024 = vmatprep.subr.bf16.mxu0 0
      %10025 = vmatpush1.bf16.msra.mxu0 %v9784
      %10026 = vmatprep.subr.bf16.mxu0 0
      %10027 = vmatpush1.bf16.msra.mxu0 %v9783
      %10028 = vmatprep.subr.bf16.mxu0 0
      %10029 = vmatpush1.bf16.msra.mxu0 %v9782
      %10030 = vmatprep.subr.bf16.mxu0 0
      %10031 = vmatpush1.bf16.msra.mxu0 %v9781
      %10032 = vmatprep.subr.bf16.mxu0 0
      %10033 = vmatpush1.bf16.msra.mxu0 %v9780
      %10034 = vmatprep.subr.bf16.mxu0 0
      %10035 = vmatpush1.bf16.msra.mxu0 %v9779
      %10036 = vmatprep.subr.bf16.mxu0 0
      %10037 = vmatpush2.bf16.msra.mxu0 %v9794
      %10038 = vmatprep.subr.bf16.mxu0 0
      %10039 = vmatpush2.bf16.msra.mxu0 %v9793
      %10040 = vmatprep.subr.bf16.mxu0 0
      %10041 = vmatpush2.bf16.msra.mxu0 %v9792
      %10042 = vmatprep.subr.bf16.mxu0 0
      %10043 = vmatpush2.bf16.msra.mxu0 %v9791
      %10044 = vmatprep.subr.bf16.mxu0 0
      %10045 = vmatpush2.bf16.msra.mxu0 %v9790
      %10046 = vmatprep.subr.bf16.mxu0 0
      %10047 = vmatpush2.bf16.msra.mxu0 %v9789
      %10048 = vmatprep.subr.bf16.mxu0 0
      %10049 = vmatpush2.bf16.msra.mxu0 %v9788
      %10050 = vmatprep.subr.bf16.mxu0 0
      %10051 = vmatpush2.bf16.msra.mxu0 %v9787
      %10052 = vmatprep.mubr.bf16.mxu0 %v9645
      %10053 = vmatmul.mubr.bf16.gmra.mxu0 %v9644
      %v10054 = vpop.f32.mrf.mxu0
      %v10055 = vadd.f32 %v9713, %v10054
      %v10056 = vpop.f32.mrf.mxu0
      %v10057 = vpop.f32.mrf.mxu0
      %v10058 = vadd.f32 %v9713, %v10057
      %v10059 = vpop.f32.mrf.mxu0
      %10060 = vmatprep.mubr.bf16.mxu0 %v9647
      %10061 = vmatmul.mubr.bf16.gmra.mxu0 %v9646
      %v10062 = vpop.f32.mrf.mxu0
      %v10063 = vadd.f32 %v9713, %v10062
      %v10064 = vpop.f32.mrf.mxu0
      %v10065 = vpop.f32.mrf.mxu0
      %v10066 = vadd.f32 %v9713, %v10065
      %v10067 = vpop.f32.mrf.mxu0
      %10068 = vmatprep.mubr.bf16.mxu0 %v9649
      %10069 = vmatmul.mubr.bf16.gmra.mxu0 %v9648
      %v10070 = vpop.f32.mrf.mxu0
      %v10071 = vadd.f32 %v9713, %v10070
      %v10072 = vpop.f32.mrf.mxu0
      %v10073 = vpop.f32.mrf.mxu0
      %v10074 = vadd.f32 %v9713, %v10073
      %v10075 = vpop.f32.mrf.mxu0
      %10076 = vmatprep.mubr.bf16.mxu0 %v9651
      %10077 = vmatmul.mubr.bf16.gmra.mxu0 %v9650
      %v10078 = vpop.f32.mrf.mxu0
      %v10079 = vadd.f32 %v9713, %v10078
      %v10080 = vpop.f32.mrf.mxu0
      %v10081 = vpop.f32.mrf.mxu0
      %v10082 = vadd.f32 %v9713, %v10081
      %v10083 = vpop.f32.mrf.mxu0
      %10084 = vmatprep.mubr.bf16.mxu0 %v9653
      %10085 = vmatmul.mubr.bf16.gmra.mxu0 %v9652
      %v10086 = vpop.f32.mrf.mxu0
      %v10087 = vadd.f32 %v9713, %v10086
      %v10088 = vpop.f32.mrf.mxu0
      %v10089 = vpop.f32.mrf.mxu0
      %v10090 = vadd.f32 %v9713, %v10089
      %v10091 = vpop.f32.mrf.mxu0
      %10092 = vmatprep.mubr.bf16.mxu0 %v9655
      %10093 = vmatmul.mubr.bf16.gmra.mxu0 %v9654
      %v10094 = vpop.f32.mrf.mxu0
      %v10095 = vadd.f32 %v9713, %v10094
      %v10096 = vpop.f32.mrf.mxu0
      %v10097 = vpop.f32.mrf.mxu0
      %v10098 = vadd.f32 %v9713, %v10097
      %v10099 = vpop.f32.mrf.mxu0
      %10100 = vmatprep.mubr.bf16.mxu0 %v9657
      %10101 = vmatmul.mubr.bf16.gmra.mxu0 %v9656
      %v10102 = vpop.f32.mrf.mxu0
      %v10103 = vadd.f32 %v9713, %v10102
      %v10104 = vpop.f32.mrf.mxu0
      %v10105 = vpop.f32.mrf.mxu0
      %v10106 = vadd.f32 %v9713, %v10105
      %v10107 = vpop.f32.mrf.mxu0
      %10108 = vmatprep.mubr.bf16.mxu0 %v9659
      %10109 = vmatmul.mubr.bf16.gmra.mxu0 %v9658
      %v10110 = vpop.f32.mrf.mxu0
      %v10111 = vadd.f32 %v9713, %v10110
      %v10112 = vpop.f32.mrf.mxu0
      %v10113 = vpop.f32.mrf.mxu0
      %v10114 = vadd.f32 %v9713, %v10113
      %v10115 = vpop.f32.mrf.mxu0
      %10116 = vmatprep.mubr.bf16.mxu0 %v9661
      %10117 = vmatmul.mubr.bf16.gmra.mxu0 %v9660
      %v10118 = vpop.f32.mrf.mxu0
      %v10119 = vadd.f32 %v9713, %v10118
      %v10120 = vpop.f32.mrf.mxu0
      %v10121 = vpop.f32.mrf.mxu0
      %v10122 = vadd.f32 %v9713, %v10121
      %v10123 = vpop.f32.mrf.mxu0
      %10124 = vmatprep.mubr.bf16.mxu0 %v9663
      %10125 = vmatmul.mubr.bf16.gmra.mxu0 %v9662
      %v10126 = vpop.f32.mrf.mxu0
      %v10127 = vadd.f32 %v9713, %v10126
      %v10128 = vpop.f32.mrf.mxu0
      %v10129 = vpop.f32.mrf.mxu0
      %v10130 = vadd.f32 %v9713, %v10129
      %v10131 = vpop.f32.mrf.mxu0
      %10132 = vmatprep.mubr.bf16.mxu0 %v9665
      %10133 = vmatmul.mubr.bf16.gmra.mxu0 %v9664
      %v10134 = vpop.f32.mrf.mxu0
      %v10135 = vadd.f32 %v9713, %v10134
      %v10136 = vpop.f32.mrf.mxu0
      %v10137 = vpop.f32.mrf.mxu0
      %v10138 = vadd.f32 %v9713, %v10137
      %v10139 = vpop.f32.mrf.mxu0
      %10140 = vmatprep.mubr.bf16.mxu0 %v9667
      %10141 = vmatmul.mubr.bf16.gmra.mxu0 %v9666
      %v10142 = vpop.f32.mrf.mxu0
      %v10143 = vadd.f32 %v9713, %v10142
      %v10144 = vpop.f32.mrf.mxu0
      %v10145 = vpop.f32.mrf.mxu0
      %v10146 = vadd.f32 %v9713, %v10145
      %v10147 = vpop.f32.mrf.mxu0
      %10148 = vmatprep.mubr.bf16.mxu0 %v9669
      %10149 = vmatmul.mubr.bf16.gmra.mxu0 %v9668
      %v10150 = vpop.f32.mrf.mxu0
      %v10151 = vadd.f32 %v9713, %v10150
      %v10152 = vpop.f32.mrf.mxu0
      %v10153 = vpop.f32.mrf.mxu0
      %v10154 = vadd.f32 %v9713, %v10153
      %v10155 = vpop.f32.mrf.mxu0
      %10156 = vmatprep.mubr.bf16.mxu0 %v9671
      %10157 = vmatmul.mubr.bf16.gmra.mxu0 %v9670
      %v10158 = vpop.f32.mrf.mxu0
      %v10159 = vadd.f32 %v9713, %v10158
      %v10160 = vpop.f32.mrf.mxu0
      %v10161 = vpop.f32.mrf.mxu0
      %v10162 = vadd.f32 %v9713, %v10161
      %v10163 = vpop.f32.mrf.mxu0
      %10164 = vmatprep.mubr.bf16.mxu0 %v9673
      %10165 = vmatmul.mubr.bf16.gmra.mxu0 %v9672
      %v10166 = vpop.f32.mrf.mxu0
      %v10167 = vadd.f32 %v9713, %v10166
      %v10168 = vpop.f32.mrf.mxu0
      %v10169 = vpop.f32.mrf.mxu0
      %v10170 = vadd.f32 %v9713, %v10169
      %v10171 = vpop.f32.mrf.mxu0
      %10172 = vmatprep.mubr.bf16.mxu0 %v9675
      %10173 = vmatmul.mubr.bf16.gmra.mxu0 %v9674
      %v10174 = vpop.f32.mrf.mxu0
      %v10175 = vadd.f32 %v9713, %v10174
      %v10176 = vpop.f32.mrf.mxu0
      %v10177 = vpop.f32.mrf.mxu0
      %v10178 = vadd.f32 %v9713, %v10177
      %v10179 = vpop.f32.mrf.mxu0
      %10180 = vdwg.mxu0
      %v10181 = vmax.f32 %v10055, 0.0
      %v10182 = vmax.f32 %v10058, 0.0
      %v10183 = vmax.f32 %v10063, 0.0
      %v10184 = vmax.f32 %v10066, 0.0
      %v10185 = vmax.f32 %v10071, 0.0
      %v10186 = vmax.f32 %v10074, 0.0
      %v10187 = vmax.f32 %v10079, 0.0
      %v10188 = vmax.f32 %v10082, 0.0
      %v10189 = vmax.f32 %v10087, 0.0
      %v10190 = vmax.f32 %v10090, 0.0
      %v10191 = vmax.f32 %v10095, 0.0
      %v10192 = vmax.f32 %v10098, 0.0
      %v10193 = vmax.f32 %v10103, 0.0
      %v10194 = vmax.f32 %v10106, 0.0
      %v10195 = vmax.f32 %v10111, 0.0
      %v10196 = vmax.f32 %v10114, 0.0
      %v10197 = vmax.f32 %v10119, 0.0
      %v10198 = vmax.f32 %v10122, 0.0
      %v10199 = vmax.f32 %v10127, 0.0
      %v10200 = vmax.f32 %v10130, 0.0
      %v10201 = vmax.f32 %v10135, 0.0
      %v10202 = vmax.f32 %v10138, 0.0
      %v10203 = vmax.f32 %v10143, 0.0
      %v10204 = vmax.f32 %v10146, 0.0
      %v10205 = vmax.f32 %v10151, 0.0
      %v10206 = vmax.f32 %v10154, 0.0
      %v10207 = vmax.f32 %v10159, 0.0
      %v10208 = vmax.f32 %v10162, 0.0
      %v10209 = vmax.f32 %v10167, 0.0
      %v10210 = vmax.f32 %v10170, 0.0
      %v10211 = vmax.f32 %v10175, 0.0
      %v10212 = vmax.f32 %v10178, 0.0
      %v10213 = vpack.c.bf16 %v10182, %v10181
      %v10214 = vpack.c.bf16 %v10184, %v10183
      %v10215 = vpack.c.bf16 %v10186, %v10185
      %v10216 = vpack.c.bf16 %v10188, %v10187
      %v10217 = vpack.c.bf16 %v10190, %v10189
      %v10218 = vpack.c.bf16 %v10192, %v10191
      %v10219 = vpack.c.bf16 %v10194, %v10193
      %v10220 = vpack.c.bf16 %v10196, %v10195
      %v10221 = vpack.c.bf16 %v10198, %v10197
      %v10222 = vpack.c.bf16 %v10200, %v10199
      %v10223 = vpack.c.bf16 %v10202, %v10201
      %v10224 = vpack.c.bf16 %v10204, %v10203
      %v10225 = vpack.c.bf16 %v10206, %v10205
      %v10226 = vpack.c.bf16 %v10208, %v10207
      %v10227 = vpack.c.bf16 %v10210, %v10209
      %v10228 = vpack.c.bf16 %v10212, %v10211
      %v10229 = vld [vmem:[%s9] sm:$0xf]
      %v10230 = vld [vmem:[%s9 + $0x4] sm:$0xf]
      %v10231 = vld [vmem:[%s9 + $0x8] sm:$0xf]
      %v10232 = vld [vmem:[%s9 + $0xc] sm:$0xf]
      %v10233 = vld [vmem:[%s9 + $0x10] sm:$0xf]
      %v10234 = vld [vmem:[%s9 + $0x14] sm:$0xf]
      %v10235 = vld [vmem:[%s9 + $0x18] sm:$0xf]
      %v10236 = vld [vmem:[%s9 + $0x1c] sm:$0xf]
      %v10237 = vld [vmem:[%s9 + $0x20] sm:$0xf]
      %v10238 = vld [vmem:[%s9 + $0x24] sm:$0xf]
      %v10239 = vld [vmem:[%s9 + $0x28] sm:$0xf]
      %v10240 = vld [vmem:[%s9 + $0x2c] sm:$0xf]
      %v10241 = vld [vmem:[%s9 + $0x30] sm:$0xf]
      %v10242 = vld [vmem:[%s9 + $0x34] sm:$0xf]
      %v10243 = vld [vmem:[%s9 + $0x38] sm:$0xf]
      %v10244 = vld [vmem:[%s9 + $0x3c] sm:$0xf]
      %v10245 = vld [vmem:[%s10] sm:$0x1]
      %v10247 = vlaneseq
      %v10248 = vshrl.u32 %v10247, 7
      %v10249 = vsub.s32 0, %v10248
      %v10250 = vrot.slane %v10245, %v10249
      %v10268 = vunpack.c.l.b16 %v10229
      %v10269 = vunpack.c.l.b16 %v10230
      %v10270 = vunpack.c.l.b16 %v10231
      %v10271 = vunpack.c.l.b16 %v10232
      %v10272 = vunpack.c.l.b16 %v10233
      %v10273 = vunpack.c.l.b16 %v10234
      %v10274 = vunpack.c.l.b16 %v10235
      %v10275 = vunpack.c.l.b16 %v10236
      %v10276 = vunpack.c.l.b16 %v10237
      %v10277 = vunpack.c.l.b16 %v10238
      %v10278 = vunpack.c.l.b16 %v10239
      %v10279 = vunpack.c.l.b16 %v10240
      %v10280 = vunpack.c.l.b16 %v10241
      %v10281 = vunpack.c.l.b16 %v10242
      %v10282 = vunpack.c.l.b16 %v10243
      %v10283 = vunpack.c.l.b16 %v10244
      %v10284 = vpack.c.b16 %v10269, %v10268
      %v10285 = vpack.c.b16 %v10271, %v10270
      %v10286 = vpack.c.b16 %v10273, %v10272
      %v10287 = vpack.c.b16 %v10275, %v10274
      %v10288 = vpack.c.b16 %v10277, %v10276
      %v10289 = vpack.c.b16 %v10279, %v10278
      %v10290 = vpack.c.b16 %v10281, %v10280
      %v10291 = vpack.c.b16 %v10283, %v10282
      %10300 = vmatprep.subr.bf16.mxu0 0
      %10301 = vmatpush1.bf16.msra.mxu0 %v10291
      %10302 = vmatprep.subr.bf16.mxu0 0
      %10303 = vmatpush1.bf16.msra.mxu0 %v10290
      %10304 = vmatprep.subr.bf16.mxu0 0
      %10305 = vmatpush1.bf16.msra.mxu0 %v10289
      %10306 = vmatprep.subr.bf16.mxu0 0
      %10307 = vmatpush1.bf16.msra.mxu0 %v10288
      %10308 = vmatprep.subr.bf16.mxu0 0
      %10309 = vmatpush1.bf16.msra.mxu0 %v10287
      %10310 = vmatprep.subr.bf16.mxu0 0
      %10311 = vmatpush1.bf16.msra.mxu0 %v10286
      %10312 = vmatprep.subr.bf16.mxu0 0
      %10313 = vmatpush1.bf16.msra.mxu0 %v10285
      %10314 = vmatprep.subr.bf16.mxu0 0
      %10315 = vmatpush1.bf16.msra.mxu0 %v10284
      %10316 = vmatprep.subr.bf16.mxu0 0
      %10317 = vmatpush2.bf16.msra.mxu0 0
      %10318 = vmatprep.subr.bf16.mxu0 0
      %10319 = vmatpush2.bf16.msra.mxu0 0
      %10320 = vmatprep.subr.bf16.mxu0 0
      %10321 = vmatpush2.bf16.msra.mxu0 0
      %10322 = vmatprep.subr.bf16.mxu0 0
      %10323 = vmatpush2.bf16.msra.mxu0 0
      %10324 = vmatprep.subr.bf16.mxu0 0
      %10325 = vmatpush2.bf16.msra.mxu0 0
      %10326 = vmatprep.subr.bf16.mxu0 0
      %10327 = vmatpush2.bf16.msra.mxu0 0
      %10328 = vmatprep.subr.bf16.mxu0 0
      %10329 = vmatpush2.bf16.msra.mxu0 0
      %10330 = vmatprep.subr.bf16.mxu0 0
      %10331 = vmatpush2.bf16.msra.mxu0 0
      %10332 = vmatprep.mubr.bf16.mxu0 0
      %10333 = vmatmul.mubr.bf16.gmra.mxu0 %v10004
      %v10334 = vpop.f32.mrf.mxu0
      %v10335 = vadd.f32 %v10250, %v10334
      %v10336 = vpop.f32.mrf.mxu0
      %v10337 = vpop.f32.mrf.mxu0
      %v10338 = vadd.f32 %v10250, %v10337
      %v10339 = vpop.f32.mrf.mxu0
      %10340 = vmatprep.mubr.bf16.mxu0 0
      %10341 = vmatmul.mubr.bf16.gmra.mxu0 %v10005
      %v10342 = vpop.f32.mrf.mxu0
      %v10343 = vadd.f32 %v10250, %v10342
      %v10344 = vpop.f32.mrf.mxu0
      %v10345 = vpop.f32.mrf.mxu0
      %v10346 = vadd.f32 %v10250, %v10345
      %v10347 = vpop.f32.mrf.mxu0
      %10348 = vmatprep.mubr.bf16.mxu0 0
      %10349 = vmatmul.mubr.bf16.gmra.mxu0 %v10006
      %v10350 = vpop.f32.mrf.mxu0
      %v10351 = vadd.f32 %v10250, %v10350
      %v10352 = vpop.f32.mrf.mxu0
      %v10353 = vpop.f32.mrf.mxu0
      %v10354 = vadd.f32 %v10250, %v10353
      %v10355 = vpop.f32.mrf.mxu0
      %10356 = vmatprep.mubr.bf16.mxu0 0
      %10357 = vmatmul.mubr.bf16.gmra.mxu0 %v10007
      %v10358 = vpop.f32.mrf.mxu0
      %v10359 = vadd.f32 %v10250, %v10358
      %v10360 = vpop.f32.mrf.mxu0
      %v10361 = vpop.f32.mrf.mxu0
      %v10362 = vadd.f32 %v10250, %v10361
      %v10363 = vpop.f32.mrf.mxu0
      %10364 = vmatprep.mubr.bf16.mxu0 0
      %10365 = vmatmul.mubr.bf16.gmra.mxu0 %v10008
      %v10366 = vpop.f32.mrf.mxu0
      %v10367 = vadd.f32 %v10250, %v10366
      %v10368 = vpop.f32.mrf.mxu0
      %v10369 = vpop.f32.mrf.mxu0
      %v10370 = vadd.f32 %v10250, %v10369
      %v10371 = vpop.f32.mrf.mxu0
      %10372 = vmatprep.mubr.bf16.mxu0 0
      %10373 = vmatmul.mubr.bf16.gmra.mxu0 %v10009
      %v10374 = vpop.f32.mrf.mxu0
      %v10375 = vadd.f32 %v10250, %v10374
      %v10376 = vpop.f32.mrf.mxu0
      %v10377 = vpop.f32.mrf.mxu0
      %v10378 = vadd.f32 %v10250, %v10377
      %v10379 = vpop.f32.mrf.mxu0
      %10380 = vmatprep.mubr.bf16.mxu0 0
      %10381 = vmatmul.mubr.bf16.gmra.mxu0 %v10010
      %v10382 = vpop.f32.mrf.mxu0
      %v10383 = vadd.f32 %v10250, %v10382
      %v10384 = vpop.f32.mrf.mxu0
      %v10385 = vpop.f32.mrf.mxu0
      %v10386 = vadd.f32 %v10250, %v10385
      %v10387 = vpop.f32.mrf.mxu0
      %10388 = vmatprep.mubr.bf16.mxu0 0
      %10389 = vmatmul.mubr.bf16.gmra.mxu0 %v10011
      %v10390 = vpop.f32.mrf.mxu0
      %v10391 = vadd.f32 %v10250, %v10390
      %v10392 = vpop.f32.mrf.mxu0
      %v10393 = vpop.f32.mrf.mxu0
      %v10394 = vadd.f32 %v10250, %v10393
      %v10395 = vpop.f32.mrf.mxu0
      %10396 = vmatprep.mubr.bf16.mxu0 0
      %10397 = vmatmul.mubr.bf16.gmra.mxu0 %v10012
      %v10398 = vpop.f32.mrf.mxu0
      %v10399 = vadd.f32 %v10250, %v10398
      %v10400 = vpop.f32.mrf.mxu0
      %v10401 = vpop.f32.mrf.mxu0
      %v10402 = vadd.f32 %v10250, %v10401
      %v10403 = vpop.f32.mrf.mxu0
      %10404 = vmatprep.mubr.bf16.mxu0 0
      %10405 = vmatmul.mubr.bf16.gmra.mxu0 %v10013
      %v10406 = vpop.f32.mrf.mxu0
      %v10407 = vadd.f32 %v10250, %v10406
      %v10408 = vpop.f32.mrf.mxu0
      %v10409 = vpop.f32.mrf.mxu0
      %v10410 = vadd.f32 %v10250, %v10409
      %v10411 = vpop.f32.mrf.mxu0
      %10412 = vmatprep.mubr.bf16.mxu0 0
      %10413 = vmatmul.mubr.bf16.gmra.mxu0 %v10014
      %v10414 = vpop.f32.mrf.mxu0
      %v10415 = vadd.f32 %v10250, %v10414
      %v10416 = vpop.f32.mrf.mxu0
      %v10417 = vpop.f32.mrf.mxu0
      %v10418 = vadd.f32 %v10250, %v10417
      %v10419 = vpop.f32.mrf.mxu0
      %10420 = vmatprep.mubr.bf16.mxu0 0
      %10421 = vmatmul.mubr.bf16.gmra.mxu0 %v10015
      %v10422 = vpop.f32.mrf.mxu0
      %v10423 = vadd.f32 %v10250, %v10422
      %v10424 = vpop.f32.mrf.mxu0
      %v10425 = vpop.f32.mrf.mxu0
      %v10426 = vadd.f32 %v10250, %v10425
      %v10427 = vpop.f32.mrf.mxu0
      %10428 = vmatprep.mubr.bf16.mxu0 0
      %10429 = vmatmul.mubr.bf16.gmra.mxu0 %v10016
      %v10430 = vpop.f32.mrf.mxu0
      %v10431 = vadd.f32 %v10250, %v10430
      %v10432 = vpop.f32.mrf.mxu0
      %v10433 = vpop.f32.mrf.mxu0
      %v10434 = vadd.f32 %v10250, %v10433
      %v10435 = vpop.f32.mrf.mxu0
      %10436 = vmatprep.mubr.bf16.mxu0 0
      %10437 = vmatmul.mubr.bf16.gmra.mxu0 %v10017
      %v10438 = vpop.f32.mrf.mxu0
      %v10439 = vadd.f32 %v10250, %v10438
      %v10440 = vpop.f32.mrf.mxu0
      %v10441 = vpop.f32.mrf.mxu0
      %v10442 = vadd.f32 %v10250, %v10441
      %v10443 = vpop.f32.mrf.mxu0
      %10444 = vmatprep.mubr.bf16.mxu0 0
      %10445 = vmatmul.mubr.bf16.gmra.mxu0 %v10018
      %v10446 = vpop.f32.mrf.mxu0
      %v10447 = vadd.f32 %v10250, %v10446
      %v10448 = vpop.f32.mrf.mxu0
      %v10449 = vpop.f32.mrf.mxu0
      %v10450 = vadd.f32 %v10250, %v10449
      %v10451 = vpop.f32.mrf.mxu0
      %10452 = vmatprep.mubr.bf16.mxu0 0
      %10453 = vmatmul.mubr.bf16.gmra.mxu0 %v10019
      %v10454 = vpop.f32.mrf.mxu0
      %v10455 = vadd.f32 %v10250, %v10454
      %v10456 = vpop.f32.mrf.mxu0
      %v10457 = vpop.f32.mrf.mxu0
      %v10458 = vadd.f32 %v10250, %v10457
      %v10459 = vpop.f32.mrf.mxu0
      %10460 = vdwg.mxu0
      %v10461 = vmax.f32 %v10335, 0.0
      %v10462 = vmax.f32 %v10338, 0.0
      %v10463 = vmax.f32 %v10343, 0.0
      %v10464 = vmax.f32 %v10346, 0.0
      %v10465 = vmax.f32 %v10351, 0.0
      %v10466 = vmax.f32 %v10354, 0.0
      %v10467 = vmax.f32 %v10359, 0.0
      %v10468 = vmax.f32 %v10362, 0.0
      %v10469 = vmax.f32 %v10367, 0.0
      %v10470 = vmax.f32 %v10370, 0.0
      %v10471 = vmax.f32 %v10375, 0.0
      %v10472 = vmax.f32 %v10378, 0.0
      %v10473 = vmax.f32 %v10383, 0.0
      %v10474 = vmax.f32 %v10386, 0.0
      %v10475 = vmax.f32 %v10391, 0.0
      %v10476 = vmax.f32 %v10394, 0.0
      %v10477 = vmax.f32 %v10399, 0.0
      %v10478 = vmax.f32 %v10402, 0.0
      %v10479 = vmax.f32 %v10407, 0.0
      %v10480 = vmax.f32 %v10410, 0.0
      %v10481 = vmax.f32 %v10415, 0.0
      %v10482 = vmax.f32 %v10418, 0.0
      %v10483 = vmax.f32 %v10423, 0.0
      %v10484 = vmax.f32 %v10426, 0.0
      %v10485 = vmax.f32 %v10431, 0.0
      %v10486 = vmax.f32 %v10434, 0.0
      %v10487 = vmax.f32 %v10439, 0.0
      %v10488 = vmax.f32 %v10442, 0.0
      %v10489 = vmax.f32 %v10447, 0.0
      %v10490 = vmax.f32 %v10450, 0.0
      %v10491 = vmax.f32 %v10455, 0.0
      %v10492 = vmax.f32 %v10458, 0.0
      %v10493 = vpack.c.bf16 %v10462, %v10461
      %v10494 = vpack.c.bf16 %v10464, %v10463
      %v10495 = vpack.c.bf16 %v10466, %v10465
      %v10496 = vpack.c.bf16 %v10468, %v10467
      %v10497 = vpack.c.bf16 %v10470, %v10469
      %v10498 = vpack.c.bf16 %v10472, %v10471
      %v10499 = vpack.c.bf16 %v10474, %v10473
      %v10500 = vpack.c.bf16 %v10476, %v10475
      %v10501 = vpack.c.bf16 %v10478, %v10477
      %v10502 = vpack.c.bf16 %v10480, %v10479
      %v10503 = vpack.c.bf16 %v10482, %v10481
      %v10504 = vpack.c.bf16 %v10484, %v10483
      %v10505 = vpack.c.bf16 %v10486, %v10485
      %v10506 = vpack.c.bf16 %v10488, %v10487
      %v10507 = vpack.c.bf16 %v10490, %v10489
      %v10508 = vpack.c.bf16 %v10492, %v10491
      %10509 = vmatprep.subr.bf16.mxu0 0
      %10510 = vmatpush1.bf16.msra.mxu0 %v10291
      %10511 = vmatprep.subr.bf16.mxu0 0
      %10512 = vmatpush1.bf16.msra.mxu0 %v10290
      %10513 = vmatprep.subr.bf16.mxu0 0
      %10514 = vmatpush1.bf16.msra.mxu0 %v10289
      %10515 = vmatprep.subr.bf16.mxu0 0
      %10516 = vmatpush1.bf16.msra.mxu0 %v10288
      %10517 = vmatprep.subr.bf16.mxu0 0
      %10518 = vmatpush1.bf16.msra.mxu0 %v10287
      %10519 = vmatprep.subr.bf16.mxu0 0
      %10520 = vmatpush1.bf16.msra.mxu0 %v10286
      %10521 = vmatprep.subr.bf16.mxu0 0
      %10522 = vmatpush1.bf16.msra.mxu0 %v10285
      %10523 = vmatprep.subr.bf16.mxu0 0
      %10524 = vmatpush1.bf16.msra.mxu0 %v10284
      %10525 = vmatprep.subr.bf16.mxu0 0
      %10526 = vmatpush2.bf16.msra.mxu0 0
      %10527 = vmatprep.subr.bf16.mxu0 0
      %10528 = vmatpush2.bf16.msra.mxu0 0
      %10529 = vmatprep.subr.bf16.mxu0 0
      %10530 = vmatpush2.bf16.msra.mxu0 0
      %10531 = vmatprep.subr.bf16.mxu0 0
      %10532 = vmatpush2.bf16.msra.mxu0 0
      %10533 = vmatprep.subr.bf16.mxu0 0
      %10534 = vmatpush2.bf16.msra.mxu0 0
      %10535 = vmatprep.subr.bf16.mxu0 0
      %10536 = vmatpush2.bf16.msra.mxu0 0
      %10537 = vmatprep.subr.bf16.mxu0 0
      %10538 = vmatpush2.bf16.msra.mxu0 0
      %10539 = vmatprep.subr.bf16.mxu0 0
      %10540 = vmatpush2.bf16.msra.mxu0 0
      %10541 = vmatprep.mubr.bf16.mxu0 0
      %10542 = vmatmul.mubr.bf16.gmra.mxu0 %v10213
      %v10543 = vpop.f32.mrf.mxu0
      %v10544 = vadd.f32 %v10250, %v10543
      %v10545 = vpop.f32.mrf.mxu0
      %v10546 = vpop.f32.mrf.mxu0
      %v10547 = vadd.f32 %v10250, %v10546
      %v10548 = vpop.f32.mrf.mxu0
      %10549 = vmatprep.mubr.bf16.mxu0 0
      %10550 = vmatmul.mubr.bf16.gmra.mxu0 %v10214
      %v10551 = vpop.f32.mrf.mxu0
      %v10552 = vadd.f32 %v10250, %v10551
      %v10553 = vpop.f32.mrf.mxu0
      %v10554 = vpop.f32.mrf.mxu0
      %v10555 = vadd.f32 %v10250, %v10554
      %v10556 = vpop.f32.mrf.mxu0
      %10557 = vmatprep.mubr.bf16.mxu0 0
      %10558 = vmatmul.mubr.bf16.gmra.mxu0 %v10215
      %v10559 = vpop.f32.mrf.mxu0
      %v10560 = vadd.f32 %v10250, %v10559
      %v10561 = vpop.f32.mrf.mxu0
      %v10562 = vpop.f32.mrf.mxu0
      %v10563 = vadd.f32 %v10250, %v10562
      %v10564 = vpop.f32.mrf.mxu0
      %10565 = vmatprep.mubr.bf16.mxu0 0
      %10566 = vmatmul.mubr.bf16.gmra.mxu0 %v10216
      %v10567 = vpop.f32.mrf.mxu0
      %v10568 = vadd.f32 %v10250, %v10567
      %v10569 = vpop.f32.mrf.mxu0
      %v10570 = vpop.f32.mrf.mxu0
      %v10571 = vadd.f32 %v10250, %v10570
      %v10572 = vpop.f32.mrf.mxu0
      %10573 = vmatprep.mubr.bf16.mxu0 0
      %10574 = vmatmul.mubr.bf16.gmra.mxu0 %v10217
      %v10575 = vpop.f32.mrf.mxu0
      %v10576 = vadd.f32 %v10250, %v10575
      %v10577 = vpop.f32.mrf.mxu0
      %v10578 = vpop.f32.mrf.mxu0
      %v10579 = vadd.f32 %v10250, %v10578
      %v10580 = vpop.f32.mrf.mxu0
      %10581 = vmatprep.mubr.bf16.mxu0 0
      %10582 = vmatmul.mubr.bf16.gmra.mxu0 %v10218
      %v10583 = vpop.f32.mrf.mxu0
      %v10584 = vadd.f32 %v10250, %v10583
      %v10585 = vpop.f32.mrf.mxu0
      %v10586 = vpop.f32.mrf.mxu0
      %v10587 = vadd.f32 %v10250, %v10586
      %v10588 = vpop.f32.mrf.mxu0
      %10589 = vmatprep.mubr.bf16.mxu0 0
      %10590 = vmatmul.mubr.bf16.gmra.mxu0 %v10219
      %v10591 = vpop.f32.mrf.mxu0
      %v10592 = vadd.f32 %v10250, %v10591
      %v10593 = vpop.f32.mrf.mxu0
      %v10594 = vpop.f32.mrf.mxu0
      %v10595 = vadd.f32 %v10250, %v10594
      %v10596 = vpop.f32.mrf.mxu0
      %10597 = vmatprep.mubr.bf16.mxu0 0
      %10598 = vmatmul.mubr.bf16.gmra.mxu0 %v10220
      %v10599 = vpop.f32.mrf.mxu0
      %v10600 = vadd.f32 %v10250, %v10599
      %v10601 = vpop.f32.mrf.mxu0
      %v10602 = vpop.f32.mrf.mxu0
      %v10603 = vadd.f32 %v10250, %v10602
      %v10604 = vpop.f32.mrf.mxu0
      %10605 = vmatprep.mubr.bf16.mxu0 0
      %10606 = vmatmul.mubr.bf16.gmra.mxu0 %v10221
      %v10607 = vpop.f32.mrf.mxu0
      %v10608 = vadd.f32 %v10250, %v10607
      %v10609 = vpop.f32.mrf.mxu0
      %v10610 = vpop.f32.mrf.mxu0
      %v10611 = vadd.f32 %v10250, %v10610
      %v10612 = vpop.f32.mrf.mxu0
      %10613 = vmatprep.mubr.bf16.mxu0 0
      %10614 = vmatmul.mubr.bf16.gmra.mxu0 %v10222
      %v10615 = vpop.f32.mrf.mxu0
      %v10616 = vadd.f32 %v10250, %v10615
      %v10617 = vpop.f32.mrf.mxu0
      %v10618 = vpop.f32.mrf.mxu0
      %v10619 = vadd.f32 %v10250, %v10618
      %v10620 = vpop.f32.mrf.mxu0
      %10621 = vmatprep.mubr.bf16.mxu0 0
      %10622 = vmatmul.mubr.bf16.gmra.mxu0 %v10223
      %v10623 = vpop.f32.mrf.mxu0
      %v10624 = vadd.f32 %v10250, %v10623
      %v10625 = vpop.f32.mrf.mxu0
      %v10626 = vpop.f32.mrf.mxu0
      %v10627 = vadd.f32 %v10250, %v10626
      %v10628 = vpop.f32.mrf.mxu0
      %10629 = vmatprep.mubr.bf16.mxu0 0
      %10630 = vmatmul.mubr.bf16.gmra.mxu0 %v10224
      %v10631 = vpop.f32.mrf.mxu0
      %v10632 = vadd.f32 %v10250, %v10631
      %v10633 = vpop.f32.mrf.mxu0
      %v10634 = vpop.f32.mrf.mxu0
      %v10635 = vadd.f32 %v10250, %v10634
      %v10636 = vpop.f32.mrf.mxu0
      %10637 = vmatprep.mubr.bf16.mxu0 0
      %10638 = vmatmul.mubr.bf16.gmra.mxu0 %v10225
      %v10639 = vpop.f32.mrf.mxu0
      %v10640 = vadd.f32 %v10250, %v10639
      %v10641 = vpop.f32.mrf.mxu0
      %v10642 = vpop.f32.mrf.mxu0
      %v10643 = vadd.f32 %v10250, %v10642
      %v10644 = vpop.f32.mrf.mxu0
      %10645 = vmatprep.mubr.bf16.mxu0 0
      %10646 = vmatmul.mubr.bf16.gmra.mxu0 %v10226
      %v10647 = vpop.f32.mrf.mxu0
      %v10648 = vadd.f32 %v10250, %v10647
      %v10649 = vpop.f32.mrf.mxu0
      %v10650 = vpop.f32.mrf.mxu0
      %v10651 = vadd.f32 %v10250, %v10650
      %v10652 = vpop.f32.mrf.mxu0
      %10653 = vmatprep.mubr.bf16.mxu0 0
      %10654 = vmatmul.mubr.bf16.gmra.mxu0 %v10227
      %v10655 = vpop.f32.mrf.mxu0
      %v10656 = vadd.f32 %v10250, %v10655
      %v10657 = vpop.f32.mrf.mxu0
      %v10658 = vpop.f32.mrf.mxu0
      %v10659 = vadd.f32 %v10250, %v10658
      %v10660 = vpop.f32.mrf.mxu0
      %10661 = vmatprep.mubr.bf16.mxu0 0
      %10662 = vmatmul.mubr.bf16.gmra.mxu0 %v10228
      %v10663 = vpop.f32.mrf.mxu0
      %v10664 = vadd.f32 %v10250, %v10663
      %v10665 = vpop.f32.mrf.mxu0
      %v10666 = vpop.f32.mrf.mxu0
      %v10667 = vadd.f32 %v10250, %v10666
      %v10668 = vpop.f32.mrf.mxu0
      %10669 = vdwg.mxu0
      %v10670 = vmax.f32 %v10544, 0.0
      %v10671 = vmax.f32 %v10547, 0.0
      %v10672 = vmax.f32 %v10552, 0.0
      %v10673 = vmax.f32 %v10555, 0.0
      %v10674 = vmax.f32 %v10560, 0.0
      %v10675 = vmax.f32 %v10563, 0.0
      %v10676 = vmax.f32 %v10568, 0.0
      %v10677 = vmax.f32 %v10571, 0.0
      %v10678 = vmax.f32 %v10576, 0.0
      %v10679 = vmax.f32 %v10579, 0.0
      %v10680 = vmax.f32 %v10584, 0.0
      %v10681 = vmax.f32 %v10587, 0.0
      %v10682 = vmax.f32 %v10592, 0.0
      %v10683 = vmax.f32 %v10595, 0.0
      %v10684 = vmax.f32 %v10600, 0.0
      %v10685 = vmax.f32 %v10603, 0.0
      %v10686 = vmax.f32 %v10608, 0.0
      %v10687 = vmax.f32 %v10611, 0.0
      %v10688 = vmax.f32 %v10616, 0.0
      %v10689 = vmax.f32 %v10619, 0.0
      %v10690 = vmax.f32 %v10624, 0.0
      %v10691 = vmax.f32 %v10627, 0.0
      %v10692 = vmax.f32 %v10632, 0.0
      %v10693 = vmax.f32 %v10635, 0.0
      %v10694 = vmax.f32 %v10640, 0.0
      %v10695 = vmax.f32 %v10643, 0.0
      %v10696 = vmax.f32 %v10648, 0.0
      %v10697 = vmax.f32 %v10651, 0.0
      %v10698 = vmax.f32 %v10656, 0.0
      %v10699 = vmax.f32 %v10659, 0.0
      %v10700 = vmax.f32 %v10664, 0.0
      %v10701 = vmax.f32 %v10667, 0.0
      %v10702 = vpack.c.bf16 %v10671, %v10670
      %v10703 = vpack.c.bf16 %v10673, %v10672
      %v10704 = vpack.c.bf16 %v10675, %v10674
      %v10705 = vpack.c.bf16 %v10677, %v10676
      %v10706 = vpack.c.bf16 %v10679, %v10678
      %v10707 = vpack.c.bf16 %v10681, %v10680
      %v10708 = vpack.c.bf16 %v10683, %v10682
      %v10709 = vpack.c.bf16 %v10685, %v10684
      %v10710 = vpack.c.bf16 %v10687, %v10686
      %v10711 = vpack.c.bf16 %v10689, %v10688
      %v10712 = vpack.c.bf16 %v10691, %v10690
      %v10713 = vpack.c.bf16 %v10693, %v10692
      %v10714 = vpack.c.bf16 %v10695, %v10694
      %v10715 = vpack.c.bf16 %v10697, %v10696
      %v10716 = vpack.c.bf16 %v10699, %v10698
      %v10717 = vpack.c.bf16 %v10701, %v10700
      %v10718 = vld [vmem:[%s11] sm:$0xf]
      %v10719 = vld [vmem:[%s11 + $0x4] sm:$0xf]
      %v10720 = vld [vmem:[%s11 + $0x8] sm:$0xf]
      %v10721 = vld [vmem:[%s11 + $0xc] sm:$0xf]
      %v10722 = vld [vmem:[%s11 + $0x10] sm:$0xf]
      %v10723 = vld [vmem:[%s11 + $0x14] sm:$0xf]
      %v10724 = vld [vmem:[%s11 + $0x18] sm:$0xf]
      %v10725 = vld [vmem:[%s11 + $0x1c] sm:$0xf]
      %v10726 = vld [vmem:[%s11 + $0x20] sm:$0xf]
      %v10727 = vld [vmem:[%s11 + $0x24] sm:$0xf]
      %v10728 = vld [vmem:[%s11 + $0x28] sm:$0xf]
      %v10729 = vld [vmem:[%s11 + $0x2c] sm:$0xf]
      %v10730 = vld [vmem:[%s11 + $0x30] sm:$0xf]
      %v10731 = vld [vmem:[%s11 + $0x34] sm:$0xf]
      %v10732 = vld [vmem:[%s11 + $0x38] sm:$0xf]
      %v10733 = vld [vmem:[%s11 + $0x3c] sm:$0xf]
      %v10734 = vld [vmem:[%s12] sm:$0x1]
      %v10736 = vlaneseq
      %v10737 = vshrl.u32 %v10736, 7
      %v10738 = vsub.s32 0, %v10737
      %v10739 = vrot.slane %v10734, %v10738
      %v10757 = vunpack.c.l.b16 %v10718
      %v10758 = vunpack.c.l.b16 %v10719
      %v10759 = vunpack.c.l.b16 %v10720
      %v10760 = vunpack.c.l.b16 %v10721
      %v10761 = vunpack.c.l.b16 %v10722
      %v10762 = vunpack.c.l.b16 %v10723
      %v10763 = vunpack.c.l.b16 %v10724
      %v10764 = vunpack.c.l.b16 %v10725
      %v10765 = vunpack.c.l.b16 %v10726
      %v10766 = vunpack.c.l.b16 %v10727
      %v10767 = vunpack.c.l.b16 %v10728
      %v10768 = vunpack.c.l.b16 %v10729
      %v10769 = vunpack.c.l.b16 %v10730
      %v10770 = vunpack.c.l.b16 %v10731
      %v10771 = vunpack.c.l.b16 %v10732
      %v10772 = vunpack.c.l.b16 %v10733
      %v10773 = vpack.c.b16 %v10758, %v10757
      %v10774 = vpack.c.b16 %v10760, %v10759
      %v10775 = vpack.c.b16 %v10762, %v10761
      %v10776 = vpack.c.b16 %v10764, %v10763
      %v10777 = vpack.c.b16 %v10766, %v10765
      %v10778 = vpack.c.b16 %v10768, %v10767
      %v10779 = vpack.c.b16 %v10770, %v10769
      %v10780 = vpack.c.b16 %v10772, %v10771
      %10789 = vmatprep.subr.bf16.mxu0 0
      %10790 = vmatpush1.bf16.msra.mxu0 %v10780
      %10791 = vmatprep.subr.bf16.mxu0 0
      %10792 = vmatpush1.bf16.msra.mxu0 %v10779
      %10793 = vmatprep.subr.bf16.mxu0 0
      %10794 = vmatpush1.bf16.msra.mxu0 %v10778
      %10795 = vmatprep.subr.bf16.mxu0 0
      %10796 = vmatpush1.bf16.msra.mxu0 %v10777
      %10797 = vmatprep.subr.bf16.mxu0 0
      %10798 = vmatpush1.bf16.msra.mxu0 %v10776
      %10799 = vmatprep.subr.bf16.mxu0 0
      %10800 = vmatpush1.bf16.msra.mxu0 %v10775
      %10801 = vmatprep.subr.bf16.mxu0 0
      %10802 = vmatpush1.bf16.msra.mxu0 %v10774
      %10803 = vmatprep.subr.bf16.mxu0 0
      %10804 = vmatpush1.bf16.msra.mxu0 %v10773
      %10805 = vmatprep.subr.bf16.mxu0 0
      %10806 = vmatpush2.bf16.msra.mxu0 0
      %10807 = vmatprep.subr.bf16.mxu0 0
      %10808 = vmatpush2.bf16.msra.mxu0 0
      %10809 = vmatprep.subr.bf16.mxu0 0
      %10810 = vmatpush2.bf16.msra.mxu0 0
      %10811 = vmatprep.subr.bf16.mxu0 0
      %10812 = vmatpush2.bf16.msra.mxu0 0
      %10813 = vmatprep.subr.bf16.mxu0 0
      %10814 = vmatpush2.bf16.msra.mxu0 0
      %10815 = vmatprep.subr.bf16.mxu0 0
      %10816 = vmatpush2.bf16.msra.mxu0 0
      %10817 = vmatprep.subr.bf16.mxu0 0
      %10818 = vmatpush2.bf16.msra.mxu0 0
      %10819 = vmatprep.subr.bf16.mxu0 0
      %10820 = vmatpush2.bf16.msra.mxu0 0
      %10821 = vmatprep.mubr.bf16.mxu0 0
      %10822 = vmatmul.mubr.bf16.gmra.mxu0 %v10493
      %v10823 = vpop.f32.mrf.mxu0
      %v10824 = vadd.f32 %v10739, %v10823
      %v10825 = vpop.f32.mrf.mxu0
      %v10826 = vpop.f32.mrf.mxu0
      %v10827 = vadd.f32 %v10739, %v10826
      %v10828 = vpop.f32.mrf.mxu0
      %10829 = vmatprep.mubr.bf16.mxu0 0
      %10830 = vmatmul.mubr.bf16.gmra.mxu0 %v10494
      %v10831 = vpop.f32.mrf.mxu0
      %v10832 = vadd.f32 %v10739, %v10831
      %v10833 = vpop.f32.mrf.mxu0
      %v10834 = vpop.f32.mrf.mxu0
      %v10835 = vadd.f32 %v10739, %v10834
      %v10836 = vpop.f32.mrf.mxu0
      %10837 = vmatprep.mubr.bf16.mxu0 0
      %10838 = vmatmul.mubr.bf16.gmra.mxu0 %v10495
      %v10839 = vpop.f32.mrf.mxu0
      %v10840 = vadd.f32 %v10739, %v10839
      %v10841 = vpop.f32.mrf.mxu0
      %v10842 = vpop.f32.mrf.mxu0
      %v10843 = vadd.f32 %v10739, %v10842
      %v10844 = vpop.f32.mrf.mxu0
      %10845 = vmatprep.mubr.bf16.mxu0 0
      %10846 = vmatmul.mubr.bf16.gmra.mxu0 %v10496
      %v10847 = vpop.f32.mrf.mxu0
      %v10848 = vadd.f32 %v10739, %v10847
      %v10849 = vpop.f32.mrf.mxu0
      %v10850 = vpop.f32.mrf.mxu0
      %v10851 = vadd.f32 %v10739, %v10850
      %v10852 = vpop.f32.mrf.mxu0
      %10853 = vmatprep.mubr.bf16.mxu0 0
      %10854 = vmatmul.mubr.bf16.gmra.mxu0 %v10497
      %v10855 = vpop.f32.mrf.mxu0
      %v10856 = vadd.f32 %v10739, %v10855
      %v10857 = vpop.f32.mrf.mxu0
      %v10858 = vpop.f32.mrf.mxu0
      %v10859 = vadd.f32 %v10739, %v10858
      %v10860 = vpop.f32.mrf.mxu0
      %10861 = vmatprep.mubr.bf16.mxu0 0
      %10862 = vmatmul.mubr.bf16.gmra.mxu0 %v10498
      %v10863 = vpop.f32.mrf.mxu0
      %v10864 = vadd.f32 %v10739, %v10863
      %v10865 = vpop.f32.mrf.mxu0
      %v10866 = vpop.f32.mrf.mxu0
      %v10867 = vadd.f32 %v10739, %v10866
      %v10868 = vpop.f32.mrf.mxu0
      %10869 = vmatprep.mubr.bf16.mxu0 0
      %10870 = vmatmul.mubr.bf16.gmra.mxu0 %v10499
      %v10871 = vpop.f32.mrf.mxu0
      %v10872 = vadd.f32 %v10739, %v10871
      %v10873 = vpop.f32.mrf.mxu0
      %v10874 = vpop.f32.mrf.mxu0
      %v10875 = vadd.f32 %v10739, %v10874
      %v10876 = vpop.f32.mrf.mxu0
      %10877 = vmatprep.mubr.bf16.mxu0 0
      %10878 = vmatmul.mubr.bf16.gmra.mxu0 %v10500
      %v10879 = vpop.f32.mrf.mxu0
      %v10880 = vadd.f32 %v10739, %v10879
      %v10881 = vpop.f32.mrf.mxu0
      %v10882 = vpop.f32.mrf.mxu0
      %v10883 = vadd.f32 %v10739, %v10882
      %v10884 = vpop.f32.mrf.mxu0
      %10885 = vmatprep.mubr.bf16.mxu0 0
      %10886 = vmatmul.mubr.bf16.gmra.mxu0 %v10501
      %v10887 = vpop.f32.mrf.mxu0
      %v10888 = vadd.f32 %v10739, %v10887
      %v10889 = vpop.f32.mrf.mxu0
      %v10890 = vpop.f32.mrf.mxu0
      %v10891 = vadd.f32 %v10739, %v10890
      %v10892 = vpop.f32.mrf.mxu0
      %10893 = vmatprep.mubr.bf16.mxu0 0
      %10894 = vmatmul.mubr.bf16.gmra.mxu0 %v10502
      %v10895 = vpop.f32.mrf.mxu0
      %v10896 = vadd.f32 %v10739, %v10895
      %v10897 = vpop.f32.mrf.mxu0
      %v10898 = vpop.f32.mrf.mxu0
      %v10899 = vadd.f32 %v10739, %v10898
      %v10900 = vpop.f32.mrf.mxu0
      %10901 = vmatprep.mubr.bf16.mxu0 0
      %10902 = vmatmul.mubr.bf16.gmra.mxu0 %v10503
      %v10903 = vpop.f32.mrf.mxu0
      %v10904 = vadd.f32 %v10739, %v10903
      %v10905 = vpop.f32.mrf.mxu0
      %v10906 = vpop.f32.mrf.mxu0
      %v10907 = vadd.f32 %v10739, %v10906
      %v10908 = vpop.f32.mrf.mxu0
      %10909 = vmatprep.mubr.bf16.mxu0 0
      %10910 = vmatmul.mubr.bf16.gmra.mxu0 %v10504
      %v10911 = vpop.f32.mrf.mxu0
      %v10912 = vadd.f32 %v10739, %v10911
      %v10913 = vpop.f32.mrf.mxu0
      %v10914 = vpop.f32.mrf.mxu0
      %v10915 = vadd.f32 %v10739, %v10914
      %v10916 = vpop.f32.mrf.mxu0
      %10917 = vmatprep.mubr.bf16.mxu0 0
      %10918 = vmatmul.mubr.bf16.gmra.mxu0 %v10505
      %v10919 = vpop.f32.mrf.mxu0
      %v10920 = vadd.f32 %v10739, %v10919
      %v10921 = vpop.f32.mrf.mxu0
      %v10922 = vpop.f32.mrf.mxu0
      %v10923 = vadd.f32 %v10739, %v10922
      %v10924 = vpop.f32.mrf.mxu0
      %10925 = vmatprep.mubr.bf16.mxu0 0
      %10926 = vmatmul.mubr.bf16.gmra.mxu0 %v10506
      %v10927 = vpop.f32.mrf.mxu0
      %v10928 = vadd.f32 %v10739, %v10927
      %v10929 = vpop.f32.mrf.mxu0
      %v10930 = vpop.f32.mrf.mxu0
      %v10931 = vadd.f32 %v10739, %v10930
      %v10932 = vpop.f32.mrf.mxu0
      %10933 = vmatprep.mubr.bf16.mxu0 0
      %10934 = vmatmul.mubr.bf16.gmra.mxu0 %v10507
      %v10935 = vpop.f32.mrf.mxu0
      %v10936 = vadd.f32 %v10739, %v10935
      %v10937 = vpop.f32.mrf.mxu0
      %v10938 = vpop.f32.mrf.mxu0
      %v10939 = vadd.f32 %v10739, %v10938
      %v10940 = vpop.f32.mrf.mxu0
      %10941 = vmatprep.mubr.bf16.mxu0 0
      %10942 = vmatmul.mubr.bf16.gmra.mxu0 %v10508
      %v10943 = vpop.f32.mrf.mxu0
      %v10944 = vadd.f32 %v10739, %v10943
      %v10945 = vpop.f32.mrf.mxu0
      %v10946 = vpop.f32.mrf.mxu0
      %v10947 = vadd.f32 %v10739, %v10946
      %v10948 = vpop.f32.mrf.mxu0
      %10949 = vdwg.mxu0
      %v10950 = vmax.f32 %v10824, 0.0
      %v10951 = vmax.f32 %v10827, 0.0
      %v10952 = vmax.f32 %v10832, 0.0
      %v10953 = vmax.f32 %v10835, 0.0
      %v10954 = vmax.f32 %v10840, 0.0
      %v10955 = vmax.f32 %v10843, 0.0
      %v10956 = vmax.f32 %v10848, 0.0
      %v10957 = vmax.f32 %v10851, 0.0
      %v10958 = vmax.f32 %v10856, 0.0
      %v10959 = vmax.f32 %v10859, 0.0
      %v10960 = vmax.f32 %v10864, 0.0
      %v10961 = vmax.f32 %v10867, 0.0
      %v10962 = vmax.f32 %v10872, 0.0
      %v10963 = vmax.f32 %v10875, 0.0
      %v10964 = vmax.f32 %v10880, 0.0
      %v10965 = vmax.f32 %v10883, 0.0
      %v10966 = vmax.f32 %v10888, 0.0
      %v10967 = vmax.f32 %v10891, 0.0
      %v10968 = vmax.f32 %v10896, 0.0
      %v10969 = vmax.f32 %v10899, 0.0
      %v10970 = vmax.f32 %v10904, 0.0
      %v10971 = vmax.f32 %v10907, 0.0
      %v10972 = vmax.f32 %v10912, 0.0
      %v10973 = vmax.f32 %v10915, 0.0
      %v10974 = vmax.f32 %v10920, 0.0
      %v10975 = vmax.f32 %v10923, 0.0
      %v10976 = vmax.f32 %v10928, 0.0
      %v10977 = vmax.f32 %v10931, 0.0
      %v10978 = vmax.f32 %v10936, 0.0
      %v10979 = vmax.f32 %v10939, 0.0
      %v10980 = vmax.f32 %v10944, 0.0
      %v10981 = vmax.f32 %v10947, 0.0
      %v10982 = vpack.c.bf16 %v10951, %v10950
      %v10983 = vpack.c.bf16 %v10953, %v10952
      %v10984 = vpack.c.bf16 %v10955, %v10954
      %v10985 = vpack.c.bf16 %v10957, %v10956
      %v10986 = vpack.c.bf16 %v10959, %v10958
      %v10987 = vpack.c.bf16 %v10961, %v10960
      %v10988 = vpack.c.bf16 %v10963, %v10962
      %v10989 = vpack.c.bf16 %v10965, %v10964
      %v10990 = vpack.c.bf16 %v10967, %v10966
      %v10991 = vpack.c.bf16 %v10969, %v10968
      %v10992 = vpack.c.bf16 %v10971, %v10970
      %v10993 = vpack.c.bf16 %v10973, %v10972
      %v10994 = vpack.c.bf16 %v10975, %v10974
      %v10995 = vpack.c.bf16 %v10977, %v10976
      %v10996 = vpack.c.bf16 %v10979, %v10978
      %v10997 = vpack.c.bf16 %v10981, %v10980
      %10998 = vmatprep.subr.bf16.mxu0 0
      %10999 = vmatpush1.bf16.msra.mxu0 %v10780
      %11000 = vmatprep.subr.bf16.mxu0 0
      %11001 = vmatpush1.bf16.msra.mxu0 %v10779
      %11002 = vmatprep.subr.bf16.mxu0 0
      %11003 = vmatpush1.bf16.msra.mxu0 %v10778
      %11004 = vmatprep.subr.bf16.mxu0 0
      %11005 = vmatpush1.bf16.msra.mxu0 %v10777
      %11006 = vmatprep.subr.bf16.mxu0 0
      %11007 = vmatpush1.bf16.msra.mxu0 %v10776
      %11008 = vmatprep.subr.bf16.mxu0 0
      %11009 = vmatpush1.bf16.msra.mxu0 %v10775
      %11010 = vmatprep.subr.bf16.mxu0 0
      %11011 = vmatpush1.bf16.msra.mxu0 %v10774
      %11012 = vmatprep.subr.bf16.mxu0 0
      %11013 = vmatpush1.bf16.msra.mxu0 %v10773
      %11014 = vmatprep.subr.bf16.mxu0 0
      %11015 = vmatpush2.bf16.msra.mxu0 0
      %11016 = vmatprep.subr.bf16.mxu0 0
      %11017 = vmatpush2.bf16.msra.mxu0 0
      %11018 = vmatprep.subr.bf16.mxu0 0
      %11019 = vmatpush2.bf16.msra.mxu0 0
      %11020 = vmatprep.subr.bf16.mxu0 0
      %11021 = vmatpush2.bf16.msra.mxu0 0
      %11022 = vmatprep.subr.bf16.mxu0 0
      %11023 = vmatpush2.bf16.msra.mxu0 0
      %11024 = vmatprep.subr.bf16.mxu0 0
      %11025 = vmatpush2.bf16.msra.mxu0 0
      %11026 = vmatprep.subr.bf16.mxu0 0
      %11027 = vmatpush2.bf16.msra.mxu0 0
      %11028 = vmatprep.subr.bf16.mxu0 0
      %11029 = vmatpush2.bf16.msra.mxu0 0
      %11030 = vmatprep.mubr.bf16.mxu0 0
      %11031 = vmatmul.mubr.bf16.gmra.mxu0 %v10702
      %v11032 = vpop.f32.mrf.mxu0
      %v11033 = vadd.f32 %v10739, %v11032
      %v11034 = vpop.f32.mrf.mxu0
      %v11035 = vpop.f32.mrf.mxu0
      %v11036 = vadd.f32 %v10739, %v11035
      %v11037 = vpop.f32.mrf.mxu0
      %11038 = vmatprep.mubr.bf16.mxu0 0
      %11039 = vmatmul.mubr.bf16.gmra.mxu0 %v10703
      %v11040 = vpop.f32.mrf.mxu0
      %v11041 = vadd.f32 %v10739, %v11040
      %v11042 = vpop.f32.mrf.mxu0
      %v11043 = vpop.f32.mrf.mxu0
      %v11044 = vadd.f32 %v10739, %v11043
      %v11045 = vpop.f32.mrf.mxu0
      %11046 = vmatprep.mubr.bf16.mxu0 0
      %11047 = vmatmul.mubr.bf16.gmra.mxu0 %v10704
      %v11048 = vpop.f32.mrf.mxu0
      %v11049 = vadd.f32 %v10739, %v11048
      %v11050 = vpop.f32.mrf.mxu0
      %v11051 = vpop.f32.mrf.mxu0
      %v11052 = vadd.f32 %v10739, %v11051
      %v11053 = vpop.f32.mrf.mxu0
      %11054 = vmatprep.mubr.bf16.mxu0 0
      %11055 = vmatmul.mubr.bf16.gmra.mxu0 %v10705
      %v11056 = vpop.f32.mrf.mxu0
      %v11057 = vadd.f32 %v10739, %v11056
      %v11058 = vpop.f32.mrf.mxu0
      %v11059 = vpop.f32.mrf.mxu0
      %v11060 = vadd.f32 %v10739, %v11059
      %v11061 = vpop.f32.mrf.mxu0
      %11062 = vmatprep.mubr.bf16.mxu0 0
      %11063 = vmatmul.mubr.bf16.gmra.mxu0 %v10706
      %v11064 = vpop.f32.mrf.mxu0
      %v11065 = vadd.f32 %v10739, %v11064
      %v11066 = vpop.f32.mrf.mxu0
      %v11067 = vpop.f32.mrf.mxu0
      %v11068 = vadd.f32 %v10739, %v11067
      %v11069 = vpop.f32.mrf.mxu0
      %11070 = vmatprep.mubr.bf16.mxu0 0
      %11071 = vmatmul.mubr.bf16.gmra.mxu0 %v10707
      %v11072 = vpop.f32.mrf.mxu0
      %v11073 = vadd.f32 %v10739, %v11072
      %v11074 = vpop.f32.mrf.mxu0
      %v11075 = vpop.f32.mrf.mxu0
      %v11076 = vadd.f32 %v10739, %v11075
      %v11077 = vpop.f32.mrf.mxu0
      %11078 = vmatprep.mubr.bf16.mxu0 0
      %11079 = vmatmul.mubr.bf16.gmra.mxu0 %v10708
      %v11080 = vpop.f32.mrf.mxu0
      %v11081 = vadd.f32 %v10739, %v11080
      %v11082 = vpop.f32.mrf.mxu0
      %v11083 = vpop.f32.mrf.mxu0
      %v11084 = vadd.f32 %v10739, %v11083
      %v11085 = vpop.f32.mrf.mxu0
      %11086 = vmatprep.mubr.bf16.mxu0 0
      %11087 = vmatmul.mubr.bf16.gmra.mxu0 %v10709
      %v11088 = vpop.f32.mrf.mxu0
      %v11089 = vadd.f32 %v10739, %v11088
      %v11090 = vpop.f32.mrf.mxu0
      %v11091 = vpop.f32.mrf.mxu0
      %v11092 = vadd.f32 %v10739, %v11091
      %v11093 = vpop.f32.mrf.mxu0
      %11094 = vmatprep.mubr.bf16.mxu0 0
      %11095 = vmatmul.mubr.bf16.gmra.mxu0 %v10710
      %v11096 = vpop.f32.mrf.mxu0
      %v11097 = vadd.f32 %v10739, %v11096
      %v11098 = vpop.f32.mrf.mxu0
      %v11099 = vpop.f32.mrf.mxu0
      %v11100 = vadd.f32 %v10739, %v11099
      %v11101 = vpop.f32.mrf.mxu0
      %11102 = vmatprep.mubr.bf16.mxu0 0
      %11103 = vmatmul.mubr.bf16.gmra.mxu0 %v10711
      %v11104 = vpop.f32.mrf.mxu0
      %v11105 = vadd.f32 %v10739, %v11104
      %v11106 = vpop.f32.mrf.mxu0
      %v11107 = vpop.f32.mrf.mxu0
      %v11108 = vadd.f32 %v10739, %v11107
      %v11109 = vpop.f32.mrf.mxu0
      %11110 = vmatprep.mubr.bf16.mxu0 0
      %11111 = vmatmul.mubr.bf16.gmra.mxu0 %v10712
      %v11112 = vpop.f32.mrf.mxu0
      %v11113 = vadd.f32 %v10739, %v11112
      %v11114 = vpop.f32.mrf.mxu0
      %v11115 = vpop.f32.mrf.mxu0
      %v11116 = vadd.f32 %v10739, %v11115
      %v11117 = vpop.f32.mrf.mxu0
      %11118 = vmatprep.mubr.bf16.mxu0 0
      %11119 = vmatmul.mubr.bf16.gmra.mxu0 %v10713
      %v11120 = vpop.f32.mrf.mxu0
      %v11121 = vadd.f32 %v10739, %v11120
      %v11122 = vpop.f32.mrf.mxu0
      %v11123 = vpop.f32.mrf.mxu0
      %v11124 = vadd.f32 %v10739, %v11123
      %v11125 = vpop.f32.mrf.mxu0
      %11126 = vmatprep.mubr.bf16.mxu0 0
      %11127 = vmatmul.mubr.bf16.gmra.mxu0 %v10714
      %v11128 = vpop.f32.mrf.mxu0
      %v11129 = vadd.f32 %v10739, %v11128
      %v11130 = vpop.f32.mrf.mxu0
      %v11131 = vpop.f32.mrf.mxu0
      %v11132 = vadd.f32 %v10739, %v11131
      %v11133 = vpop.f32.mrf.mxu0
      %11134 = vmatprep.mubr.bf16.mxu0 0
      %11135 = vmatmul.mubr.bf16.gmra.mxu0 %v10715
      %v11136 = vpop.f32.mrf.mxu0
      %v11137 = vadd.f32 %v10739, %v11136
      %v11138 = vpop.f32.mrf.mxu0
      %v11139 = vpop.f32.mrf.mxu0
      %v11140 = vadd.f32 %v10739, %v11139
      %v11141 = vpop.f32.mrf.mxu0
      %11142 = vmatprep.mubr.bf16.mxu0 0
      %11143 = vmatmul.mubr.bf16.gmra.mxu0 %v10716
      %v11144 = vpop.f32.mrf.mxu0
      %v11145 = vadd.f32 %v10739, %v11144
      %v11146 = vpop.f32.mrf.mxu0
      %v11147 = vpop.f32.mrf.mxu0
      %v11148 = vadd.f32 %v10739, %v11147
      %v11149 = vpop.f32.mrf.mxu0
      %11150 = vmatprep.mubr.bf16.mxu0 0
      %11151 = vmatmul.mubr.bf16.gmra.mxu0 %v10717
      %v11152 = vpop.f32.mrf.mxu0
      %v11153 = vadd.f32 %v10739, %v11152
      %v11154 = vpop.f32.mrf.mxu0
      %v11155 = vpop.f32.mrf.mxu0
      %v11156 = vadd.f32 %v10739, %v11155
      %v11157 = vpop.f32.mrf.mxu0
      %11158 = vdwg.mxu0
      %v11159 = vmax.f32 %v11033, 0.0
      %v11160 = vmax.f32 %v11036, 0.0
      %v11161 = vmax.f32 %v11041, 0.0
      %v11162 = vmax.f32 %v11044, 0.0
      %v11163 = vmax.f32 %v11049, 0.0
      %v11164 = vmax.f32 %v11052, 0.0
      %v11165 = vmax.f32 %v11057, 0.0
      %v11166 = vmax.f32 %v11060, 0.0
      %v11167 = vmax.f32 %v11065, 0.0
      %v11168 = vmax.f32 %v11068, 0.0
      %v11169 = vmax.f32 %v11073, 0.0
      %v11170 = vmax.f32 %v11076, 0.0
      %v11171 = vmax.f32 %v11081, 0.0
      %v11172 = vmax.f32 %v11084, 0.0
      %v11173 = vmax.f32 %v11089, 0.0
      %v11174 = vmax.f32 %v11092, 0.0
      %v11175 = vmax.f32 %v11097, 0.0
      %v11176 = vmax.f32 %v11100, 0.0
      %v11177 = vmax.f32 %v11105, 0.0
      %v11178 = vmax.f32 %v11108, 0.0
      %v11179 = vmax.f32 %v11113, 0.0
      %v11180 = vmax.f32 %v11116, 0.0
      %v11181 = vmax.f32 %v11121, 0.0
      %v11182 = vmax.f32 %v11124, 0.0
      %v11183 = vmax.f32 %v11129, 0.0
      %v11184 = vmax.f32 %v11132, 0.0
      %v11185 = vmax.f32 %v11137, 0.0
      %v11186 = vmax.f32 %v11140, 0.0
      %v11187 = vmax.f32 %v11145, 0.0
      %v11188 = vmax.f32 %v11148, 0.0
      %v11189 = vmax.f32 %v11153, 0.0
      %v11190 = vmax.f32 %v11156, 0.0
      %v11191 = vpack.c.bf16 %v11160, %v11159
      %v11192 = vpack.c.bf16 %v11162, %v11161
      %v11193 = vpack.c.bf16 %v11164, %v11163
      %v11194 = vpack.c.bf16 %v11166, %v11165
      %v11195 = vpack.c.bf16 %v11168, %v11167
      %v11196 = vpack.c.bf16 %v11170, %v11169
      %v11197 = vpack.c.bf16 %v11172, %v11171
      %v11198 = vpack.c.bf16 %v11174, %v11173
      %v11199 = vpack.c.bf16 %v11176, %v11175
      %v11200 = vpack.c.bf16 %v11178, %v11177
      %v11201 = vpack.c.bf16 %v11180, %v11179
      %v11202 = vpack.c.bf16 %v11182, %v11181
      %v11203 = vpack.c.bf16 %v11184, %v11183
      %v11204 = vpack.c.bf16 %v11186, %v11185
      %v11205 = vpack.c.bf16 %v11188, %v11187
      %v11206 = vpack.c.bf16 %v11190, %v11189
      %v11207 = vld [vmem:[%s13] sm:$0xf]
      %v11208 = vld [vmem:[%s14] sm:$0xff]
      %11210 = vset.pattern.permute.xlu0 0
      %11211 = vperm.xlu0 %11210, %v11208
      %v11212 = vpop.permute.xlu0 %11211
      %11214 = vmatprep.subr.bf16.mxu0 0
      %11215 = vmatpush1.bf16.xpose.msra.mxu0 %v10989
      %11216 = vmatprep.subr.bf16.mxu0 0
      %11217 = vmatpush1.bf16.xpose.msra.mxu0 %v10988
      %11218 = vmatprep.subr.bf16.mxu0 0
      %11219 = vmatpush1.bf16.xpose.msra.mxu0 %v10987
      %11220 = vmatprep.subr.bf16.mxu0 0
      %11221 = vmatpush1.bf16.xpose.msra.mxu0 %v10986
      %11222 = vmatprep.subr.bf16.mxu0 0
      %11223 = vmatpush1.bf16.xpose.msra.mxu0 %v10985
      %11224 = vmatprep.subr.bf16.mxu0 0
      %11225 = vmatpush1.bf16.xpose.msra.mxu0 %v10984
      %11226 = vmatprep.subr.bf16.mxu0 0
      %11227 = vmatpush1.bf16.xpose.msra.mxu0 %v10983
      %11228 = vmatprep.subr.bf16.mxu0 0
      %11229 = vmatpush1.bf16.xpose.msra.mxu0 %v10982
      %11230 = vmatprep.subr.bf16.mxu0 0
      %11231 = vmatpush2.bf16.xpose.msra.mxu0 %v10997
      %11232 = vmatprep.subr.bf16.mxu0 0
      %11233 = vmatpush2.bf16.xpose.msra.mxu0 %v10996
      %11234 = vmatprep.subr.bf16.mxu0 0
      %11235 = vmatpush2.bf16.xpose.msra.mxu0 %v10995
      %11236 = vmatprep.subr.bf16.mxu0 0
      %11237 = vmatpush2.bf16.xpose.msra.mxu0 %v10994
      %11238 = vmatprep.subr.bf16.mxu0 0
      %11239 = vmatpush2.bf16.xpose.msra.mxu0 %v10993
      %11240 = vmatprep.subr.bf16.mxu0 0
      %11241 = vmatpush2.bf16.xpose.msra.mxu0 %v10992
      %11242 = vmatprep.subr.bf16.mxu0 0
      %11243 = vmatpush2.bf16.xpose.msra.mxu0 %v10991
      %11244 = vmatprep.subr.bf16.mxu0 0
      %11245 = vmatpush2.bf16.xpose.msra.mxu0 %v10990
      %11246 = vmatprep.mubr.bf16.mxu0 0
      %11247 = vmatmul.mubr.bf16.gmra.mxu0 %v11207
      %v11248 = vpop.f32.mrf.mxu0
      %v11249 = vadd.f32 %v11212, %v11248
      %v11250 = vpop.f32.mrf.mxu0
      %v11251 = vadd.f32 %v11212, %v11250
      %v11252 = vpop.f32.mrf.mxu0
      %v11253 = vpop.f32.mrf.mxu0
      %11254 = vdwg.mxu0
      %11255 = vst [vmem:[%s496] sm:$0xff] %v11249
      %11256 = vst [vmem:[%s496 + $0x8] sm:$0xff] %v11251
      %11257 = vmatprep.subr.bf16.mxu0 0
      %11258 = vmatpush1.bf16.xpose.msra.mxu0 %v11198
      %11259 = vmatprep.subr.bf16.mxu0 0
      %11260 = vmatpush1.bf16.xpose.msra.mxu0 %v11197
      %11261 = vmatprep.subr.bf16.mxu0 0
      %11262 = vmatpush1.bf16.xpose.msra.mxu0 %v11196
      %11263 = vmatprep.subr.bf16.mxu0 0
      %11264 = vmatpush1.bf16.xpose.msra.mxu0 %v11195
      %11265 = vmatprep.subr.bf16.mxu0 0
      %11266 = vmatpush1.bf16.xpose.msra.mxu0 %v11194
      %11267 = vmatprep.subr.bf16.mxu0 0
      %11268 = vmatpush1.bf16.xpose.msra.mxu0 %v11193
      %11269 = vmatprep.subr.bf16.mxu0 0
      %11270 = vmatpush1.bf16.xpose.msra.mxu0 %v11192
      %11271 = vmatprep.subr.bf16.mxu0 0
      %11272 = vmatpush1.bf16.xpose.msra.mxu0 %v11191
      %11273 = vmatprep.subr.bf16.mxu0 0
      %11274 = vmatpush2.bf16.xpose.msra.mxu0 %v11206
      %11275 = vmatprep.subr.bf16.mxu0 0
      %11276 = vmatpush2.bf16.xpose.msra.mxu0 %v11205
      %11277 = vmatprep.subr.bf16.mxu0 0
      %11278 = vmatpush2.bf16.xpose.msra.mxu0 %v11204
      %11279 = vmatprep.subr.bf16.mxu0 0
      %11280 = vmatpush2.bf16.xpose.msra.mxu0 %v11203
      %11281 = vmatprep.subr.bf16.mxu0 0
      %11282 = vmatpush2.bf16.xpose.msra.mxu0 %v11202
      %11283 = vmatprep.subr.bf16.mxu0 0
      %11284 = vmatpush2.bf16.xpose.msra.mxu0 %v11201
      %11285 = vmatprep.subr.bf16.mxu0 0
      %11286 = vmatpush2.bf16.xpose.msra.mxu0 %v11200
      %11287 = vmatprep.subr.bf16.mxu0 0
      %11288 = vmatpush2.bf16.xpose.msra.mxu0 %v11199
      %11289 = vmatprep.mubr.bf16.mxu0 0
      %11290 = vmatmul.mubr.bf16.gmra.mxu0 %v11207
      %v11291 = vpop.f32.mrf.mxu0
      %v11292 = vadd.f32 %v11212, %v11291
      %v11293 = vpop.f32.mrf.mxu0
      %v11294 = vadd.f32 %v11212, %v11293
      %v11295 = vpop.f32.mrf.mxu0
      %v11296 = vpop.f32.mrf.mxu0
      %11297 = vdwg.mxu0
      %11298 = vst [vmem:[%s496 + $0x10] sm:$0xff] %v11292
      %11299 = vst [vmem:[%s496 + $0x18] sm:$0xff] %v11294
      %s11300 = smul.u32 4, %s26
      %p11301 = scmp.lt.s32.totalorder %s11300, 7
      %s11302 = scalar_select %p11301, %s11300, 7
      %s11303 = smul.addr %s11302, 8
      %s11304 = scalar_lea.vmem %s15, %s11303
      // Predicated region
      $region81: #{mlp_forward.1} parent=79 // pred_check
        %p11305 = pneg %p364
      $region82: #{mlp_forward.1} parent=79 // pred_check_branch
        %11307 = sbr.rel (%p11305) target = $region84
      $region83: #{mlp_forward.1} parent=79 // pred_region
        %s11308 = smul.u32 4, %s26
      $region84: #{mlp_forward.1} parent=79 // pred_fallthru
        _
    $region80: #{mlp_forward.1} parent=5 // pred_fallthru
      _
    %p11309 = scmp.le.s32.totalorder 2, %s21
    // Predicated region
    $region85: #{mlp_forward.1} parent=5 // pred_check
      %p11310 = pneg %p11309
    $region86: #{mlp_forward.1} parent=5 // pred_check_branch
      %11312 = sbr.rel (%p11310) target = $region88
    $region87: #{mlp_forward.1} parent=5 // pred_region
      %s11313 = ssub.s32 %s21, 2
      // Predicated region
      $region89: #{mlp_forward.1} parent=87 // pred_check
        %p11314 = pneg %p370
      $region90: #{mlp_forward.1} parent=87 // pred_check_branch
        %11316 = sbr.rel (%p11314) target = $region92
      $region91: #{mlp_forward.1} parent=87 // pred_region
        %s11317 = smul.u32 4, %s27
        %p11318 = scmp.lt.s32.totalorder %s11317, 7
        %s11319 = scalar_select %p11318, %s11317, 7
        %s11320 = smul.addr %s11319, 8
        %s11321 = scalar_lea.vmem %s15, %s11320
      $region92: #{mlp_forward.1} parent=87 // pred_fallthru
        _
    $region88: #{mlp_forward.1} parent=5 // pred_fallthru
      _
  $region6: #{mlp_forward.1} parent=0 // loop_footer
    %s25 = sadd.s32 1, %s21
  $region7: #{mlp_forward.1} parent=0 // loop_footer_branch
    %20 = sbr.rel target = $region3
  $region8: #{mlp_forward.1} parent=0 // loop_exit
    _

</llo_original>
